<compile_context>
chip_gen: v7x
topology: tpu7x:2x2x1
jax: 0.10.0
libtpu: 0.0.40
codegen_flags: <defaults>
</compile_context>

<pallas_src>
import jax
import jax.numpy as jnp
from jax import lax
from jax.experimental import pallas as pl
from jax.experimental.pallas import tpu as pltpu


# ----------------------------- fused Pallas kernel ---------------------------

def cnn3prv_kernel(xcol_ref, w1_ref, b1_ref, w2_ref, b2_ref, w3_ref, b3_ref,
                   w4_ref, b4_ref, w5_ref, b5_ref, wo_ref, bo_ref, y_ref):
    # xcol_ref: (N*81, 27)  im2col of padded layer-1 input (cols = kh,kw,cin)
    # w1_ref:   (27, 16)            b1_ref: (1, 16)
    # w2..w4:   (9, Cin, Cout)      b*:     (1, Cout)
    # w5_ref:   (1152, 256)         b5_ref: (1, 256)
    # wo_ref:   (256, 1)            bo_ref: (1, 1)
    # y_ref:    (N, 1)
    n = y_ref.shape[0]

    def conv3x3_relu(a4d, w_ref, b_ref):
        # a4d: (N, Hin, Win, Cin) value; 3x3 "valid" conv + bias + ReLU.
        _, hin, win, cin = a4d.shape
        cout = w_ref.shape[2]
        hout, wout = hin - 2, win - 2
        rows = n * hout * wout
        acc = jnp.zeros((rows, cout), jnp.float32)
        for t in range(9):                       # static unroll over taps
            kh, kw = divmod(t, 3)
            patch = a4d[:, kh:kh + hout, kw:kw + wout, :].reshape(rows, cin)
            acc = acc + jnp.dot(patch, w_ref[t],
                                preferred_element_type=jnp.float32)
        return jnp.maximum(acc + b_ref[...], 0.0)   # (rows, cout), kept 2-D

    # Layer 1 (pad=1): one lane-dense matmul on the pre-built im2col slab.
    a1 = jnp.maximum(
        jnp.dot(xcol_ref[...], w1_ref[...],
                preferred_element_type=jnp.float32) + b1_ref[...],
        0.0)                                                    # (N*81, 16)

    a2 = conv3x3_relu(a1.reshape(n, 9, 9, 16), w2_ref, b2_ref)  # (N*49, 32)
    a3 = conv3x3_relu(a2.reshape(n, 7, 7, 32), w3_ref, b3_ref)  # (N*25, 64)
    a4 = conv3x3_relu(a3.reshape(n, 5, 5, 64), w4_ref, b4_ref)  # (N*9, 128)

    # Layer 5: 3x3 input, 3x3 kernel, 1x1 output -> im2col == full flatten:
    # a single (N, 1152) @ (1152, 256) matmul, output kept lane-dense (256).
    a4_col = a4.reshape(n, 9 * 128)
    a5 = jnp.maximum(
        jnp.dot(a4_col, w5_ref[...],
                preferred_element_type=jnp.float32) + b5_ref[...],
        0.0)                                                    # (N, 256)

    # Flatten of a 1x1x256 map is the identity on (N, 256); final Linear.
    y_ref[...] = (jnp.dot(a5, wo_ref[...],
                          preferred_element_type=jnp.float32) + bo_ref[...])


# ---------------------------------- wrapper ----------------------------------

def cnn_3prv_forward(x_nchw, params):
    n = x_nchw.shape[0]

    # Layer-1 prep (NCHW->NHWC, pad=1, im2col) as one tiny fused XLA op chain
    # feeding a lane-dense (N*81, 27) slab into the fused kernel.
    x = jnp.transpose(x_nchw, (0, 2, 3, 1))                     # (N, 9, 9, 3)
    xp = jnp.pad(x, ((0, 0), (1, 1), (1, 1), (0, 0)))           # (N, 11, 11, 3)
    taps = [xp[:, kh:kh + 9, kw:kw + 9, :]
            for kh in range(3) for kw in range(3)]
    x_col = jnp.concatenate(taps, axis=-1).reshape(n * 81, 27)

    # Pre-flatten weights once so in-kernel access is w_ref[t] / 2-D slabs.
    args = (
        x_col,
        params["w1"].reshape(27, 16),        params["b1"].reshape(1, 16),
        params["w2"].reshape(9, 16, 32),     params["b2"].reshape(1, 32),
        params["w3"].reshape(9, 32, 64),     params["b3"].reshape(1, 64),
        params["w4"].reshape(9, 64, 128),    params["b4"].reshape(1, 128),
        params["w5"].reshape(9 * 128, 256),  params["b5"].reshape(1, 256),
        params["w_out"],                     params["b_out"].reshape(1, 1),
    )

    vmem = pl.BlockSpec(memory_space=pltpu.MemorySpace.VMEM)
    # TODO(synk): if batch size grows, add a grid over N with
    # dimension_semantics=("parallel",) so v7x can shard across its 2 TCs.
    return pl.pallas_call(
        cnn3prv_kernel,
        out_shape=jax.ShapeDtypeStruct((n, 1), jnp.float32),
        in_specs=[vmem] * len(args),
        out_specs=vmem,
    )(*args)


# ------------------------- deterministic params ------------------------------

def init_params(key):
    def conv_w(k, kh, kw, cin, cout):
        scale = 1.0 / jnp.sqrt(cin * kh * kw)
        return scale * jax.random.normal(k, (kh, kw, cin, cout), jnp.float32)

    ks = jax.random.split(key, 12)
    return {
        "w1": conv_w(ks[0], 3, 3, 3, 16),
        "b1": 0.01 * jax.random.normal(ks[1], (16,), jnp.float32),
        "w2": conv_w(ks[2], 3, 3, 16, 32),
        "b2": 0.01 * jax.random.normal(ks[3], (32,), jnp.float32),
        "w3": conv_w(ks[4], 3, 3, 32, 64),
        "b3": 0.01 * jax.random.normal(ks[5], (64,), jnp.float32),
        "w4": conv_w(ks[6], 3, 3, 64, 128),
        "b4": 0.01 * jax.random.normal(ks[7], (128,), jnp.float32),
        "w5": conv_w(ks[8], 3, 3, 128, 256),
        "b5": 0.01 * jax.random.normal(ks[9], (256,), jnp.float32),
        "w_out": (1.0 / jnp.sqrt(256.0))
                 * jax.random.normal(ks[10], (256, 1), jnp.float32),
        "b_out": 0.01 * jax.random.normal(ks[11], (1,), jnp.float32),
    }


# --------------------------- pure-JAX reference ------------------------------

def reference_forward(x_nchw, params):
    x = jnp.transpose(x_nchw, (0, 2, 3, 1))
    dn = ("NHWC", "HWIO", "NHWC")

    def conv(x, w, b, pad):
        y = lax.conv_general_dilated(
            x, w, window_strides=(1, 1),
            padding=((pad, pad), (pad, pad)),
            dimension_numbers=dn, precision=lax.Precision.HIGHEST)
        return jnp.maximum(y + b, 0.0)

    x = conv(x, params["w1"], params["b1"], 1)
    x = conv(x, params["w2"], params["b2"], 0)
    x = conv(x, params["w3"], params["b3"], 0)
    x = conv(x, params["w4"], params["b4"], 0)
    x = conv(x, params["w5"], params["b5"], 0)
    x = x.reshape(x.shape[0], -1)
    return x @ params["w_out"] + params["b_out"].reshape(1, -1)


# ---------------------------------- main -------------------------------------

if __name__ == "__main__":
    key = jax.random.PRNGKey(0)
    k_params, k_x = jax.random.split(key)
    params = init_params(k_params)

    # Linear(256, 1) requires a 1x1 spatial map after the five convs
    # => 9x9 input, 3 channels, NCHW like PyTorch.
    x = jax.random.normal(k_x, (2, 3, 9, 9), jnp.float32)

    fwd = jax.jit(cnn_3prv_forward)
    out = jax.block_until_ready(fwd(x, params))

    ref = jax.block_until_ready(reference_forward(x, params))
    assert out.shape == (2, 1), out.shape
    assert jnp.allclose(out, ref, rtol=1e-3, atol=1e-3), (out, ref)

    print("KERNEL_OK")
</pallas_src>

<mosaic_0001>
module attributes {stable_mosaic.version = 11 : i64} {
  func.func @cnn3prv_kernel(%arg0: memref<162x27xf32, #tpu.memory_space<vmem>>, %arg1: memref<27x16xf32, #tpu.memory_space<vmem>>, %arg2: memref<1x16xf32, #tpu.memory_space<vmem>>, %arg3: memref<9x16x32xf32, #tpu.memory_space<vmem>>, %arg4: memref<1x32xf32, #tpu.memory_space<vmem>>, %arg5: memref<9x32x64xf32, #tpu.memory_space<vmem>>, %arg6: memref<1x64xf32, #tpu.memory_space<vmem>>, %arg7: memref<9x64x128xf32, #tpu.memory_space<vmem>>, %arg8: memref<1x128xf32, #tpu.memory_space<vmem>>, %arg9: memref<1152x256xf32, #tpu.memory_space<vmem>>, %arg10: memref<1x256xf32, #tpu.memory_space<vmem>>, %arg11: memref<256x1xf32, #tpu.memory_space<vmem>>, %arg12: memref<1x1xf32, #tpu.memory_space<vmem>>, %arg13: memref<2x1xf32, #tpu.memory_space<vmem>>) attributes {dimension_semantics = [], scalar_prefetch = 0 : i64, scratch_operands = 0 : i64, tpu.core_type = #tpu.core_type<tc>} {
    %c0 = arith.constant 0 : index
    %c0_0 = arith.constant 0 : index
    %0 = vector.load %arg0[%c0, %c0_0] : memref<162x27xf32, #tpu.memory_space<vmem>>, vector<162x27xf32>
    %c0_1 = arith.constant 0 : index
    %c0_2 = arith.constant 0 : index
    %1 = vector.load %arg1[%c0_1, %c0_2] : memref<27x16xf32, #tpu.memory_space<vmem>>, vector<27x16xf32>
    %cst = arith.constant dense<0.000000e+00> : vector<162x16xf32>
    %2 = tpu.matmul %0, %1, %cst {dimension_numbers = #tpu.dot_dimension_numbers<[1], [0], [0], [1], [0, 0, 1, 1], [], []>} : vector<162x27xf32>, vector<27x16xf32>, vector<162x16xf32> -> vector<162x16xf32>
    %c0_3 = arith.constant 0 : index
    %c0_4 = arith.constant 0 : index
    %3 = vector.load %arg2[%c0_3, %c0_4] : memref<1x16xf32, #tpu.memory_space<vmem>>, vector<1x16xf32>
    %4 = vector.broadcast %3 : vector<1x16xf32> to vector<162x16xf32>
    %5 = arith.addf %2, %4 : vector<162x16xf32>
    %cst_5 = arith.constant 0.000000e+00 : f32
    %6 = vector.broadcast %cst_5 : f32 to vector<162x16xf32>
    %7 = arith.maximumf %5, %6 : vector<162x16xf32>
    %8 = vector.shape_cast %7 : vector<162x16xf32> to vector<2x9x9x16xf32>
    %cst_6 = arith.constant 0.000000e+00 : f32
    %9 = vector.broadcast %cst_6 : f32 to vector<98x32xf32>
    %10 = vector.extract_strided_slice %8 {offsets = [0, 0, 0, 0], sizes = [2, 7, 7, 16], strides = [1, 1, 1, 1]} : vector<2x9x9x16xf32> to vector<2x7x7x16xf32>
    %11 = vector.shape_cast %10 : vector<2x7x7x16xf32> to vector<98x16xf32>
    %c0_7 = arith.constant 0 : index
    %c0_8 = arith.constant 0 : index
    %c0_9 = arith.constant 0 : index
    %12 = vector.load %arg3[%c0_7, %c0_8, %c0_9] : memref<9x16x32xf32, #tpu.memory_space<vmem>>, vector<1x16x32xf32>
    %13 = vector.shape_cast %12 : vector<1x16x32xf32> to vector<16x32xf32>
    %cst_10 = arith.constant dense<0.000000e+00> : vector<98x32xf32>
    %14 = tpu.matmul %11, %13, %cst_10 {dimension_numbers = #tpu.dot_dimension_numbers<[1], [0], [0], [1], [0, 0, 1, 1], [], []>} : vector<98x16xf32>, vector<16x32xf32>, vector<98x32xf32> -> vector<98x32xf32>
    %15 = arith.addf %9, %14 : vector<98x32xf32>
    %16 = vector.extract_strided_slice %8 {offsets = [0, 0, 1, 0], sizes = [2, 7, 7, 16], strides = [1, 1, 1, 1]} : vector<2x9x9x16xf32> to vector<2x7x7x16xf32>
    %17 = vector.shape_cast %16 : vector<2x7x7x16xf32> to vector<98x16xf32>
    %c1 = arith.constant 1 : index
    %c0_11 = arith.constant 0 : index
    %c0_12 = arith.constant 0 : index
    %18 = vector.load %arg3[%c1, %c0_11, %c0_12] : memref<9x16x32xf32, #tpu.memory_space<vmem>>, vector<1x16x32xf32>
    %19 = vector.shape_cast %18 : vector<1x16x32xf32> to vector<16x32xf32>
    %cst_13 = arith.constant dense<0.000000e+00> : vector<98x32xf32>
    %20 = tpu.matmul %17, %19, %cst_13 {dimension_numbers = #tpu.dot_dimension_numbers<[1], [0], [0], [1], [0, 0, 1, 1], [], []>} : vector<98x16xf32>, vector<16x32xf32>, vector<98x32xf32> -> vector<98x32xf32>
    %21 = arith.addf %15, %20 : vector<98x32xf32>
    %22 = vector.extract_strided_slice %8 {offsets = [0, 0, 2, 0], sizes = [2, 7, 7, 16], strides = [1, 1, 1, 1]} : vector<2x9x9x16xf32> to vector<2x7x7x16xf32>
    %23 = vector.shape_cast %22 : vector<2x7x7x16xf32> to vector<98x16xf32>
    %c2 = arith.constant 2 : index
    %c0_14 = arith.constant 0 : index
    %c0_15 = arith.constant 0 : index
    %24 = vector.load %arg3[%c2, %c0_14, %c0_15] : memref<9x16x32xf32, #tpu.memory_space<vmem>>, vector<1x16x32xf32>
    %25 = vector.shape_cast %24 : vector<1x16x32xf32> to vector<16x32xf32>
    %cst_16 = arith.constant dense<0.000000e+00> : vector<98x32xf32>
    %26 = tpu.matmul %23, %25, %cst_16 {dimension_numbers = #tpu.dot_dimension_numbers<[1], [0], [0], [1], [0, 0, 1, 1], [], []>} : vector<98x16xf32>, vector<16x32xf32>, vector<98x32xf32> -> vector<98x32xf32>
    %27 = arith.addf %21, %26 : vector<98x32xf32>
    %28 = vector.extract_strided_slice %8 {offsets = [0, 1, 0, 0], sizes = [2, 7, 7, 16], strides = [1, 1, 1, 1]} : vector<2x9x9x16xf32> to vector<2x7x7x16xf32>
    %29 = vector.shape_cast %28 : vector<2x7x7x16xf32> to vector<98x16xf32>
    %c3 = arith.constant 3 : index
    %c0_17 = arith.constant 0 : index
    %c0_18 = arith.constant 0 : index
    %30 = vector.load %arg3[%c3, %c0_17, %c0_18] : memref<9x16x32xf32, #tpu.memory_space<vmem>>, vector<1x16x32xf32>
    %31 = vector.shape_cast %30 : vector<1x16x32xf32> to vector<16x32xf32>
    %cst_19 = arith.constant dense<0.000000e+00> : vector<98x32xf32>
    %32 = tpu.matmul %29, %31, %cst_19 {dimension_numbers = #tpu.dot_dimension_numbers<[1], [0], [0], [1], [0, 0, 1, 1], [], []>} : vector<98x16xf32>, vector<16x32xf32>, vector<98x32xf32> -> vector<98x32xf32>
    %33 = arith.addf %27, %32 : vector<98x32xf32>
    %34 = vector.extract_strided_slice %8 {offsets = [0, 1, 1, 0], sizes = [2, 7, 7, 16], strides = [1, 1, 1, 1]} : vector<2x9x9x16xf32> to vector<2x7x7x16xf32>
    %35 = vector.shape_cast %34 : vector<2x7x7x16xf32> to vector<98x16xf32>
    %c4 = arith.constant 4 : index
    %c0_20 = arith.constant 0 : index
    %c0_21 = arith.constant 0 : index
    %36 = vector.load %arg3[%c4, %c0_20, %c0_21] : memref<9x16x32xf32, #tpu.memory_space<vmem>>, vector<1x16x32xf32>
    %37 = vector.shape_cast %36 : vector<1x16x32xf32> to vector<16x32xf32>
    %cst_22 = arith.constant dense<0.000000e+00> : vector<98x32xf32>
    %38 = tpu.matmul %35, %37, %cst_22 {dimension_numbers = #tpu.dot_dimension_numbers<[1], [0], [0], [1], [0, 0, 1, 1], [], []>} : vector<98x16xf32>, vector<16x32xf32>, vector<98x32xf32> -> vector<98x32xf32>
    %39 = arith.addf %33, %38 : vector<98x32xf32>
    %40 = vector.extract_strided_slice %8 {offsets = [0, 1, 2, 0], sizes = [2, 7, 7, 16], strides = [1, 1, 1, 1]} : vector<2x9x9x16xf32> to vector<2x7x7x16xf32>
    %41 = vector.shape_cast %40 : vector<2x7x7x16xf32> to vector<98x16xf32>
    %c5 = arith.constant 5 : index
    %c0_23 = arith.constant 0 : index
    %c0_24 = arith.constant 0 : index
    %42 = vector.load %arg3[%c5, %c0_23, %c0_24] : memref<9x16x32xf32, #tpu.memory_space<vmem>>, vector<1x16x32xf32>
    %43 = vector.shape_cast %42 : vector<1x16x32xf32> to vector<16x32xf32>
    %cst_25 = arith.constant dense<0.000000e+00> : vector<98x32xf32>
    %44 = tpu.matmul %41, %43, %cst_25 {dimension_numbers = #tpu.dot_dimension_numbers<[1], [0], [0], [1], [0, 0, 1, 1], [], []>} : vector<98x16xf32>, vector<16x32xf32>, vector<98x32xf32> -> vector<98x32xf32>
    %45 = arith.addf %39, %44 : vector<98x32xf32>
    %46 = vector.extract_strided_slice %8 {offsets = [0, 2, 0, 0], sizes = [2, 7, 7, 16], strides = [1, 1, 1, 1]} : vector<2x9x9x16xf32> to vector<2x7x7x16xf32>
    %47 = vector.shape_cast %46 : vector<2x7x7x16xf32> to vector<98x16xf32>
    %c6 = arith.constant 6 : index
    %c0_26 = arith.constant 0 : index
    %c0_27 = arith.constant 0 : index
    %48 = vector.load %arg3[%c6, %c0_26, %c0_27] : memref<9x16x32xf32, #tpu.memory_space<vmem>>, vector<1x16x32xf32>
    %49 = vector.shape_cast %48 : vector<1x16x32xf32> to vector<16x32xf32>
    %cst_28 = arith.constant dense<0.000000e+00> : vector<98x32xf32>
    %50 = tpu.matmul %47, %49, %cst_28 {dimension_numbers = #tpu.dot_dimension_numbers<[1], [0], [0], [1], [0, 0, 1, 1], [], []>} : vector<98x16xf32>, vector<16x32xf32>, vector<98x32xf32> -> vector<98x32xf32>
    %51 = arith.addf %45, %50 : vector<98x32xf32>
    %52 = vector.extract_strided_slice %8 {offsets = [0, 2, 1, 0], sizes = [2, 7, 7, 16], strides = [1, 1, 1, 1]} : vector<2x9x9x16xf32> to vector<2x7x7x16xf32>
    %53 = vector.shape_cast %52 : vector<2x7x7x16xf32> to vector<98x16xf32>
    %c7 = arith.constant 7 : index
    %c0_29 = arith.constant 0 : index
    %c0_30 = arith.constant 0 : index
    %54 = vector.load %arg3[%c7, %c0_29, %c0_30] : memref<9x16x32xf32, #tpu.memory_space<vmem>>, vector<1x16x32xf32>
    %55 = vector.shape_cast %54 : vector<1x16x32xf32> to vector<16x32xf32>
    %cst_31 = arith.constant dense<0.000000e+00> : vector<98x32xf32>
    %56 = tpu.matmul %53, %55, %cst_31 {dimension_numbers = #tpu.dot_dimension_numbers<[1], [0], [0], [1], [0, 0, 1, 1], [], []>} : vector<98x16xf32>, vector<16x32xf32>, vector<98x32xf32> -> vector<98x32xf32>
    %57 = arith.addf %51, %56 : vector<98x32xf32>
    %58 = vector.extract_strided_slice %8 {offsets = [0, 2, 2, 0], sizes = [2, 7, 7, 16], strides = [1, 1, 1, 1]} : vector<2x9x9x16xf32> to vector<2x7x7x16xf32>
    %59 = vector.shape_cast %58 : vector<2x7x7x16xf32> to vector<98x16xf32>
    %c8 = arith.constant 8 : index
    %c0_32 = arith.constant 0 : index
    %c0_33 = arith.constant 0 : index
    %60 = vector.load %arg3[%c8, %c0_32, %c0_33] : memref<9x16x32xf32, #tpu.memory_space<vmem>>, vector<1x16x32xf32>
    %61 = vector.shape_cast %60 : vector<1x16x32xf32> to vector<16x32xf32>
    %cst_34 = arith.constant dense<0.000000e+00> : vector<98x32xf32>
    %62 = tpu.matmul %59, %61, %cst_34 {dimension_numbers = #tpu.dot_dimension_numbers<[1], [0], [0], [1], [0, 0, 1, 1], [], []>} : vector<98x16xf32>, vector<16x32xf32>, vector<98x32xf32> -> vector<98x32xf32>
    %63 = arith.addf %57, %62 : vector<98x32xf32>
    %c0_35 = arith.constant 0 : index
    %c0_36 = arith.constant 0 : index
    %64 = vector.load %arg4[%c0_35, %c0_36] : memref<1x32xf32, #tpu.memory_space<vmem>>, vector<1x32xf32>
    %65 = vector.broadcast %64 : vector<1x32xf32> to vector<98x32xf32>
    %66 = arith.addf %63, %65 : vector<98x32xf32>
    %cst_37 = arith.constant 0.000000e+00 : f32
    %67 = vector.broadcast %cst_37 : f32 to vector<98x32xf32>
    %68 = arith.maximumf %66, %67 : vector<98x32xf32>
    %69 = vector.shape_cast %68 : vector<98x32xf32> to vector<2x7x7x32xf32>
    %cst_38 = arith.constant 0.000000e+00 : f32
    %70 = vector.broadcast %cst_38 : f32 to vector<50x64xf32>
    %71 = vector.extract_strided_slice %69 {offsets = [0, 0, 0, 0], sizes = [2, 5, 5, 32], strides = [1, 1, 1, 1]} : vector<2x7x7x32xf32> to vector<2x5x5x32xf32>
    %72 = vector.shape_cast %71 : vector<2x5x5x32xf32> to vector<50x32xf32>
    %c0_39 = arith.constant 0 : index
    %c0_40 = arith.constant 0 : index
    %c0_41 = arith.constant 0 : index
    %73 = vector.load %arg5[%c0_39, %c0_40, %c0_41] : memref<9x32x64xf32, #tpu.memory_space<vmem>>, vector<1x32x64xf32>
    %74 = vector.shape_cast %73 : vector<1x32x64xf32> to vector<32x64xf32>
    %cst_42 = arith.constant dense<0.000000e+00> : vector<50x64xf32>
    %75 = tpu.matmul %72, %74, %cst_42 {dimension_numbers = #tpu.dot_dimension_numbers<[1], [0], [0], [1], [0, 0, 1, 1], [], []>} : vector<50x32xf32>, vector<32x64xf32>, vector<50x64xf32> -> vector<50x64xf32>
    %76 = arith.addf %70, %75 : vector<50x64xf32>
    %77 = vector.extract_strided_slice %69 {offsets = [0, 0, 1, 0], sizes = [2, 5, 5, 32], strides = [1, 1, 1, 1]} : vector<2x7x7x32xf32> to vector<2x5x5x32xf32>
    %78 = vector.shape_cast %77 : vector<2x5x5x32xf32> to vector<50x32xf32>
    %c1_43 = arith.constant 1 : index
    %c0_44 = arith.constant 0 : index
    %c0_45 = arith.constant 0 : index
    %79 = vector.load %arg5[%c1_43, %c0_44, %c0_45] : memref<9x32x64xf32, #tpu.memory_space<vmem>>, vector<1x32x64xf32>
    %80 = vector.shape_cast %79 : vector<1x32x64xf32> to vector<32x64xf32>
    %cst_46 = arith.constant dense<0.000000e+00> : vector<50x64xf32>
    %81 = tpu.matmul %78, %80, %cst_46 {dimension_numbers = #tpu.dot_dimension_numbers<[1], [0], [0], [1], [0, 0, 1, 1], [], []>} : vector<50x32xf32>, vector<32x64xf32>, vector<50x64xf32> -> vector<50x64xf32>
    %82 = arith.addf %76, %81 : vector<50x64xf32>
    %83 = vector.extract_strided_slice %69 {offsets = [0, 0, 2, 0], sizes = [2, 5, 5, 32], strides = [1, 1, 1, 1]} : vector<2x7x7x32xf32> to vector<2x5x5x32xf32>
    %84 = vector.shape_cast %83 : vector<2x5x5x32xf32> to vector<50x32xf32>
    %c2_47 = arith.constant 2 : index
    %c0_48 = arith.constant 0 : index
    %c0_49 = arith.constant 0 : index
    %85 = vector.load %arg5[%c2_47, %c0_48, %c0_49] : memref<9x32x64xf32, #tpu.memory_space<vmem>>, vector<1x32x64xf32>
    %86 = vector.shape_cast %85 : vector<1x32x64xf32> to vector<32x64xf32>
    %cst_50 = arith.constant dense<0.000000e+00> : vector<50x64xf32>
    %87 = tpu.matmul %84, %86, %cst_50 {dimension_numbers = #tpu.dot_dimension_numbers<[1], [0], [0], [1], [0, 0, 1, 1], [], []>} : vector<50x32xf32>, vector<32x64xf32>, vector<50x64xf32> -> vector<50x64xf32>
    %88 = arith.addf %82, %87 : vector<50x64xf32>
    %89 = vector.extract_strided_slice %69 {offsets = [0, 1, 0, 0], sizes = [2, 5, 5, 32], strides = [1, 1, 1, 1]} : vector<2x7x7x32xf32> to vector<2x5x5x32xf32>
    %90 = vector.shape_cast %89 : vector<2x5x5x32xf32> to vector<50x32xf32>
    %c3_51 = arith.constant 3 : index
    %c0_52 = arith.constant 0 : index
    %c0_53 = arith.constant 0 : index
    %91 = vector.load %arg5[%c3_51, %c0_52, %c0_53] : memref<9x32x64xf32, #tpu.memory_space<vmem>>, vector<1x32x64xf32>
    %92 = vector.shape_cast %91 : vector<1x32x64xf32> to vector<32x64xf32>
    %cst_54 = arith.constant dense<0.000000e+00> : vector<50x64xf32>
    %93 = tpu.matmul %90, %92, %cst_54 {dimension_numbers = #tpu.dot_dimension_numbers<[1], [0], [0], [1], [0, 0, 1, 1], [], []>} : vector<50x32xf32>, vector<32x64xf32>, vector<50x64xf32> -> vector<50x64xf32>
    %94 = arith.addf %88, %93 : vector<50x64xf32>
    %95 = vector.extract_strided_slice %69 {offsets = [0, 1, 1, 0], sizes = [2, 5, 5, 32], strides = [1, 1, 1, 1]} : vector<2x7x7x32xf32> to vector<2x5x5x32xf32>
    %96 = vector.shape_cast %95 : vector<2x5x5x32xf32> to vector<50x32xf32>
    %c4_55 = arith.constant 4 : index
    %c0_56 = arith.constant 0 : index
    %c0_57 = arith.constant 0 : index
    %97 = vector.load %arg5[%c4_55, %c0_56, %c0_57] : memref<9x32x64xf32, #tpu.memory_space<vmem>>, vector<1x32x64xf32>
    %98 = vector.shape_cast %97 : vector<1x32x64xf32> to vector<32x64xf32>
    %cst_58 = arith.constant dense<0.000000e+00> : vector<50x64xf32>
    %99 = tpu.matmul %96, %98, %cst_58 {dimension_numbers = #tpu.dot_dimension_numbers<[1], [0], [0], [1], [0, 0, 1, 1], [], []>} : vector<50x32xf32>, vector<32x64xf32>, vector<50x64xf32> -> vector<50x64xf32>
    %100 = arith.addf %94, %99 : vector<50x64xf32>
    %101 = vector.extract_strided_slice %69 {offsets = [0, 1, 2, 0], sizes = [2, 5, 5, 32], strides = [1, 1, 1, 1]} : vector<2x7x7x32xf32> to vector<2x5x5x32xf32>
    %102 = vector.shape_cast %101 : vector<2x5x5x32xf32> to vector<50x32xf32>
    %c5_59 = arith.constant 5 : index
    %c0_60 = arith.constant 0 : index
    %c0_61 = arith.constant 0 : index
    %103 = vector.load %arg5[%c5_59, %c0_60, %c0_61] : memref<9x32x64xf32, #tpu.memory_space<vmem>>, vector<1x32x64xf32>
    %104 = vector.shape_cast %103 : vector<1x32x64xf32> to vector<32x64xf32>
    %cst_62 = arith.constant dense<0.000000e+00> : vector<50x64xf32>
    %105 = tpu.matmul %102, %104, %cst_62 {dimension_numbers = #tpu.dot_dimension_numbers<[1], [0], [0], [1], [0, 0, 1, 1], [], []>} : vector<50x32xf32>, vector<32x64xf32>, vector<50x64xf32> -> vector<50x64xf32>
    %106 = arith.addf %100, %105 : vector<50x64xf32>
    %107 = vector.extract_strided_slice %69 {offsets = [0, 2, 0, 0], sizes = [2, 5, 5, 32], strides = [1, 1, 1, 1]} : vector<2x7x7x32xf32> to vector<2x5x5x32xf32>
    %108 = vector.shape_cast %107 : vector<2x5x5x32xf32> to vector<50x32xf32>
    %c6_63 = arith.constant 6 : index
    %c0_64 = arith.constant 0 : index
    %c0_65 = arith.constant 0 : index
    %109 = vector.load %arg5[%c6_63, %c0_64, %c0_65] : memref<9x32x64xf32, #tpu.memory_space<vmem>>, vector<1x32x64xf32>
    %110 = vector.shape_cast %109 : vector<1x32x64xf32> to vector<32x64xf32>
    %cst_66 = arith.constant dense<0.000000e+00> : vector<50x64xf32>
    %111 = tpu.matmul %108, %110, %cst_66 {dimension_numbers = #tpu.dot_dimension_numbers<[1], [0], [0], [1], [0, 0, 1, 1], [], []>} : vector<50x32xf32>, vector<32x64xf32>, vector<50x64xf32> -> vector<50x64xf32>
    %112 = arith.addf %106, %111 : vector<50x64xf32>
    %113 = vector.extract_strided_slice %69 {offsets = [0, 2, 1, 0], sizes = [2, 5, 5, 32], strides = [1, 1, 1, 1]} : vector<2x7x7x32xf32> to vector<2x5x5x32xf32>
    %114 = vector.shape_cast %113 : vector<2x5x5x32xf32> to vector<50x32xf32>
    %c7_67 = arith.constant 7 : index
    %c0_68 = arith.constant 0 : index
    %c0_69 = arith.constant 0 : index
    %115 = vector.load %arg5[%c7_67, %c0_68, %c0_69] : memref<9x32x64xf32, #tpu.memory_space<vmem>>, vector<1x32x64xf32>
    %116 = vector.shape_cast %115 : vector<1x32x64xf32> to vector<32x64xf32>
    %cst_70 = arith.constant dense<0.000000e+00> : vector<50x64xf32>
    %117 = tpu.matmul %114, %116, %cst_70 {dimension_numbers = #tpu.dot_dimension_numbers<[1], [0], [0], [1], [0, 0, 1, 1], [], []>} : vector<50x32xf32>, vector<32x64xf32>, vector<50x64xf32> -> vector<50x64xf32>
    %118 = arith.addf %112, %117 : vector<50x64xf32>
    %119 = vector.extract_strided_slice %69 {offsets = [0, 2, 2, 0], sizes = [2, 5, 5, 32], strides = [1, 1, 1, 1]} : vector<2x7x7x32xf32> to vector<2x5x5x32xf32>
    %120 = vector.shape_cast %119 : vector<2x5x5x32xf32> to vector<50x32xf32>
    %c8_71 = arith.constant 8 : index
    %c0_72 = arith.constant 0 : index
    %c0_73 = arith.constant 0 : index
    %121 = vector.load %arg5[%c8_71, %c0_72, %c0_73] : memref<9x32x64xf32, #tpu.memory_space<vmem>>, vector<1x32x64xf32>
    %122 = vector.shape_cast %121 : vector<1x32x64xf32> to vector<32x64xf32>
    %cst_74 = arith.constant dense<0.000000e+00> : vector<50x64xf32>
    %123 = tpu.matmul %120, %122, %cst_74 {dimension_numbers = #tpu.dot_dimension_numbers<[1], [0], [0], [1], [0, 0, 1, 1], [], []>} : vector<50x32xf32>, vector<32x64xf32>, vector<50x64xf32> -> vector<50x64xf32>
    %124 = arith.addf %118, %123 : vector<50x64xf32>
    %c0_75 = arith.constant 0 : index
    %c0_76 = arith.constant 0 : index
    %125 = vector.load %arg6[%c0_75, %c0_76] : memref<1x64xf32, #tpu.memory_space<vmem>>, vector<1x64xf32>
    %126 = vector.broadcast %125 : vector<1x64xf32> to vector<50x64xf32>
    %127 = arith.addf %124, %126 : vector<50x64xf32>
    %cst_77 = arith.constant 0.000000e+00 : f32
    %128 = vector.broadcast %cst_77 : f32 to vector<50x64xf32>
    %129 = arith.maximumf %127, %128 : vector<50x64xf32>
    %130 = vector.shape_cast %129 : vector<50x64xf32> to vector<2x5x5x64xf32>
    %cst_78 = arith.constant 0.000000e+00 : f32
    %131 = vector.broadcast %cst_78 : f32 to vector<18x128xf32>
    %132 = vector.extract_strided_slice %130 {offsets = [0, 0, 0, 0], sizes = [2, 3, 3, 64], strides = [1, 1, 1, 1]} : vector<2x5x5x64xf32> to vector<2x3x3x64xf32>
    %133 = vector.shape_cast %132 : vector<2x3x3x64xf32> to vector<18x64xf32>
    %c0_79 = arith.constant 0 : index
    %c0_80 = arith.constant 0 : index
    %c0_81 = arith.constant 0 : index
    %134 = vector.load %arg7[%c0_79, %c0_80, %c0_81] : memref<9x64x128xf32, #tpu.memory_space<vmem>>, vector<1x64x128xf32>
    %135 = vector.shape_cast %134 : vector<1x64x128xf32> to vector<64x128xf32>
    %cst_82 = arith.constant dense<0.000000e+00> : vector<18x128xf32>
    %136 = tpu.matmul %133, %135, %cst_82 {dimension_numbers = #tpu.dot_dimension_numbers<[1], [0], [0], [1], [0, 0, 1, 1], [], []>} : vector<18x64xf32>, vector<64x128xf32>, vector<18x128xf32> -> vector<18x128xf32>
    %137 = arith.addf %131, %136 : vector<18x128xf32>
    %138 = vector.extract_strided_slice %130 {offsets = [0, 0, 1, 0], sizes = [2, 3, 3, 64], strides = [1, 1, 1, 1]} : vector<2x5x5x64xf32> to vector<2x3x3x64xf32>
    %139 = vector.shape_cast %138 : vector<2x3x3x64xf32> to vector<18x64xf32>
    %c1_83 = arith.constant 1 : index
    %c0_84 = arith.constant 0 : index
    %c0_85 = arith.constant 0 : index
    %140 = vector.load %arg7[%c1_83, %c0_84, %c0_85] : memref<9x64x128xf32, #tpu.memory_space<vmem>>, vector<1x64x128xf32>
    %141 = vector.shape_cast %140 : vector<1x64x128xf32> to vector<64x128xf32>
    %cst_86 = arith.constant dense<0.000000e+00> : vector<18x128xf32>
    %142 = tpu.matmul %139, %141, %cst_86 {dimension_numbers = #tpu.dot_dimension_numbers<[1], [0], [0], [1], [0, 0, 1, 1], [], []>} : vector<18x64xf32>, vector<64x128xf32>, vector<18x128xf32> -> vector<18x128xf32>
    %143 = arith.addf %137, %142 : vector<18x128xf32>
    %144 = vector.extract_strided_slice %130 {offsets = [0, 0, 2, 0], sizes = [2, 3, 3, 64], strides = [1, 1, 1, 1]} : vector<2x5x5x64xf32> to vector<2x3x3x64xf32>
    %145 = vector.shape_cast %144 : vector<2x3x3x64xf32> to vector<18x64xf32>
    %c2_87 = arith.constant 2 : index
    %c0_88 = arith.constant 0 : index
    %c0_89 = arith.constant 0 : index
    %146 = vector.load %arg7[%c2_87, %c0_88, %c0_89] : memref<9x64x128xf32, #tpu.memory_space<vmem>>, vector<1x64x128xf32>
    %147 = vector.shape_cast %146 : vector<1x64x128xf32> to vector<64x128xf32>
    %cst_90 = arith.constant dense<0.000000e+00> : vector<18x128xf32>
    %148 = tpu.matmul %145, %147, %cst_90 {dimension_numbers = #tpu.dot_dimension_numbers<[1], [0], [0], [1], [0, 0, 1, 1], [], []>} : vector<18x64xf32>, vector<64x128xf32>, vector<18x128xf32> -> vector<18x128xf32>
    %149 = arith.addf %143, %148 : vector<18x128xf32>
    %150 = vector.extract_strided_slice %130 {offsets = [0, 1, 0, 0], sizes = [2, 3, 3, 64], strides = [1, 1, 1, 1]} : vector<2x5x5x64xf32> to vector<2x3x3x64xf32>
    %151 = vector.shape_cast %150 : vector<2x3x3x64xf32> to vector<18x64xf32>
    %c3_91 = arith.constant 3 : index
    %c0_92 = arith.constant 0 : index
    %c0_93 = arith.constant 0 : index
    %152 = vector.load %arg7[%c3_91, %c0_92, %c0_93] : memref<9x64x128xf32, #tpu.memory_space<vmem>>, vector<1x64x128xf32>
    %153 = vector.shape_cast %152 : vector<1x64x128xf32> to vector<64x128xf32>
    %cst_94 = arith.constant dense<0.000000e+00> : vector<18x128xf32>
    %154 = tpu.matmul %151, %153, %cst_94 {dimension_numbers = #tpu.dot_dimension_numbers<[1], [0], [0], [1], [0, 0, 1, 1], [], []>} : vector<18x64xf32>, vector<64x128xf32>, vector<18x128xf32> -> vector<18x128xf32>
    %155 = arith.addf %149, %154 : vector<18x128xf32>
    %156 = vector.extract_strided_slice %130 {offsets = [0, 1, 1, 0], sizes = [2, 3, 3, 64], strides = [1, 1, 1, 1]} : vector<2x5x5x64xf32> to vector<2x3x3x64xf32>
    %157 = vector.shape_cast %156 : vector<2x3x3x64xf32> to vector<18x64xf32>
    %c4_95 = arith.constant 4 : index
    %c0_96 = arith.constant 0 : index
    %c0_97 = arith.constant 0 : index
    %158 = vector.load %arg7[%c4_95, %c0_96, %c0_97] : memref<9x64x128xf32, #tpu.memory_space<vmem>>, vector<1x64x128xf32>
    %159 = vector.shape_cast %158 : vector<1x64x128xf32> to vector<64x128xf32>
    %cst_98 = arith.constant dense<0.000000e+00> : vector<18x128xf32>
    %160 = tpu.matmul %157, %159, %cst_98 {dimension_numbers = #tpu.dot_dimension_numbers<[1], [0], [0], [1], [0, 0, 1, 1], [], []>} : vector<18x64xf32>, vector<64x128xf32>, vector<18x128xf32> -> vector<18x128xf32>
    %161 = arith.addf %155, %160 : vector<18x128xf32>
    %162 = vector.extract_strided_slice %130 {offsets = [0, 1, 2, 0], sizes = [2, 3, 3, 64], strides = [1, 1, 1, 1]} : vector<2x5x5x64xf32> to vector<2x3x3x64xf32>
    %163 = vector.shape_cast %162 : vector<2x3x3x64xf32> to vector<18x64xf32>
    %c5_99 = arith.constant 5 : index
    %c0_100 = arith.constant 0 : index
    %c0_101 = arith.constant 0 : index
    %164 = vector.load %arg7[%c5_99, %c0_100, %c0_101] : memref<9x64x128xf32, #tpu.memory_space<vmem>>, vector<1x64x128xf32>
    %165 = vector.shape_cast %164 : vector<1x64x128xf32> to vector<64x128xf32>
    %cst_102 = arith.constant dense<0.000000e+00> : vector<18x128xf32>
    %166 = tpu.matmul %163, %165, %cst_102 {dimension_numbers = #tpu.dot_dimension_numbers<[1], [0], [0], [1], [0, 0, 1, 1], [], []>} : vector<18x64xf32>, vector<64x128xf32>, vector<18x128xf32> -> vector<18x128xf32>
    %167 = arith.addf %161, %166 : vector<18x128xf32>
    %168 = vector.extract_strided_slice %130 {offsets = [0, 2, 0, 0], sizes = [2, 3, 3, 64], strides = [1, 1, 1, 1]} : vector<2x5x5x64xf32> to vector<2x3x3x64xf32>
    %169 = vector.shape_cast %168 : vector<2x3x3x64xf32> to vector<18x64xf32>
    %c6_103 = arith.constant 6 : index
    %c0_104 = arith.constant 0 : index
    %c0_105 = arith.constant 0 : index
    %170 = vector.load %arg7[%c6_103, %c0_104, %c0_105] : memref<9x64x128xf32, #tpu.memory_space<vmem>>, vector<1x64x128xf32>
    %171 = vector.shape_cast %170 : vector<1x64x128xf32> to vector<64x128xf32>
    %cst_106 = arith.constant dense<0.000000e+00> : vector<18x128xf32>
    %172 = tpu.matmul %169, %171, %cst_106 {dimension_numbers = #tpu.dot_dimension_numbers<[1], [0], [0], [1], [0, 0, 1, 1], [], []>} : vector<18x64xf32>, vector<64x128xf32>, vector<18x128xf32> -> vector<18x128xf32>
    %173 = arith.addf %167, %172 : vector<18x128xf32>
    %174 = vector.extract_strided_slice %130 {offsets = [0, 2, 1, 0], sizes = [2, 3, 3, 64], strides = [1, 1, 1, 1]} : vector<2x5x5x64xf32> to vector<2x3x3x64xf32>
    %175 = vector.shape_cast %174 : vector<2x3x3x64xf32> to vector<18x64xf32>
    %c7_107 = arith.constant 7 : index
    %c0_108 = arith.constant 0 : index
    %c0_109 = arith.constant 0 : index
    %176 = vector.load %arg7[%c7_107, %c0_108, %c0_109] : memref<9x64x128xf32, #tpu.memory_space<vmem>>, vector<1x64x128xf32>
    %177 = vector.shape_cast %176 : vector<1x64x128xf32> to vector<64x128xf32>
    %cst_110 = arith.constant dense<0.000000e+00> : vector<18x128xf32>
    %178 = tpu.matmul %175, %177, %cst_110 {dimension_numbers = #tpu.dot_dimension_numbers<[1], [0], [0], [1], [0, 0, 1, 1], [], []>} : vector<18x64xf32>, vector<64x128xf32>, vector<18x128xf32> -> vector<18x128xf32>
    %179 = arith.addf %173, %178 : vector<18x128xf32>
    %180 = vector.extract_strided_slice %130 {offsets = [0, 2, 2, 0], sizes = [2, 3, 3, 64], strides = [1, 1, 1, 1]} : vector<2x5x5x64xf32> to vector<2x3x3x64xf32>
    %181 = vector.shape_cast %180 : vector<2x3x3x64xf32> to vector<18x64xf32>
    %c8_111 = arith.constant 8 : index
    %c0_112 = arith.constant 0 : index
    %c0_113 = arith.constant 0 : index
    %182 = vector.load %arg7[%c8_111, %c0_112, %c0_113] : memref<9x64x128xf32, #tpu.memory_space<vmem>>, vector<1x64x128xf32>
    %183 = vector.shape_cast %182 : vector<1x64x128xf32> to vector<64x128xf32>
    %cst_114 = arith.constant dense<0.000000e+00> : vector<18x128xf32>
    %184 = tpu.matmul %181, %183, %cst_114 {dimension_numbers = #tpu.dot_dimension_numbers<[1], [0], [0], [1], [0, 0, 1, 1], [], []>} : vector<18x64xf32>, vector<64x128xf32>, vector<18x128xf32> -> vector<18x128xf32>
    %185 = arith.addf %179, %184 : vector<18x128xf32>
    %c0_115 = arith.constant 0 : index
    %c0_116 = arith.constant 0 : index
    %186 = vector.load %arg8[%c0_115, %c0_116] : memref<1x128xf32, #tpu.memory_space<vmem>>, vector<1x128xf32>
    %187 = vector.broadcast %186 : vector<1x128xf32> to vector<18x128xf32>
    %188 = arith.addf %185, %187 : vector<18x128xf32>
    %cst_117 = arith.constant 0.000000e+00 : f32
    %189 = vector.broadcast %cst_117 : f32 to vector<18x128xf32>
    %190 = arith.maximumf %188, %189 : vector<18x128xf32>
    %191 = vector.shape_cast %190 : vector<18x128xf32> to vector<2x1152xf32>
    %c0_118 = arith.constant 0 : index
    %c0_119 = arith.constant 0 : index
    %192 = vector.load %arg9[%c0_118, %c0_119] : memref<1152x256xf32, #tpu.memory_space<vmem>>, vector<1152x256xf32>
    %cst_120 = arith.constant dense<0.000000e+00> : vector<2x256xf32>
    %193 = tpu.matmul %191, %192, %cst_120 {dimension_numbers = #tpu.dot_dimension_numbers<[1], [0], [0], [1], [0, 0, 1, 1], [], []>} : vector<2x1152xf32>, vector<1152x256xf32>, vector<2x256xf32> -> vector<2x256xf32>
    %c0_121 = arith.constant 0 : index
    %c0_122 = arith.constant 0 : index
    %194 = vector.load %arg10[%c0_121, %c0_122] : memref<1x256xf32, #tpu.memory_space<vmem>>, vector<1x256xf32>
    %195 = vector.broadcast %194 : vector<1x256xf32> to vector<2x256xf32>
    %196 = arith.addf %193, %195 : vector<2x256xf32>
    %cst_123 = arith.constant 0.000000e+00 : f32
    %197 = vector.broadcast %cst_123 : f32 to vector<2x256xf32>
    %198 = arith.maximumf %196, %197 : vector<2x256xf32>
    %c0_124 = arith.constant 0 : index
    %c0_125 = arith.constant 0 : index
    %199 = vector.load %arg11[%c0_124, %c0_125] : memref<256x1xf32, #tpu.memory_space<vmem>>, vector<256x1xf32>
    %cst_126 = arith.constant dense<0.000000e+00> : vector<2x1xf32>
    %200 = tpu.matmul %198, %199, %cst_126 {dimension_numbers = #tpu.dot_dimension_numbers<[1], [0], [0], [1], [0, 0, 1, 1], [], []>} : vector<2x256xf32>, vector<256x1xf32>, vector<2x1xf32> -> vector<2x1xf32>
    %c0_127 = arith.constant 0 : index
    %c0_128 = arith.constant 0 : index
    %201 = vector.load %arg12[%c0_127, %c0_128] : memref<1x1xf32, #tpu.memory_space<vmem>>, vector<1x1xf32>
    %202 = vector.broadcast %201 : vector<1x1xf32> to vector<2x1xf32>
    %203 = arith.addf %200, %202 : vector<2x1xf32>
    %c0_129 = arith.constant 0 : index
    %c0_130 = arith.constant 0 : index
    %204 = vector.load %arg13[%c0_129, %c0_130] : memref<2x1xf32, #tpu.memory_space<vmem>>, vector<2x1xf32>
    tpu.vector_store %arg13[%c0_129, %c0_130], %203 {strides = array<i32>} : memref<2x1xf32, #tpu.memory_space<vmem>>, vector<2x1xf32>,
    return
  }
}

</mosaic_0001>

<llo_original>
// kernel: cnn_3prv_forward.1
$region0: #{cnn_3prv_forward.1}
  #allocation0 [shape = 'u32[]', space=smem, size = 0x4, offset = 0x4, fixed_abs, tag = 'smem constant byte address 0x4 - core index']
  #allocation1 [shape = 'u32[144,128]{1,0:T(1,128)}', space=vmem, size = 0x12000, scoped, tag = 'internal scratch']
  #allocation2 [shape = 'f32[1,1]{1,0:T(1,128)S(1)}', space=vmem, size = 0x200, scoped, tag = 'scoped memory for cnn_3prv_forward.1']
  %s0 = inlined_call_operand.vmem [shape: f32[162,27], index: 0, kind: input, shape index: {}]
  %s1 = inlined_call_operand.vmem [shape: f32[27,16], index: 1, kind: input, shape index: {}]
  %s2 = inlined_call_operand.vmem [shape: f32[1,16], index: 2, kind: input, shape index: {}]
  %s3 = inlined_call_operand.vmem [shape: f32[9,16,32], index: 3, kind: input, shape index: {}]
  %s4 = inlined_call_operand.vmem [shape: f32[1,32], index: 4, kind: input, shape index: {}]
  %s5 = inlined_call_operand.vmem [shape: f32[9,32,64], index: 5, kind: input, shape index: {}]
  %s6 = inlined_call_operand.vmem [shape: f32[1,64], index: 6, kind: input, shape index: {}]
  %s7 = inlined_call_operand.vmem [shape: f32[9,64,128], index: 7, kind: input, shape index: {}]
  %s8 = inlined_call_operand.vmem [shape: f32[1,128], index: 8, kind: input, shape index: {}]
  %s9 = inlined_call_operand.vmem [shape: f32[1152,256], index: 9, kind: input, shape index: {}]
  %s10 = inlined_call_operand.vmem [shape: f32[1,256], index: 10, kind: input, shape index: {}]
  %s11 = inlined_call_operand.vmem [shape: f32[256,1], index: 11, kind: input, shape index: {}]
  %s12 = inlined_call_operand.<no memory space> [shape: f32[1,1], index: 12, kind: input, shape index: {}]
  %s13 = inlined_call_operand.vmem [shape: f32[2,1], index: 13, kind: output, shape index: {}]
  %s14 = sld [smem:[#allocation0]]
  $region62: #{cnn_3prv_forward.1} parent=0
    _
  %s16 = ssub.s32 1, %s14
  %s17 = scalar_select 0, %s16, %s14
  %v18 = vstv %s12
  %19 = vst [vmem:[#allocation2] sm:$0x1] %v18
  // Predicated region
  $region2: #{cnn_3prv_forward.1} parent=0 // pred_check
    _
  $region3: #{cnn_3prv_forward.1} parent=0 // pred_check_branch
    %21 = sbr.rel (0) target = $region5
  $region4: #{cnn_3prv_forward.1} parent=0 // pred_region
    _
  $region5: #{cnn_3prv_forward.1} parent=0 // pred_fallthru
    _
  // Predicated region
  $region6: #{cnn_3prv_forward.1} parent=0 // pred_check
    _
  $region7: #{cnn_3prv_forward.1} parent=0 // pred_check_branch
    %23 = sbr.rel (0) target = $region9
  $region8: #{cnn_3prv_forward.1} parent=0 // pred_region
    _
  $region9: #{cnn_3prv_forward.1} parent=0 // pred_fallthru
    _
  // Predicated region
  $region10: #{cnn_3prv_forward.1} parent=0 // pred_check
    _
  $region11: #{cnn_3prv_forward.1} parent=0 // pred_check_branch
    %25 = sbr.rel (0) target = $region13
  $region12: #{cnn_3prv_forward.1} parent=0 // pred_region
    _
  $region13: #{cnn_3prv_forward.1} parent=0 // pred_fallthru
    _
  // Predicated region
  $region14: #{cnn_3prv_forward.1} parent=0 // pred_check
    _
  $region15: #{cnn_3prv_forward.1} parent=0 // pred_check_branch
    %27 = sbr.rel (0) target = $region17
  $region16: #{cnn_3prv_forward.1} parent=0 // pred_region
    _
  $region17: #{cnn_3prv_forward.1} parent=0 // pred_fallthru
    _
  // Predicated region
  $region18: #{cnn_3prv_forward.1} parent=0 // pred_check
    _
  $region19: #{cnn_3prv_forward.1} parent=0 // pred_check_branch
    %29 = sbr.rel (0) target = $region21
  $region20: #{cnn_3prv_forward.1} parent=0 // pred_region
    _
  $region21: #{cnn_3prv_forward.1} parent=0 // pred_fallthru
    _
  // Predicated region
  $region22: #{cnn_3prv_forward.1} parent=0 // pred_check
    _
  $region23: #{cnn_3prv_forward.1} parent=0 // pred_check_branch
    %31 = sbr.rel (0) target = $region25
  $region24: #{cnn_3prv_forward.1} parent=0 // pred_region
    _
  $region25: #{cnn_3prv_forward.1} parent=0 // pred_fallthru
    _
  // Predicated region
  $region26: #{cnn_3prv_forward.1} parent=0 // pred_check
    _
  $region27: #{cnn_3prv_forward.1} parent=0 // pred_check_branch
    %33 = sbr.rel (0) target = $region29
  $region28: #{cnn_3prv_forward.1} parent=0 // pred_region
    _
  $region29: #{cnn_3prv_forward.1} parent=0 // pred_fallthru
    _
  // Predicated region
  $region30: #{cnn_3prv_forward.1} parent=0 // pred_check
    _
  $region31: #{cnn_3prv_forward.1} parent=0 // pred_check_branch
    %35 = sbr.rel (0) target = $region33
  $region32: #{cnn_3prv_forward.1} parent=0 // pred_region
    _
  $region33: #{cnn_3prv_forward.1} parent=0 // pred_fallthru
    _
  // Predicated region
  $region34: #{cnn_3prv_forward.1} parent=0 // pred_check
    _
  $region35: #{cnn_3prv_forward.1} parent=0 // pred_check_branch
    %37 = sbr.rel (0) target = $region37
  $region36: #{cnn_3prv_forward.1} parent=0 // pred_region
    _
  $region37: #{cnn_3prv_forward.1} parent=0 // pred_fallthru
    _
  // Predicated region
  $region38: #{cnn_3prv_forward.1} parent=0 // pred_check
    _
  $region39: #{cnn_3prv_forward.1} parent=0 // pred_check_branch
    %39 = sbr.rel (0) target = $region41
  $region40: #{cnn_3prv_forward.1} parent=0 // pred_region
    _
  $region41: #{cnn_3prv_forward.1} parent=0 // pred_fallthru
    _
  // Predicated region
  $region42: #{cnn_3prv_forward.1} parent=0 // pred_check
    _
  $region43: #{cnn_3prv_forward.1} parent=0 // pred_check_branch
    %41 = sbr.rel (0) target = $region45
  $region44: #{cnn_3prv_forward.1} parent=0 // pred_region
    _
  $region45: #{cnn_3prv_forward.1} parent=0 // pred_fallthru
    _
  // Predicated region
  $region46: #{cnn_3prv_forward.1} parent=0 // pred_check
    _
  $region47: #{cnn_3prv_forward.1} parent=0 // pred_check_branch
    %43 = sbr.rel (0) target = $region49
  $region48: #{cnn_3prv_forward.1} parent=0 // pred_region
    _
  $region49: #{cnn_3prv_forward.1} parent=0 // pred_fallthru
    _
  // Predicated region
  $region50: #{cnn_3prv_forward.1} parent=0 // pred_check
    _
  $region51: #{cnn_3prv_forward.1} parent=0 // pred_check_branch
    %45 = sbr.rel (0) target = $region53
  $region52: #{cnn_3prv_forward.1} parent=0 // pred_region
    _
  $region53: #{cnn_3prv_forward.1} parent=0 // pred_fallthru
    _
  %v46 = vld [vmem:[%s0] sm:$0xff]
  %v47 = vld [vmem:[%s0 + $0x8] sm:$0xff]
  %v48 = vld [vmem:[%s0 + $0x10] sm:$0xff]
  %v49 = vld [vmem:[%s0 + $0x18] sm:$0xff]
  %v50 = vld [vmem:[%s0 + $0x20] sm:$0xff]
  %v51 = vld [vmem:[%s0 + $0x28] sm:$0xff]
  %v52 = vld [vmem:[%s0 + $0x30] sm:$0xff]
  %v53 = vld [vmem:[%s0 + $0x38] sm:$0xff]
  %v54 = vld [vmem:[%s0 + $0x40] sm:$0xff]
  %v55 = vld [vmem:[%s0 + $0x48] sm:$0xff]
  %v56 = vld [vmem:[%s0 + $0x50] sm:$0xff]
  %v57 = vld [vmem:[%s0 + $0x58] sm:$0xff]
  %v58 = vld [vmem:[%s0 + $0x60] sm:$0xff]
  %v59 = vld [vmem:[%s0 + $0x68] sm:$0xff]
  %v60 = vld [vmem:[%s0 + $0x70] sm:$0xff]
  %v61 = vld [vmem:[%s0 + $0x78] sm:$0xff]
  %v62 = vld [vmem:[%s0 + $0x80] sm:$0xff]
  %v63 = vld [vmem:[%s0 + $0x88] sm:$0xff]
  %v64 = vld [vmem:[%s0 + $0x90] sm:$0xff]
  %v65 = vld [vmem:[%s0 + $0x98] sm:$0xff]
  %v66 = vld [vmem:[%s0 + $0xa0] sm:$0x3]
  %v67 = vld [vmem:[%s1] sm:$0xff]
  %v68 = vld [vmem:[%s1 + $0x8] sm:$0xff]
  %v69 = vld [vmem:[%s1 + $0x10] sm:$0xff]
  %v70 = vld [vmem:[%s1 + $0x18] sm:$0x7]
  %v71 = vld [vmem:[%s2] sm:$0x1]
  %v73 = vlaneseq
  %v74 = vshrl.u32 %v73, 7
  %v75 = vsub.s32 0, %v74
  %v76 = vrot.slane %v71, %v75
  %vm78 = vcmask 220160
  %v80 = vsel %vm78, %v46, 0
  %v83 = vsel %vm78, %v47, 0
  %v86 = vsel %vm78, %v48, 0
  %v89 = vsel %vm78, %v49, 0
  %v92 = vsel %vm78, %v50, 0
  %v95 = vsel %vm78, %v51, 0
  %v98 = vsel %vm78, %v52, 0
  %v101 = vsel %vm78, %v53, 0
  %v104 = vsel %vm78, %v54, 0
  %v107 = vsel %vm78, %v55, 0
  %v110 = vsel %vm78, %v56, 0
  %v113 = vsel %vm78, %v57, 0
  %v116 = vsel %vm78, %v58, 0
  %v119 = vsel %vm78, %v59, 0
  %v122 = vsel %vm78, %v60, 0
  %v125 = vsel %vm78, %v61, 0
  %v128 = vsel %vm78, %v62, 0
  %v131 = vsel %vm78, %v63, 0
  %v134 = vsel %vm78, %v64, 0
  %v137 = vsel %vm78, %v65, 0
  %v140 = vsel %vm78, %v66, 0
  %vm142 = vcmask 1042432
  %v144 = vsel %vm142, %v70, 0
  %146 = vmatprep.subr.mxu0 0.0
  %147 = vmatpush1.msra.mxu0 %v67
  %148 = vmatprep.subr.mxu0 0.0
  %149 = vmatpush1.msra.mxu0 %v68
  %150 = vmatprep.subr.mxu0 0.0
  %151 = vmatpush1.msra.mxu0 %v69
  %152 = vmatprep.subr.mxu0 0.0
  %153 = vmatpush1.msra.mxu0 %v144
  %154 = vmatprep.subr.mxu0 0.0
  %155 = vmatpush1.msra.mxu0 0.0
  %156 = vmatprep.subr.mxu0 0.0
  %157 = vmatpush1.msra.mxu0 0.0
  %158 = vmatprep.subr.mxu0 0.0
  %159 = vmatpush1.msra.mxu0 0.0
  %160 = vmatprep.subr.mxu0 0.0
  %161 = vmatpush1.msra.mxu0 0.0
  %162 = vmatprep.subr.mxu0 0.0
  %163 = vmatpush1.msra.mxu0 0.0
  %164 = vmatprep.subr.mxu0 0.0
  %165 = vmatpush1.msra.mxu0 0.0
  %166 = vmatprep.subr.mxu0 0.0
  %167 = vmatpush1.msra.mxu0 0.0
  %168 = vmatprep.subr.mxu0 0.0
  %169 = vmatpush1.msra.mxu0 0.0
  %170 = vmatprep.subr.mxu0 0.0
  %171 = vmatpush1.msra.mxu0 0.0
  %172 = vmatprep.subr.mxu0 0.0
  %173 = vmatpush1.msra.mxu0 0.0
  %174 = vmatprep.subr.mxu0 0.0
  %175 = vmatpush1.msra.mxu0 0.0
  %176 = vmatprep.subr.mxu0 0.0
  %177 = vmatpush1.msra.mxu0 0.0
  %178 = vmatprep.subr.mxu0 0.0
  %179 = vmatpush1.msra.mxu0 0.0
  %180 = vmatprep.subr.mxu0 0.0
  %181 = vmatpush1.msra.mxu0 0.0
  %182 = vmatprep.subr.mxu0 0.0
  %183 = vmatpush1.msra.mxu0 0.0
  %184 = vmatprep.subr.mxu0 0.0
  %185 = vmatpush1.msra.mxu0 0.0
  %186 = vmatprep.subr.mxu0 0.0
  %187 = vmatpush1.msra.mxu0 0.0
  %188 = vmatprep.subr.mxu0 0.0
  %189 = vmatpush1.msra.mxu0 0.0
  %190 = vmatprep.subr.mxu0 0.0
  %191 = vmatpush1.msra.mxu0 0.0
  %192 = vmatprep.subr.mxu0 0.0
  %193 = vmatpush1.msra.mxu0 0.0
  %194 = vmatprep.subr.mxu0 0.0
  %195 = vmatpush1.msra.mxu0 0.0
  %196 = vmatprep.subr.mxu0 0.0
  %197 = vmatpush1.msra.mxu0 0.0
  %198 = vmatprep.subr.mxu0 0.0
  %199 = vmatpush1.msra.mxu0 0.0
  %200 = vmatprep.subr.mxu0 0.0
  %201 = vmatpush1.msra.mxu0 0.0
  %202 = vmatprep.subr.mxu0 0.0
  %203 = vmatpush1.msra.mxu0 0.0
  %204 = vmatprep.subr.mxu0 0.0
  %205 = vmatpush1.msra.mxu0 0.0
  %206 = vmatprep.subr.mxu0 0.0
  %207 = vmatpush1.msra.mxu0 0.0
  %208 = vmatprep.subr.mxu0 0.0
  %209 = vmatpush1.msra.mxu0 0.0
  %210 = vmatprep.mubr.f32.mxu0 0.0
  %211 = vmatmul.mubr.f32.gmra.mrb[0].mxu0 %v80
  %v212 = vpop.f32.mrb[0].mxu0
  %v213 = vadd.f32 %v76, %v212
  %v214 = vpop.f32.mrb[0].mxu0
  %215 = vmatprep.mubr.f32.mxu0 0.0
  %216 = vmatmul.mubr.f32.gmra.mrb[0].mxu0 %v83
  %v217 = vpop.f32.mrb[0].mxu0
  %v218 = vadd.f32 %v76, %v217
  %v219 = vpop.f32.mrb[0].mxu0
  %220 = vmatprep.mubr.f32.mxu0 0.0
  %221 = vmatmul.mubr.f32.gmra.mrb[0].mxu0 %v86
  %v222 = vpop.f32.mrb[0].mxu0
  %v223 = vadd.f32 %v76, %v222
  %v224 = vpop.f32.mrb[0].mxu0
  %225 = vmatprep.mubr.f32.mxu0 0.0
  %226 = vmatmul.mubr.f32.gmra.mrb[0].mxu0 %v89
  %v227 = vpop.f32.mrb[0].mxu0
  %v228 = vadd.f32 %v76, %v227
  %v229 = vpop.f32.mrb[0].mxu0
  %230 = vmatprep.mubr.f32.mxu0 0.0
  %231 = vmatmul.mubr.f32.gmra.mrb[0].mxu0 %v92
  %v232 = vpop.f32.mrb[0].mxu0
  %v233 = vadd.f32 %v76, %v232
  %v234 = vpop.f32.mrb[0].mxu0
  %235 = vmatprep.mubr.f32.mxu0 0.0
  %236 = vmatmul.mubr.f32.gmra.mrb[0].mxu0 %v95
  %v237 = vpop.f32.mrb[0].mxu0
  %v238 = vadd.f32 %v76, %v237
  %v239 = vpop.f32.mrb[0].mxu0
  %240 = vmatprep.mubr.f32.mxu0 0.0
  %241 = vmatmul.mubr.f32.gmra.mrb[0].mxu0 %v98
  %v242 = vpop.f32.mrb[0].mxu0
  %v243 = vadd.f32 %v76, %v242
  %v244 = vpop.f32.mrb[0].mxu0
  %245 = vmatprep.mubr.f32.mxu0 0.0
  %246 = vmatmul.mubr.f32.gmra.mrb[0].mxu0 %v101
  %v247 = vpop.f32.mrb[0].mxu0
  %v248 = vadd.f32 %v76, %v247
  %v249 = vpop.f32.mrb[0].mxu0
  %250 = vmatprep.mubr.f32.mxu0 0.0
  %251 = vmatmul.mubr.f32.gmra.mrb[0].mxu0 %v104
  %v252 = vpop.f32.mrb[0].mxu0
  %v253 = vadd.f32 %v76, %v252
  %v254 = vpop.f32.mrb[0].mxu0
  %255 = vmatprep.mubr.f32.mxu0 0.0
  %256 = vmatmul.mubr.f32.gmra.mrb[0].mxu0 %v107
  %v257 = vpop.f32.mrb[0].mxu0
  %v258 = vadd.f32 %v76, %v257
  %v259 = vpop.f32.mrb[0].mxu0
  %260 = vmatprep.mubr.f32.mxu0 0.0
  %261 = vmatmul.mubr.f32.gmra.mrb[0].mxu0 %v110
  %v262 = vpop.f32.mrb[0].mxu0
  %v263 = vadd.f32 %v76, %v262
  %v264 = vpop.f32.mrb[0].mxu0
  %265 = vmatprep.mubr.f32.mxu0 0.0
  %266 = vmatmul.mubr.f32.gmra.mrb[0].mxu0 %v113
  %v267 = vpop.f32.mrb[0].mxu0
  %v268 = vadd.f32 %v76, %v267
  %v269 = vpop.f32.mrb[0].mxu0
  %270 = vmatprep.mubr.f32.mxu0 0.0
  %271 = vmatmul.mubr.f32.gmra.mrb[0].mxu0 %v116
  %v272 = vpop.f32.mrb[0].mxu0
  %v273 = vadd.f32 %v76, %v272
  %v274 = vpop.f32.mrb[0].mxu0
  %275 = vmatprep.mubr.f32.mxu0 0.0
  %276 = vmatmul.mubr.f32.gmra.mrb[0].mxu0 %v119
  %v277 = vpop.f32.mrb[0].mxu0
  %v278 = vadd.f32 %v76, %v277
  %v279 = vpop.f32.mrb[0].mxu0
  %280 = vmatprep.mubr.f32.mxu0 0.0
  %281 = vmatmul.mubr.f32.gmra.mrb[0].mxu0 %v122
  %v282 = vpop.f32.mrb[0].mxu0
  %v283 = vadd.f32 %v76, %v282
  %v284 = vpop.f32.mrb[0].mxu0
  %285 = vmatprep.mubr.f32.mxu0 0.0
  %286 = vmatmul.mubr.f32.gmra.mrb[0].mxu0 %v125
  %v287 = vpop.f32.mrb[0].mxu0
  %v288 = vadd.f32 %v76, %v287
  %v289 = vpop.f32.mrb[0].mxu0
  %290 = vmatprep.mubr.f32.mxu0 0.0
  %291 = vmatmul.mubr.f32.gmra.mrb[0].mxu0 %v128
  %v292 = vpop.f32.mrb[0].mxu0
  %v293 = vadd.f32 %v76, %v292
  %v294 = vpop.f32.mrb[0].mxu0
  %295 = vmatprep.mubr.f32.mxu0 0.0
  %296 = vmatmul.mubr.f32.gmra.mrb[0].mxu0 %v131
  %v297 = vpop.f32.mrb[0].mxu0
  %v298 = vadd.f32 %v76, %v297
  %v299 = vpop.f32.mrb[0].mxu0
  %300 = vmatprep.mubr.f32.mxu0 0.0
  %301 = vmatmul.mubr.f32.gmra.mrb[0].mxu0 %v134
  %v302 = vpop.f32.mrb[0].mxu0
  %v303 = vadd.f32 %v76, %v302
  %v304 = vpop.f32.mrb[0].mxu0
  %305 = vmatprep.mubr.f32.mxu0 0.0
  %306 = vmatmul.mubr.f32.gmra.mrb[0].mxu0 %v137
  %v307 = vpop.f32.mrb[0].mxu0
  %v308 = vadd.f32 %v76, %v307
  %v309 = vpop.f32.mrb[0].mxu0
  %310 = vmatprep.mubr.f32.mxu0 0.0
  %311 = vmatmul.mubr.f32.gmra.mrb[0].mxu0 %v140
  %v312 = vpop.f32.mrb[0].mxu0
  %v313 = vadd.f32 %v76, %v312
  %v314 = vpop.f32.mrb[0].mxu0
  %315 = vdwg.mxu0
  %v316 = vmax.f32 %v213, 0.0
  %v317 = vmax.f32 %v218, 0.0
  %v318 = vmax.f32 %v223, 0.0
  %v319 = vmax.f32 %v228, 0.0
  %v320 = vmax.f32 %v233, 0.0
  %v321 = vmax.f32 %v238, 0.0
  %v322 = vmax.f32 %v243, 0.0
  %v323 = vmax.f32 %v248, 0.0
  %v324 = vmax.f32 %v253, 0.0
  %v325 = vmax.f32 %v258, 0.0
  %v326 = vmax.f32 %v263, 0.0
  %v327 = vmax.f32 %v268, 0.0
  %v328 = vmax.f32 %v273, 0.0
  %v329 = vmax.f32 %v278, 0.0
  %v330 = vmax.f32 %v283, 0.0
  %v331 = vmax.f32 %v288, 0.0
  %v332 = vmax.f32 %v293, 0.0
  %v333 = vmax.f32 %v298, 0.0
  %v334 = vmax.f32 %v303, 0.0
  %v335 = vmax.f32 %v308, 0.0
  %v336 = vmax.f32 %v313, 0.0
  %v358 = vcombine.high %v316, %v316
  %v360 = vunpack.c.l.s4 1966171168
  %v361 = vunpack.c.0.s8 %v360
  %v362 = vlaneseq
  %v363 = vshrl.u32 %v362, 7
  %v364 = vsub.s32 %v361, %v363
  %v365 = vrot.slane %v316, %v364
  %v367 = vunpack.c.l.s4 1966171168
  %v368 = vunpack.c.0.s8 %v367
  %v369 = vlaneseq
  %v370 = vshrl.u32 %v369, 7
  %v371 = vsub.s32 %v368, %v370
  %v372 = vrot.slane %v358, %v371
  %v373 = vcombine.high %v365, %v365
  %v374 = vcombine.high %v372, %v372
  %v376 = vunpack.c.l.s4 1966171168
  %v377 = vunpack.c.0.s8 %v376
  %v378 = vlaneseq
  %v379 = vshrl.u32 %v378, 7
  %v380 = vsub.s32 %v377, %v379
  %v381 = vrot.slane %v365, %v380
  %v383 = vunpack.c.l.s4 1966171168
  %v384 = vunpack.c.0.s8 %v383
  %v385 = vlaneseq
  %v386 = vshrl.u32 %v385, 7
  %v387 = vsub.s32 %v384, %v386
  %v388 = vrot.slane %v372, %v387
  %v390 = vunpack.c.l.s4 1966171168
  %v391 = vunpack.c.0.s8 %v390
  %v392 = vlaneseq
  %v393 = vshrl.u32 %v392, 7
  %v394 = vsub.s32 %v391, %v393
  %v395 = vrot.slane %v373, %v394
  %v397 = vunpack.c.l.s4 1966171168
  %v398 = vunpack.c.0.s8 %v397
  %v399 = vlaneseq
  %v400 = vshrl.u32 %v399, 7
  %v401 = vsub.s32 %v398, %v400
  %v402 = vrot.slane %v374, %v401
  %v403 = vcombine.high %v381, %v381
  %v404 = vcombine.high %v388, %v388
  %v405 = vcombine.high %v395, %v395
  %v406 = vcombine.high %v402, %v402
  %v407 = vcombine.high %v317, %v317
  %v409 = vunpack.c.l.s4 1966171168
  %v410 = vunpack.c.0.s8 %v409
  %v411 = vlaneseq
  %v412 = vshrl.u32 %v411, 7
  %v413 = vsub.s32 %v410, %v412
  %v414 = vrot.slane %v317, %v413
  %v416 = vunpack.c.l.s4 1966171168
  %v417 = vunpack.c.0.s8 %v416
  %v418 = vlaneseq
  %v419 = vshrl.u32 %v418, 7
  %v420 = vsub.s32 %v417, %v419
  %v421 = vrot.slane %v407, %v420
  %v422 = vcombine.high %v414, %v414
  %v423 = vcombine.high %v421, %v421
  %v425 = vunpack.c.l.s4 1966171168
  %v426 = vunpack.c.0.s8 %v425
  %v427 = vlaneseq
  %v428 = vshrl.u32 %v427, 7
  %v429 = vsub.s32 %v426, %v428
  %v430 = vrot.slane %v414, %v429
  %v432 = vunpack.c.l.s4 1966171168
  %v433 = vunpack.c.0.s8 %v432
  %v434 = vlaneseq
  %v435 = vshrl.u32 %v434, 7
  %v436 = vsub.s32 %v433, %v435
  %v437 = vrot.slane %v421, %v436
  %v439 = vunpack.c.l.s4 1966171168
  %v440 = vunpack.c.0.s8 %v439
  %v441 = vlaneseq
  %v442 = vshrl.u32 %v441, 7
  %v443 = vsub.s32 %v440, %v442
  %v444 = vrot.slane %v422, %v443
  %v446 = vunpack.c.l.s4 1966171168
  %v447 = vunpack.c.0.s8 %v446
  %v448 = vlaneseq
  %v449 = vshrl.u32 %v448, 7
  %v450 = vsub.s32 %v447, %v449
  %v451 = vrot.slane %v423, %v450
  %v452 = vcombine.high %v430, %v430
  %v453 = vcombine.high %v437, %v437
  %v454 = vcombine.high %v444, %v444
  %v455 = vcombine.high %v451, %v451
  %v456 = vcombine.high %v318, %v318
  %v458 = vunpack.c.l.s4 1966171168
  %v459 = vunpack.c.0.s8 %v458
  %v460 = vlaneseq
  %v461 = vshrl.u32 %v460, 7
  %v462 = vsub.s32 %v459, %v461
  %v463 = vrot.slane %v318, %v462
  %v465 = vunpack.c.l.s4 1966171168
  %v466 = vunpack.c.0.s8 %v465
  %v467 = vlaneseq
  %v468 = vshrl.u32 %v467, 7
  %v469 = vsub.s32 %v466, %v468
  %v470 = vrot.slane %v456, %v469
  %v471 = vcombine.high %v463, %v463
  %v472 = vcombine.high %v470, %v470
  %v474 = vunpack.c.l.s4 1966171168
  %v475 = vunpack.c.0.s8 %v474
  %v476 = vlaneseq
  %v477 = vshrl.u32 %v476, 7
  %v478 = vsub.s32 %v475, %v477
  %v479 = vrot.slane %v463, %v478
  %v481 = vunpack.c.l.s4 1966171168
  %v482 = vunpack.c.0.s8 %v481
  %v483 = vlaneseq
  %v484 = vshrl.u32 %v483, 7
  %v485 = vsub.s32 %v482, %v484
  %v486 = vrot.slane %v470, %v485
  %v488 = vunpack.c.l.s4 1966171168
  %v489 = vunpack.c.0.s8 %v488
  %v490 = vlaneseq
  %v491 = vshrl.u32 %v490, 7
  %v492 = vsub.s32 %v489, %v491
  %v493 = vrot.slane %v471, %v492
  %v495 = vunpack.c.l.s4 1966171168
  %v496 = vunpack.c.0.s8 %v495
  %v497 = vlaneseq
  %v498 = vshrl.u32 %v497, 7
  %v499 = vsub.s32 %v496, %v498
  %v500 = vrot.slane %v472, %v499
  %v501 = vcombine.high %v479, %v479
  %v502 = vcombine.high %v486, %v486
  %v503 = vcombine.high %v493, %v493
  %v504 = vcombine.high %v500, %v500
  %v505 = vcombine.high %v319, %v319
  %v507 = vunpack.c.l.s4 1966171168
  %v508 = vunpack.c.0.s8 %v507
  %v509 = vlaneseq
  %v510 = vshrl.u32 %v509, 7
  %v511 = vsub.s32 %v508, %v510
  %v512 = vrot.slane %v319, %v511
  %v514 = vunpack.c.l.s4 1966171168
  %v515 = vunpack.c.0.s8 %v514
  %v516 = vlaneseq
  %v517 = vshrl.u32 %v516, 7
  %v518 = vsub.s32 %v515, %v517
  %v519 = vrot.slane %v505, %v518
  %v520 = vcombine.high %v512, %v512
  %v521 = vcombine.high %v519, %v519
  %v523 = vunpack.c.l.s4 1966171168
  %v524 = vunpack.c.0.s8 %v523
  %v525 = vlaneseq
  %v526 = vshrl.u32 %v525, 7
  %v527 = vsub.s32 %v524, %v526
  %v528 = vrot.slane %v512, %v527
  %v530 = vunpack.c.l.s4 1966171168
  %v531 = vunpack.c.0.s8 %v530
  %v532 = vlaneseq
  %v533 = vshrl.u32 %v532, 7
  %v534 = vsub.s32 %v531, %v533
  %v535 = vrot.slane %v519, %v534
  %v537 = vunpack.c.l.s4 1966171168
  %v538 = vunpack.c.0.s8 %v537
  %v539 = vlaneseq
  %v540 = vshrl.u32 %v539, 7
  %v541 = vsub.s32 %v538, %v540
  %v542 = vrot.slane %v520, %v541
  %v544 = vunpack.c.l.s4 1966171168
  %v545 = vunpack.c.0.s8 %v544
  %v546 = vlaneseq
  %v547 = vshrl.u32 %v546, 7
  %v548 = vsub.s32 %v545, %v547
  %v549 = vrot.slane %v521, %v548
  %v550 = vcombine.high %v528, %v528
  %v551 = vcombine.high %v535, %v535
  %v552 = vcombine.high %v542, %v542
  %v553 = vcombine.high %v549, %v549
  %v554 = vcombine.high %v320, %v320
  %v556 = vunpack.c.l.s4 1966171168
  %v557 = vunpack.c.0.s8 %v556
  %v558 = vlaneseq
  %v559 = vshrl.u32 %v558, 7
  %v560 = vsub.s32 %v557, %v559
  %v561 = vrot.slane %v320, %v560
  %v563 = vunpack.c.l.s4 1966171168
  %v564 = vunpack.c.0.s8 %v563
  %v565 = vlaneseq
  %v566 = vshrl.u32 %v565, 7
  %v567 = vsub.s32 %v564, %v566
  %v568 = vrot.slane %v554, %v567
  %v569 = vcombine.high %v561, %v561
  %v570 = vcombine.high %v568, %v568
  %v572 = vunpack.c.l.s4 1966171168
  %v573 = vunpack.c.0.s8 %v572
  %v574 = vlaneseq
  %v575 = vshrl.u32 %v574, 7
  %v576 = vsub.s32 %v573, %v575
  %v577 = vrot.slane %v561, %v576
  %v579 = vunpack.c.l.s4 1966171168
  %v580 = vunpack.c.0.s8 %v579
  %v581 = vlaneseq
  %v582 = vshrl.u32 %v581, 7
  %v583 = vsub.s32 %v580, %v582
  %v584 = vrot.slane %v568, %v583
  %v586 = vunpack.c.l.s4 1966171168
  %v587 = vunpack.c.0.s8 %v586
  %v588 = vlaneseq
  %v589 = vshrl.u32 %v588, 7
  %v590 = vsub.s32 %v587, %v589
  %v591 = vrot.slane %v569, %v590
  %v593 = vunpack.c.l.s4 1966171168
  %v594 = vunpack.c.0.s8 %v593
  %v595 = vlaneseq
  %v596 = vshrl.u32 %v595, 7
  %v597 = vsub.s32 %v594, %v596
  %v598 = vrot.slane %v570, %v597
  %v599 = vcombine.high %v577, %v577
  %v600 = vcombine.high %v584, %v584
  %v601 = vcombine.high %v591, %v591
  %v602 = vcombine.high %v598, %v598
  %v603 = vcombine.high %v321, %v321
  %v605 = vunpack.c.l.s4 1966171168
  %v606 = vunpack.c.0.s8 %v605
  %v607 = vlaneseq
  %v608 = vshrl.u32 %v607, 7
  %v609 = vsub.s32 %v606, %v608
  %v610 = vrot.slane %v321, %v609
  %v612 = vunpack.c.l.s4 1966171168
  %v613 = vunpack.c.0.s8 %v612
  %v614 = vlaneseq
  %v615 = vshrl.u32 %v614, 7
  %v616 = vsub.s32 %v613, %v615
  %v617 = vrot.slane %v603, %v616
  %v618 = vcombine.high %v610, %v610
  %v619 = vcombine.high %v617, %v617
  %v621 = vunpack.c.l.s4 1966171168
  %v622 = vunpack.c.0.s8 %v621
  %v623 = vlaneseq
  %v624 = vshrl.u32 %v623, 7
  %v625 = vsub.s32 %v622, %v624
  %v626 = vrot.slane %v610, %v625
  %v628 = vunpack.c.l.s4 1966171168
  %v629 = vunpack.c.0.s8 %v628
  %v630 = vlaneseq
  %v631 = vshrl.u32 %v630, 7
  %v632 = vsub.s32 %v629, %v631
  %v633 = vrot.slane %v617, %v632
  %v635 = vunpack.c.l.s4 1966171168
  %v636 = vunpack.c.0.s8 %v635
  %v637 = vlaneseq
  %v638 = vshrl.u32 %v637, 7
  %v639 = vsub.s32 %v636, %v638
  %v640 = vrot.slane %v618, %v639
  %v642 = vunpack.c.l.s4 1966171168
  %v643 = vunpack.c.0.s8 %v642
  %v644 = vlaneseq
  %v645 = vshrl.u32 %v644, 7
  %v646 = vsub.s32 %v643, %v645
  %v647 = vrot.slane %v619, %v646
  %v648 = vcombine.high %v626, %v626
  %v649 = vcombine.high %v633, %v633
  %v650 = vcombine.high %v640, %v640
  %v651 = vcombine.high %v647, %v647
  %v652 = vcombine.high %v322, %v322
  %v654 = vunpack.c.l.s4 1966171168
  %v655 = vunpack.c.0.s8 %v654
  %v656 = vlaneseq
  %v657 = vshrl.u32 %v656, 7
  %v658 = vsub.s32 %v655, %v657
  %v659 = vrot.slane %v322, %v658
  %v661 = vunpack.c.l.s4 1966171168
  %v662 = vunpack.c.0.s8 %v661
  %v663 = vlaneseq
  %v664 = vshrl.u32 %v663, 7
  %v665 = vsub.s32 %v662, %v664
  %v666 = vrot.slane %v652, %v665
  %v667 = vcombine.high %v659, %v659
  %v668 = vcombine.high %v666, %v666
  %v670 = vunpack.c.l.s4 1966171168
  %v671 = vunpack.c.0.s8 %v670
  %v672 = vlaneseq
  %v673 = vshrl.u32 %v672, 7
  %v674 = vsub.s32 %v671, %v673
  %v675 = vrot.slane %v659, %v674
  %v677 = vunpack.c.l.s4 1966171168
  %v678 = vunpack.c.0.s8 %v677
  %v679 = vlaneseq
  %v680 = vshrl.u32 %v679, 7
  %v681 = vsub.s32 %v678, %v680
  %v682 = vrot.slane %v666, %v681
  %v684 = vunpack.c.l.s4 1966171168
  %v685 = vunpack.c.0.s8 %v684
  %v686 = vlaneseq
  %v687 = vshrl.u32 %v686, 7
  %v688 = vsub.s32 %v685, %v687
  %v689 = vrot.slane %v667, %v688
  %v691 = vunpack.c.l.s4 1966171168
  %v692 = vunpack.c.0.s8 %v691
  %v693 = vlaneseq
  %v694 = vshrl.u32 %v693, 7
  %v695 = vsub.s32 %v692, %v694
  %v696 = vrot.slane %v668, %v695
  %v697 = vcombine.high %v675, %v675
  %v698 = vcombine.high %v682, %v682
  %v699 = vcombine.high %v689, %v689
  %v700 = vcombine.high %v696, %v696
  %v701 = vcombine.high %v323, %v323
  %v703 = vunpack.c.l.s4 1966171168
  %v704 = vunpack.c.0.s8 %v703
  %v705 = vlaneseq
  %v706 = vshrl.u32 %v705, 7
  %v707 = vsub.s32 %v704, %v706
  %v708 = vrot.slane %v323, %v707
  %v710 = vunpack.c.l.s4 1966171168
  %v711 = vunpack.c.0.s8 %v710
  %v712 = vlaneseq
  %v713 = vshrl.u32 %v712, 7
  %v714 = vsub.s32 %v711, %v713
  %v715 = vrot.slane %v701, %v714
  %v716 = vcombine.high %v708, %v708
  %v717 = vcombine.high %v715, %v715
  %v719 = vunpack.c.l.s4 1966171168
  %v720 = vunpack.c.0.s8 %v719
  %v721 = vlaneseq
  %v722 = vshrl.u32 %v721, 7
  %v723 = vsub.s32 %v720, %v722
  %v724 = vrot.slane %v708, %v723
  %v726 = vunpack.c.l.s4 1966171168
  %v727 = vunpack.c.0.s8 %v726
  %v728 = vlaneseq
  %v729 = vshrl.u32 %v728, 7
  %v730 = vsub.s32 %v727, %v729
  %v731 = vrot.slane %v715, %v730
  %v733 = vunpack.c.l.s4 1966171168
  %v734 = vunpack.c.0.s8 %v733
  %v735 = vlaneseq
  %v736 = vshrl.u32 %v735, 7
  %v737 = vsub.s32 %v734, %v736
  %v738 = vrot.slane %v716, %v737
  %v740 = vunpack.c.l.s4 1966171168
  %v741 = vunpack.c.0.s8 %v740
  %v742 = vlaneseq
  %v743 = vshrl.u32 %v742, 7
  %v744 = vsub.s32 %v741, %v743
  %v745 = vrot.slane %v717, %v744
  %v746 = vcombine.high %v724, %v724
  %v747 = vcombine.high %v731, %v731
  %v748 = vcombine.high %v738, %v738
  %v749 = vcombine.high %v745, %v745
  %v750 = vcombine.high %v324, %v324
  %v752 = vunpack.c.l.s4 1966171168
  %v753 = vunpack.c.0.s8 %v752
  %v754 = vlaneseq
  %v755 = vshrl.u32 %v754, 7
  %v756 = vsub.s32 %v753, %v755
  %v757 = vrot.slane %v324, %v756
  %v759 = vunpack.c.l.s4 1966171168
  %v760 = vunpack.c.0.s8 %v759
  %v761 = vlaneseq
  %v762 = vshrl.u32 %v761, 7
  %v763 = vsub.s32 %v760, %v762
  %v764 = vrot.slane %v750, %v763
  %v765 = vcombine.high %v757, %v757
  %v766 = vcombine.high %v764, %v764
  %v768 = vunpack.c.l.s4 1966171168
  %v769 = vunpack.c.0.s8 %v768
  %v770 = vlaneseq
  %v771 = vshrl.u32 %v770, 7
  %v772 = vsub.s32 %v769, %v771
  %v773 = vrot.slane %v757, %v772
  %v775 = vunpack.c.l.s4 1966171168
  %v776 = vunpack.c.0.s8 %v775
  %v777 = vlaneseq
  %v778 = vshrl.u32 %v777, 7
  %v779 = vsub.s32 %v776, %v778
  %v780 = vrot.slane %v764, %v779
  %v782 = vunpack.c.l.s4 1966171168
  %v783 = vunpack.c.0.s8 %v782
  %v784 = vlaneseq
  %v785 = vshrl.u32 %v784, 7
  %v786 = vsub.s32 %v783, %v785
  %v787 = vrot.slane %v765, %v786
  %v789 = vunpack.c.l.s4 1966171168
  %v790 = vunpack.c.0.s8 %v789
  %v791 = vlaneseq
  %v792 = vshrl.u32 %v791, 7
  %v793 = vsub.s32 %v790, %v792
  %v794 = vrot.slane %v766, %v793
  %v795 = vcombine.high %v773, %v773
  %v796 = vcombine.high %v780, %v780
  %v797 = vcombine.high %v787, %v787
  %v798 = vcombine.high %v794, %v794
  %v799 = vcombine.high %v325, %v325
  %v801 = vunpack.c.l.s4 1966171168
  %v802 = vunpack.c.0.s8 %v801
  %v803 = vlaneseq
  %v804 = vshrl.u32 %v803, 7
  %v805 = vsub.s32 %v802, %v804
  %v806 = vrot.slane %v325, %v805
  %v808 = vunpack.c.l.s4 1966171168
  %v809 = vunpack.c.0.s8 %v808
  %v810 = vlaneseq
  %v811 = vshrl.u32 %v810, 7
  %v812 = vsub.s32 %v809, %v811
  %v813 = vrot.slane %v799, %v812
  %v814 = vcombine.high %v806, %v806
  %v815 = vcombine.high %v813, %v813
  %v817 = vunpack.c.l.s4 1966171168
  %v818 = vunpack.c.0.s8 %v817
  %v819 = vlaneseq
  %v820 = vshrl.u32 %v819, 7
  %v821 = vsub.s32 %v818, %v820
  %v822 = vrot.slane %v806, %v821
  %v824 = vunpack.c.l.s4 1966171168
  %v825 = vunpack.c.0.s8 %v824
  %v826 = vlaneseq
  %v827 = vshrl.u32 %v826, 7
  %v828 = vsub.s32 %v825, %v827
  %v829 = vrot.slane %v813, %v828
  %v831 = vunpack.c.l.s4 1966171168
  %v832 = vunpack.c.0.s8 %v831
  %v833 = vlaneseq
  %v834 = vshrl.u32 %v833, 7
  %v835 = vsub.s32 %v832, %v834
  %v836 = vrot.slane %v814, %v835
  %v838 = vunpack.c.l.s4 1966171168
  %v839 = vunpack.c.0.s8 %v838
  %v840 = vlaneseq
  %v841 = vshrl.u32 %v840, 7
  %v842 = vsub.s32 %v839, %v841
  %v843 = vrot.slane %v815, %v842
  %v844 = vcombine.high %v822, %v822
  %v845 = vcombine.high %v829, %v829
  %v846 = vcombine.high %v836, %v836
  %v847 = vcombine.high %v843, %v843
  %v848 = vcombine.high %v326, %v326
  %v850 = vunpack.c.l.s4 1966171168
  %v851 = vunpack.c.0.s8 %v850
  %v852 = vlaneseq
  %v853 = vshrl.u32 %v852, 7
  %v854 = vsub.s32 %v851, %v853
  %v855 = vrot.slane %v326, %v854
  %v857 = vunpack.c.l.s4 1966171168
  %v858 = vunpack.c.0.s8 %v857
  %v859 = vlaneseq
  %v860 = vshrl.u32 %v859, 7
  %v861 = vsub.s32 %v858, %v860
  %v862 = vrot.slane %v848, %v861
  %v863 = vcombine.high %v855, %v855
  %v864 = vcombine.high %v862, %v862
  %v866 = vunpack.c.l.s4 1966171168
  %v867 = vunpack.c.0.s8 %v866
  %v868 = vlaneseq
  %v869 = vshrl.u32 %v868, 7
  %v870 = vsub.s32 %v867, %v869
  %v871 = vrot.slane %v855, %v870
  %v873 = vunpack.c.l.s4 1966171168
  %v874 = vunpack.c.0.s8 %v873
  %v875 = vlaneseq
  %v876 = vshrl.u32 %v875, 7
  %v877 = vsub.s32 %v874, %v876
  %v878 = vrot.slane %v862, %v877
  %v880 = vunpack.c.l.s4 1966171168
  %v881 = vunpack.c.0.s8 %v880
  %v882 = vlaneseq
  %v883 = vshrl.u32 %v882, 7
  %v884 = vsub.s32 %v881, %v883
  %v885 = vrot.slane %v863, %v884
  %v887 = vunpack.c.l.s4 1966171168
  %v888 = vunpack.c.0.s8 %v887
  %v889 = vlaneseq
  %v890 = vshrl.u32 %v889, 7
  %v891 = vsub.s32 %v888, %v890
  %v892 = vrot.slane %v864, %v891
  %v893 = vcombine.high %v871, %v871
  %v894 = vcombine.high %v878, %v878
  %v895 = vcombine.high %v885, %v885
  %v896 = vcombine.high %v892, %v892
  %v897 = vcombine.high %v327, %v327
  %v899 = vunpack.c.l.s4 1966171168
  %v900 = vunpack.c.0.s8 %v899
  %v901 = vlaneseq
  %v902 = vshrl.u32 %v901, 7
  %v903 = vsub.s32 %v900, %v902
  %v904 = vrot.slane %v327, %v903
  %v906 = vunpack.c.l.s4 1966171168
  %v907 = vunpack.c.0.s8 %v906
  %v908 = vlaneseq
  %v909 = vshrl.u32 %v908, 7
  %v910 = vsub.s32 %v907, %v909
  %v911 = vrot.slane %v897, %v910
  %v912 = vcombine.high %v904, %v904
  %v913 = vcombine.high %v911, %v911
  %v915 = vunpack.c.l.s4 1966171168
  %v916 = vunpack.c.0.s8 %v915
  %v917 = vlaneseq
  %v918 = vshrl.u32 %v917, 7
  %v919 = vsub.s32 %v916, %v918
  %v920 = vrot.slane %v904, %v919
  %v922 = vunpack.c.l.s4 1966171168
  %v923 = vunpack.c.0.s8 %v922
  %v924 = vlaneseq
  %v925 = vshrl.u32 %v924, 7
  %v926 = vsub.s32 %v923, %v925
  %v927 = vrot.slane %v911, %v926
  %v929 = vunpack.c.l.s4 1966171168
  %v930 = vunpack.c.0.s8 %v929
  %v931 = vlaneseq
  %v932 = vshrl.u32 %v931, 7
  %v933 = vsub.s32 %v930, %v932
  %v934 = vrot.slane %v912, %v933
  %v936 = vunpack.c.l.s4 1966171168
  %v937 = vunpack.c.0.s8 %v936
  %v938 = vlaneseq
  %v939 = vshrl.u32 %v938, 7
  %v940 = vsub.s32 %v937, %v939
  %v941 = vrot.slane %v913, %v940
  %v942 = vcombine.high %v920, %v920
  %v943 = vcombine.high %v927, %v927
  %v944 = vcombine.high %v934, %v934
  %v945 = vcombine.high %v941, %v941
  %v946 = vcombine.high %v328, %v328
  %v948 = vunpack.c.l.s4 1966171168
  %v949 = vunpack.c.0.s8 %v948
  %v950 = vlaneseq
  %v951 = vshrl.u32 %v950, 7
  %v952 = vsub.s32 %v949, %v951
  %v953 = vrot.slane %v328, %v952
  %v955 = vunpack.c.l.s4 1966171168
  %v956 = vunpack.c.0.s8 %v955
  %v957 = vlaneseq
  %v958 = vshrl.u32 %v957, 7
  %v959 = vsub.s32 %v956, %v958
  %v960 = vrot.slane %v946, %v959
  %v961 = vcombine.high %v953, %v953
  %v962 = vcombine.high %v960, %v960
  %v964 = vunpack.c.l.s4 1966171168
  %v965 = vunpack.c.0.s8 %v964
  %v966 = vlaneseq
  %v967 = vshrl.u32 %v966, 7
  %v968 = vsub.s32 %v965, %v967
  %v969 = vrot.slane %v953, %v968
  %v971 = vunpack.c.l.s4 1966171168
  %v972 = vunpack.c.0.s8 %v971
  %v973 = vlaneseq
  %v974 = vshrl.u32 %v973, 7
  %v975 = vsub.s32 %v972, %v974
  %v976 = vrot.slane %v960, %v975
  %v978 = vunpack.c.l.s4 1966171168
  %v979 = vunpack.c.0.s8 %v978
  %v980 = vlaneseq
  %v981 = vshrl.u32 %v980, 7
  %v982 = vsub.s32 %v979, %v981
  %v983 = vrot.slane %v961, %v982
  %v985 = vunpack.c.l.s4 1966171168
  %v986 = vunpack.c.0.s8 %v985
  %v987 = vlaneseq
  %v988 = vshrl.u32 %v987, 7
  %v989 = vsub.s32 %v986, %v988
  %v990 = vrot.slane %v962, %v989
  %v991 = vcombine.high %v969, %v969
  %v992 = vcombine.high %v976, %v976
  %v993 = vcombine.high %v983, %v983
  %v994 = vcombine.high %v990, %v990
  %v995 = vcombine.high %v329, %v329
  %v997 = vunpack.c.l.s4 1966171168
  %v998 = vunpack.c.0.s8 %v997
  %v999 = vlaneseq
  %v1000 = vshrl.u32 %v999, 7
  %v1001 = vsub.s32 %v998, %v1000
  %v1002 = vrot.slane %v329, %v1001
  %v1004 = vunpack.c.l.s4 1966171168
  %v1005 = vunpack.c.0.s8 %v1004
  %v1006 = vlaneseq
  %v1007 = vshrl.u32 %v1006, 7
  %v1008 = vsub.s32 %v1005, %v1007
  %v1009 = vrot.slane %v995, %v1008
  %v1010 = vcombine.high %v1002, %v1002
  %v1011 = vcombine.high %v1009, %v1009
  %v1013 = vunpack.c.l.s4 1966171168
  %v1014 = vunpack.c.0.s8 %v1013
  %v1015 = vlaneseq
  %v1016 = vshrl.u32 %v1015, 7
  %v1017 = vsub.s32 %v1014, %v1016
  %v1018 = vrot.slane %v1002, %v1017
  %v1020 = vunpack.c.l.s4 1966171168
  %v1021 = vunpack.c.0.s8 %v1020
  %v1022 = vlaneseq
  %v1023 = vshrl.u32 %v1022, 7
  %v1024 = vsub.s32 %v1021, %v1023
  %v1025 = vrot.slane %v1009, %v1024
  %v1027 = vunpack.c.l.s4 1966171168
  %v1028 = vunpack.c.0.s8 %v1027
  %v1029 = vlaneseq
  %v1030 = vshrl.u32 %v1029, 7
  %v1031 = vsub.s32 %v1028, %v1030
  %v1032 = vrot.slane %v1010, %v1031
  %v1034 = vunpack.c.l.s4 1966171168
  %v1035 = vunpack.c.0.s8 %v1034
  %v1036 = vlaneseq
  %v1037 = vshrl.u32 %v1036, 7
  %v1038 = vsub.s32 %v1035, %v1037
  %v1039 = vrot.slane %v1011, %v1038
  %v1040 = vcombine.high %v1018, %v1018
  %v1041 = vcombine.high %v1025, %v1025
  %v1042 = vcombine.high %v1032, %v1032
  %v1043 = vcombine.high %v1039, %v1039
  %v1044 = vcombine.high %v330, %v330
  %v1046 = vunpack.c.l.s4 1966171168
  %v1047 = vunpack.c.0.s8 %v1046
  %v1048 = vlaneseq
  %v1049 = vshrl.u32 %v1048, 7
  %v1050 = vsub.s32 %v1047, %v1049
  %v1051 = vrot.slane %v330, %v1050
  %v1053 = vunpack.c.l.s4 1966171168
  %v1054 = vunpack.c.0.s8 %v1053
  %v1055 = vlaneseq
  %v1056 = vshrl.u32 %v1055, 7
  %v1057 = vsub.s32 %v1054, %v1056
  %v1058 = vrot.slane %v1044, %v1057
  %v1059 = vcombine.high %v1051, %v1051
  %v1060 = vcombine.high %v1058, %v1058
  %v1062 = vunpack.c.l.s4 1966171168
  %v1063 = vunpack.c.0.s8 %v1062
  %v1064 = vlaneseq
  %v1065 = vshrl.u32 %v1064, 7
  %v1066 = vsub.s32 %v1063, %v1065
  %v1067 = vrot.slane %v1051, %v1066
  %v1069 = vunpack.c.l.s4 1966171168
  %v1070 = vunpack.c.0.s8 %v1069
  %v1071 = vlaneseq
  %v1072 = vshrl.u32 %v1071, 7
  %v1073 = vsub.s32 %v1070, %v1072
  %v1074 = vrot.slane %v1058, %v1073
  %v1076 = vunpack.c.l.s4 1966171168
  %v1077 = vunpack.c.0.s8 %v1076
  %v1078 = vlaneseq
  %v1079 = vshrl.u32 %v1078, 7
  %v1080 = vsub.s32 %v1077, %v1079
  %v1081 = vrot.slane %v1059, %v1080
  %v1083 = vunpack.c.l.s4 1966171168
  %v1084 = vunpack.c.0.s8 %v1083
  %v1085 = vlaneseq
  %v1086 = vshrl.u32 %v1085, 7
  %v1087 = vsub.s32 %v1084, %v1086
  %v1088 = vrot.slane %v1060, %v1087
  %v1089 = vcombine.high %v1067, %v1067
  %v1090 = vcombine.high %v1074, %v1074
  %v1091 = vcombine.high %v1081, %v1081
  %v1092 = vcombine.high %v1088, %v1088
  %v1093 = vcombine.high %v331, %v331
  %v1095 = vunpack.c.l.s4 1966171168
  %v1096 = vunpack.c.0.s8 %v1095
  %v1097 = vlaneseq
  %v1098 = vshrl.u32 %v1097, 7
  %v1099 = vsub.s32 %v1096, %v1098
  %v1100 = vrot.slane %v331, %v1099
  %v1102 = vunpack.c.l.s4 1966171168
  %v1103 = vunpack.c.0.s8 %v1102
  %v1104 = vlaneseq
  %v1105 = vshrl.u32 %v1104, 7
  %v1106 = vsub.s32 %v1103, %v1105
  %v1107 = vrot.slane %v1093, %v1106
  %v1108 = vcombine.high %v1100, %v1100
  %v1109 = vcombine.high %v1107, %v1107
  %v1111 = vunpack.c.l.s4 1966171168
  %v1112 = vunpack.c.0.s8 %v1111
  %v1113 = vlaneseq
  %v1114 = vshrl.u32 %v1113, 7
  %v1115 = vsub.s32 %v1112, %v1114
  %v1116 = vrot.slane %v1100, %v1115
  %v1118 = vunpack.c.l.s4 1966171168
  %v1119 = vunpack.c.0.s8 %v1118
  %v1120 = vlaneseq
  %v1121 = vshrl.u32 %v1120, 7
  %v1122 = vsub.s32 %v1119, %v1121
  %v1123 = vrot.slane %v1107, %v1122
  %v1125 = vunpack.c.l.s4 1966171168
  %v1126 = vunpack.c.0.s8 %v1125
  %v1127 = vlaneseq
  %v1128 = vshrl.u32 %v1127, 7
  %v1129 = vsub.s32 %v1126, %v1128
  %v1130 = vrot.slane %v1108, %v1129
  %v1132 = vunpack.c.l.s4 1966171168
  %v1133 = vunpack.c.0.s8 %v1132
  %v1134 = vlaneseq
  %v1135 = vshrl.u32 %v1134, 7
  %v1136 = vsub.s32 %v1133, %v1135
  %v1137 = vrot.slane %v1109, %v1136
  %v1138 = vcombine.high %v1116, %v1116
  %v1139 = vcombine.high %v1123, %v1123
  %v1140 = vcombine.high %v1130, %v1130
  %v1141 = vcombine.high %v1137, %v1137
  %v1142 = vcombine.high %v332, %v332
  %v1144 = vunpack.c.l.s4 1966171168
  %v1145 = vunpack.c.0.s8 %v1144
  %v1146 = vlaneseq
  %v1147 = vshrl.u32 %v1146, 7
  %v1148 = vsub.s32 %v1145, %v1147
  %v1149 = vrot.slane %v332, %v1148
  %v1151 = vunpack.c.l.s4 1966171168
  %v1152 = vunpack.c.0.s8 %v1151
  %v1153 = vlaneseq
  %v1154 = vshrl.u32 %v1153, 7
  %v1155 = vsub.s32 %v1152, %v1154
  %v1156 = vrot.slane %v1142, %v1155
  %v1157 = vcombine.high %v1149, %v1149
  %v1158 = vcombine.high %v1156, %v1156
  %v1160 = vunpack.c.l.s4 1966171168
  %v1161 = vunpack.c.0.s8 %v1160
  %v1162 = vlaneseq
  %v1163 = vshrl.u32 %v1162, 7
  %v1164 = vsub.s32 %v1161, %v1163
  %v1165 = vrot.slane %v1149, %v1164
  %v1167 = vunpack.c.l.s4 1966171168
  %v1168 = vunpack.c.0.s8 %v1167
  %v1169 = vlaneseq
  %v1170 = vshrl.u32 %v1169, 7
  %v1171 = vsub.s32 %v1168, %v1170
  %v1172 = vrot.slane %v1156, %v1171
  %v1174 = vunpack.c.l.s4 1966171168
  %v1175 = vunpack.c.0.s8 %v1174
  %v1176 = vlaneseq
  %v1177 = vshrl.u32 %v1176, 7
  %v1178 = vsub.s32 %v1175, %v1177
  %v1179 = vrot.slane %v1157, %v1178
  %v1181 = vunpack.c.l.s4 1966171168
  %v1182 = vunpack.c.0.s8 %v1181
  %v1183 = vlaneseq
  %v1184 = vshrl.u32 %v1183, 7
  %v1185 = vsub.s32 %v1182, %v1184
  %v1186 = vrot.slane %v1158, %v1185
  %v1187 = vcombine.high %v1165, %v1165
  %v1188 = vcombine.high %v1172, %v1172
  %v1189 = vcombine.high %v1179, %v1179
  %v1190 = vcombine.high %v1186, %v1186
  %v1191 = vcombine.high %v333, %v333
  %v1193 = vunpack.c.l.s4 1966171168
  %v1194 = vunpack.c.0.s8 %v1193
  %v1195 = vlaneseq
  %v1196 = vshrl.u32 %v1195, 7
  %v1197 = vsub.s32 %v1194, %v1196
  %v1198 = vrot.slane %v333, %v1197
  %v1200 = vunpack.c.l.s4 1966171168
  %v1201 = vunpack.c.0.s8 %v1200
  %v1202 = vlaneseq
  %v1203 = vshrl.u32 %v1202, 7
  %v1204 = vsub.s32 %v1201, %v1203
  %v1205 = vrot.slane %v1191, %v1204
  %v1206 = vcombine.high %v1198, %v1198
  %v1207 = vcombine.high %v1205, %v1205
  %v1209 = vunpack.c.l.s4 1966171168
  %v1210 = vunpack.c.0.s8 %v1209
  %v1211 = vlaneseq
  %v1212 = vshrl.u32 %v1211, 7
  %v1213 = vsub.s32 %v1210, %v1212
  %v1214 = vrot.slane %v1198, %v1213
  %v1216 = vunpack.c.l.s4 1966171168
  %v1217 = vunpack.c.0.s8 %v1216
  %v1218 = vlaneseq
  %v1219 = vshrl.u32 %v1218, 7
  %v1220 = vsub.s32 %v1217, %v1219
  %v1221 = vrot.slane %v1205, %v1220
  %v1223 = vunpack.c.l.s4 1966171168
  %v1224 = vunpack.c.0.s8 %v1223
  %v1225 = vlaneseq
  %v1226 = vshrl.u32 %v1225, 7
  %v1227 = vsub.s32 %v1224, %v1226
  %v1228 = vrot.slane %v1206, %v1227
  %v1230 = vunpack.c.l.s4 1966171168
  %v1231 = vunpack.c.0.s8 %v1230
  %v1232 = vlaneseq
  %v1233 = vshrl.u32 %v1232, 7
  %v1234 = vsub.s32 %v1231, %v1233
  %v1235 = vrot.slane %v1207, %v1234
  %v1236 = vcombine.high %v1214, %v1214
  %v1237 = vcombine.high %v1221, %v1221
  %v1238 = vcombine.high %v1228, %v1228
  %v1239 = vcombine.high %v1235, %v1235
  %v1240 = vcombine.high %v334, %v334
  %v1242 = vunpack.c.l.s4 1966171168
  %v1243 = vunpack.c.0.s8 %v1242
  %v1244 = vlaneseq
  %v1245 = vshrl.u32 %v1244, 7
  %v1246 = vsub.s32 %v1243, %v1245
  %v1247 = vrot.slane %v334, %v1246
  %v1249 = vunpack.c.l.s4 1966171168
  %v1250 = vunpack.c.0.s8 %v1249
  %v1251 = vlaneseq
  %v1252 = vshrl.u32 %v1251, 7
  %v1253 = vsub.s32 %v1250, %v1252
  %v1254 = vrot.slane %v1240, %v1253
  %v1255 = vcombine.high %v1247, %v1247
  %v1256 = vcombine.high %v1254, %v1254
  %v1258 = vunpack.c.l.s4 1966171168
  %v1259 = vunpack.c.0.s8 %v1258
  %v1260 = vlaneseq
  %v1261 = vshrl.u32 %v1260, 7
  %v1262 = vsub.s32 %v1259, %v1261
  %v1263 = vrot.slane %v1247, %v1262
  %v1265 = vunpack.c.l.s4 1966171168
  %v1266 = vunpack.c.0.s8 %v1265
  %v1267 = vlaneseq
  %v1268 = vshrl.u32 %v1267, 7
  %v1269 = vsub.s32 %v1266, %v1268
  %v1270 = vrot.slane %v1254, %v1269
  %v1272 = vunpack.c.l.s4 1966171168
  %v1273 = vunpack.c.0.s8 %v1272
  %v1274 = vlaneseq
  %v1275 = vshrl.u32 %v1274, 7
  %v1276 = vsub.s32 %v1273, %v1275
  %v1277 = vrot.slane %v1255, %v1276
  %v1279 = vunpack.c.l.s4 1966171168
  %v1280 = vunpack.c.0.s8 %v1279
  %v1281 = vlaneseq
  %v1282 = vshrl.u32 %v1281, 7
  %v1283 = vsub.s32 %v1280, %v1282
  %v1284 = vrot.slane %v1256, %v1283
  %v1285 = vcombine.high %v1263, %v1263
  %v1286 = vcombine.high %v1270, %v1270
  %v1287 = vcombine.high %v1277, %v1277
  %v1288 = vcombine.high %v1284, %v1284
  %v1289 = vcombine.high %v335, %v335
  %v1291 = vunpack.c.l.s4 1966171168
  %v1292 = vunpack.c.0.s8 %v1291
  %v1293 = vlaneseq
  %v1294 = vshrl.u32 %v1293, 7
  %v1295 = vsub.s32 %v1292, %v1294
  %v1296 = vrot.slane %v335, %v1295
  %v1298 = vunpack.c.l.s4 1966171168
  %v1299 = vunpack.c.0.s8 %v1298
  %v1300 = vlaneseq
  %v1301 = vshrl.u32 %v1300, 7
  %v1302 = vsub.s32 %v1299, %v1301
  %v1303 = vrot.slane %v1289, %v1302
  %v1304 = vcombine.high %v1296, %v1296
  %v1305 = vcombine.high %v1303, %v1303
  %v1307 = vunpack.c.l.s4 1966171168
  %v1308 = vunpack.c.0.s8 %v1307
  %v1309 = vlaneseq
  %v1310 = vshrl.u32 %v1309, 7
  %v1311 = vsub.s32 %v1308, %v1310
  %v1312 = vrot.slane %v1296, %v1311
  %v1314 = vunpack.c.l.s4 1966171168
  %v1315 = vunpack.c.0.s8 %v1314
  %v1316 = vlaneseq
  %v1317 = vshrl.u32 %v1316, 7
  %v1318 = vsub.s32 %v1315, %v1317
  %v1319 = vrot.slane %v1303, %v1318
  %v1321 = vunpack.c.l.s4 1966171168
  %v1322 = vunpack.c.0.s8 %v1321
  %v1323 = vlaneseq
  %v1324 = vshrl.u32 %v1323, 7
  %v1325 = vsub.s32 %v1322, %v1324
  %v1326 = vrot.slane %v1304, %v1325
  %v1328 = vunpack.c.l.s4 1966171168
  %v1329 = vunpack.c.0.s8 %v1328
  %v1330 = vlaneseq
  %v1331 = vshrl.u32 %v1330, 7
  %v1332 = vsub.s32 %v1329, %v1331
  %v1333 = vrot.slane %v1305, %v1332
  %v1334 = vcombine.high %v1312, %v1312
  %v1335 = vcombine.high %v1319, %v1319
  %v1336 = vcombine.high %v1326, %v1326
  %v1337 = vcombine.high %v1333, %v1333
  %v1339 = vunpack.c.l.s4 1966171168
  %v1340 = vunpack.c.0.s8 %v1339
  %v1341 = vlaneseq
  %v1342 = vshrl.u32 %v1341, 7
  %v1343 = vsub.s32 %v1340, %v1342
  %v1344 = vrot.slane %v336, %v1343
  %v1345 = vcombine.high %v1344, %v1344
  %v1347 = vunpack.c.l.s4 1966171168
  %v1348 = vunpack.c.0.s8 %v1347
  %v1349 = vlaneseq
  %v1350 = vshrl.u32 %v1349, 7
  %v1351 = vsub.s32 %v1348, %v1350
  %v1352 = vrot.slane %v1344, %v1351
  %v1354 = vunpack.c.l.s4 1966171168
  %v1355 = vunpack.c.0.s8 %v1354
  %v1356 = vlaneseq
  %v1357 = vshrl.u32 %v1356, 7
  %v1358 = vsub.s32 %v1355, %v1357
  %v1359 = vrot.slane %v1345, %v1358
  %v1360 = vld [vmem:[%s3] sm:$0xff]
  %v1361 = vld [vmem:[%s3 + $0x8] sm:$0xff]
  %s1362 = scalar_lea.vmem %s3, 16
  %v1363 = vld [vmem:[%s1362] sm:$0xff]
  %v1364 = vld [vmem:[%s1362 + $0x8] sm:$0xff]
  %v1365 = vcombine.low %v395, %v403
  %v1366 = vcombine.low %v405, %v388
  %v1367 = vcombine.low %v402, %v404
  %v1368 = vcombine.low %v406, %v452
  %v1370 = vunpack.c.l.s4 1966171168
  %v1371 = vunpack.c.0.s8 %v1370
  %v1372 = vlaneseq
  %v1373 = vshrl.u32 %v1372, 7
  %v1374 = vsub.s32 %v1371, %v1373
  %v1375 = vrot.slane %v1365, %v1374
  %v1377 = vunpack.c.l.s4 1966171168
  %v1378 = vunpack.c.0.s8 %v1377
  %v1379 = vlaneseq
  %v1380 = vshrl.u32 %v1379, 7
  %v1381 = vsub.s32 %v1378, %v1380
  %v1382 = vrot.slane %v1366, %v1381
  %v1384 = vunpack.c.l.s4 1966171168
  %v1385 = vunpack.c.0.s8 %v1384
  %v1386 = vlaneseq
  %v1387 = vshrl.u32 %v1386, 7
  %v1388 = vsub.s32 %v1385, %v1387
  %v1389 = vrot.slane %v1367, %v1388
  %v1391 = vunpack.c.l.s4 1966171168
  %v1392 = vunpack.c.0.s8 %v1391
  %v1393 = vlaneseq
  %v1394 = vshrl.u32 %v1393, 7
  %v1395 = vsub.s32 %v1392, %v1394
  %v1396 = vrot.slane %v1368, %v1395
  %v1397 = vcombine.low %v1375, %v1382
  %v1398 = vcombine.low %v1389, %v1396
  %v1400 = vunpack.c.l.s4 1966171168
  %v1401 = vunpack.c.0.s8 %v1400
  %v1402 = vlaneseq
  %v1403 = vshrl.u32 %v1402, 7
  %v1404 = vsub.s32 %v1401, %v1403
  %v1405 = vrot.slane %v1397, %v1404
  %v1407 = vunpack.c.l.s4 1966171168
  %v1408 = vunpack.c.0.s8 %v1407
  %v1409 = vlaneseq
  %v1410 = vshrl.u32 %v1409, 7
  %v1411 = vsub.s32 %v1408, %v1410
  %v1412 = vrot.slane %v1398, %v1411
  %v1413 = vcombine.low %v1405, %v1412
  %v1414 = vcombine.low %v454, %v437
  %v1415 = vcombine.low %v451, %v453
  %v1416 = vcombine.low %v455, %v479
  %v1417 = vcombine.low %v503, %v486
  %v1419 = vunpack.c.l.s4 1966171168
  %v1420 = vunpack.c.0.s8 %v1419
  %v1421 = vlaneseq
  %v1422 = vshrl.u32 %v1421, 7
  %v1423 = vsub.s32 %v1420, %v1422
  %v1424 = vrot.slane %v1414, %v1423
  %v1426 = vunpack.c.l.s4 1966171168
  %v1427 = vunpack.c.0.s8 %v1426
  %v1428 = vlaneseq
  %v1429 = vshrl.u32 %v1428, 7
  %v1430 = vsub.s32 %v1427, %v1429
  %v1431 = vrot.slane %v1415, %v1430
  %v1433 = vunpack.c.l.s4 1966171168
  %v1434 = vunpack.c.0.s8 %v1433
  %v1435 = vlaneseq
  %v1436 = vshrl.u32 %v1435, 7
  %v1437 = vsub.s32 %v1434, %v1436
  %v1438 = vrot.slane %v1416, %v1437
  %v1440 = vunpack.c.l.s4 1966171168
  %v1441 = vunpack.c.0.s8 %v1440
  %v1442 = vlaneseq
  %v1443 = vshrl.u32 %v1442, 7
  %v1444 = vsub.s32 %v1441, %v1443
  %v1445 = vrot.slane %v1417, %v1444
  %v1446 = vcombine.low %v1424, %v1431
  %v1447 = vcombine.low %v1438, %v1445
  %v1449 = vunpack.c.l.s4 1966171168
  %v1450 = vunpack.c.0.s8 %v1449
  %v1451 = vlaneseq
  %v1452 = vshrl.u32 %v1451, 7
  %v1453 = vsub.s32 %v1450, %v1452
  %v1454 = vrot.slane %v1446, %v1453
  %v1456 = vunpack.c.l.s4 1966171168
  %v1457 = vunpack.c.0.s8 %v1456
  %v1458 = vlaneseq
  %v1459 = vshrl.u32 %v1458, 7
  %v1460 = vsub.s32 %v1457, %v1459
  %v1461 = vrot.slane %v1447, %v1460
  %v1462 = vcombine.low %v1454, %v1461
  %v1463 = vcombine.low %v500, %v502
  %v1464 = vcombine.low %v504, %v528
  %v1465 = vcombine.low %v542, %v535
  %v1466 = vcombine.low %v549, %v551
  %v1468 = vunpack.c.l.s4 1966171168
  %v1469 = vunpack.c.0.s8 %v1468
  %v1470 = vlaneseq
  %v1471 = vshrl.u32 %v1470, 7
  %v1472 = vsub.s32 %v1469, %v1471
  %v1473 = vrot.slane %v1463, %v1472
  %v1475 = vunpack.c.l.s4 1966171168
  %v1476 = vunpack.c.0.s8 %v1475
  %v1477 = vlaneseq
  %v1478 = vshrl.u32 %v1477, 7
  %v1479 = vsub.s32 %v1476, %v1478
  %v1480 = vrot.slane %v1464, %v1479
  %v1482 = vunpack.c.l.s4 1966171168
  %v1483 = vunpack.c.0.s8 %v1482
  %v1484 = vlaneseq
  %v1485 = vshrl.u32 %v1484, 7
  %v1486 = vsub.s32 %v1483, %v1485
  %v1487 = vrot.slane %v1465, %v1486
  %v1489 = vunpack.c.l.s4 1966171168
  %v1490 = vunpack.c.0.s8 %v1489
  %v1491 = vlaneseq
  %v1492 = vshrl.u32 %v1491, 7
  %v1493 = vsub.s32 %v1490, %v1492
  %v1494 = vrot.slane %v1466, %v1493
  %v1495 = vcombine.low %v1473, %v1480
  %v1496 = vcombine.low %v1487, %v1494
  %v1498 = vunpack.c.l.s4 1966171168
  %v1499 = vunpack.c.0.s8 %v1498
  %v1500 = vlaneseq
  %v1501 = vshrl.u32 %v1500, 7
  %v1502 = vsub.s32 %v1499, %v1501
  %v1503 = vrot.slane %v1495, %v1502
  %v1505 = vunpack.c.l.s4 1966171168
  %v1506 = vunpack.c.0.s8 %v1505
  %v1507 = vlaneseq
  %v1508 = vshrl.u32 %v1507, 7
  %v1509 = vsub.s32 %v1506, %v1508
  %v1510 = vrot.slane %v1496, %v1509
  %v1511 = vcombine.low %v1503, %v1510
  %v1512 = vcombine.low %v553, %v577
  %v1513 = vcombine.low %v591, %v599
  %v1514 = vcombine.low %v598, %v600
  %v1515 = vcombine.low %v602, %v626
  %v1517 = vunpack.c.l.s4 1966171168
  %v1518 = vunpack.c.0.s8 %v1517
  %v1519 = vlaneseq
  %v1520 = vshrl.u32 %v1519, 7
  %v1521 = vsub.s32 %v1518, %v1520
  %v1522 = vrot.slane %v1512, %v1521
  %v1524 = vunpack.c.l.s4 1966171168
  %v1525 = vunpack.c.0.s8 %v1524
  %v1526 = vlaneseq
  %v1527 = vshrl.u32 %v1526, 7
  %v1528 = vsub.s32 %v1525, %v1527
  %v1529 = vrot.slane %v1513, %v1528
  %v1531 = vunpack.c.l.s4 1966171168
  %v1532 = vunpack.c.0.s8 %v1531
  %v1533 = vlaneseq
  %v1534 = vshrl.u32 %v1533, 7
  %v1535 = vsub.s32 %v1532, %v1534
  %v1536 = vrot.slane %v1514, %v1535
  %v1538 = vunpack.c.l.s4 1966171168
  %v1539 = vunpack.c.0.s8 %v1538
  %v1540 = vlaneseq
  %v1541 = vshrl.u32 %v1540, 7
  %v1542 = vsub.s32 %v1539, %v1541
  %v1543 = vrot.slane %v1515, %v1542
  %v1544 = vcombine.low %v1522, %v1529
  %v1545 = vcombine.low %v1536, %v1543
  %v1547 = vunpack.c.l.s4 1966171168
  %v1548 = vunpack.c.0.s8 %v1547
  %v1549 = vlaneseq
  %v1550 = vshrl.u32 %v1549, 7
  %v1551 = vsub.s32 %v1548, %v1550
  %v1552 = vrot.slane %v1544, %v1551
  %v1554 = vunpack.c.l.s4 1966171168
  %v1555 = vunpack.c.0.s8 %v1554
  %v1556 = vlaneseq
  %v1557 = vshrl.u32 %v1556, 7
  %v1558 = vsub.s32 %v1555, %v1557
  %v1559 = vrot.slane %v1545, %v1558
  %v1560 = vcombine.low %v1552, %v1559
  %v1561 = vcombine.low %v640, %v648
  %v1562 = vcombine.low %v650, %v649
  %v1563 = vcombine.low %v651, %v675
  %v1564 = vcombine.low %v689, %v697
  %v1566 = vunpack.c.l.s4 1966171168
  %v1567 = vunpack.c.0.s8 %v1566
  %v1568 = vlaneseq
  %v1569 = vshrl.u32 %v1568, 7
  %v1570 = vsub.s32 %v1567, %v1569
  %v1571 = vrot.slane %v1561, %v1570
  %v1573 = vunpack.c.l.s4 1966171168
  %v1574 = vunpack.c.0.s8 %v1573
  %v1575 = vlaneseq
  %v1576 = vshrl.u32 %v1575, 7
  %v1577 = vsub.s32 %v1574, %v1576
  %v1578 = vrot.slane %v1562, %v1577
  %v1580 = vunpack.c.l.s4 1966171168
  %v1581 = vunpack.c.0.s8 %v1580
  %v1582 = vlaneseq
  %v1583 = vshrl.u32 %v1582, 7
  %v1584 = vsub.s32 %v1581, %v1583
  %v1585 = vrot.slane %v1563, %v1584
  %v1587 = vunpack.c.l.s4 1966171168
  %v1588 = vunpack.c.0.s8 %v1587
  %v1589 = vlaneseq
  %v1590 = vshrl.u32 %v1589, 7
  %v1591 = vsub.s32 %v1588, %v1590
  %v1592 = vrot.slane %v1564, %v1591
  %v1593 = vcombine.low %v1571, %v1578
  %v1594 = vcombine.low %v1585, %v1592
  %v1596 = vunpack.c.l.s4 1966171168
  %v1597 = vunpack.c.0.s8 %v1596
  %v1598 = vlaneseq
  %v1599 = vshrl.u32 %v1598, 7
  %v1600 = vsub.s32 %v1597, %v1599
  %v1601 = vrot.slane %v1593, %v1600
  %v1603 = vunpack.c.l.s4 1966171168
  %v1604 = vunpack.c.0.s8 %v1603
  %v1605 = vlaneseq
  %v1606 = vshrl.u32 %v1605, 7
  %v1607 = vsub.s32 %v1604, %v1606
  %v1608 = vrot.slane %v1594, %v1607
  %v1609 = vcombine.low %v1601, %v1608
  %v1610 = vcombine.low %v699, %v682
  %v1611 = vcombine.low %v700, %v724
  %v1612 = vcombine.low %v738, %v746
  %v1613 = vcombine.low %v748, %v731
  %v1615 = vunpack.c.l.s4 1966171168
  %v1616 = vunpack.c.0.s8 %v1615
  %v1617 = vlaneseq
  %v1618 = vshrl.u32 %v1617, 7
  %v1619 = vsub.s32 %v1616, %v1618
  %v1620 = vrot.slane %v1610, %v1619
  %v1622 = vunpack.c.l.s4 1966171168
  %v1623 = vunpack.c.0.s8 %v1622
  %v1624 = vlaneseq
  %v1625 = vshrl.u32 %v1624, 7
  %v1626 = vsub.s32 %v1623, %v1625
  %v1627 = vrot.slane %v1611, %v1626
  %v1629 = vunpack.c.l.s4 1966171168
  %v1630 = vunpack.c.0.s8 %v1629
  %v1631 = vlaneseq
  %v1632 = vshrl.u32 %v1631, 7
  %v1633 = vsub.s32 %v1630, %v1632
  %v1634 = vrot.slane %v1612, %v1633
  %v1636 = vunpack.c.l.s4 1966171168
  %v1637 = vunpack.c.0.s8 %v1636
  %v1638 = vlaneseq
  %v1639 = vshrl.u32 %v1638, 7
  %v1640 = vsub.s32 %v1637, %v1639
  %v1641 = vrot.slane %v1613, %v1640
  %v1642 = vcombine.low %v1620, %v1627
  %v1643 = vcombine.low %v1634, %v1641
  %v1645 = vunpack.c.l.s4 1966171168
  %v1646 = vunpack.c.0.s8 %v1645
  %v1647 = vlaneseq
  %v1648 = vshrl.u32 %v1647, 7
  %v1649 = vsub.s32 %v1646, %v1648
  %v1650 = vrot.slane %v1642, %v1649
  %v1652 = vunpack.c.l.s4 1966171168
  %v1653 = vunpack.c.0.s8 %v1652
  %v1654 = vlaneseq
  %v1655 = vshrl.u32 %v1654, 7
  %v1656 = vsub.s32 %v1653, %v1655
  %v1657 = vrot.slane %v1643, %v1656
  %v1658 = vcombine.low %v1650, %v1657
  %v1659 = vcombine.low %v745, %v893
  %v1660 = vcombine.low %v895, %v878
  %v1661 = vcombine.low %v892, %v894
  %v1662 = vcombine.low %v896, %v920
  %v1664 = vunpack.c.l.s4 1966171168
  %v1665 = vunpack.c.0.s8 %v1664
  %v1666 = vlaneseq
  %v1667 = vshrl.u32 %v1666, 7
  %v1668 = vsub.s32 %v1665, %v1667
  %v1669 = vrot.slane %v1659, %v1668
  %v1671 = vunpack.c.l.s4 1966171168
  %v1672 = vunpack.c.0.s8 %v1671
  %v1673 = vlaneseq
  %v1674 = vshrl.u32 %v1673, 7
  %v1675 = vsub.s32 %v1672, %v1674
  %v1676 = vrot.slane %v1660, %v1675
  %v1678 = vunpack.c.l.s4 1966171168
  %v1679 = vunpack.c.0.s8 %v1678
  %v1680 = vlaneseq
  %v1681 = vshrl.u32 %v1680, 7
  %v1682 = vsub.s32 %v1679, %v1681
  %v1683 = vrot.slane %v1661, %v1682
  %v1685 = vunpack.c.l.s4 1966171168
  %v1686 = vunpack.c.0.s8 %v1685
  %v1687 = vlaneseq
  %v1688 = vshrl.u32 %v1687, 7
  %v1689 = vsub.s32 %v1686, %v1688
  %v1690 = vrot.slane %v1662, %v1689
  %v1691 = vcombine.low %v1669, %v1676
  %v1692 = vcombine.low %v1683, %v1690
  %v1694 = vunpack.c.l.s4 1966171168
  %v1695 = vunpack.c.0.s8 %v1694
  %v1696 = vlaneseq
  %v1697 = vshrl.u32 %v1696, 7
  %v1698 = vsub.s32 %v1695, %v1697
  %v1699 = vrot.slane %v1691, %v1698
  %v1701 = vunpack.c.l.s4 1966171168
  %v1702 = vunpack.c.0.s8 %v1701
  %v1703 = vlaneseq
  %v1704 = vshrl.u32 %v1703, 7
  %v1705 = vsub.s32 %v1702, %v1704
  %v1706 = vrot.slane %v1692, %v1705
  %v1707 = vcombine.low %v1699, %v1706
  %v1708 = vcombine.low %v944, %v927
  %v1709 = vcombine.low %v941, %v943
  %v1710 = vcombine.low %v945, %v969
  %v1711 = vcombine.low %v983, %v976
  %v1713 = vunpack.c.l.s4 1966171168
  %v1714 = vunpack.c.0.s8 %v1713
  %v1715 = vlaneseq
  %v1716 = vshrl.u32 %v1715, 7
  %v1717 = vsub.s32 %v1714, %v1716
  %v1718 = vrot.slane %v1708, %v1717
  %v1720 = vunpack.c.l.s4 1966171168
  %v1721 = vunpack.c.0.s8 %v1720
  %v1722 = vlaneseq
  %v1723 = vshrl.u32 %v1722, 7
  %v1724 = vsub.s32 %v1721, %v1723
  %v1725 = vrot.slane %v1709, %v1724
  %v1727 = vunpack.c.l.s4 1966171168
  %v1728 = vunpack.c.0.s8 %v1727
  %v1729 = vlaneseq
  %v1730 = vshrl.u32 %v1729, 7
  %v1731 = vsub.s32 %v1728, %v1730
  %v1732 = vrot.slane %v1710, %v1731
  %v1734 = vunpack.c.l.s4 1966171168
  %v1735 = vunpack.c.0.s8 %v1734
  %v1736 = vlaneseq
  %v1737 = vshrl.u32 %v1736, 7
  %v1738 = vsub.s32 %v1735, %v1737
  %v1739 = vrot.slane %v1711, %v1738
  %v1740 = vcombine.low %v1718, %v1725
  %v1741 = vcombine.low %v1732, %v1739
  %v1743 = vunpack.c.l.s4 1966171168
  %v1744 = vunpack.c.0.s8 %v1743
  %v1745 = vlaneseq
  %v1746 = vshrl.u32 %v1745, 7
  %v1747 = vsub.s32 %v1744, %v1746
  %v1748 = vrot.slane %v1740, %v1747
  %v1750 = vunpack.c.l.s4 1966171168
  %v1751 = vunpack.c.0.s8 %v1750
  %v1752 = vlaneseq
  %v1753 = vshrl.u32 %v1752, 7
  %v1754 = vsub.s32 %v1751, %v1753
  %v1755 = vrot.slane %v1741, %v1754
  %v1756 = vcombine.low %v1748, %v1755
  %v1757 = vcombine.low %v990, %v992
  %v1758 = vcombine.low %v994, %v1018
  %v1759 = vcombine.low %v1032, %v1040
  %v1760 = vcombine.low %v1039, %v1041
  %v1762 = vunpack.c.l.s4 1966171168
  %v1763 = vunpack.c.0.s8 %v1762
  %v1764 = vlaneseq
  %v1765 = vshrl.u32 %v1764, 7
  %v1766 = vsub.s32 %v1763, %v1765
  %v1767 = vrot.slane %v1757, %v1766
  %v1769 = vunpack.c.l.s4 1966171168
  %v1770 = vunpack.c.0.s8 %v1769
  %v1771 = vlaneseq
  %v1772 = vshrl.u32 %v1771, 7
  %v1773 = vsub.s32 %v1770, %v1772
  %v1774 = vrot.slane %v1758, %v1773
  %v1776 = vunpack.c.l.s4 1966171168
  %v1777 = vunpack.c.0.s8 %v1776
  %v1778 = vlaneseq
  %v1779 = vshrl.u32 %v1778, 7
  %v1780 = vsub.s32 %v1777, %v1779
  %v1781 = vrot.slane %v1759, %v1780
  %v1783 = vunpack.c.l.s4 1966171168
  %v1784 = vunpack.c.0.s8 %v1783
  %v1785 = vlaneseq
  %v1786 = vshrl.u32 %v1785, 7
  %v1787 = vsub.s32 %v1784, %v1786
  %v1788 = vrot.slane %v1760, %v1787
  %v1789 = vcombine.low %v1767, %v1774
  %v1790 = vcombine.low %v1781, %v1788
  %v1792 = vunpack.c.l.s4 1966171168
  %v1793 = vunpack.c.0.s8 %v1792
  %v1794 = vlaneseq
  %v1795 = vshrl.u32 %v1794, 7
  %v1796 = vsub.s32 %v1793, %v1795
  %v1797 = vrot.slane %v1789, %v1796
  %v1799 = vunpack.c.l.s4 1966171168
  %v1800 = vunpack.c.0.s8 %v1799
  %v1801 = vlaneseq
  %v1802 = vshrl.u32 %v1801, 7
  %v1803 = vsub.s32 %v1800, %v1802
  %v1804 = vrot.slane %v1790, %v1803
  %v1805 = vcombine.low %v1797, %v1804
  %v1806 = vcombine.low %v1043, %v1067
  %v1807 = vcombine.low %v1081, %v1089
  %v1808 = vcombine.low %v1091, %v1090
  %v1809 = vcombine.low %v1092, %v1116
  %v1811 = vunpack.c.l.s4 1966171168
  %v1812 = vunpack.c.0.s8 %v1811
  %v1813 = vlaneseq
  %v1814 = vshrl.u32 %v1813, 7
  %v1815 = vsub.s32 %v1812, %v1814
  %v1816 = vrot.slane %v1806, %v1815
  %v1818 = vunpack.c.l.s4 1966171168
  %v1819 = vunpack.c.0.s8 %v1818
  %v1820 = vlaneseq
  %v1821 = vshrl.u32 %v1820, 7
  %v1822 = vsub.s32 %v1819, %v1821
  %v1823 = vrot.slane %v1807, %v1822
  %v1825 = vunpack.c.l.s4 1966171168
  %v1826 = vunpack.c.0.s8 %v1825
  %v1827 = vlaneseq
  %v1828 = vshrl.u32 %v1827, 7
  %v1829 = vsub.s32 %v1826, %v1828
  %v1830 = vrot.slane %v1808, %v1829
  %v1832 = vunpack.c.l.s4 1966171168
  %v1833 = vunpack.c.0.s8 %v1832
  %v1834 = vlaneseq
  %v1835 = vshrl.u32 %v1834, 7
  %v1836 = vsub.s32 %v1833, %v1835
  %v1837 = vrot.slane %v1809, %v1836
  %v1838 = vcombine.low %v1816, %v1823
  %v1839 = vcombine.low %v1830, %v1837
  %v1841 = vunpack.c.l.s4 1966171168
  %v1842 = vunpack.c.0.s8 %v1841
  %v1843 = vlaneseq
  %v1844 = vshrl.u32 %v1843, 7
  %v1845 = vsub.s32 %v1842, %v1844
  %v1846 = vrot.slane %v1838, %v1845
  %v1848 = vunpack.c.l.s4 1966171168
  %v1849 = vunpack.c.0.s8 %v1848
  %v1850 = vlaneseq
  %v1851 = vshrl.u32 %v1850, 7
  %v1852 = vsub.s32 %v1849, %v1851
  %v1853 = vrot.slane %v1839, %v1852
  %v1854 = vcombine.low %v1846, %v1853
  %v1855 = vcombine.low %v1130, %v1138
  %v1856 = vcombine.low %v1140, %v1123
  %v1857 = vcombine.low %v1141, %v1165
  %v1858 = vcombine.low %v1179, %v1187
  %v1860 = vunpack.c.l.s4 1966171168
  %v1861 = vunpack.c.0.s8 %v1860
  %v1862 = vlaneseq
  %v1863 = vshrl.u32 %v1862, 7
  %v1864 = vsub.s32 %v1861, %v1863
  %v1865 = vrot.slane %v1855, %v1864
  %v1867 = vunpack.c.l.s4 1966171168
  %v1868 = vunpack.c.0.s8 %v1867
  %v1869 = vlaneseq
  %v1870 = vshrl.u32 %v1869, 7
  %v1871 = vsub.s32 %v1868, %v1870
  %v1872 = vrot.slane %v1856, %v1871
  %v1874 = vunpack.c.l.s4 1966171168
  %v1875 = vunpack.c.0.s8 %v1874
  %v1876 = vlaneseq
  %v1877 = vshrl.u32 %v1876, 7
  %v1878 = vsub.s32 %v1875, %v1877
  %v1879 = vrot.slane %v1857, %v1878
  %v1881 = vunpack.c.l.s4 1966171168
  %v1882 = vunpack.c.0.s8 %v1881
  %v1883 = vlaneseq
  %v1884 = vshrl.u32 %v1883, 7
  %v1885 = vsub.s32 %v1882, %v1884
  %v1886 = vrot.slane %v1858, %v1885
  %v1887 = vcombine.low %v1865, %v1872
  %v1888 = vcombine.low %v1879, %v1886
  %v1890 = vunpack.c.l.s4 1966171168
  %v1891 = vunpack.c.0.s8 %v1890
  %v1892 = vlaneseq
  %v1893 = vshrl.u32 %v1892, 7
  %v1894 = vsub.s32 %v1891, %v1893
  %v1895 = vrot.slane %v1887, %v1894
  %v1897 = vunpack.c.l.s4 1966171168
  %v1898 = vunpack.c.0.s8 %v1897
  %v1899 = vlaneseq
  %v1900 = vshrl.u32 %v1899, 7
  %v1901 = vsub.s32 %v1898, %v1900
  %v1902 = vrot.slane %v1888, %v1901
  %v1903 = vcombine.low %v1895, %v1902
  %v1904 = vcombine.low %v1189, %v1172
  %v1905 = vcombine.low %v1186, %v1214
  %v1906 = vcombine.low %v1228, %v1236
  %v1907 = vcombine.low %v1238, %v1221
  %v1909 = vunpack.c.l.s4 1966171168
  %v1910 = vunpack.c.0.s8 %v1909
  %v1911 = vlaneseq
  %v1912 = vshrl.u32 %v1911, 7
  %v1913 = vsub.s32 %v1910, %v1912
  %v1914 = vrot.slane %v1904, %v1913
  %v1916 = vunpack.c.l.s4 1966171168
  %v1917 = vunpack.c.0.s8 %v1916
  %v1918 = vlaneseq
  %v1919 = vshrl.u32 %v1918, 7
  %v1920 = vsub.s32 %v1917, %v1919
  %v1921 = vrot.slane %v1905, %v1920
  %v1923 = vunpack.c.l.s4 1966171168
  %v1924 = vunpack.c.0.s8 %v1923
  %v1925 = vlaneseq
  %v1926 = vshrl.u32 %v1925, 7
  %v1927 = vsub.s32 %v1924, %v1926
  %v1928 = vrot.slane %v1906, %v1927
  %v1930 = vunpack.c.l.s4 1966171168
  %v1931 = vunpack.c.0.s8 %v1930
  %v1932 = vlaneseq
  %v1933 = vshrl.u32 %v1932, 7
  %v1934 = vsub.s32 %v1931, %v1933
  %v1935 = vrot.slane %v1907, %v1934
  %v1936 = vcombine.low %v1914, %v1921
  %v1937 = vcombine.low %v1928, %v1935
  %v1939 = vunpack.c.l.s4 1966171168
  %v1940 = vunpack.c.0.s8 %v1939
  %v1941 = vlaneseq
  %v1942 = vshrl.u32 %v1941, 7
  %v1943 = vsub.s32 %v1940, %v1942
  %v1944 = vrot.slane %v1936, %v1943
  %v1946 = vunpack.c.l.s4 1966171168
  %v1947 = vunpack.c.0.s8 %v1946
  %v1948 = vlaneseq
  %v1949 = vshrl.u32 %v1948, 7
  %v1950 = vsub.s32 %v1947, %v1949
  %v1951 = vrot.slane %v1937, %v1950
  %v1952 = vcombine.low %v1944, %v1951
  %v1953 = vcombine.low %v1235, %v1237
  %v1955 = vunpack.c.l.s4 1966171168
  %v1956 = vunpack.c.0.s8 %v1955
  %v1957 = vlaneseq
  %v1958 = vshrl.u32 %v1957, 7
  %v1959 = vsub.s32 %v1956, %v1958
  %v1960 = vrot.slane %v1953, %v1959
  %v1962 = vunpack.c.l.s4 1966171168
  %v1963 = vunpack.c.0.s8 %v1962
  %v1964 = vlaneseq
  %v1965 = vshrl.u32 %v1964, 7
  %v1966 = vsub.s32 %v1963, %v1965
  %v1967 = vrot.slane %v1960, %v1966
  %vm1968 = vcmask 130048
  %v1969 = vsel %vm1968, %v1413, 0
  %v1971 = vsel %vm1968, %v1462, 0
  %v1973 = vsel %vm1968, %v1511, 0
  %v1975 = vsel %vm1968, %v1560, 0
  %v1977 = vsel %vm1968, %v1609, 0
  %v1979 = vsel %vm1968, %v1658, 0
  %v1981 = vsel %vm1968, %v1707, 0
  %v1983 = vsel %vm1968, %v1756, 0
  %v1985 = vsel %vm1968, %v1805, 0
  %v1987 = vsel %vm1968, %v1854, 0
  %v1989 = vsel %vm1968, %v1903, 0
  %v1991 = vsel %vm1968, %v1952, 0
  %v1993 = vsel %vm1968, %v1967, 0
  %1995 = vmatprep.subr.mxu0 0.0
  %1996 = vmatpush1.msra.mxu0 %v1363
  %1997 = vmatprep.subr.mxu0 0.0
  %1998 = vmatpush1.msra.mxu0 %v1364
  %1999 = vmatprep.subr.mxu0 0.0
  %2000 = vmatpush1.msra.mxu0 0.0
  %2001 = vmatprep.subr.mxu0 0.0
  %2002 = vmatpush1.msra.mxu0 0.0
  %2003 = vmatprep.subr.mxu0 0.0
  %2004 = vmatpush1.msra.mxu0 0.0
  %2005 = vmatprep.subr.mxu0 0.0
  %2006 = vmatpush1.msra.mxu0 0.0
  %2007 = vmatprep.subr.mxu0 0.0
  %2008 = vmatpush1.msra.mxu0 0.0
  %2009 = vmatprep.subr.mxu0 0.0
  %2010 = vmatpush1.msra.mxu0 0.0
  %2011 = vmatprep.subr.mxu0 0.0
  %2012 = vmatpush1.msra.mxu0 0.0
  %2013 = vmatprep.subr.mxu0 0.0
  %2014 = vmatpush1.msra.mxu0 0.0
  %2015 = vmatprep.subr.mxu0 0.0
  %2016 = vmatpush1.msra.mxu0 0.0
  %2017 = vmatprep.subr.mxu0 0.0
  %2018 = vmatpush1.msra.mxu0 0.0
  %2019 = vmatprep.subr.mxu0 0.0
  %2020 = vmatpush1.msra.mxu0 0.0
  %2021 = vmatprep.subr.mxu0 0.0
  %2022 = vmatpush1.msra.mxu0 0.0
  %2023 = vmatprep.subr.mxu0 0.0
  %2024 = vmatpush1.msra.mxu0 0.0
  %2025 = vmatprep.subr.mxu0 0.0
  %2026 = vmatpush1.msra.mxu0 0.0
  %2027 = vmatprep.subr.mxu0 0.0
  %2028 = vmatpush1.msra.mxu0 0.0
  %2029 = vmatprep.subr.mxu0 0.0
  %2030 = vmatpush1.msra.mxu0 0.0
  %2031 = vmatprep.subr.mxu0 0.0
  %2032 = vmatpush1.msra.mxu0 0.0
  %2033 = vmatprep.subr.mxu0 0.0
  %2034 = vmatpush1.msra.mxu0 0.0
  %2035 = vmatprep.subr.mxu0 0.0
  %2036 = vmatpush1.msra.mxu0 0.0
  %2037 = vmatprep.subr.mxu0 0.0
  %2038 = vmatpush1.msra.mxu0 0.0
  %2039 = vmatprep.subr.mxu0 0.0
  %2040 = vmatpush1.msra.mxu0 0.0
  %2041 = vmatprep.subr.mxu0 0.0
  %2042 = vmatpush1.msra.mxu0 0.0
  %2043 = vmatprep.subr.mxu0 0.0
  %2044 = vmatpush1.msra.mxu0 0.0
  %2045 = vmatprep.subr.mxu0 0.0
  %2046 = vmatpush1.msra.mxu0 0.0
  %2047 = vmatprep.subr.mxu0 0.0
  %2048 = vmatpush1.msra.mxu0 0.0
  %2049 = vmatprep.subr.mxu0 0.0
  %2050 = vmatpush1.msra.mxu0 0.0
  %2051 = vmatprep.subr.mxu0 0.0
  %2052 = vmatpush1.msra.mxu0 0.0
  %2053 = vmatprep.subr.mxu0 0.0
  %2054 = vmatpush1.msra.mxu0 0.0
  %2055 = vmatprep.subr.mxu0 0.0
  %2056 = vmatpush1.msra.mxu0 0.0
  %2057 = vmatprep.subr.mxu0 0.0
  %2058 = vmatpush1.msra.mxu0 0.0
  %2059 = vmatprep.mubr.f32.mxu0 0.0
  %2060 = vmatmul.mubr.f32.gmra.mrb[0].mxu0 %v1969
  %v2061 = vpop.f32.mrb[0].mxu0
  %v2062 = vadd.f32 0.0, %v2061
  %v2063 = vpop.f32.mrb[0].mxu0
  %2064 = vmatprep.mubr.f32.mxu0 0.0
  %2065 = vmatmul.mubr.f32.gmra.mrb[0].mxu0 %v1971
  %v2066 = vpop.f32.mrb[0].mxu0
  %v2067 = vadd.f32 0.0, %v2066
  %v2068 = vpop.f32.mrb[0].mxu0
  %2069 = vmatprep.mubr.f32.mxu0 0.0
  %2070 = vmatmul.mubr.f32.gmra.mrb[0].mxu0 %v1973
  %v2071 = vpop.f32.mrb[0].mxu0
  %v2072 = vadd.f32 0.0, %v2071
  %v2073 = vpop.f32.mrb[0].mxu0
  %2074 = vmatprep.mubr.f32.mxu0 0.0
  %2075 = vmatmul.mubr.f32.gmra.mrb[0].mxu0 %v1975
  %v2076 = vpop.f32.mrb[0].mxu0
  %v2077 = vadd.f32 0.0, %v2076
  %v2078 = vpop.f32.mrb[0].mxu0
  %2079 = vmatprep.mubr.f32.mxu0 0.0
  %2080 = vmatmul.mubr.f32.gmra.mrb[0].mxu0 %v1977
  %v2081 = vpop.f32.mrb[0].mxu0
  %v2082 = vadd.f32 0.0, %v2081
  %v2083 = vpop.f32.mrb[0].mxu0
  %2084 = vmatprep.mubr.f32.mxu0 0.0
  %2085 = vmatmul.mubr.f32.gmra.mrb[0].mxu0 %v1979
  %v2086 = vpop.f32.mrb[0].mxu0
  %v2087 = vadd.f32 0.0, %v2086
  %v2088 = vpop.f32.mrb[0].mxu0
  %2089 = vmatprep.mubr.f32.mxu0 0.0
  %2090 = vmatmul.mubr.f32.gmra.mrb[0].mxu0 %v1981
  %v2091 = vpop.f32.mrb[0].mxu0
  %v2092 = vadd.f32 0.0, %v2091
  %v2093 = vpop.f32.mrb[0].mxu0
  %2094 = vmatprep.mubr.f32.mxu0 0.0
  %2095 = vmatmul.mubr.f32.gmra.mrb[0].mxu0 %v1983
  %v2096 = vpop.f32.mrb[0].mxu0
  %v2097 = vadd.f32 0.0, %v2096
  %v2098 = vpop.f32.mrb[0].mxu0
  %2099 = vmatprep.mubr.f32.mxu0 0.0
  %2100 = vmatmul.mubr.f32.gmra.mrb[0].mxu0 %v1985
  %v2101 = vpop.f32.mrb[0].mxu0
  %v2102 = vadd.f32 0.0, %v2101
  %v2103 = vpop.f32.mrb[0].mxu0
  %2104 = vmatprep.mubr.f32.mxu0 0.0
  %2105 = vmatmul.mubr.f32.gmra.mrb[0].mxu0 %v1987
  %v2106 = vpop.f32.mrb[0].mxu0
  %v2107 = vadd.f32 0.0, %v2106
  %v2108 = vpop.f32.mrb[0].mxu0
  %2109 = vmatprep.mubr.f32.mxu0 0.0
  %2110 = vmatmul.mubr.f32.gmra.mrb[0].mxu0 %v1989
  %v2111 = vpop.f32.mrb[0].mxu0
  %v2112 = vadd.f32 0.0, %v2111
  %v2113 = vpop.f32.mrb[0].mxu0
  %2114 = vmatprep.mubr.f32.mxu0 0.0
  %2115 = vmatmul.mubr.f32.gmra.mrb[0].mxu0 %v1991
  %v2116 = vpop.f32.mrb[0].mxu0
  %v2117 = vadd.f32 0.0, %v2116
  %v2118 = vpop.f32.mrb[0].mxu0
  %2119 = vmatprep.mubr.f32.mxu0 0.0
  %2120 = vmatmul.mubr.f32.gmra.mrb[0].mxu0 %v1993
  %v2121 = vpop.f32.mrb[0].mxu0
  %v2122 = vadd.f32 0.0, %v2121
  %v2123 = vpop.f32.mrb[0].mxu0
  %2124 = vdwg.mxu0
  %v2125 = vcombine.low %v381, %v395
  %v2126 = vcombine.low %v403, %v405
  %v2127 = vcombine.low %v388, %v402
  %v2128 = vcombine.low %v404, %v444
  %v2130 = vunpack.c.l.s4 1966171168
  %v2131 = vunpack.c.0.s8 %v2130
  %v2132 = vlaneseq
  %v2133 = vshrl.u32 %v2132, 7
  %v2134 = vsub.s32 %v2131, %v2133
  %v2135 = vrot.slane %v2125, %v2134
  %v2137 = vunpack.c.l.s4 1966171168
  %v2138 = vunpack.c.0.s8 %v2137
  %v2139 = vlaneseq
  %v2140 = vshrl.u32 %v2139, 7
  %v2141 = vsub.s32 %v2138, %v2140
  %v2142 = vrot.slane %v2126, %v2141
  %v2144 = vunpack.c.l.s4 1966171168
  %v2145 = vunpack.c.0.s8 %v2144
  %v2146 = vlaneseq
  %v2147 = vshrl.u32 %v2146, 7
  %v2148 = vsub.s32 %v2145, %v2147
  %v2149 = vrot.slane %v2127, %v2148
  %v2151 = vunpack.c.l.s4 1966171168
  %v2152 = vunpack.c.0.s8 %v2151
  %v2153 = vlaneseq
  %v2154 = vshrl.u32 %v2153, 7
  %v2155 = vsub.s32 %v2152, %v2154
  %v2156 = vrot.slane %v2128, %v2155
  %v2157 = vcombine.low %v2135, %v2142
  %v2158 = vcombine.low %v2149, %v2156
  %v2160 = vunpack.c.l.s4 1966171168
  %v2161 = vunpack.c.0.s8 %v2160
  %v2162 = vlaneseq
  %v2163 = vshrl.u32 %v2162, 7
  %v2164 = vsub.s32 %v2161, %v2163
  %v2165 = vrot.slane %v2157, %v2164
  %v2167 = vunpack.c.l.s4 1966171168
  %v2168 = vunpack.c.0.s8 %v2167
  %v2169 = vlaneseq
  %v2170 = vshrl.u32 %v2169, 7
  %v2171 = vsub.s32 %v2168, %v2170
  %v2172 = vrot.slane %v2158, %v2171
  %v2173 = vcombine.low %v2165, %v2172
  %v2174 = vcombine.low %v452, %v454
  %v2175 = vcombine.low %v437, %v451
  %v2176 = vcombine.low %v453, %v455
  %v2177 = vcombine.low %v501, %v503
  %v2179 = vunpack.c.l.s4 1966171168
  %v2180 = vunpack.c.0.s8 %v2179
  %v2181 = vlaneseq
  %v2182 = vshrl.u32 %v2181, 7
  %v2183 = vsub.s32 %v2180, %v2182
  %v2184 = vrot.slane %v2174, %v2183
  %v2186 = vunpack.c.l.s4 1966171168
  %v2187 = vunpack.c.0.s8 %v2186
  %v2188 = vlaneseq
  %v2189 = vshrl.u32 %v2188, 7
  %v2190 = vsub.s32 %v2187, %v2189
  %v2191 = vrot.slane %v2175, %v2190
  %v2193 = vunpack.c.l.s4 1966171168
  %v2194 = vunpack.c.0.s8 %v2193
  %v2195 = vlaneseq
  %v2196 = vshrl.u32 %v2195, 7
  %v2197 = vsub.s32 %v2194, %v2196
  %v2198 = vrot.slane %v2176, %v2197
  %v2200 = vunpack.c.l.s4 1966171168
  %v2201 = vunpack.c.0.s8 %v2200
  %v2202 = vlaneseq
  %v2203 = vshrl.u32 %v2202, 7
  %v2204 = vsub.s32 %v2201, %v2203
  %v2205 = vrot.slane %v2177, %v2204
  %v2206 = vcombine.low %v2184, %v2191
  %v2207 = vcombine.low %v2198, %v2205
  %v2209 = vunpack.c.l.s4 1966171168
  %v2210 = vunpack.c.0.s8 %v2209
  %v2211 = vlaneseq
  %v2212 = vshrl.u32 %v2211, 7
  %v2213 = vsub.s32 %v2210, %v2212
  %v2214 = vrot.slane %v2206, %v2213
  %v2216 = vunpack.c.l.s4 1966171168
  %v2217 = vunpack.c.0.s8 %v2216
  %v2218 = vlaneseq
  %v2219 = vshrl.u32 %v2218, 7
  %v2220 = vsub.s32 %v2217, %v2219
  %v2221 = vrot.slane %v2207, %v2220
  %v2222 = vcombine.low %v2214, %v2221
  %v2223 = vcombine.low %v486, %v500
  %v2224 = vcombine.low %v502, %v504
  %v2225 = vcombine.low %v528, %v552
  %v2226 = vcombine.low %v535, %v549
  %v2228 = vunpack.c.l.s4 1966171168
  %v2229 = vunpack.c.0.s8 %v2228
  %v2230 = vlaneseq
  %v2231 = vshrl.u32 %v2230, 7
  %v2232 = vsub.s32 %v2229, %v2231
  %v2233 = vrot.slane %v2223, %v2232
  %v2235 = vunpack.c.l.s4 1966171168
  %v2236 = vunpack.c.0.s8 %v2235
  %v2237 = vlaneseq
  %v2238 = vshrl.u32 %v2237, 7
  %v2239 = vsub.s32 %v2236, %v2238
  %v2240 = vrot.slane %v2224, %v2239
  %v2242 = vunpack.c.l.s4 1966171168
  %v2243 = vunpack.c.0.s8 %v2242
  %v2244 = vlaneseq
  %v2245 = vshrl.u32 %v2244, 7
  %v2246 = vsub.s32 %v2243, %v2245
  %v2247 = vrot.slane %v2225, %v2246
  %v2249 = vunpack.c.l.s4 1966171168
  %v2250 = vunpack.c.0.s8 %v2249
  %v2251 = vlaneseq
  %v2252 = vshrl.u32 %v2251, 7
  %v2253 = vsub.s32 %v2250, %v2252
  %v2254 = vrot.slane %v2226, %v2253
  %v2255 = vcombine.low %v2233, %v2240
  %v2256 = vcombine.low %v2247, %v2254
  %v2258 = vunpack.c.l.s4 1966171168
  %v2259 = vunpack.c.0.s8 %v2258
  %v2260 = vlaneseq
  %v2261 = vshrl.u32 %v2260, 7
  %v2262 = vsub.s32 %v2259, %v2261
  %v2263 = vrot.slane %v2255, %v2262
  %v2265 = vunpack.c.l.s4 1966171168
  %v2266 = vunpack.c.0.s8 %v2265
  %v2267 = vlaneseq
  %v2268 = vshrl.u32 %v2267, 7
  %v2269 = vsub.s32 %v2266, %v2268
  %v2270 = vrot.slane %v2256, %v2269
  %v2271 = vcombine.low %v2263, %v2270
  %v2272 = vcombine.low %v551, %v553
  %v2273 = vcombine.low %v577, %v591
  %v2274 = vcombine.low %v584, %v598
  %v2275 = vcombine.low %v600, %v602
  %v2277 = vunpack.c.l.s4 1966171168
  %v2278 = vunpack.c.0.s8 %v2277
  %v2279 = vlaneseq
  %v2280 = vshrl.u32 %v2279, 7
  %v2281 = vsub.s32 %v2278, %v2280
  %v2282 = vrot.slane %v2272, %v2281
  %v2284 = vunpack.c.l.s4 1966171168
  %v2285 = vunpack.c.0.s8 %v2284
  %v2286 = vlaneseq
  %v2287 = vshrl.u32 %v2286, 7
  %v2288 = vsub.s32 %v2285, %v2287
  %v2289 = vrot.slane %v2273, %v2288
  %v2291 = vunpack.c.l.s4 1966171168
  %v2292 = vunpack.c.0.s8 %v2291
  %v2293 = vlaneseq
  %v2294 = vshrl.u32 %v2293, 7
  %v2295 = vsub.s32 %v2292, %v2294
  %v2296 = vrot.slane %v2274, %v2295
  %v2298 = vunpack.c.l.s4 1966171168
  %v2299 = vunpack.c.0.s8 %v2298
  %v2300 = vlaneseq
  %v2301 = vshrl.u32 %v2300, 7
  %v2302 = vsub.s32 %v2299, %v2301
  %v2303 = vrot.slane %v2275, %v2302
  %v2304 = vcombine.low %v2282, %v2289
  %v2305 = vcombine.low %v2296, %v2303
  %v2307 = vunpack.c.l.s4 1966171168
  %v2308 = vunpack.c.0.s8 %v2307
  %v2309 = vlaneseq
  %v2310 = vshrl.u32 %v2309, 7
  %v2311 = vsub.s32 %v2308, %v2310
  %v2312 = vrot.slane %v2304, %v2311
  %v2314 = vunpack.c.l.s4 1966171168
  %v2315 = vunpack.c.0.s8 %v2314
  %v2316 = vlaneseq
  %v2317 = vshrl.u32 %v2316, 7
  %v2318 = vsub.s32 %v2315, %v2317
  %v2319 = vrot.slane %v2305, %v2318
  %v2320 = vcombine.low %v2312, %v2319
  %v2321 = vcombine.low %v626, %v640
  %v2322 = vcombine.low %v648, %v647
  %v2323 = vcombine.low %v649, %v651
  %v2324 = vcombine.low %v675, %v689
  %v2326 = vunpack.c.l.s4 1966171168
  %v2327 = vunpack.c.0.s8 %v2326
  %v2328 = vlaneseq
  %v2329 = vshrl.u32 %v2328, 7
  %v2330 = vsub.s32 %v2327, %v2329
  %v2331 = vrot.slane %v2321, %v2330
  %v2333 = vunpack.c.l.s4 1966171168
  %v2334 = vunpack.c.0.s8 %v2333
  %v2335 = vlaneseq
  %v2336 = vshrl.u32 %v2335, 7
  %v2337 = vsub.s32 %v2334, %v2336
  %v2338 = vrot.slane %v2322, %v2337
  %v2340 = vunpack.c.l.s4 1966171168
  %v2341 = vunpack.c.0.s8 %v2340
  %v2342 = vlaneseq
  %v2343 = vshrl.u32 %v2342, 7
  %v2344 = vsub.s32 %v2341, %v2343
  %v2345 = vrot.slane %v2323, %v2344
  %v2347 = vunpack.c.l.s4 1966171168
  %v2348 = vunpack.c.0.s8 %v2347
  %v2349 = vlaneseq
  %v2350 = vshrl.u32 %v2349, 7
  %v2351 = vsub.s32 %v2348, %v2350
  %v2352 = vrot.slane %v2324, %v2351
  %v2353 = vcombine.low %v2331, %v2338
  %v2354 = vcombine.low %v2345, %v2352
  %v2356 = vunpack.c.l.s4 1966171168
  %v2357 = vunpack.c.0.s8 %v2356
  %v2358 = vlaneseq
  %v2359 = vshrl.u32 %v2358, 7
  %v2360 = vsub.s32 %v2357, %v2359
  %v2361 = vrot.slane %v2353, %v2360
  %v2363 = vunpack.c.l.s4 1966171168
  %v2364 = vunpack.c.0.s8 %v2363
  %v2365 = vlaneseq
  %v2366 = vshrl.u32 %v2365, 7
  %v2367 = vsub.s32 %v2364, %v2366
  %v2368 = vrot.slane %v2354, %v2367
  %v2369 = vcombine.low %v2361, %v2368
  %v2370 = vcombine.low %v697, %v699
  %v2371 = vcombine.low %v698, %v700
  %v2372 = vcombine.low %v724, %v738
  %v2373 = vcombine.low %v746, %v748
  %v2375 = vunpack.c.l.s4 1966171168
  %v2376 = vunpack.c.0.s8 %v2375
  %v2377 = vlaneseq
  %v2378 = vshrl.u32 %v2377, 7
  %v2379 = vsub.s32 %v2376, %v2378
  %v2380 = vrot.slane %v2370, %v2379
  %v2382 = vunpack.c.l.s4 1966171168
  %v2383 = vunpack.c.0.s8 %v2382
  %v2384 = vlaneseq
  %v2385 = vshrl.u32 %v2384, 7
  %v2386 = vsub.s32 %v2383, %v2385
  %v2387 = vrot.slane %v2371, %v2386
  %v2389 = vunpack.c.l.s4 1966171168
  %v2390 = vunpack.c.0.s8 %v2389
  %v2391 = vlaneseq
  %v2392 = vshrl.u32 %v2391, 7
  %v2393 = vsub.s32 %v2390, %v2392
  %v2394 = vrot.slane %v2372, %v2393
  %v2396 = vunpack.c.l.s4 1966171168
  %v2397 = vunpack.c.0.s8 %v2396
  %v2398 = vlaneseq
  %v2399 = vshrl.u32 %v2398, 7
  %v2400 = vsub.s32 %v2397, %v2399
  %v2401 = vrot.slane %v2373, %v2400
  %v2402 = vcombine.low %v2380, %v2387
  %v2403 = vcombine.low %v2394, %v2401
  %v2405 = vunpack.c.l.s4 1966171168
  %v2406 = vunpack.c.0.s8 %v2405
  %v2407 = vlaneseq
  %v2408 = vshrl.u32 %v2407, 7
  %v2409 = vsub.s32 %v2406, %v2408
  %v2410 = vrot.slane %v2402, %v2409
  %v2412 = vunpack.c.l.s4 1966171168
  %v2413 = vunpack.c.0.s8 %v2412
  %v2414 = vlaneseq
  %v2415 = vshrl.u32 %v2414, 7
  %v2416 = vsub.s32 %v2413, %v2415
  %v2417 = vrot.slane %v2403, %v2416
  %v2418 = vcombine.low %v2410, %v2417
  %v2419 = vcombine.low %v731, %v885
  %v2420 = vcombine.low %v893, %v895
  %v2421 = vcombine.low %v878, %v892
  %v2422 = vcombine.low %v894, %v896
  %v2424 = vunpack.c.l.s4 1966171168
  %v2425 = vunpack.c.0.s8 %v2424
  %v2426 = vlaneseq
  %v2427 = vshrl.u32 %v2426, 7
  %v2428 = vsub.s32 %v2425, %v2427
  %v2429 = vrot.slane %v2419, %v2428
  %v2431 = vunpack.c.l.s4 1966171168
  %v2432 = vunpack.c.0.s8 %v2431
  %v2433 = vlaneseq
  %v2434 = vshrl.u32 %v2433, 7
  %v2435 = vsub.s32 %v2432, %v2434
  %v2436 = vrot.slane %v2420, %v2435
  %v2438 = vunpack.c.l.s4 1966171168
  %v2439 = vunpack.c.0.s8 %v2438
  %v2440 = vlaneseq
  %v2441 = vshrl.u32 %v2440, 7
  %v2442 = vsub.s32 %v2439, %v2441
  %v2443 = vrot.slane %v2421, %v2442
  %v2445 = vunpack.c.l.s4 1966171168
  %v2446 = vunpack.c.0.s8 %v2445
  %v2447 = vlaneseq
  %v2448 = vshrl.u32 %v2447, 7
  %v2449 = vsub.s32 %v2446, %v2448
  %v2450 = vrot.slane %v2422, %v2449
  %v2451 = vcombine.low %v2429, %v2436
  %v2452 = vcombine.low %v2443, %v2450
  %v2454 = vunpack.c.l.s4 1966171168
  %v2455 = vunpack.c.0.s8 %v2454
  %v2456 = vlaneseq
  %v2457 = vshrl.u32 %v2456, 7
  %v2458 = vsub.s32 %v2455, %v2457
  %v2459 = vrot.slane %v2451, %v2458
  %v2461 = vunpack.c.l.s4 1966171168
  %v2462 = vunpack.c.0.s8 %v2461
  %v2463 = vlaneseq
  %v2464 = vshrl.u32 %v2463, 7
  %v2465 = vsub.s32 %v2462, %v2464
  %v2466 = vrot.slane %v2452, %v2465
  %v2467 = vcombine.low %v2459, %v2466
  %v2468 = vcombine.low %v942, %v944
  %v2469 = vcombine.low %v927, %v941
  %v2470 = vcombine.low %v943, %v945
  %v2471 = vcombine.low %v969, %v993
  %v2473 = vunpack.c.l.s4 1966171168
  %v2474 = vunpack.c.0.s8 %v2473
  %v2475 = vlaneseq
  %v2476 = vshrl.u32 %v2475, 7
  %v2477 = vsub.s32 %v2474, %v2476
  %v2478 = vrot.slane %v2468, %v2477
  %v2480 = vunpack.c.l.s4 1966171168
  %v2481 = vunpack.c.0.s8 %v2480
  %v2482 = vlaneseq
  %v2483 = vshrl.u32 %v2482, 7
  %v2484 = vsub.s32 %v2481, %v2483
  %v2485 = vrot.slane %v2469, %v2484
  %v2487 = vunpack.c.l.s4 1966171168
  %v2488 = vunpack.c.0.s8 %v2487
  %v2489 = vlaneseq
  %v2490 = vshrl.u32 %v2489, 7
  %v2491 = vsub.s32 %v2488, %v2490
  %v2492 = vrot.slane %v2470, %v2491
  %v2494 = vunpack.c.l.s4 1966171168
  %v2495 = vunpack.c.0.s8 %v2494
  %v2496 = vlaneseq
  %v2497 = vshrl.u32 %v2496, 7
  %v2498 = vsub.s32 %v2495, %v2497
  %v2499 = vrot.slane %v2471, %v2498
  %v2500 = vcombine.low %v2478, %v2485
  %v2501 = vcombine.low %v2492, %v2499
  %v2503 = vunpack.c.l.s4 1966171168
  %v2504 = vunpack.c.0.s8 %v2503
  %v2505 = vlaneseq
  %v2506 = vshrl.u32 %v2505, 7
  %v2507 = vsub.s32 %v2504, %v2506
  %v2508 = vrot.slane %v2500, %v2507
  %v2510 = vunpack.c.l.s4 1966171168
  %v2511 = vunpack.c.0.s8 %v2510
  %v2512 = vlaneseq
  %v2513 = vshrl.u32 %v2512, 7
  %v2514 = vsub.s32 %v2511, %v2513
  %v2515 = vrot.slane %v2501, %v2514
  %v2516 = vcombine.low %v2508, %v2515
  %v2517 = vcombine.low %v976, %v990
  %v2518 = vcombine.low %v992, %v994
  %v2519 = vcombine.low %v1018, %v1032
  %v2520 = vcombine.low %v1025, %v1039
  %v2522 = vunpack.c.l.s4 1966171168
  %v2523 = vunpack.c.0.s8 %v2522
  %v2524 = vlaneseq
  %v2525 = vshrl.u32 %v2524, 7
  %v2526 = vsub.s32 %v2523, %v2525
  %v2527 = vrot.slane %v2517, %v2526
  %v2529 = vunpack.c.l.s4 1966171168
  %v2530 = vunpack.c.0.s8 %v2529
  %v2531 = vlaneseq
  %v2532 = vshrl.u32 %v2531, 7
  %v2533 = vsub.s32 %v2530, %v2532
  %v2534 = vrot.slane %v2518, %v2533
  %v2536 = vunpack.c.l.s4 1966171168
  %v2537 = vunpack.c.0.s8 %v2536
  %v2538 = vlaneseq
  %v2539 = vshrl.u32 %v2538, 7
  %v2540 = vsub.s32 %v2537, %v2539
  %v2541 = vrot.slane %v2519, %v2540
  %v2543 = vunpack.c.l.s4 1966171168
  %v2544 = vunpack.c.0.s8 %v2543
  %v2545 = vlaneseq
  %v2546 = vshrl.u32 %v2545, 7
  %v2547 = vsub.s32 %v2544, %v2546
  %v2548 = vrot.slane %v2520, %v2547
  %v2549 = vcombine.low %v2527, %v2534
  %v2550 = vcombine.low %v2541, %v2548
  %v2552 = vunpack.c.l.s4 1966171168
  %v2553 = vunpack.c.0.s8 %v2552
  %v2554 = vlaneseq
  %v2555 = vshrl.u32 %v2554, 7
  %v2556 = vsub.s32 %v2553, %v2555
  %v2557 = vrot.slane %v2549, %v2556
  %v2559 = vunpack.c.l.s4 1966171168
  %v2560 = vunpack.c.0.s8 %v2559
  %v2561 = vlaneseq
  %v2562 = vshrl.u32 %v2561, 7
  %v2563 = vsub.s32 %v2560, %v2562
  %v2564 = vrot.slane %v2550, %v2563
  %v2565 = vcombine.low %v2557, %v2564
  %v2566 = vcombine.low %v1041, %v1043
  %v2567 = vcombine.low %v1067, %v1081
  %v2568 = vcombine.low %v1089, %v1088
  %v2569 = vcombine.low %v1090, %v1092
  %v2571 = vunpack.c.l.s4 1966171168
  %v2572 = vunpack.c.0.s8 %v2571
  %v2573 = vlaneseq
  %v2574 = vshrl.u32 %v2573, 7
  %v2575 = vsub.s32 %v2572, %v2574
  %v2576 = vrot.slane %v2566, %v2575
  %v2578 = vunpack.c.l.s4 1966171168
  %v2579 = vunpack.c.0.s8 %v2578
  %v2580 = vlaneseq
  %v2581 = vshrl.u32 %v2580, 7
  %v2582 = vsub.s32 %v2579, %v2581
  %v2583 = vrot.slane %v2567, %v2582
  %v2585 = vunpack.c.l.s4 1966171168
  %v2586 = vunpack.c.0.s8 %v2585
  %v2587 = vlaneseq
  %v2588 = vshrl.u32 %v2587, 7
  %v2589 = vsub.s32 %v2586, %v2588
  %v2590 = vrot.slane %v2568, %v2589
  %v2592 = vunpack.c.l.s4 1966171168
  %v2593 = vunpack.c.0.s8 %v2592
  %v2594 = vlaneseq
  %v2595 = vshrl.u32 %v2594, 7
  %v2596 = vsub.s32 %v2593, %v2595
  %v2597 = vrot.slane %v2569, %v2596
  %v2598 = vcombine.low %v2576, %v2583
  %v2599 = vcombine.low %v2590, %v2597
  %v2601 = vunpack.c.l.s4 1966171168
  %v2602 = vunpack.c.0.s8 %v2601
  %v2603 = vlaneseq
  %v2604 = vshrl.u32 %v2603, 7
  %v2605 = vsub.s32 %v2602, %v2604
  %v2606 = vrot.slane %v2598, %v2605
  %v2608 = vunpack.c.l.s4 1966171168
  %v2609 = vunpack.c.0.s8 %v2608
  %v2610 = vlaneseq
  %v2611 = vshrl.u32 %v2610, 7
  %v2612 = vsub.s32 %v2609, %v2611
  %v2613 = vrot.slane %v2599, %v2612
  %v2614 = vcombine.low %v2606, %v2613
  %v2615 = vcombine.low %v1116, %v1130
  %v2616 = vcombine.low %v1138, %v1140
  %v2617 = vcombine.low %v1139, %v1141
  %v2618 = vcombine.low %v1165, %v1179
  %v2620 = vunpack.c.l.s4 1966171168
  %v2621 = vunpack.c.0.s8 %v2620
  %v2622 = vlaneseq
  %v2623 = vshrl.u32 %v2622, 7
  %v2624 = vsub.s32 %v2621, %v2623
  %v2625 = vrot.slane %v2615, %v2624
  %v2627 = vunpack.c.l.s4 1966171168
  %v2628 = vunpack.c.0.s8 %v2627
  %v2629 = vlaneseq
  %v2630 = vshrl.u32 %v2629, 7
  %v2631 = vsub.s32 %v2628, %v2630
  %v2632 = vrot.slane %v2616, %v2631
  %v2634 = vunpack.c.l.s4 1966171168
  %v2635 = vunpack.c.0.s8 %v2634
  %v2636 = vlaneseq
  %v2637 = vshrl.u32 %v2636, 7
  %v2638 = vsub.s32 %v2635, %v2637
  %v2639 = vrot.slane %v2617, %v2638
  %v2641 = vunpack.c.l.s4 1966171168
  %v2642 = vunpack.c.0.s8 %v2641
  %v2643 = vlaneseq
  %v2644 = vshrl.u32 %v2643, 7
  %v2645 = vsub.s32 %v2642, %v2644
  %v2646 = vrot.slane %v2618, %v2645
  %v2647 = vcombine.low %v2625, %v2632
  %v2648 = vcombine.low %v2639, %v2646
  %v2650 = vunpack.c.l.s4 1966171168
  %v2651 = vunpack.c.0.s8 %v2650
  %v2652 = vlaneseq
  %v2653 = vshrl.u32 %v2652, 7
  %v2654 = vsub.s32 %v2651, %v2653
  %v2655 = vrot.slane %v2647, %v2654
  %v2657 = vunpack.c.l.s4 1966171168
  %v2658 = vunpack.c.0.s8 %v2657
  %v2659 = vlaneseq
  %v2660 = vshrl.u32 %v2659, 7
  %v2661 = vsub.s32 %v2658, %v2660
  %v2662 = vrot.slane %v2648, %v2661
  %v2663 = vcombine.low %v2655, %v2662
  %v2664 = vcombine.low %v1187, %v1189
  %v2665 = vcombine.low %v1172, %v1190
  %v2666 = vcombine.low %v1214, %v1228
  %v2667 = vcombine.low %v1236, %v1238
  %v2669 = vunpack.c.l.s4 1966171168
  %v2670 = vunpack.c.0.s8 %v2669
  %v2671 = vlaneseq
  %v2672 = vshrl.u32 %v2671, 7
  %v2673 = vsub.s32 %v2670, %v2672
  %v2674 = vrot.slane %v2664, %v2673
  %v2676 = vunpack.c.l.s4 1966171168
  %v2677 = vunpack.c.0.s8 %v2676
  %v2678 = vlaneseq
  %v2679 = vshrl.u32 %v2678, 7
  %v2680 = vsub.s32 %v2677, %v2679
  %v2681 = vrot.slane %v2665, %v2680
  %v2683 = vunpack.c.l.s4 1966171168
  %v2684 = vunpack.c.0.s8 %v2683
  %v2685 = vlaneseq
  %v2686 = vshrl.u32 %v2685, 7
  %v2687 = vsub.s32 %v2684, %v2686
  %v2688 = vrot.slane %v2666, %v2687
  %v2690 = vunpack.c.l.s4 1966171168
  %v2691 = vunpack.c.0.s8 %v2690
  %v2692 = vlaneseq
  %v2693 = vshrl.u32 %v2692, 7
  %v2694 = vsub.s32 %v2691, %v2693
  %v2695 = vrot.slane %v2667, %v2694
  %v2696 = vcombine.low %v2674, %v2681
  %v2697 = vcombine.low %v2688, %v2695
  %v2699 = vunpack.c.l.s4 1966171168
  %v2700 = vunpack.c.0.s8 %v2699
  %v2701 = vlaneseq
  %v2702 = vshrl.u32 %v2701, 7
  %v2703 = vsub.s32 %v2700, %v2702
  %v2704 = vrot.slane %v2696, %v2703
  %v2706 = vunpack.c.l.s4 1966171168
  %v2707 = vunpack.c.0.s8 %v2706
  %v2708 = vlaneseq
  %v2709 = vshrl.u32 %v2708, 7
  %v2710 = vsub.s32 %v2707, %v2709
  %v2711 = vrot.slane %v2697, %v2710
  %v2712 = vcombine.low %v2704, %v2711
  %v2713 = vcombine.low %v1221, %v1235
  %v2715 = vunpack.c.l.s4 1966171168
  %v2716 = vunpack.c.0.s8 %v2715
  %v2717 = vlaneseq
  %v2718 = vshrl.u32 %v2717, 7
  %v2719 = vsub.s32 %v2716, %v2718
  %v2720 = vrot.slane %v2713, %v2719
  %v2722 = vunpack.c.l.s4 1966171168
  %v2723 = vunpack.c.0.s8 %v2722
  %v2724 = vlaneseq
  %v2725 = vshrl.u32 %v2724, 7
  %v2726 = vsub.s32 %v2723, %v2725
  %v2727 = vrot.slane %v2720, %v2726
  %v2728 = vsel %vm1968, %v2173, 0
  %v2730 = vsel %vm1968, %v2222, 0
  %v2732 = vsel %vm1968, %v2271, 0
  %v2734 = vsel %vm1968, %v2320, 0
  %v2736 = vsel %vm1968, %v2369, 0
  %v2738 = vsel %vm1968, %v2418, 0
  %v2740 = vsel %vm1968, %v2467, 0
  %v2742 = vsel %vm1968, %v2516, 0
  %v2744 = vsel %vm1968, %v2565, 0
  %v2746 = vsel %vm1968, %v2614, 0
  %v2748 = vsel %vm1968, %v2663, 0
  %v2750 = vsel %vm1968, %v2712, 0
  %v2752 = vsel %vm1968, %v2727, 0
  %2754 = vmatprep.subr.mxu0 0.0
  %2755 = vmatpush1.msra.mxu0 %v1360
  %2756 = vmatprep.subr.mxu0 0.0
  %2757 = vmatpush1.msra.mxu0 %v1361
  %2758 = vmatprep.subr.mxu0 0.0
  %2759 = vmatpush1.msra.mxu0 0.0
  %2760 = vmatprep.subr.mxu0 0.0
  %2761 = vmatpush1.msra.mxu0 0.0
  %2762 = vmatprep.subr.mxu0 0.0
  %2763 = vmatpush1.msra.mxu0 0.0
  %2764 = vmatprep.subr.mxu0 0.0
  %2765 = vmatpush1.msra.mxu0 0.0
  %2766 = vmatprep.subr.mxu0 0.0
  %2767 = vmatpush1.msra.mxu0 0.0
  %2768 = vmatprep.subr.mxu0 0.0
  %2769 = vmatpush1.msra.mxu0 0.0
  %2770 = vmatprep.subr.mxu0 0.0
  %2771 = vmatpush1.msra.mxu0 0.0
  %2772 = vmatprep.subr.mxu0 0.0
  %2773 = vmatpush1.msra.mxu0 0.0
  %2774 = vmatprep.subr.mxu0 0.0
  %2775 = vmatpush1.msra.mxu0 0.0
  %2776 = vmatprep.subr.mxu0 0.0
  %2777 = vmatpush1.msra.mxu0 0.0
  %2778 = vmatprep.subr.mxu0 0.0
  %2779 = vmatpush1.msra.mxu0 0.0
  %2780 = vmatprep.subr.mxu0 0.0
  %2781 = vmatpush1.msra.mxu0 0.0
  %2782 = vmatprep.subr.mxu0 0.0
  %2783 = vmatpush1.msra.mxu0 0.0
  %2784 = vmatprep.subr.mxu0 0.0
  %2785 = vmatpush1.msra.mxu0 0.0
  %2786 = vmatprep.subr.mxu0 0.0
  %2787 = vmatpush1.msra.mxu0 0.0
  %2788 = vmatprep.subr.mxu0 0.0
  %2789 = vmatpush1.msra.mxu0 0.0
  %2790 = vmatprep.subr.mxu0 0.0
  %2791 = vmatpush1.msra.mxu0 0.0
  %2792 = vmatprep.subr.mxu0 0.0
  %2793 = vmatpush1.msra.mxu0 0.0
  %2794 = vmatprep.subr.mxu0 0.0
  %2795 = vmatpush1.msra.mxu0 0.0
  %2796 = vmatprep.subr.mxu0 0.0
  %2797 = vmatpush1.msra.mxu0 0.0
  %2798 = vmatprep.subr.mxu0 0.0
  %2799 = vmatpush1.msra.mxu0 0.0
  %2800 = vmatprep.subr.mxu0 0.0
  %2801 = vmatpush1.msra.mxu0 0.0
  %2802 = vmatprep.subr.mxu0 0.0
  %2803 = vmatpush1.msra.mxu0 0.0
  %2804 = vmatprep.subr.mxu0 0.0
  %2805 = vmatpush1.msra.mxu0 0.0
  %2806 = vmatprep.subr.mxu0 0.0
  %2807 = vmatpush1.msra.mxu0 0.0
  %2808 = vmatprep.subr.mxu0 0.0
  %2809 = vmatpush1.msra.mxu0 0.0
  %2810 = vmatprep.subr.mxu0 0.0
  %2811 = vmatpush1.msra.mxu0 0.0
  %2812 = vmatprep.subr.mxu0 0.0
  %2813 = vmatpush1.msra.mxu0 0.0
  %2814 = vmatprep.subr.mxu0 0.0
  %2815 = vmatpush1.msra.mxu0 0.0
  %2816 = vmatprep.subr.mxu0 0.0
  %2817 = vmatpush1.msra.mxu0 0.0
  %2818 = vmatprep.mubr.f32.mxu0 0.0
  %2819 = vmatmul.mubr.f32.gmra.mrb[0].mxu0 %v2728
  %v2820 = vpop.f32.mrb[0].mxu0
  %v2821 = vadd.f32 %v2062, %v2820
  %v2822 = vpop.f32.mrb[0].mxu0
  %2823 = vmatprep.mubr.f32.mxu0 0.0
  %2824 = vmatmul.mubr.f32.gmra.mrb[0].mxu0 %v2730
  %v2825 = vpop.f32.mrb[0].mxu0
  %v2826 = vadd.f32 %v2067, %v2825
  %v2827 = vpop.f32.mrb[0].mxu0
  %2828 = vmatprep.mubr.f32.mxu0 0.0
  %2829 = vmatmul.mubr.f32.gmra.mrb[0].mxu0 %v2732
  %v2830 = vpop.f32.mrb[0].mxu0
  %v2831 = vadd.f32 %v2072, %v2830
  %v2832 = vpop.f32.mrb[0].mxu0
  %2833 = vmatprep.mubr.f32.mxu0 0.0
  %2834 = vmatmul.mubr.f32.gmra.mrb[0].mxu0 %v2734
  %v2835 = vpop.f32.mrb[0].mxu0
  %v2836 = vadd.f32 %v2077, %v2835
  %v2837 = vpop.f32.mrb[0].mxu0
  %2838 = vmatprep.mubr.f32.mxu0 0.0
  %2839 = vmatmul.mubr.f32.gmra.mrb[0].mxu0 %v2736
  %v2840 = vpop.f32.mrb[0].mxu0
  %v2841 = vadd.f32 %v2082, %v2840
  %v2842 = vpop.f32.mrb[0].mxu0
  %2843 = vmatprep.mubr.f32.mxu0 0.0
  %2844 = vmatmul.mubr.f32.gmra.mrb[0].mxu0 %v2738
  %v2845 = vpop.f32.mrb[0].mxu0
  %v2846 = vadd.f32 %v2087, %v2845
  %v2847 = vpop.f32.mrb[0].mxu0
  %2848 = vmatprep.mubr.f32.mxu0 0.0
  %2849 = vmatmul.mubr.f32.gmra.mrb[0].mxu0 %v2740
  %v2850 = vpop.f32.mrb[0].mxu0
  %v2851 = vadd.f32 %v2092, %v2850
  %v2852 = vpop.f32.mrb[0].mxu0
  %2853 = vmatprep.mubr.f32.mxu0 0.0
  %2854 = vmatmul.mubr.f32.gmra.mrb[0].mxu0 %v2742
  %v2855 = vpop.f32.mrb[0].mxu0
  %v2856 = vadd.f32 %v2097, %v2855
  %v2857 = vpop.f32.mrb[0].mxu0
  %2858 = vmatprep.mubr.f32.mxu0 0.0
  %2859 = vmatmul.mubr.f32.gmra.mrb[0].mxu0 %v2744
  %v2860 = vpop.f32.mrb[0].mxu0
  %v2861 = vadd.f32 %v2102, %v2860
  %v2862 = vpop.f32.mrb[0].mxu0
  %2863 = vmatprep.mubr.f32.mxu0 0.0
  %2864 = vmatmul.mubr.f32.gmra.mrb[0].mxu0 %v2746
  %v2865 = vpop.f32.mrb[0].mxu0
  %v2866 = vadd.f32 %v2107, %v2865
  %v2867 = vpop.f32.mrb[0].mxu0
  %2868 = vmatprep.mubr.f32.mxu0 0.0
  %2869 = vmatmul.mubr.f32.gmra.mrb[0].mxu0 %v2748
  %v2870 = vpop.f32.mrb[0].mxu0
  %v2871 = vadd.f32 %v2112, %v2870
  %v2872 = vpop.f32.mrb[0].mxu0
  %2873 = vmatprep.mubr.f32.mxu0 0.0
  %2874 = vmatmul.mubr.f32.gmra.mrb[0].mxu0 %v2750
  %v2875 = vpop.f32.mrb[0].mxu0
  %v2876 = vadd.f32 %v2117, %v2875
  %v2877 = vpop.f32.mrb[0].mxu0
  %2878 = vmatprep.mubr.f32.mxu0 0.0
  %2879 = vmatmul.mubr.f32.gmra.mrb[0].mxu0 %v2752
  %v2880 = vpop.f32.mrb[0].mxu0
  %v2881 = vadd.f32 %v2122, %v2880
  %v2882 = vpop.f32.mrb[0].mxu0
  %2883 = vdwg.mxu0
  %s2884 = scalar_lea.vmem %s3, 32
  %v2885 = vld [vmem:[%s2884] sm:$0xff]
  %v2886 = vld [vmem:[%s2884 + $0x8] sm:$0xff]
  %v2887 = vcombine.low %v404, %v406
  %v2888 = vcombine.low %v430, %v454
  %v2890 = vunpack.c.l.s4 1966171168
  %v2891 = vunpack.c.0.s8 %v2890
  %v2892 = vlaneseq
  %v2893 = vshrl.u32 %v2892, 7
  %v2894 = vsub.s32 %v2891, %v2893
  %v2895 = vrot.slane %v2887, %v2894
  %v2897 = vunpack.c.l.s4 1966171168
  %v2898 = vunpack.c.0.s8 %v2897
  %v2899 = vlaneseq
  %v2900 = vshrl.u32 %v2899, 7
  %v2901 = vsub.s32 %v2898, %v2900
  %v2902 = vrot.slane %v2888, %v2901
  %v2903 = vcombine.low %v2142, %v2149
  %v2904 = vcombine.low %v2895, %v2902
  %v2906 = vunpack.c.l.s4 1966171168
  %v2907 = vunpack.c.0.s8 %v2906
  %v2908 = vlaneseq
  %v2909 = vshrl.u32 %v2908, 7
  %v2910 = vsub.s32 %v2907, %v2909
  %v2911 = vrot.slane %v2903, %v2910
  %v2913 = vunpack.c.l.s4 1966171168
  %v2914 = vunpack.c.0.s8 %v2913
  %v2915 = vlaneseq
  %v2916 = vshrl.u32 %v2915, 7
  %v2917 = vsub.s32 %v2914, %v2916
  %v2918 = vrot.slane %v2904, %v2917
  %v2919 = vcombine.low %v2911, %v2918
  %v2920 = vcombine.low %v479, %v493
  %v2922 = vunpack.c.l.s4 1966171168
  %v2923 = vunpack.c.0.s8 %v2922
  %v2924 = vlaneseq
  %v2925 = vshrl.u32 %v2924, 7
  %v2926 = vsub.s32 %v2923, %v2925
  %v2927 = vrot.slane %v2920, %v2926
  %v2928 = vcombine.low %v2191, %v2198
  %v2929 = vcombine.low %v2927, %v2233
  %v2931 = vunpack.c.l.s4 1966171168
  %v2932 = vunpack.c.0.s8 %v2931
  %v2933 = vlaneseq
  %v2934 = vshrl.u32 %v2933, 7
  %v2935 = vsub.s32 %v2932, %v2934
  %v2936 = vrot.slane %v2928, %v2935
  %v2938 = vunpack.c.l.s4 1966171168
  %v2939 = vunpack.c.0.s8 %v2938
  %v2940 = vlaneseq
  %v2941 = vshrl.u32 %v2940, 7
  %v2942 = vsub.s32 %v2939, %v2941
  %v2943 = vrot.slane %v2929, %v2942
  %v2944 = vcombine.low %v2936, %v2943
  %v2945 = vcombine.low %v528, %v542
  %v2946 = vcombine.low %v550, %v549
  %v2948 = vunpack.c.l.s4 1966171168
  %v2949 = vunpack.c.0.s8 %v2948
  %v2950 = vlaneseq
  %v2951 = vshrl.u32 %v2950, 7
  %v2952 = vsub.s32 %v2949, %v2951
  %v2953 = vrot.slane %v2945, %v2952
  %v2955 = vunpack.c.l.s4 1966171168
  %v2956 = vunpack.c.0.s8 %v2955
  %v2957 = vlaneseq
  %v2958 = vshrl.u32 %v2957, 7
  %v2959 = vsub.s32 %v2956, %v2958
  %v2960 = vrot.slane %v2946, %v2959
  %v2961 = vcombine.low %v2240, %v2953
  %v2962 = vcombine.low %v2960, %v2282
  %v2964 = vunpack.c.l.s4 1966171168
  %v2965 = vunpack.c.0.s8 %v2964
  %v2966 = vlaneseq
  %v2967 = vshrl.u32 %v2966, 7
  %v2968 = vsub.s32 %v2965, %v2967
  %v2969 = vrot.slane %v2961, %v2968
  %v2971 = vunpack.c.l.s4 1966171168
  %v2972 = vunpack.c.0.s8 %v2971
  %v2973 = vlaneseq
  %v2974 = vshrl.u32 %v2973, 7
  %v2975 = vsub.s32 %v2972, %v2974
  %v2976 = vrot.slane %v2962, %v2975
  %v2977 = vcombine.low %v2969, %v2976
  %v2978 = vcombine.low %v599, %v601
  %v2980 = vunpack.c.l.s4 1966171168
  %v2981 = vunpack.c.0.s8 %v2980
  %v2982 = vlaneseq
  %v2983 = vshrl.u32 %v2982, 7
  %v2984 = vsub.s32 %v2981, %v2983
  %v2985 = vrot.slane %v2978, %v2984
  %v2986 = vcombine.low %v2289, %v2985
  %v2987 = vcombine.low %v2303, %v2331
  %v2989 = vunpack.c.l.s4 1966171168
  %v2990 = vunpack.c.0.s8 %v2989
  %v2991 = vlaneseq
  %v2992 = vshrl.u32 %v2991, 7
  %v2993 = vsub.s32 %v2990, %v2992
  %v2994 = vrot.slane %v2986, %v2993
  %v2996 = vunpack.c.l.s4 1966171168
  %v2997 = vunpack.c.0.s8 %v2996
  %v2998 = vlaneseq
  %v2999 = vshrl.u32 %v2998, 7
  %v3000 = vsub.s32 %v2997, %v2999
  %v3001 = vrot.slane %v2987, %v3000
  %v3002 = vcombine.low %v2994, %v3001
  %v3003 = vcombine.low %v648, %v650
  %v3004 = vcombine.low %v633, %v651
  %v3006 = vunpack.c.l.s4 1966171168
  %v3007 = vunpack.c.0.s8 %v3006
  %v3008 = vlaneseq
  %v3009 = vshrl.u32 %v3008, 7
  %v3010 = vsub.s32 %v3007, %v3009
  %v3011 = vrot.slane %v3003, %v3010
  %v3013 = vunpack.c.l.s4 1966171168
  %v3014 = vunpack.c.0.s8 %v3013
  %v3015 = vlaneseq
  %v3016 = vshrl.u32 %v3015, 7
  %v3017 = vsub.s32 %v3014, %v3016
  %v3018 = vrot.slane %v3004, %v3017
  %v3019 = vcombine.low %v3011, %v3018
  %v3020 = vcombine.low %v2352, %v2380
  %v3022 = vunpack.c.l.s4 1966171168
  %v3023 = vunpack.c.0.s8 %v3022
  %v3024 = vlaneseq
  %v3025 = vshrl.u32 %v3024, 7
  %v3026 = vsub.s32 %v3023, %v3025
  %v3027 = vrot.slane %v3019, %v3026
  %v3029 = vunpack.c.l.s4 1966171168
  %v3030 = vunpack.c.0.s8 %v3029
  %v3031 = vlaneseq
  %v3032 = vshrl.u32 %v3031, 7
  %v3033 = vsub.s32 %v3030, %v3032
  %v3034 = vrot.slane %v3020, %v3033
  %v3035 = vcombine.low %v3027, %v3034
  %v3036 = vcombine.low %v682, %v696
  %v3037 = vcombine.low %v731, %v745
  %v3039 = vunpack.c.l.s4 1966171168
  %v3040 = vunpack.c.0.s8 %v3039
  %v3041 = vlaneseq
  %v3042 = vshrl.u32 %v3041, 7
  %v3043 = vsub.s32 %v3040, %v3042
  %v3044 = vrot.slane %v3036, %v3043
  %v3046 = vunpack.c.l.s4 1966171168
  %v3047 = vunpack.c.0.s8 %v3046
  %v3048 = vlaneseq
  %v3049 = vshrl.u32 %v3048, 7
  %v3050 = vsub.s32 %v3047, %v3049
  %v3051 = vrot.slane %v3037, %v3050
  %v3052 = vcombine.low %v3044, %v2394
  %v3053 = vcombine.low %v2401, %v3051
  %v3055 = vunpack.c.l.s4 1966171168
  %v3056 = vunpack.c.0.s8 %v3055
  %v3057 = vlaneseq
  %v3058 = vshrl.u32 %v3057, 7
  %v3059 = vsub.s32 %v3056, %v3058
  %v3060 = vrot.slane %v3052, %v3059
  %v3062 = vunpack.c.l.s4 1966171168
  %v3063 = vunpack.c.0.s8 %v3062
  %v3064 = vlaneseq
  %v3065 = vshrl.u32 %v3064, 7
  %v3066 = vsub.s32 %v3063, %v3065
  %v3067 = vrot.slane %v3053, %v3066
  %v3068 = vcombine.low %v3060, %v3067
  %v3069 = vcombine.low %v747, %v895
  %v3070 = vcombine.low %v920, %v934
  %v3072 = vunpack.c.l.s4 1966171168
  %v3073 = vunpack.c.0.s8 %v3072
  %v3074 = vlaneseq
  %v3075 = vshrl.u32 %v3074, 7
  %v3076 = vsub.s32 %v3073, %v3075
  %v3077 = vrot.slane %v3069, %v3076
  %v3079 = vunpack.c.l.s4 1966171168
  %v3080 = vunpack.c.0.s8 %v3079
  %v3081 = vlaneseq
  %v3082 = vshrl.u32 %v3081, 7
  %v3083 = vsub.s32 %v3080, %v3082
  %v3084 = vrot.slane %v3070, %v3083
  %v3085 = vcombine.low %v3077, %v2443
  %v3086 = vcombine.low %v2450, %v3084
  %v3088 = vunpack.c.l.s4 1966171168
  %v3089 = vunpack.c.0.s8 %v3088
  %v3090 = vlaneseq
  %v3091 = vshrl.u32 %v3090, 7
  %v3092 = vsub.s32 %v3089, %v3091
  %v3093 = vrot.slane %v3085, %v3092
  %v3095 = vunpack.c.l.s4 1966171168
  %v3096 = vunpack.c.0.s8 %v3095
  %v3097 = vlaneseq
  %v3098 = vshrl.u32 %v3097, 7
  %v3099 = vsub.s32 %v3096, %v3098
  %v3100 = vrot.slane %v3086, %v3099
  %v3101 = vcombine.low %v3093, %v3100
  %v3102 = vcombine.low %v969, %v983
  %v3103 = vcombine.low %v991, %v990
  %v3105 = vunpack.c.l.s4 1966171168
  %v3106 = vunpack.c.0.s8 %v3105
  %v3107 = vlaneseq
  %v3108 = vshrl.u32 %v3107, 7
  %v3109 = vsub.s32 %v3106, %v3108
  %v3110 = vrot.slane %v3102, %v3109
  %v3112 = vunpack.c.l.s4 1966171168
  %v3113 = vunpack.c.0.s8 %v3112
  %v3114 = vlaneseq
  %v3115 = vshrl.u32 %v3114, 7
  %v3116 = vsub.s32 %v3113, %v3115
  %v3117 = vrot.slane %v3103, %v3116
  %v3118 = vcombine.low %v2485, %v2492
  %v3119 = vcombine.low %v3110, %v3117
  %v3121 = vunpack.c.l.s4 1966171168
  %v3122 = vunpack.c.0.s8 %v3121
  %v3123 = vlaneseq
  %v3124 = vshrl.u32 %v3123, 7
  %v3125 = vsub.s32 %v3122, %v3124
  %v3126 = vrot.slane %v3118, %v3125
  %v3128 = vunpack.c.l.s4 1966171168
  %v3129 = vunpack.c.0.s8 %v3128
  %v3130 = vlaneseq
  %v3131 = vshrl.u32 %v3130, 7
  %v3132 = vsub.s32 %v3129, %v3131
  %v3133 = vrot.slane %v3119, %v3132
  %v3134 = vcombine.low %v3126, %v3133
  %v3135 = vcombine.low %v1040, %v1042
  %v3137 = vunpack.c.l.s4 1966171168
  %v3138 = vunpack.c.0.s8 %v3137
  %v3139 = vlaneseq
  %v3140 = vshrl.u32 %v3139, 7
  %v3141 = vsub.s32 %v3138, %v3140
  %v3142 = vrot.slane %v3135, %v3141
  %v3143 = vcombine.low %v2534, %v2541
  %v3144 = vcombine.low %v3142, %v2576
  %v3146 = vunpack.c.l.s4 1966171168
  %v3147 = vunpack.c.0.s8 %v3146
  %v3148 = vlaneseq
  %v3149 = vshrl.u32 %v3148, 7
  %v3150 = vsub.s32 %v3147, %v3149
  %v3151 = vrot.slane %v3143, %v3150
  %v3153 = vunpack.c.l.s4 1966171168
  %v3154 = vunpack.c.0.s8 %v3153
  %v3155 = vlaneseq
  %v3156 = vshrl.u32 %v3155, 7
  %v3157 = vsub.s32 %v3154, %v3156
  %v3158 = vrot.slane %v3144, %v3157
  %v3159 = vcombine.low %v3151, %v3158
  %v3160 = vcombine.low %v1089, %v1091
  %v3161 = vcombine.low %v1074, %v1092
  %v3163 = vunpack.c.l.s4 1966171168
  %v3164 = vunpack.c.0.s8 %v3163
  %v3165 = vlaneseq
  %v3166 = vshrl.u32 %v3165, 7
  %v3167 = vsub.s32 %v3164, %v3166
  %v3168 = vrot.slane %v3160, %v3167
  %v3170 = vunpack.c.l.s4 1966171168
  %v3171 = vunpack.c.0.s8 %v3170
  %v3172 = vlaneseq
  %v3173 = vshrl.u32 %v3172, 7
  %v3174 = vsub.s32 %v3171, %v3173
  %v3175 = vrot.slane %v3161, %v3174
  %v3176 = vcombine.low %v2583, %v3168
  %v3177 = vcombine.low %v3175, %v2625
  %v3179 = vunpack.c.l.s4 1966171168
  %v3180 = vunpack.c.0.s8 %v3179
  %v3181 = vlaneseq
  %v3182 = vshrl.u32 %v3181, 7
  %v3183 = vsub.s32 %v3180, %v3182
  %v3184 = vrot.slane %v3176, %v3183
  %v3186 = vunpack.c.l.s4 1966171168
  %v3187 = vunpack.c.0.s8 %v3186
  %v3188 = vlaneseq
  %v3189 = vshrl.u32 %v3188, 7
  %v3190 = vsub.s32 %v3187, %v3189
  %v3191 = vrot.slane %v3177, %v3190
  %v3192 = vcombine.low %v3184, %v3191
  %v3193 = vcombine.low %v1123, %v1137
  %v3195 = vunpack.c.l.s4 1966171168
  %v3196 = vunpack.c.0.s8 %v3195
  %v3197 = vlaneseq
  %v3198 = vshrl.u32 %v3197, 7
  %v3199 = vsub.s32 %v3196, %v3198
  %v3200 = vrot.slane %v3193, %v3199
  %v3201 = vcombine.low %v2632, %v3200
  %v3202 = vcombine.low %v2646, %v2674
  %v3204 = vunpack.c.l.s4 1966171168
  %v3205 = vunpack.c.0.s8 %v3204
  %v3206 = vlaneseq
  %v3207 = vshrl.u32 %v3206, 7
  %v3208 = vsub.s32 %v3205, %v3207
  %v3209 = vrot.slane %v3201, %v3208
  %v3211 = vunpack.c.l.s4 1966171168
  %v3212 = vunpack.c.0.s8 %v3211
  %v3213 = vlaneseq
  %v3214 = vshrl.u32 %v3213, 7
  %v3215 = vsub.s32 %v3212, %v3214
  %v3216 = vrot.slane %v3202, %v3215
  %v3217 = vcombine.low %v3209, %v3216
  %v3218 = vcombine.low %v1172, %v1186
  %v3219 = vcombine.low %v1188, %v1228
  %v3221 = vunpack.c.l.s4 1966171168
  %v3222 = vunpack.c.0.s8 %v3221
  %v3223 = vlaneseq
  %v3224 = vshrl.u32 %v3223, 7
  %v3225 = vsub.s32 %v3222, %v3224
  %v3226 = vrot.slane %v3218, %v3225
  %v3228 = vunpack.c.l.s4 1966171168
  %v3229 = vunpack.c.0.s8 %v3228
  %v3230 = vlaneseq
  %v3231 = vshrl.u32 %v3230, 7
  %v3232 = vsub.s32 %v3229, %v3231
  %v3233 = vrot.slane %v3219, %v3232
  %v3234 = vcombine.low %v3226, %v3233
  %v3235 = vcombine.low %v2695, %v2720
  %v3237 = vunpack.c.l.s4 1966171168
  %v3238 = vunpack.c.0.s8 %v3237
  %v3239 = vlaneseq
  %v3240 = vshrl.u32 %v3239, 7
  %v3241 = vsub.s32 %v3238, %v3240
  %v3242 = vrot.slane %v3234, %v3241
  %v3244 = vunpack.c.l.s4 1966171168
  %v3245 = vunpack.c.0.s8 %v3244
  %v3246 = vlaneseq
  %v3247 = vshrl.u32 %v3246, 7
  %v3248 = vsub.s32 %v3245, %v3247
  %v3249 = vrot.slane %v3235, %v3248
  %v3250 = vcombine.low %v3242, %v3249
  %v3251 = vcombine.low %v1237, %v1239
  %v3253 = vunpack.c.l.s4 1966171168
  %v3254 = vunpack.c.0.s8 %v3253
  %v3255 = vlaneseq
  %v3256 = vshrl.u32 %v3255, 7
  %v3257 = vsub.s32 %v3254, %v3256
  %v3258 = vrot.slane %v3251, %v3257
  %v3260 = vunpack.c.l.s4 1966171168
  %v3261 = vunpack.c.0.s8 %v3260
  %v3262 = vlaneseq
  %v3263 = vshrl.u32 %v3262, 7
  %v3264 = vsub.s32 %v3261, %v3263
  %v3265 = vrot.slane %v3258, %v3264
  %v3266 = vsel %vm1968, %v2919, 0
  %v3268 = vsel %vm1968, %v2944, 0
  %v3270 = vsel %vm1968, %v2977, 0
  %v3272 = vsel %vm1968, %v3002, 0
  %v3274 = vsel %vm1968, %v3035, 0
  %v3276 = vsel %vm1968, %v3068, 0
  %v3278 = vsel %vm1968, %v3101, 0
  %v3280 = vsel %vm1968, %v3134, 0
  %v3282 = vsel %vm1968, %v3159, 0
  %v3284 = vsel %vm1968, %v3192, 0
  %v3286 = vsel %vm1968, %v3217, 0
  %v3288 = vsel %vm1968, %v3250, 0
  %v3290 = vsel %vm1968, %v3265, 0
  %3292 = vmatprep.subr.mxu0 0.0
  %3293 = vmatpush1.msra.mxu0 %v2885
  %3294 = vmatprep.subr.mxu0 0.0
  %3295 = vmatpush1.msra.mxu0 %v2886
  %3296 = vmatprep.subr.mxu0 0.0
  %3297 = vmatpush1.msra.mxu0 0.0
  %3298 = vmatprep.subr.mxu0 0.0
  %3299 = vmatpush1.msra.mxu0 0.0
  %3300 = vmatprep.subr.mxu0 0.0
  %3301 = vmatpush1.msra.mxu0 0.0
  %3302 = vmatprep.subr.mxu0 0.0
  %3303 = vmatpush1.msra.mxu0 0.0
  %3304 = vmatprep.subr.mxu0 0.0
  %3305 = vmatpush1.msra.mxu0 0.0
  %3306 = vmatprep.subr.mxu0 0.0
  %3307 = vmatpush1.msra.mxu0 0.0
  %3308 = vmatprep.subr.mxu0 0.0
  %3309 = vmatpush1.msra.mxu0 0.0
  %3310 = vmatprep.subr.mxu0 0.0
  %3311 = vmatpush1.msra.mxu0 0.0
  %3312 = vmatprep.subr.mxu0 0.0
  %3313 = vmatpush1.msra.mxu0 0.0
  %3314 = vmatprep.subr.mxu0 0.0
  %3315 = vmatpush1.msra.mxu0 0.0
  %3316 = vmatprep.subr.mxu0 0.0
  %3317 = vmatpush1.msra.mxu0 0.0
  %3318 = vmatprep.subr.mxu0 0.0
  %3319 = vmatpush1.msra.mxu0 0.0
  %3320 = vmatprep.subr.mxu0 0.0
  %3321 = vmatpush1.msra.mxu0 0.0
  %3322 = vmatprep.subr.mxu0 0.0
  %3323 = vmatpush1.msra.mxu0 0.0
  %3324 = vmatprep.subr.mxu0 0.0
  %3325 = vmatpush1.msra.mxu0 0.0
  %3326 = vmatprep.subr.mxu0 0.0
  %3327 = vmatpush1.msra.mxu0 0.0
  %3328 = vmatprep.subr.mxu0 0.0
  %3329 = vmatpush1.msra.mxu0 0.0
  %3330 = vmatprep.subr.mxu0 0.0
  %3331 = vmatpush1.msra.mxu0 0.0
  %3332 = vmatprep.subr.mxu0 0.0
  %3333 = vmatpush1.msra.mxu0 0.0
  %3334 = vmatprep.subr.mxu0 0.0
  %3335 = vmatpush1.msra.mxu0 0.0
  %3336 = vmatprep.subr.mxu0 0.0
  %3337 = vmatpush1.msra.mxu0 0.0
  %3338 = vmatprep.subr.mxu0 0.0
  %3339 = vmatpush1.msra.mxu0 0.0
  %3340 = vmatprep.subr.mxu0 0.0
  %3341 = vmatpush1.msra.mxu0 0.0
  %3342 = vmatprep.subr.mxu0 0.0
  %3343 = vmatpush1.msra.mxu0 0.0
  %3344 = vmatprep.subr.mxu0 0.0
  %3345 = vmatpush1.msra.mxu0 0.0
  %3346 = vmatprep.subr.mxu0 0.0
  %3347 = vmatpush1.msra.mxu0 0.0
  %3348 = vmatprep.subr.mxu0 0.0
  %3349 = vmatpush1.msra.mxu0 0.0
  %3350 = vmatprep.subr.mxu0 0.0
  %3351 = vmatpush1.msra.mxu0 0.0
  %3352 = vmatprep.subr.mxu0 0.0
  %3353 = vmatpush1.msra.mxu0 0.0
  %3354 = vmatprep.subr.mxu0 0.0
  %3355 = vmatpush1.msra.mxu0 0.0
  %3356 = vmatprep.mubr.f32.mxu0 0.0
  %3357 = vmatmul.mubr.f32.gmra.mrb[0].mxu0 %v3266
  %v3358 = vpop.f32.mrb[0].mxu0
  %v3359 = vadd.f32 0.0, %v3358
  %v3360 = vpop.f32.mrb[0].mxu0
  %3361 = vmatprep.mubr.f32.mxu0 0.0
  %3362 = vmatmul.mubr.f32.gmra.mrb[0].mxu0 %v3268
  %v3363 = vpop.f32.mrb[0].mxu0
  %v3364 = vadd.f32 0.0, %v3363
  %v3365 = vpop.f32.mrb[0].mxu0
  %3366 = vmatprep.mubr.f32.mxu0 0.0
  %3367 = vmatmul.mubr.f32.gmra.mrb[0].mxu0 %v3270
  %v3368 = vpop.f32.mrb[0].mxu0
  %v3369 = vadd.f32 0.0, %v3368
  %v3370 = vpop.f32.mrb[0].mxu0
  %3371 = vmatprep.mubr.f32.mxu0 0.0
  %3372 = vmatmul.mubr.f32.gmra.mrb[0].mxu0 %v3272
  %v3373 = vpop.f32.mrb[0].mxu0
  %v3374 = vadd.f32 0.0, %v3373
  %v3375 = vpop.f32.mrb[0].mxu0
  %3376 = vmatprep.mubr.f32.mxu0 0.0
  %3377 = vmatmul.mubr.f32.gmra.mrb[0].mxu0 %v3274
  %v3378 = vpop.f32.mrb[0].mxu0
  %v3379 = vadd.f32 0.0, %v3378
  %v3380 = vpop.f32.mrb[0].mxu0
  %3381 = vmatprep.mubr.f32.mxu0 0.0
  %3382 = vmatmul.mubr.f32.gmra.mrb[0].mxu0 %v3276
  %v3383 = vpop.f32.mrb[0].mxu0
  %v3384 = vadd.f32 0.0, %v3383
  %v3385 = vpop.f32.mrb[0].mxu0
  %3386 = vmatprep.mubr.f32.mxu0 0.0
  %3387 = vmatmul.mubr.f32.gmra.mrb[0].mxu0 %v3278
  %v3388 = vpop.f32.mrb[0].mxu0
  %v3389 = vadd.f32 0.0, %v3388
  %v3390 = vpop.f32.mrb[0].mxu0
  %3391 = vmatprep.mubr.f32.mxu0 0.0
  %3392 = vmatmul.mubr.f32.gmra.mrb[0].mxu0 %v3280
  %v3393 = vpop.f32.mrb[0].mxu0
  %v3394 = vadd.f32 0.0, %v3393
  %v3395 = vpop.f32.mrb[0].mxu0
  %3396 = vmatprep.mubr.f32.mxu0 0.0
  %3397 = vmatmul.mubr.f32.gmra.mrb[0].mxu0 %v3282
  %v3398 = vpop.f32.mrb[0].mxu0
  %v3399 = vadd.f32 0.0, %v3398
  %v3400 = vpop.f32.mrb[0].mxu0
  %3401 = vmatprep.mubr.f32.mxu0 0.0
  %3402 = vmatmul.mubr.f32.gmra.mrb[0].mxu0 %v3284
  %v3403 = vpop.f32.mrb[0].mxu0
  %v3404 = vadd.f32 0.0, %v3403
  %v3405 = vpop.f32.mrb[0].mxu0
  %3406 = vmatprep.mubr.f32.mxu0 0.0
  %3407 = vmatmul.mubr.f32.gmra.mrb[0].mxu0 %v3286
  %v3408 = vpop.f32.mrb[0].mxu0
  %v3409 = vadd.f32 0.0, %v3408
  %v3410 = vpop.f32.mrb[0].mxu0
  %3411 = vmatprep.mubr.f32.mxu0 0.0
  %3412 = vmatmul.mubr.f32.gmra.mrb[0].mxu0 %v3288
  %v3413 = vpop.f32.mrb[0].mxu0
  %v3414 = vadd.f32 0.0, %v3413
  %v3415 = vpop.f32.mrb[0].mxu0
  %3416 = vmatprep.mubr.f32.mxu0 0.0
  %3417 = vmatmul.mubr.f32.gmra.mrb[0].mxu0 %v3290
  %v3418 = vpop.f32.mrb[0].mxu0
  %v3419 = vadd.f32 0.0, %v3418
  %v3420 = vpop.f32.mrb[0].mxu0
  %3421 = vdwg.mxu0
  %v3422 = vadd.f32 %v2821, %v3359
  %v3423 = vadd.f32 %v2826, %v3364
  %v3424 = vadd.f32 %v2831, %v3369
  %v3425 = vadd.f32 %v2836, %v3374
  %v3426 = vadd.f32 %v2841, %v3379
  %v3427 = vadd.f32 %v2846, %v3384
  %v3428 = vadd.f32 %v2851, %v3389
  %v3429 = vadd.f32 %v2856, %v3394
  %v3430 = vadd.f32 %v2861, %v3399
  %v3431 = vadd.f32 %v2866, %v3404
  %v3432 = vadd.f32 %v2871, %v3409
  %v3433 = vadd.f32 %v2876, %v3414
  %v3434 = vadd.f32 %v2881, %v3419
  %s3435 = scalar_lea.vmem %s3, 48
  %v3436 = vld [vmem:[%s3435] sm:$0xff]
  %v3437 = vld [vmem:[%s3435 + $0x8] sm:$0xff]
  %v3438 = vcombine.low %v444, %v452
  %v3439 = vcombine.low %v455, %v501
  %v3441 = vunpack.c.l.s4 1966171168
  %v3442 = vunpack.c.0.s8 %v3441
  %v3443 = vlaneseq
  %v3444 = vshrl.u32 %v3443, 7
  %v3445 = vsub.s32 %v3442, %v3444
  %v3446 = vrot.slane %v3438, %v3445
  %v3448 = vunpack.c.l.s4 1966171168
  %v3449 = vunpack.c.0.s8 %v3448
  %v3450 = vlaneseq
  %v3451 = vshrl.u32 %v3450, 7
  %v3452 = vsub.s32 %v3449, %v3451
  %v3453 = vrot.slane %v3439, %v3452
  %v3454 = vcombine.low %v3446, %v1424
  %v3455 = vcombine.low %v1431, %v3453
  %v3457 = vunpack.c.l.s4 1966171168
  %v3458 = vunpack.c.0.s8 %v3457
  %v3459 = vlaneseq
  %v3460 = vshrl.u32 %v3459, 7
  %v3461 = vsub.s32 %v3458, %v3460
  %v3462 = vrot.slane %v3454, %v3461
  %v3464 = vunpack.c.l.s4 1966171168
  %v3465 = vunpack.c.0.s8 %v3464
  %v3466 = vlaneseq
  %v3467 = vshrl.u32 %v3466, 7
  %v3468 = vsub.s32 %v3465, %v3467
  %v3469 = vrot.slane %v3455, %v3468
  %v3470 = vcombine.low %v3462, %v3469
  %v3471 = vcombine.low %v552, %v535
  %v3473 = vunpack.c.l.s4 1966171168
  %v3474 = vunpack.c.0.s8 %v3473
  %v3475 = vlaneseq
  %v3476 = vshrl.u32 %v3475, 7
  %v3477 = vsub.s32 %v3474, %v3476
  %v3478 = vrot.slane %v3471, %v3477
  %v3479 = vcombine.low %v1445, %v1473
  %v3480 = vcombine.low %v1480, %v3478
  %v3482 = vunpack.c.l.s4 1966171168
  %v3483 = vunpack.c.0.s8 %v3482
  %v3484 = vlaneseq
  %v3485 = vshrl.u32 %v3484, 7
  %v3486 = vsub.s32 %v3483, %v3485
  %v3487 = vrot.slane %v3479, %v3486
  %v3489 = vunpack.c.l.s4 1966171168
  %v3490 = vunpack.c.0.s8 %v3489
  %v3491 = vlaneseq
  %v3492 = vshrl.u32 %v3491, 7
  %v3493 = vsub.s32 %v3490, %v3492
  %v3494 = vrot.slane %v3480, %v3493
  %v3495 = vcombine.low %v3487, %v3494
  %v3496 = vcombine.low %v591, %v584
  %v3498 = vunpack.c.l.s4 1966171168
  %v3499 = vunpack.c.0.s8 %v3498
  %v3500 = vlaneseq
  %v3501 = vshrl.u32 %v3500, 7
  %v3502 = vsub.s32 %v3499, %v3501
  %v3503 = vrot.slane %v3496, %v3502
  %v3504 = vcombine.low %v1494, %v1522
  %v3505 = vcombine.low %v3503, %v1536
  %v3507 = vunpack.c.l.s4 1966171168
  %v3508 = vunpack.c.0.s8 %v3507
  %v3509 = vlaneseq
  %v3510 = vshrl.u32 %v3509, 7
  %v3511 = vsub.s32 %v3508, %v3510
  %v3512 = vrot.slane %v3504, %v3511
  %v3514 = vunpack.c.l.s4 1966171168
  %v3515 = vunpack.c.0.s8 %v3514
  %v3516 = vlaneseq
  %v3517 = vshrl.u32 %v3516, 7
  %v3518 = vsub.s32 %v3515, %v3517
  %v3519 = vrot.slane %v3505, %v3518
  %v3520 = vcombine.low %v3512, %v3519
  %v3521 = vcombine.low %v647, %v649
  %v3523 = vunpack.c.l.s4 1966171168
  %v3524 = vunpack.c.0.s8 %v3523
  %v3525 = vlaneseq
  %v3526 = vshrl.u32 %v3525, 7
  %v3527 = vsub.s32 %v3524, %v3526
  %v3528 = vrot.slane %v3521, %v3527
  %v3529 = vcombine.low %v1543, %v1571
  %v3530 = vcombine.low %v3528, %v1585
  %v3532 = vunpack.c.l.s4 1966171168
  %v3533 = vunpack.c.0.s8 %v3532
  %v3534 = vlaneseq
  %v3535 = vshrl.u32 %v3534, 7
  %v3536 = vsub.s32 %v3533, %v3535
  %v3537 = vrot.slane %v3529, %v3536
  %v3539 = vunpack.c.l.s4 1966171168
  %v3540 = vunpack.c.0.s8 %v3539
  %v3541 = vlaneseq
  %v3542 = vshrl.u32 %v3541, 7
  %v3543 = vsub.s32 %v3540, %v3542
  %v3544 = vrot.slane %v3530, %v3543
  %v3545 = vcombine.low %v3537, %v3544
  %v3546 = vcombine.low %v699, %v698
  %v3548 = vunpack.c.l.s4 1966171168
  %v3549 = vunpack.c.0.s8 %v3548
  %v3550 = vlaneseq
  %v3551 = vshrl.u32 %v3550, 7
  %v3552 = vsub.s32 %v3549, %v3551
  %v3553 = vrot.slane %v3546, %v3552
  %v3554 = vcombine.low %v1592, %v3553
  %v3555 = vcombine.low %v1627, %v1634
  %v3557 = vunpack.c.l.s4 1966171168
  %v3558 = vunpack.c.0.s8 %v3557
  %v3559 = vlaneseq
  %v3560 = vshrl.u32 %v3559, 7
  %v3561 = vsub.s32 %v3558, %v3560
  %v3562 = vrot.slane %v3554, %v3561
  %v3564 = vunpack.c.l.s4 1966171168
  %v3565 = vunpack.c.0.s8 %v3564
  %v3566 = vlaneseq
  %v3567 = vshrl.u32 %v3566, 7
  %v3568 = vsub.s32 %v3565, %v3567
  %v3569 = vrot.slane %v3555, %v3568
  %v3570 = vcombine.low %v3562, %v3569
  %v3571 = vcombine.low %v749, %v773
  %v3572 = vcombine.low %v787, %v795
  %v3573 = vcombine.low %v797, %v780
  %v3575 = vunpack.c.l.s4 1966171168
  %v3576 = vunpack.c.0.s8 %v3575
  %v3577 = vlaneseq
  %v3578 = vshrl.u32 %v3577, 7
  %v3579 = vsub.s32 %v3576, %v3578
  %v3580 = vrot.slane %v3571, %v3579
  %v3582 = vunpack.c.l.s4 1966171168
  %v3583 = vunpack.c.0.s8 %v3582
  %v3584 = vlaneseq
  %v3585 = vshrl.u32 %v3584, 7
  %v3586 = vsub.s32 %v3583, %v3585
  %v3587 = vrot.slane %v3572, %v3586
  %v3589 = vunpack.c.l.s4 1966171168
  %v3590 = vunpack.c.0.s8 %v3589
  %v3591 = vlaneseq
  %v3592 = vshrl.u32 %v3591, 7
  %v3593 = vsub.s32 %v3590, %v3592
  %v3594 = vrot.slane %v3573, %v3593
  %v3595 = vcombine.low %v1641, %v3580
  %v3596 = vcombine.low %v3587, %v3594
  %v3598 = vunpack.c.l.s4 1966171168
  %v3599 = vunpack.c.0.s8 %v3598
  %v3600 = vlaneseq
  %v3601 = vshrl.u32 %v3600, 7
  %v3602 = vsub.s32 %v3599, %v3601
  %v3603 = vrot.slane %v3595, %v3602
  %v3605 = vunpack.c.l.s4 1966171168
  %v3606 = vunpack.c.0.s8 %v3605
  %v3607 = vlaneseq
  %v3608 = vshrl.u32 %v3607, 7
  %v3609 = vsub.s32 %v3606, %v3608
  %v3610 = vrot.slane %v3596, %v3609
  %v3611 = vcombine.low %v3603, %v3610
  %v3612 = vcombine.low %v794, %v942
  %v3614 = vunpack.c.l.s4 1966171168
  %v3615 = vunpack.c.0.s8 %v3614
  %v3616 = vlaneseq
  %v3617 = vshrl.u32 %v3616, 7
  %v3618 = vsub.s32 %v3615, %v3617
  %v3619 = vrot.slane %v3612, %v3618
  %v3620 = vcombine.low %v3619, %v1718
  %v3621 = vcombine.low %v1725, %v1732
  %v3623 = vunpack.c.l.s4 1966171168
  %v3624 = vunpack.c.0.s8 %v3623
  %v3625 = vlaneseq
  %v3626 = vshrl.u32 %v3625, 7
  %v3627 = vsub.s32 %v3624, %v3626
  %v3628 = vrot.slane %v3620, %v3627
  %v3630 = vunpack.c.l.s4 1966171168
  %v3631 = vunpack.c.0.s8 %v3630
  %v3632 = vlaneseq
  %v3633 = vshrl.u32 %v3632, 7
  %v3634 = vsub.s32 %v3631, %v3633
  %v3635 = vrot.slane %v3621, %v3634
  %v3636 = vcombine.low %v3628, %v3635
  %v3637 = vcombine.low %v993, %v976
  %v3638 = vcombine.low %v1032, %v1025
  %v3640 = vunpack.c.l.s4 1966171168
  %v3641 = vunpack.c.0.s8 %v3640
  %v3642 = vlaneseq
  %v3643 = vshrl.u32 %v3642, 7
  %v3644 = vsub.s32 %v3641, %v3643
  %v3645 = vrot.slane %v3637, %v3644
  %v3647 = vunpack.c.l.s4 1966171168
  %v3648 = vunpack.c.0.s8 %v3647
  %v3649 = vlaneseq
  %v3650 = vshrl.u32 %v3649, 7
  %v3651 = vsub.s32 %v3648, %v3650
  %v3652 = vrot.slane %v3638, %v3651
  %v3653 = vcombine.low %v3645, %v1767
  %v3654 = vcombine.low %v1774, %v3652
  %v3656 = vunpack.c.l.s4 1966171168
  %v3657 = vunpack.c.0.s8 %v3656
  %v3658 = vlaneseq
  %v3659 = vshrl.u32 %v3658, 7
  %v3660 = vsub.s32 %v3657, %v3659
  %v3661 = vrot.slane %v3653, %v3660
  %v3663 = vunpack.c.l.s4 1966171168
  %v3664 = vunpack.c.0.s8 %v3663
  %v3665 = vlaneseq
  %v3666 = vshrl.u32 %v3665, 7
  %v3667 = vsub.s32 %v3664, %v3666
  %v3668 = vrot.slane %v3654, %v3667
  %v3669 = vcombine.low %v3661, %v3668
  %v3670 = vcombine.low %v1088, %v1090
  %v3672 = vunpack.c.l.s4 1966171168
  %v3673 = vunpack.c.0.s8 %v3672
  %v3674 = vlaneseq
  %v3675 = vshrl.u32 %v3674, 7
  %v3676 = vsub.s32 %v3673, %v3675
  %v3677 = vrot.slane %v3670, %v3676
  %v3678 = vcombine.low %v1788, %v1816
  %v3679 = vcombine.low %v1823, %v3677
  %v3681 = vunpack.c.l.s4 1966171168
  %v3682 = vunpack.c.0.s8 %v3681
  %v3683 = vlaneseq
  %v3684 = vshrl.u32 %v3683, 7
  %v3685 = vsub.s32 %v3682, %v3684
  %v3686 = vrot.slane %v3678, %v3685
  %v3688 = vunpack.c.l.s4 1966171168
  %v3689 = vunpack.c.0.s8 %v3688
  %v3690 = vlaneseq
  %v3691 = vshrl.u32 %v3690, 7
  %v3692 = vsub.s32 %v3689, %v3691
  %v3693 = vrot.slane %v3679, %v3692
  %v3694 = vcombine.low %v3686, %v3693
  %v3695 = vcombine.low %v1140, %v1139
  %v3697 = vunpack.c.l.s4 1966171168
  %v3698 = vunpack.c.0.s8 %v3697
  %v3699 = vlaneseq
  %v3700 = vshrl.u32 %v3699, 7
  %v3701 = vsub.s32 %v3698, %v3700
  %v3702 = vrot.slane %v3695, %v3701
  %v3703 = vcombine.low %v1837, %v1865
  %v3704 = vcombine.low %v3702, %v1879
  %v3706 = vunpack.c.l.s4 1966171168
  %v3707 = vunpack.c.0.s8 %v3706
  %v3708 = vlaneseq
  %v3709 = vshrl.u32 %v3708, 7
  %v3710 = vsub.s32 %v3707, %v3709
  %v3711 = vrot.slane %v3703, %v3710
  %v3713 = vunpack.c.l.s4 1966171168
  %v3714 = vunpack.c.0.s8 %v3713
  %v3715 = vlaneseq
  %v3716 = vshrl.u32 %v3715, 7
  %v3717 = vsub.s32 %v3714, %v3716
  %v3718 = vrot.slane %v3704, %v3717
  %v3719 = vcombine.low %v3711, %v3718
  %v3720 = vcombine.low %v1190, %v1214
  %v3722 = vunpack.c.l.s4 1966171168
  %v3723 = vunpack.c.0.s8 %v3722
  %v3724 = vlaneseq
  %v3725 = vshrl.u32 %v3724, 7
  %v3726 = vsub.s32 %v3723, %v3725
  %v3727 = vrot.slane %v3720, %v3726
  %v3728 = vcombine.low %v1886, %v1914
  %v3729 = vcombine.low %v3727, %v1928
  %v3731 = vunpack.c.l.s4 1966171168
  %v3732 = vunpack.c.0.s8 %v3731
  %v3733 = vlaneseq
  %v3734 = vshrl.u32 %v3733, 7
  %v3735 = vsub.s32 %v3732, %v3734
  %v3736 = vrot.slane %v3728, %v3735
  %v3738 = vunpack.c.l.s4 1966171168
  %v3739 = vunpack.c.0.s8 %v3738
  %v3740 = vlaneseq
  %v3741 = vshrl.u32 %v3740, 7
  %v3742 = vsub.s32 %v3739, %v3741
  %v3743 = vrot.slane %v3729, %v3742
  %v3744 = vcombine.low %v3736, %v3743
  %v3745 = vcombine.low %v1235, %v1263
  %v3746 = vcombine.low %v1277, %v1285
  %v3747 = vcombine.low %v1287, %v1270
  %v3749 = vunpack.c.l.s4 1966171168
  %v3750 = vunpack.c.0.s8 %v3749
  %v3751 = vlaneseq
  %v3752 = vshrl.u32 %v3751, 7
  %v3753 = vsub.s32 %v3750, %v3752
  %v3754 = vrot.slane %v3745, %v3753
  %v3756 = vunpack.c.l.s4 1966171168
  %v3757 = vunpack.c.0.s8 %v3756
  %v3758 = vlaneseq
  %v3759 = vshrl.u32 %v3758, 7
  %v3760 = vsub.s32 %v3757, %v3759
  %v3761 = vrot.slane %v3746, %v3760
  %v3763 = vunpack.c.l.s4 1966171168
  %v3764 = vunpack.c.0.s8 %v3763
  %v3765 = vlaneseq
  %v3766 = vshrl.u32 %v3765, 7
  %v3767 = vsub.s32 %v3764, %v3766
  %v3768 = vrot.slane %v3747, %v3767
  %v3769 = vcombine.low %v1935, %v3754
  %v3770 = vcombine.low %v3761, %v3768
  %v3772 = vunpack.c.l.s4 1966171168
  %v3773 = vunpack.c.0.s8 %v3772
  %v3774 = vlaneseq
  %v3775 = vshrl.u32 %v3774, 7
  %v3776 = vsub.s32 %v3773, %v3775
  %v3777 = vrot.slane %v3769, %v3776
  %v3779 = vunpack.c.l.s4 1966171168
  %v3780 = vunpack.c.0.s8 %v3779
  %v3781 = vlaneseq
  %v3782 = vshrl.u32 %v3781, 7
  %v3783 = vsub.s32 %v3780, %v3782
  %v3784 = vrot.slane %v3770, %v3783
  %v3785 = vcombine.low %v3777, %v3784
  %v3786 = vcombine.low %v1284, %v1286
  %v3788 = vunpack.c.l.s4 1966171168
  %v3789 = vunpack.c.0.s8 %v3788
  %v3790 = vlaneseq
  %v3791 = vshrl.u32 %v3790, 7
  %v3792 = vsub.s32 %v3789, %v3791
  %v3793 = vrot.slane %v3786, %v3792
  %v3795 = vunpack.c.l.s4 1966171168
  %v3796 = vunpack.c.0.s8 %v3795
  %v3797 = vlaneseq
  %v3798 = vshrl.u32 %v3797, 7
  %v3799 = vsub.s32 %v3796, %v3798
  %v3800 = vrot.slane %v3793, %v3799
  %v3801 = vsel %vm1968, %v3470, 0
  %v3803 = vsel %vm1968, %v3495, 0
  %v3805 = vsel %vm1968, %v3520, 0
  %v3807 = vsel %vm1968, %v3545, 0
  %v3809 = vsel %vm1968, %v3570, 0
  %v3811 = vsel %vm1968, %v3611, 0
  %v3813 = vsel %vm1968, %v3636, 0
  %v3815 = vsel %vm1968, %v3669, 0
  %v3817 = vsel %vm1968, %v3694, 0
  %v3819 = vsel %vm1968, %v3719, 0
  %v3821 = vsel %vm1968, %v3744, 0
  %v3823 = vsel %vm1968, %v3785, 0
  %v3825 = vsel %vm1968, %v3800, 0
  %3827 = vmatprep.subr.mxu0 0.0
  %3828 = vmatpush1.msra.mxu0 %v3436
  %3829 = vmatprep.subr.mxu0 0.0
  %3830 = vmatpush1.msra.mxu0 %v3437
  %3831 = vmatprep.subr.mxu0 0.0
  %3832 = vmatpush1.msra.mxu0 0.0
  %3833 = vmatprep.subr.mxu0 0.0
  %3834 = vmatpush1.msra.mxu0 0.0
  %3835 = vmatprep.subr.mxu0 0.0
  %3836 = vmatpush1.msra.mxu0 0.0
  %3837 = vmatprep.subr.mxu0 0.0
  %3838 = vmatpush1.msra.mxu0 0.0
  %3839 = vmatprep.subr.mxu0 0.0
  %3840 = vmatpush1.msra.mxu0 0.0
  %3841 = vmatprep.subr.mxu0 0.0
  %3842 = vmatpush1.msra.mxu0 0.0
  %3843 = vmatprep.subr.mxu0 0.0
  %3844 = vmatpush1.msra.mxu0 0.0
  %3845 = vmatprep.subr.mxu0 0.0
  %3846 = vmatpush1.msra.mxu0 0.0
  %3847 = vmatprep.subr.mxu0 0.0
  %3848 = vmatpush1.msra.mxu0 0.0
  %3849 = vmatprep.subr.mxu0 0.0
  %3850 = vmatpush1.msra.mxu0 0.0
  %3851 = vmatprep.subr.mxu0 0.0
  %3852 = vmatpush1.msra.mxu0 0.0
  %3853 = vmatprep.subr.mxu0 0.0
  %3854 = vmatpush1.msra.mxu0 0.0
  %3855 = vmatprep.subr.mxu0 0.0
  %3856 = vmatpush1.msra.mxu0 0.0
  %3857 = vmatprep.subr.mxu0 0.0
  %3858 = vmatpush1.msra.mxu0 0.0
  %3859 = vmatprep.subr.mxu0 0.0
  %3860 = vmatpush1.msra.mxu0 0.0
  %3861 = vmatprep.subr.mxu0 0.0
  %3862 = vmatpush1.msra.mxu0 0.0
  %3863 = vmatprep.subr.mxu0 0.0
  %3864 = vmatpush1.msra.mxu0 0.0
  %3865 = vmatprep.subr.mxu0 0.0
  %3866 = vmatpush1.msra.mxu0 0.0
  %3867 = vmatprep.subr.mxu0 0.0
  %3868 = vmatpush1.msra.mxu0 0.0
  %3869 = vmatprep.subr.mxu0 0.0
  %3870 = vmatpush1.msra.mxu0 0.0
  %3871 = vmatprep.subr.mxu0 0.0
  %3872 = vmatpush1.msra.mxu0 0.0
  %3873 = vmatprep.subr.mxu0 0.0
  %3874 = vmatpush1.msra.mxu0 0.0
  %3875 = vmatprep.subr.mxu0 0.0
  %3876 = vmatpush1.msra.mxu0 0.0
  %3877 = vmatprep.subr.mxu0 0.0
  %3878 = vmatpush1.msra.mxu0 0.0
  %3879 = vmatprep.subr.mxu0 0.0
  %3880 = vmatpush1.msra.mxu0 0.0
  %3881 = vmatprep.subr.mxu0 0.0
  %3882 = vmatpush1.msra.mxu0 0.0
  %3883 = vmatprep.subr.mxu0 0.0
  %3884 = vmatpush1.msra.mxu0 0.0
  %3885 = vmatprep.subr.mxu0 0.0
  %3886 = vmatpush1.msra.mxu0 0.0
  %3887 = vmatprep.subr.mxu0 0.0
  %3888 = vmatpush1.msra.mxu0 0.0
  %3889 = vmatprep.subr.mxu0 0.0
  %3890 = vmatpush1.msra.mxu0 0.0
  %3891 = vmatprep.mubr.f32.mxu0 0.0
  %3892 = vmatmul.mubr.f32.gmra.mrb[0].mxu0 %v3801
  %v3893 = vpop.f32.mrb[0].mxu0
  %v3894 = vadd.f32 0.0, %v3893
  %v3895 = vpop.f32.mrb[0].mxu0
  %3896 = vmatprep.mubr.f32.mxu0 0.0
  %3897 = vmatmul.mubr.f32.gmra.mrb[0].mxu0 %v3803
  %v3898 = vpop.f32.mrb[0].mxu0
  %v3899 = vadd.f32 0.0, %v3898
  %v3900 = vpop.f32.mrb[0].mxu0
  %3901 = vmatprep.mubr.f32.mxu0 0.0
  %3902 = vmatmul.mubr.f32.gmra.mrb[0].mxu0 %v3805
  %v3903 = vpop.f32.mrb[0].mxu0
  %v3904 = vadd.f32 0.0, %v3903
  %v3905 = vpop.f32.mrb[0].mxu0
  %3906 = vmatprep.mubr.f32.mxu0 0.0
  %3907 = vmatmul.mubr.f32.gmra.mrb[0].mxu0 %v3807
  %v3908 = vpop.f32.mrb[0].mxu0
  %v3909 = vadd.f32 0.0, %v3908
  %v3910 = vpop.f32.mrb[0].mxu0
  %3911 = vmatprep.mubr.f32.mxu0 0.0
  %3912 = vmatmul.mubr.f32.gmra.mrb[0].mxu0 %v3809
  %v3913 = vpop.f32.mrb[0].mxu0
  %v3914 = vadd.f32 0.0, %v3913
  %v3915 = vpop.f32.mrb[0].mxu0
  %3916 = vmatprep.mubr.f32.mxu0 0.0
  %3917 = vmatmul.mubr.f32.gmra.mrb[0].mxu0 %v3811
  %v3918 = vpop.f32.mrb[0].mxu0
  %v3919 = vadd.f32 0.0, %v3918
  %v3920 = vpop.f32.mrb[0].mxu0
  %3921 = vmatprep.mubr.f32.mxu0 0.0
  %3922 = vmatmul.mubr.f32.gmra.mrb[0].mxu0 %v3813
  %v3923 = vpop.f32.mrb[0].mxu0
  %v3924 = vadd.f32 0.0, %v3923
  %v3925 = vpop.f32.mrb[0].mxu0
  %3926 = vmatprep.mubr.f32.mxu0 0.0
  %3927 = vmatmul.mubr.f32.gmra.mrb[0].mxu0 %v3815
  %v3928 = vpop.f32.mrb[0].mxu0
  %v3929 = vadd.f32 0.0, %v3928
  %v3930 = vpop.f32.mrb[0].mxu0
  %3931 = vmatprep.mubr.f32.mxu0 0.0
  %3932 = vmatmul.mubr.f32.gmra.mrb[0].mxu0 %v3817
  %v3933 = vpop.f32.mrb[0].mxu0
  %v3934 = vadd.f32 0.0, %v3933
  %v3935 = vpop.f32.mrb[0].mxu0
  %3936 = vmatprep.mubr.f32.mxu0 0.0
  %3937 = vmatmul.mubr.f32.gmra.mrb[0].mxu0 %v3819
  %v3938 = vpop.f32.mrb[0].mxu0
  %v3939 = vadd.f32 0.0, %v3938
  %v3940 = vpop.f32.mrb[0].mxu0
  %3941 = vmatprep.mubr.f32.mxu0 0.0
  %3942 = vmatmul.mubr.f32.gmra.mrb[0].mxu0 %v3821
  %v3943 = vpop.f32.mrb[0].mxu0
  %v3944 = vadd.f32 0.0, %v3943
  %v3945 = vpop.f32.mrb[0].mxu0
  %3946 = vmatprep.mubr.f32.mxu0 0.0
  %3947 = vmatmul.mubr.f32.gmra.mrb[0].mxu0 %v3823
  %v3948 = vpop.f32.mrb[0].mxu0
  %v3949 = vadd.f32 0.0, %v3948
  %v3950 = vpop.f32.mrb[0].mxu0
  %3951 = vmatprep.mubr.f32.mxu0 0.0
  %3952 = vmatmul.mubr.f32.gmra.mrb[0].mxu0 %v3825
  %v3953 = vpop.f32.mrb[0].mxu0
  %v3954 = vadd.f32 0.0, %v3953
  %v3955 = vpop.f32.mrb[0].mxu0
  %3956 = vdwg.mxu0
  %v3957 = vadd.f32 %v3422, %v3894
  %v3958 = vadd.f32 %v3423, %v3899
  %v3959 = vadd.f32 %v3424, %v3904
  %v3960 = vadd.f32 %v3425, %v3909
  %v3961 = vadd.f32 %v3426, %v3914
  %v3962 = vadd.f32 %v3427, %v3919
  %v3963 = vadd.f32 %v3428, %v3924
  %v3964 = vadd.f32 %v3429, %v3929
  %v3965 = vadd.f32 %v3430, %v3934
  %v3966 = vadd.f32 %v3431, %v3939
  %v3967 = vadd.f32 %v3432, %v3944
  %v3968 = vadd.f32 %v3433, %v3949
  %v3969 = vadd.f32 %v3434, %v3954
  %s3970 = scalar_lea.vmem %s3, 64
  %v3971 = vld [vmem:[%s3970] sm:$0xff]
  %v3972 = vld [vmem:[%s3970 + $0x8] sm:$0xff]
  %v3973 = vcombine.low %v479, %v503
  %v3975 = vunpack.c.l.s4 1966171168
  %v3976 = vunpack.c.0.s8 %v3975
  %v3977 = vlaneseq
  %v3978 = vshrl.u32 %v3977, 7
  %v3979 = vsub.s32 %v3976, %v3978
  %v3980 = vrot.slane %v3973, %v3979
  %v3981 = vcombine.low %v2198, %v3980
  %v3983 = vunpack.c.l.s4 1966171168
  %v3984 = vunpack.c.0.s8 %v3983
  %v3985 = vlaneseq
  %v3986 = vshrl.u32 %v3985, 7
  %v3987 = vsub.s32 %v3984, %v3986
  %v3988 = vrot.slane %v3981, %v3987
  %v3989 = vcombine.low %v2214, %v3988
  %v3990 = vcombine.low %v2953, %v2254
  %v3992 = vunpack.c.l.s4 1966171168
  %v3993 = vunpack.c.0.s8 %v3992
  %v3994 = vlaneseq
  %v3995 = vshrl.u32 %v3994, 7
  %v3996 = vsub.s32 %v3993, %v3995
  %v3997 = vrot.slane %v3990, %v3996
  %v3998 = vcombine.low %v2263, %v3997
  %v3999 = vcombine.low %v599, %v598
  %v4001 = vunpack.c.l.s4 1966171168
  %v4002 = vunpack.c.0.s8 %v4001
  %v4003 = vlaneseq
  %v4004 = vshrl.u32 %v4003, 7
  %v4005 = vsub.s32 %v4002, %v4004
  %v4006 = vrot.slane %v3999, %v4005
  %v4007 = vcombine.low %v4006, %v2303
  %v4009 = vunpack.c.l.s4 1966171168
  %v4010 = vunpack.c.0.s8 %v4009
  %v4011 = vlaneseq
  %v4012 = vshrl.u32 %v4011, 7
  %v4013 = vsub.s32 %v4010, %v4012
  %v4014 = vrot.slane %v4007, %v4013
  %v4015 = vcombine.low %v2312, %v4014
  %v4016 = vcombine.low %v2331, %v3011
  %v4018 = vunpack.c.l.s4 1966171168
  %v4019 = vunpack.c.0.s8 %v4018
  %v4020 = vlaneseq
  %v4021 = vshrl.u32 %v4020, 7
  %v4022 = vsub.s32 %v4019, %v4021
  %v4023 = vrot.slane %v4016, %v4022
  %v4024 = vcombine.low %v4023, %v2368
  %v4025 = vcombine.low %v682, %v700
  %v4027 = vunpack.c.l.s4 1966171168
  %v4028 = vunpack.c.0.s8 %v4027
  %v4029 = vlaneseq
  %v4030 = vshrl.u32 %v4029, 7
  %v4031 = vsub.s32 %v4028, %v4030
  %v4032 = vrot.slane %v4025, %v4031
  %v4033 = vcombine.low %v2380, %v4032
  %v4035 = vunpack.c.l.s4 1966171168
  %v4036 = vunpack.c.0.s8 %v4035
  %v4037 = vlaneseq
  %v4038 = vshrl.u32 %v4037, 7
  %v4039 = vsub.s32 %v4036, %v4038
  %v4040 = vrot.slane %v4033, %v4039
  %v4041 = vcombine.low %v4040, %v2417
  %v4042 = vcombine.low %v773, %v787
  %v4043 = vcombine.low %v795, %v797
  %v4044 = vcombine.low %v780, %v794
  %v4046 = vunpack.c.l.s4 1966171168
  %v4047 = vunpack.c.0.s8 %v4046
  %v4048 = vlaneseq
  %v4049 = vshrl.u32 %v4048, 7
  %v4050 = vsub.s32 %v4047, %v4049
  %v4051 = vrot.slane %v4042, %v4050
  %v4053 = vunpack.c.l.s4 1966171168
  %v4054 = vunpack.c.0.s8 %v4053
  %v4055 = vlaneseq
  %v4056 = vshrl.u32 %v4055, 7
  %v4057 = vsub.s32 %v4054, %v4056
  %v4058 = vrot.slane %v4043, %v4057
  %v4060 = vunpack.c.l.s4 1966171168
  %v4061 = vunpack.c.0.s8 %v4060
  %v4062 = vlaneseq
  %v4063 = vshrl.u32 %v4062, 7
  %v4064 = vsub.s32 %v4061, %v4063
  %v4065 = vrot.slane %v4044, %v4064
  %v4066 = vcombine.low %v3051, %v4051
  %v4067 = vcombine.low %v4058, %v4065
  %v4069 = vunpack.c.l.s4 1966171168
  %v4070 = vunpack.c.0.s8 %v4069
  %v4071 = vlaneseq
  %v4072 = vshrl.u32 %v4071, 7
  %v4073 = vsub.s32 %v4070, %v4072
  %v4074 = vrot.slane %v4066, %v4073
  %v4076 = vunpack.c.l.s4 1966171168
  %v4077 = vunpack.c.0.s8 %v4076
  %v4078 = vlaneseq
  %v4079 = vshrl.u32 %v4078, 7
  %v4080 = vsub.s32 %v4077, %v4079
  %v4081 = vrot.slane %v4067, %v4080
  %v4082 = vcombine.low %v4074, %v4081
  %v4083 = vcombine.low %v796, %v944
  %v4085 = vunpack.c.l.s4 1966171168
  %v4086 = vunpack.c.0.s8 %v4085
  %v4087 = vlaneseq
  %v4088 = vshrl.u32 %v4087, 7
  %v4089 = vsub.s32 %v4086, %v4088
  %v4090 = vrot.slane %v4083, %v4089
  %v4091 = vcombine.low %v4090, %v2485
  %v4092 = vcombine.low %v2492, %v3110
  %v4094 = vunpack.c.l.s4 1966171168
  %v4095 = vunpack.c.0.s8 %v4094
  %v4096 = vlaneseq
  %v4097 = vshrl.u32 %v4096, 7
  %v4098 = vsub.s32 %v4095, %v4097
  %v4099 = vrot.slane %v4091, %v4098
  %v4101 = vunpack.c.l.s4 1966171168
  %v4102 = vunpack.c.0.s8 %v4101
  %v4103 = vlaneseq
  %v4104 = vshrl.u32 %v4103, 7
  %v4105 = vsub.s32 %v4102, %v4104
  %v4106 = vrot.slane %v4092, %v4105
  %v4107 = vcombine.low %v4099, %v4106
  %v4108 = vcombine.low %v1040, %v1039
  %v4110 = vunpack.c.l.s4 1966171168
  %v4111 = vunpack.c.0.s8 %v4110
  %v4112 = vlaneseq
  %v4113 = vshrl.u32 %v4112, 7
  %v4114 = vsub.s32 %v4111, %v4113
  %v4115 = vrot.slane %v4108, %v4114
  %v4116 = vcombine.low %v2541, %v4115
  %v4118 = vunpack.c.l.s4 1966171168
  %v4119 = vunpack.c.0.s8 %v4118
  %v4120 = vlaneseq
  %v4121 = vshrl.u32 %v4120, 7
  %v4122 = vsub.s32 %v4119, %v4121
  %v4123 = vrot.slane %v4116, %v4122
  %v4124 = vcombine.low %v2557, %v4123
  %v4125 = vcombine.low %v3168, %v2597
  %v4127 = vunpack.c.l.s4 1966171168
  %v4128 = vunpack.c.0.s8 %v4127
  %v4129 = vlaneseq
  %v4130 = vshrl.u32 %v4129, 7
  %v4131 = vsub.s32 %v4128, %v4130
  %v4132 = vrot.slane %v4125, %v4131
  %v4133 = vcombine.low %v2606, %v4132
  %v4134 = vcombine.low %v1123, %v1141
  %v4136 = vunpack.c.l.s4 1966171168
  %v4137 = vunpack.c.0.s8 %v4136
  %v4138 = vlaneseq
  %v4139 = vshrl.u32 %v4138, 7
  %v4140 = vsub.s32 %v4137, %v4139
  %v4141 = vrot.slane %v4134, %v4140
  %v4142 = vcombine.low %v4141, %v2646
  %v4144 = vunpack.c.l.s4 1966171168
  %v4145 = vunpack.c.0.s8 %v4144
  %v4146 = vlaneseq
  %v4147 = vshrl.u32 %v4146, 7
  %v4148 = vsub.s32 %v4145, %v4147
  %v4149 = vrot.slane %v4142, %v4148
  %v4150 = vcombine.low %v2655, %v4149
  %v4151 = vcombine.low %v2674, %v3226
  %v4153 = vunpack.c.l.s4 1966171168
  %v4154 = vunpack.c.0.s8 %v4153
  %v4155 = vlaneseq
  %v4156 = vshrl.u32 %v4155, 7
  %v4157 = vsub.s32 %v4154, %v4156
  %v4158 = vrot.slane %v4151, %v4157
  %v4159 = vcombine.low %v4158, %v2711
  %v4160 = vcombine.low %v1237, %v1277
  %v4161 = vcombine.low %v1285, %v1287
  %v4162 = vcombine.low %v1270, %v1284
  %v4164 = vunpack.c.l.s4 1966171168
  %v4165 = vunpack.c.0.s8 %v4164
  %v4166 = vlaneseq
  %v4167 = vshrl.u32 %v4166, 7
  %v4168 = vsub.s32 %v4165, %v4167
  %v4169 = vrot.slane %v4160, %v4168
  %v4171 = vunpack.c.l.s4 1966171168
  %v4172 = vunpack.c.0.s8 %v4171
  %v4173 = vlaneseq
  %v4174 = vshrl.u32 %v4173, 7
  %v4175 = vsub.s32 %v4172, %v4174
  %v4176 = vrot.slane %v4161, %v4175
  %v4178 = vunpack.c.l.s4 1966171168
  %v4179 = vunpack.c.0.s8 %v4178
  %v4180 = vlaneseq
  %v4181 = vshrl.u32 %v4180, 7
  %v4182 = vsub.s32 %v4179, %v4181
  %v4183 = vrot.slane %v4162, %v4182
  %v4184 = vcombine.low %v2720, %v4169
  %v4185 = vcombine.low %v4176, %v4183
  %v4187 = vunpack.c.l.s4 1966171168
  %v4188 = vunpack.c.0.s8 %v4187
  %v4189 = vlaneseq
  %v4190 = vshrl.u32 %v4189, 7
  %v4191 = vsub.s32 %v4188, %v4190
  %v4192 = vrot.slane %v4184, %v4191
  %v4194 = vunpack.c.l.s4 1966171168
  %v4195 = vunpack.c.0.s8 %v4194
  %v4196 = vlaneseq
  %v4197 = vshrl.u32 %v4196, 7
  %v4198 = vsub.s32 %v4195, %v4197
  %v4199 = vrot.slane %v4185, %v4198
  %v4200 = vcombine.low %v4192, %v4199
  %v4201 = vcombine.low %v1286, %v1288
  %v4203 = vunpack.c.l.s4 1966171168
  %v4204 = vunpack.c.0.s8 %v4203
  %v4205 = vlaneseq
  %v4206 = vshrl.u32 %v4205, 7
  %v4207 = vsub.s32 %v4204, %v4206
  %v4208 = vrot.slane %v4201, %v4207
  %v4210 = vunpack.c.l.s4 1966171168
  %v4211 = vunpack.c.0.s8 %v4210
  %v4212 = vlaneseq
  %v4213 = vshrl.u32 %v4212, 7
  %v4214 = vsub.s32 %v4211, %v4213
  %v4215 = vrot.slane %v4208, %v4214
  %v4216 = vsel %vm1968, %v3989, 0
  %v4218 = vsel %vm1968, %v3998, 0
  %v4220 = vsel %vm1968, %v4015, 0
  %v4222 = vsel %vm1968, %v4024, 0
  %v4224 = vsel %vm1968, %v4041, 0
  %v4226 = vsel %vm1968, %v4082, 0
  %v4228 = vsel %vm1968, %v4107, 0
  %v4230 = vsel %vm1968, %v4124, 0
  %v4232 = vsel %vm1968, %v4133, 0
  %v4234 = vsel %vm1968, %v4150, 0
  %v4236 = vsel %vm1968, %v4159, 0
  %v4238 = vsel %vm1968, %v4200, 0
  %v4240 = vsel %vm1968, %v4215, 0
  %4242 = vmatprep.subr.mxu0 0.0
  %4243 = vmatpush1.msra.mxu0 %v3971
  %4244 = vmatprep.subr.mxu0 0.0
  %4245 = vmatpush1.msra.mxu0 %v3972
  %4246 = vmatprep.subr.mxu0 0.0
  %4247 = vmatpush1.msra.mxu0 0.0
  %4248 = vmatprep.subr.mxu0 0.0
  %4249 = vmatpush1.msra.mxu0 0.0
  %4250 = vmatprep.subr.mxu0 0.0
  %4251 = vmatpush1.msra.mxu0 0.0
  %4252 = vmatprep.subr.mxu0 0.0
  %4253 = vmatpush1.msra.mxu0 0.0
  %4254 = vmatprep.subr.mxu0 0.0
  %4255 = vmatpush1.msra.mxu0 0.0
  %4256 = vmatprep.subr.mxu0 0.0
  %4257 = vmatpush1.msra.mxu0 0.0
  %4258 = vmatprep.subr.mxu0 0.0
  %4259 = vmatpush1.msra.mxu0 0.0
  %4260 = vmatprep.subr.mxu0 0.0
  %4261 = vmatpush1.msra.mxu0 0.0
  %4262 = vmatprep.subr.mxu0 0.0
  %4263 = vmatpush1.msra.mxu0 0.0
  %4264 = vmatprep.subr.mxu0 0.0
  %4265 = vmatpush1.msra.mxu0 0.0
  %4266 = vmatprep.subr.mxu0 0.0
  %4267 = vmatpush1.msra.mxu0 0.0
  %4268 = vmatprep.subr.mxu0 0.0
  %4269 = vmatpush1.msra.mxu0 0.0
  %4270 = vmatprep.subr.mxu0 0.0
  %4271 = vmatpush1.msra.mxu0 0.0
  %4272 = vmatprep.subr.mxu0 0.0
  %4273 = vmatpush1.msra.mxu0 0.0
  %4274 = vmatprep.subr.mxu0 0.0
  %4275 = vmatpush1.msra.mxu0 0.0
  %4276 = vmatprep.subr.mxu0 0.0
  %4277 = vmatpush1.msra.mxu0 0.0
  %4278 = vmatprep.subr.mxu0 0.0
  %4279 = vmatpush1.msra.mxu0 0.0
  %4280 = vmatprep.subr.mxu0 0.0
  %4281 = vmatpush1.msra.mxu0 0.0
  %4282 = vmatprep.subr.mxu0 0.0
  %4283 = vmatpush1.msra.mxu0 0.0
  %4284 = vmatprep.subr.mxu0 0.0
  %4285 = vmatpush1.msra.mxu0 0.0
  %4286 = vmatprep.subr.mxu0 0.0
  %4287 = vmatpush1.msra.mxu0 0.0
  %4288 = vmatprep.subr.mxu0 0.0
  %4289 = vmatpush1.msra.mxu0 0.0
  %4290 = vmatprep.subr.mxu0 0.0
  %4291 = vmatpush1.msra.mxu0 0.0
  %4292 = vmatprep.subr.mxu0 0.0
  %4293 = vmatpush1.msra.mxu0 0.0
  %4294 = vmatprep.subr.mxu0 0.0
  %4295 = vmatpush1.msra.mxu0 0.0
  %4296 = vmatprep.subr.mxu0 0.0
  %4297 = vmatpush1.msra.mxu0 0.0
  %4298 = vmatprep.subr.mxu0 0.0
  %4299 = vmatpush1.msra.mxu0 0.0
  %4300 = vmatprep.subr.mxu0 0.0
  %4301 = vmatpush1.msra.mxu0 0.0
  %4302 = vmatprep.subr.mxu0 0.0
  %4303 = vmatpush1.msra.mxu0 0.0
  %4304 = vmatprep.subr.mxu0 0.0
  %4305 = vmatpush1.msra.mxu0 0.0
  %4306 = vmatprep.mubr.f32.mxu0 0.0
  %4307 = vmatmul.mubr.f32.gmra.mrb[0].mxu0 %v4216
  %v4308 = vpop.f32.mrb[0].mxu0
  %v4309 = vadd.f32 0.0, %v4308
  %v4310 = vpop.f32.mrb[0].mxu0
  %4311 = vmatprep.mubr.f32.mxu0 0.0
  %4312 = vmatmul.mubr.f32.gmra.mrb[0].mxu0 %v4218
  %v4313 = vpop.f32.mrb[0].mxu0
  %v4314 = vadd.f32 0.0, %v4313
  %v4315 = vpop.f32.mrb[0].mxu0
  %4316 = vmatprep.mubr.f32.mxu0 0.0
  %4317 = vmatmul.mubr.f32.gmra.mrb[0].mxu0 %v4220
  %v4318 = vpop.f32.mrb[0].mxu0
  %v4319 = vadd.f32 0.0, %v4318
  %v4320 = vpop.f32.mrb[0].mxu0
  %4321 = vmatprep.mubr.f32.mxu0 0.0
  %4322 = vmatmul.mubr.f32.gmra.mrb[0].mxu0 %v4222
  %v4323 = vpop.f32.mrb[0].mxu0
  %v4324 = vadd.f32 0.0, %v4323
  %v4325 = vpop.f32.mrb[0].mxu0
  %4326 = vmatprep.mubr.f32.mxu0 0.0
  %4327 = vmatmul.mubr.f32.gmra.mrb[0].mxu0 %v4224
  %v4328 = vpop.f32.mrb[0].mxu0
  %v4329 = vadd.f32 0.0, %v4328
  %v4330 = vpop.f32.mrb[0].mxu0
  %4331 = vmatprep.mubr.f32.mxu0 0.0
  %4332 = vmatmul.mubr.f32.gmra.mrb[0].mxu0 %v4226
  %v4333 = vpop.f32.mrb[0].mxu0
  %v4334 = vadd.f32 0.0, %v4333
  %v4335 = vpop.f32.mrb[0].mxu0
  %4336 = vmatprep.mubr.f32.mxu0 0.0
  %4337 = vmatmul.mubr.f32.gmra.mrb[0].mxu0 %v4228
  %v4338 = vpop.f32.mrb[0].mxu0
  %v4339 = vadd.f32 0.0, %v4338
  %v4340 = vpop.f32.mrb[0].mxu0
  %4341 = vmatprep.mubr.f32.mxu0 0.0
  %4342 = vmatmul.mubr.f32.gmra.mrb[0].mxu0 %v4230
  %v4343 = vpop.f32.mrb[0].mxu0
  %v4344 = vadd.f32 0.0, %v4343
  %v4345 = vpop.f32.mrb[0].mxu0
  %4346 = vmatprep.mubr.f32.mxu0 0.0
  %4347 = vmatmul.mubr.f32.gmra.mrb[0].mxu0 %v4232
  %v4348 = vpop.f32.mrb[0].mxu0
  %v4349 = vadd.f32 0.0, %v4348
  %v4350 = vpop.f32.mrb[0].mxu0
  %4351 = vmatprep.mubr.f32.mxu0 0.0
  %4352 = vmatmul.mubr.f32.gmra.mrb[0].mxu0 %v4234
  %v4353 = vpop.f32.mrb[0].mxu0
  %v4354 = vadd.f32 0.0, %v4353
  %v4355 = vpop.f32.mrb[0].mxu0
  %4356 = vmatprep.mubr.f32.mxu0 0.0
  %4357 = vmatmul.mubr.f32.gmra.mrb[0].mxu0 %v4236
  %v4358 = vpop.f32.mrb[0].mxu0
  %v4359 = vadd.f32 0.0, %v4358
  %v4360 = vpop.f32.mrb[0].mxu0
  %4361 = vmatprep.mubr.f32.mxu0 0.0
  %4362 = vmatmul.mubr.f32.gmra.mrb[0].mxu0 %v4238
  %v4363 = vpop.f32.mrb[0].mxu0
  %v4364 = vadd.f32 0.0, %v4363
  %v4365 = vpop.f32.mrb[0].mxu0
  %4366 = vmatprep.mubr.f32.mxu0 0.0
  %4367 = vmatmul.mubr.f32.gmra.mrb[0].mxu0 %v4240
  %v4368 = vpop.f32.mrb[0].mxu0
  %v4369 = vadd.f32 0.0, %v4368
  %v4370 = vpop.f32.mrb[0].mxu0
  %4371 = vdwg.mxu0
  %v4372 = vadd.f32 %v3957, %v4309
  %v4373 = vadd.f32 %v3958, %v4314
  %v4374 = vadd.f32 %v3959, %v4319
  %v4375 = vadd.f32 %v3960, %v4324
  %v4376 = vadd.f32 %v3961, %v4329
  %v4377 = vadd.f32 %v3962, %v4334
  %v4378 = vadd.f32 %v3963, %v4339
  %v4379 = vadd.f32 %v3964, %v4344
  %v4380 = vadd.f32 %v3965, %v4349
  %v4381 = vadd.f32 %v3966, %v4354
  %v4382 = vadd.f32 %v3967, %v4359
  %v4383 = vadd.f32 %v3968, %v4364
  %v4384 = vadd.f32 %v3969, %v4369
  %s4385 = scalar_lea.vmem %s3, 80
  %v4386 = vld [vmem:[%s4385] sm:$0xff]
  %v4387 = vld [vmem:[%s4385 + $0x8] sm:$0xff]
  %v4388 = vcombine.low %v493, %v486
  %v4390 = vunpack.c.l.s4 1966171168
  %v4391 = vunpack.c.0.s8 %v4390
  %v4392 = vlaneseq
  %v4393 = vshrl.u32 %v4392, 7
  %v4394 = vsub.s32 %v4391, %v4393
  %v4395 = vrot.slane %v4388, %v4394
  %v4396 = vcombine.low %v1438, %v4395
  %v4398 = vunpack.c.l.s4 1966171168
  %v4399 = vunpack.c.0.s8 %v4398
  %v4400 = vlaneseq
  %v4401 = vshrl.u32 %v4400, 7
  %v4402 = vsub.s32 %v4399, %v4401
  %v4403 = vrot.slane %v4396, %v4402
  %v4404 = vcombine.low %v1454, %v4403
  %v4405 = vcombine.low %v542, %v550
  %v4407 = vunpack.c.l.s4 1966171168
  %v4408 = vunpack.c.0.s8 %v4407
  %v4409 = vlaneseq
  %v4410 = vshrl.u32 %v4409, 7
  %v4411 = vsub.s32 %v4408, %v4410
  %v4412 = vrot.slane %v4405, %v4411
  %v4413 = vcombine.low %v4412, %v1494
  %v4415 = vunpack.c.l.s4 1966171168
  %v4416 = vunpack.c.0.s8 %v4415
  %v4417 = vlaneseq
  %v4418 = vshrl.u32 %v4417, 7
  %v4419 = vsub.s32 %v4416, %v4418
  %v4420 = vrot.slane %v4413, %v4419
  %v4421 = vcombine.low %v1503, %v4420
  %v4422 = vcombine.low %v601, %v600
  %v4424 = vunpack.c.l.s4 1966171168
  %v4425 = vunpack.c.0.s8 %v4424
  %v4426 = vlaneseq
  %v4427 = vshrl.u32 %v4426, 7
  %v4428 = vsub.s32 %v4425, %v4427
  %v4429 = vrot.slane %v4422, %v4428
  %v4430 = vcombine.low %v4429, %v1543
  %v4432 = vunpack.c.l.s4 1966171168
  %v4433 = vunpack.c.0.s8 %v4432
  %v4434 = vlaneseq
  %v4435 = vshrl.u32 %v4434, 7
  %v4436 = vsub.s32 %v4433, %v4435
  %v4437 = vrot.slane %v4430, %v4436
  %v4438 = vcombine.low %v1552, %v4437
  %v4439 = vcombine.low %v650, %v633
  %v4441 = vunpack.c.l.s4 1966171168
  %v4442 = vunpack.c.0.s8 %v4441
  %v4443 = vlaneseq
  %v4444 = vshrl.u32 %v4443, 7
  %v4445 = vsub.s32 %v4442, %v4444
  %v4446 = vrot.slane %v4439, %v4445
  %v4447 = vcombine.low %v1571, %v4446
  %v4449 = vunpack.c.l.s4 1966171168
  %v4450 = vunpack.c.0.s8 %v4449
  %v4451 = vlaneseq
  %v4452 = vshrl.u32 %v4451, 7
  %v4453 = vsub.s32 %v4450, %v4452
  %v4454 = vrot.slane %v4447, %v4453
  %v4455 = vcombine.low %v4454, %v1608
  %v4456 = vcombine.low %v696, %v724
  %v4458 = vunpack.c.l.s4 1966171168
  %v4459 = vunpack.c.0.s8 %v4458
  %v4460 = vlaneseq
  %v4461 = vshrl.u32 %v4460, 7
  %v4462 = vsub.s32 %v4459, %v4461
  %v4463 = vrot.slane %v4456, %v4462
  %v4464 = vcombine.low %v1620, %v4463
  %v4466 = vunpack.c.l.s4 1966171168
  %v4467 = vunpack.c.0.s8 %v4466
  %v4468 = vlaneseq
  %v4469 = vshrl.u32 %v4468, 7
  %v4470 = vsub.s32 %v4467, %v4469
  %v4471 = vrot.slane %v4464, %v4470
  %v4472 = vcombine.low %v4471, %v1657
  %v4473 = vcombine.low %v745, %v747
  %v4474 = vcombine.low %v794, %v796
  %v4476 = vunpack.c.l.s4 1966171168
  %v4477 = vunpack.c.0.s8 %v4476
  %v4478 = vlaneseq
  %v4479 = vshrl.u32 %v4478, 7
  %v4480 = vsub.s32 %v4477, %v4479
  %v4481 = vrot.slane %v4473, %v4480
  %v4483 = vunpack.c.l.s4 1966171168
  %v4484 = vunpack.c.0.s8 %v4483
  %v4485 = vlaneseq
  %v4486 = vshrl.u32 %v4485, 7
  %v4487 = vsub.s32 %v4484, %v4486
  %v4488 = vrot.slane %v4474, %v4487
  %v4489 = vcombine.low %v4481, %v3587
  %v4490 = vcombine.low %v3594, %v4488
  %v4492 = vunpack.c.l.s4 1966171168
  %v4493 = vunpack.c.0.s8 %v4492
  %v4494 = vlaneseq
  %v4495 = vshrl.u32 %v4494, 7
  %v4496 = vsub.s32 %v4493, %v4495
  %v4497 = vrot.slane %v4489, %v4496
  %v4499 = vunpack.c.l.s4 1966171168
  %v4500 = vunpack.c.0.s8 %v4499
  %v4501 = vlaneseq
  %v4502 = vshrl.u32 %v4501, 7
  %v4503 = vsub.s32 %v4500, %v4502
  %v4504 = vrot.slane %v4490, %v4503
  %v4505 = vcombine.low %v4497, %v4504
  %v4506 = vcombine.low %v798, %v927
  %v4507 = vcombine.low %v983, %v991
  %v4509 = vunpack.c.l.s4 1966171168
  %v4510 = vunpack.c.0.s8 %v4509
  %v4511 = vlaneseq
  %v4512 = vshrl.u32 %v4511, 7
  %v4513 = vsub.s32 %v4510, %v4512
  %v4514 = vrot.slane %v4506, %v4513
  %v4516 = vunpack.c.l.s4 1966171168
  %v4517 = vunpack.c.0.s8 %v4516
  %v4518 = vlaneseq
  %v4519 = vshrl.u32 %v4518, 7
  %v4520 = vsub.s32 %v4517, %v4519
  %v4521 = vrot.slane %v4507, %v4520
  %v4522 = vcombine.low %v4514, %v1725
  %v4523 = vcombine.low %v1732, %v4521
  %v4525 = vunpack.c.l.s4 1966171168
  %v4526 = vunpack.c.0.s8 %v4525
  %v4527 = vlaneseq
  %v4528 = vshrl.u32 %v4527, 7
  %v4529 = vsub.s32 %v4526, %v4528
  %v4530 = vrot.slane %v4522, %v4529
  %v4532 = vunpack.c.l.s4 1966171168
  %v4533 = vunpack.c.0.s8 %v4532
  %v4534 = vlaneseq
  %v4535 = vshrl.u32 %v4534, 7
  %v4536 = vsub.s32 %v4533, %v4535
  %v4537 = vrot.slane %v4523, %v4536
  %v4538 = vcombine.low %v4530, %v4537
  %v4539 = vcombine.low %v1042, %v1041
  %v4541 = vunpack.c.l.s4 1966171168
  %v4542 = vunpack.c.0.s8 %v4541
  %v4543 = vlaneseq
  %v4544 = vshrl.u32 %v4543, 7
  %v4545 = vsub.s32 %v4542, %v4544
  %v4546 = vrot.slane %v4539, %v4545
  %v4547 = vcombine.low %v1781, %v4546
  %v4549 = vunpack.c.l.s4 1966171168
  %v4550 = vunpack.c.0.s8 %v4549
  %v4551 = vlaneseq
  %v4552 = vshrl.u32 %v4551, 7
  %v4553 = vsub.s32 %v4550, %v4552
  %v4554 = vrot.slane %v4547, %v4553
  %v4555 = vcombine.low %v1797, %v4554
  %v4556 = vcombine.low %v1091, %v1074
  %v4558 = vunpack.c.l.s4 1966171168
  %v4559 = vunpack.c.0.s8 %v4558
  %v4560 = vlaneseq
  %v4561 = vshrl.u32 %v4560, 7
  %v4562 = vsub.s32 %v4559, %v4561
  %v4563 = vrot.slane %v4556, %v4562
  %v4564 = vcombine.low %v4563, %v1837
  %v4566 = vunpack.c.l.s4 1966171168
  %v4567 = vunpack.c.0.s8 %v4566
  %v4568 = vlaneseq
  %v4569 = vshrl.u32 %v4568, 7
  %v4570 = vsub.s32 %v4567, %v4569
  %v4571 = vrot.slane %v4564, %v4570
  %v4572 = vcombine.low %v1846, %v4571
  %v4573 = vcombine.low %v1137, %v1165
  %v4575 = vunpack.c.l.s4 1966171168
  %v4576 = vunpack.c.0.s8 %v4575
  %v4577 = vlaneseq
  %v4578 = vshrl.u32 %v4577, 7
  %v4579 = vsub.s32 %v4576, %v4578
  %v4580 = vrot.slane %v4573, %v4579
  %v4581 = vcombine.low %v4580, %v1886
  %v4583 = vunpack.c.l.s4 1966171168
  %v4584 = vunpack.c.0.s8 %v4583
  %v4585 = vlaneseq
  %v4586 = vshrl.u32 %v4585, 7
  %v4587 = vsub.s32 %v4584, %v4586
  %v4588 = vrot.slane %v4581, %v4587
  %v4589 = vcombine.low %v1895, %v4588
  %v4590 = vcombine.low %v1186, %v1188
  %v4592 = vunpack.c.l.s4 1966171168
  %v4593 = vunpack.c.0.s8 %v4592
  %v4594 = vlaneseq
  %v4595 = vshrl.u32 %v4594, 7
  %v4596 = vsub.s32 %v4593, %v4595
  %v4597 = vrot.slane %v4590, %v4596
  %v4598 = vcombine.low %v1914, %v4597
  %v4600 = vunpack.c.l.s4 1966171168
  %v4601 = vunpack.c.0.s8 %v4600
  %v4602 = vlaneseq
  %v4603 = vshrl.u32 %v4602, 7
  %v4604 = vsub.s32 %v4601, %v4603
  %v4605 = vrot.slane %v4598, %v4604
  %v4606 = vcombine.low %v4605, %v1951
  %v4607 = vcombine.low %v1239, %v1285
  %v4609 = vunpack.c.l.s4 1966171168
  %v4610 = vunpack.c.0.s8 %v4609
  %v4611 = vlaneseq
  %v4612 = vshrl.u32 %v4611, 7
  %v4613 = vsub.s32 %v4610, %v4612
  %v4614 = vrot.slane %v4607, %v4613
  %v4615 = vcombine.low %v1960, %v4614
  %v4616 = vcombine.low %v3768, %v3793
  %v4618 = vunpack.c.l.s4 1966171168
  %v4619 = vunpack.c.0.s8 %v4618
  %v4620 = vlaneseq
  %v4621 = vshrl.u32 %v4620, 7
  %v4622 = vsub.s32 %v4619, %v4621
  %v4623 = vrot.slane %v4615, %v4622
  %v4625 = vunpack.c.l.s4 1966171168
  %v4626 = vunpack.c.0.s8 %v4625
  %v4627 = vlaneseq
  %v4628 = vshrl.u32 %v4627, 7
  %v4629 = vsub.s32 %v4626, %v4628
  %v4630 = vrot.slane %v4616, %v4629
  %v4631 = vcombine.low %v4623, %v4630
  %v4632 = vcombine.low %v1288, %v1312
  %v4634 = vunpack.c.l.s4 1966171168
  %v4635 = vunpack.c.0.s8 %v4634
  %v4636 = vlaneseq
  %v4637 = vshrl.u32 %v4636, 7
  %v4638 = vsub.s32 %v4635, %v4637
  %v4639 = vrot.slane %v4632, %v4638
  %v4641 = vunpack.c.l.s4 1966171168
  %v4642 = vunpack.c.0.s8 %v4641
  %v4643 = vlaneseq
  %v4644 = vshrl.u32 %v4643, 7
  %v4645 = vsub.s32 %v4642, %v4644
  %v4646 = vrot.slane %v4639, %v4645
  %v4647 = vsel %vm1968, %v4404, 0
  %v4649 = vsel %vm1968, %v4421, 0
  %v4651 = vsel %vm1968, %v4438, 0
  %v4653 = vsel %vm1968, %v4455, 0
  %v4655 = vsel %vm1968, %v4472, 0
  %v4657 = vsel %vm1968, %v4505, 0
  %v4659 = vsel %vm1968, %v4538, 0
  %v4661 = vsel %vm1968, %v4555, 0
  %v4663 = vsel %vm1968, %v4572, 0
  %v4665 = vsel %vm1968, %v4589, 0
  %v4667 = vsel %vm1968, %v4606, 0
  %v4669 = vsel %vm1968, %v4631, 0
  %v4671 = vsel %vm1968, %v4646, 0
  %4673 = vmatprep.subr.mxu0 0.0
  %4674 = vmatpush1.msra.mxu0 %v4386
  %4675 = vmatprep.subr.mxu0 0.0
  %4676 = vmatpush1.msra.mxu0 %v4387
  %4677 = vmatprep.subr.mxu0 0.0
  %4678 = vmatpush1.msra.mxu0 0.0
  %4679 = vmatprep.subr.mxu0 0.0
  %4680 = vmatpush1.msra.mxu0 0.0
  %4681 = vmatprep.subr.mxu0 0.0
  %4682 = vmatpush1.msra.mxu0 0.0
  %4683 = vmatprep.subr.mxu0 0.0
  %4684 = vmatpush1.msra.mxu0 0.0
  %4685 = vmatprep.subr.mxu0 0.0
  %4686 = vmatpush1.msra.mxu0 0.0
  %4687 = vmatprep.subr.mxu0 0.0
  %4688 = vmatpush1.msra.mxu0 0.0
  %4689 = vmatprep.subr.mxu0 0.0
  %4690 = vmatpush1.msra.mxu0 0.0
  %4691 = vmatprep.subr.mxu0 0.0
  %4692 = vmatpush1.msra.mxu0 0.0
  %4693 = vmatprep.subr.mxu0 0.0
  %4694 = vmatpush1.msra.mxu0 0.0
  %4695 = vmatprep.subr.mxu0 0.0
  %4696 = vmatpush1.msra.mxu0 0.0
  %4697 = vmatprep.subr.mxu0 0.0
  %4698 = vmatpush1.msra.mxu0 0.0
  %4699 = vmatprep.subr.mxu0 0.0
  %4700 = vmatpush1.msra.mxu0 0.0
  %4701 = vmatprep.subr.mxu0 0.0
  %4702 = vmatpush1.msra.mxu0 0.0
  %4703 = vmatprep.subr.mxu0 0.0
  %4704 = vmatpush1.msra.mxu0 0.0
  %4705 = vmatprep.subr.mxu0 0.0
  %4706 = vmatpush1.msra.mxu0 0.0
  %4707 = vmatprep.subr.mxu0 0.0
  %4708 = vmatpush1.msra.mxu0 0.0
  %4709 = vmatprep.subr.mxu0 0.0
  %4710 = vmatpush1.msra.mxu0 0.0
  %4711 = vmatprep.subr.mxu0 0.0
  %4712 = vmatpush1.msra.mxu0 0.0
  %4713 = vmatprep.subr.mxu0 0.0
  %4714 = vmatpush1.msra.mxu0 0.0
  %4715 = vmatprep.subr.mxu0 0.0
  %4716 = vmatpush1.msra.mxu0 0.0
  %4717 = vmatprep.subr.mxu0 0.0
  %4718 = vmatpush1.msra.mxu0 0.0
  %4719 = vmatprep.subr.mxu0 0.0
  %4720 = vmatpush1.msra.mxu0 0.0
  %4721 = vmatprep.subr.mxu0 0.0
  %4722 = vmatpush1.msra.mxu0 0.0
  %4723 = vmatprep.subr.mxu0 0.0
  %4724 = vmatpush1.msra.mxu0 0.0
  %4725 = vmatprep.subr.mxu0 0.0
  %4726 = vmatpush1.msra.mxu0 0.0
  %4727 = vmatprep.subr.mxu0 0.0
  %4728 = vmatpush1.msra.mxu0 0.0
  %4729 = vmatprep.subr.mxu0 0.0
  %4730 = vmatpush1.msra.mxu0 0.0
  %4731 = vmatprep.subr.mxu0 0.0
  %4732 = vmatpush1.msra.mxu0 0.0
  %4733 = vmatprep.subr.mxu0 0.0
  %4734 = vmatpush1.msra.mxu0 0.0
  %4735 = vmatprep.subr.mxu0 0.0
  %4736 = vmatpush1.msra.mxu0 0.0
  %4737 = vmatprep.mubr.f32.mxu0 0.0
  %4738 = vmatmul.mubr.f32.gmra.mrb[0].mxu0 %v4647
  %v4739 = vpop.f32.mrb[0].mxu0
  %v4740 = vadd.f32 0.0, %v4739
  %v4741 = vpop.f32.mrb[0].mxu0
  %4742 = vmatprep.mubr.f32.mxu0 0.0
  %4743 = vmatmul.mubr.f32.gmra.mrb[0].mxu0 %v4649
  %v4744 = vpop.f32.mrb[0].mxu0
  %v4745 = vadd.f32 0.0, %v4744
  %v4746 = vpop.f32.mrb[0].mxu0
  %4747 = vmatprep.mubr.f32.mxu0 0.0
  %4748 = vmatmul.mubr.f32.gmra.mrb[0].mxu0 %v4651
  %v4749 = vpop.f32.mrb[0].mxu0
  %v4750 = vadd.f32 0.0, %v4749
  %v4751 = vpop.f32.mrb[0].mxu0
  %4752 = vmatprep.mubr.f32.mxu0 0.0
  %4753 = vmatmul.mubr.f32.gmra.mrb[0].mxu0 %v4653
  %v4754 = vpop.f32.mrb[0].mxu0
  %v4755 = vadd.f32 0.0, %v4754
  %v4756 = vpop.f32.mrb[0].mxu0
  %4757 = vmatprep.mubr.f32.mxu0 0.0
  %4758 = vmatmul.mubr.f32.gmra.mrb[0].mxu0 %v4655
  %v4759 = vpop.f32.mrb[0].mxu0
  %v4760 = vadd.f32 0.0, %v4759
  %v4761 = vpop.f32.mrb[0].mxu0
  %4762 = vmatprep.mubr.f32.mxu0 0.0
  %4763 = vmatmul.mubr.f32.gmra.mrb[0].mxu0 %v4657
  %v4764 = vpop.f32.mrb[0].mxu0
  %v4765 = vadd.f32 0.0, %v4764
  %v4766 = vpop.f32.mrb[0].mxu0
  %4767 = vmatprep.mubr.f32.mxu0 0.0
  %4768 = vmatmul.mubr.f32.gmra.mrb[0].mxu0 %v4659
  %v4769 = vpop.f32.mrb[0].mxu0
  %v4770 = vadd.f32 0.0, %v4769
  %v4771 = vpop.f32.mrb[0].mxu0
  %4772 = vmatprep.mubr.f32.mxu0 0.0
  %4773 = vmatmul.mubr.f32.gmra.mrb[0].mxu0 %v4661
  %v4774 = vpop.f32.mrb[0].mxu0
  %v4775 = vadd.f32 0.0, %v4774
  %v4776 = vpop.f32.mrb[0].mxu0
  %4777 = vmatprep.mubr.f32.mxu0 0.0
  %4778 = vmatmul.mubr.f32.gmra.mrb[0].mxu0 %v4663
  %v4779 = vpop.f32.mrb[0].mxu0
  %v4780 = vadd.f32 0.0, %v4779
  %v4781 = vpop.f32.mrb[0].mxu0
  %4782 = vmatprep.mubr.f32.mxu0 0.0
  %4783 = vmatmul.mubr.f32.gmra.mrb[0].mxu0 %v4665
  %v4784 = vpop.f32.mrb[0].mxu0
  %v4785 = vadd.f32 0.0, %v4784
  %v4786 = vpop.f32.mrb[0].mxu0
  %4787 = vmatprep.mubr.f32.mxu0 0.0
  %4788 = vmatmul.mubr.f32.gmra.mrb[0].mxu0 %v4667
  %v4789 = vpop.f32.mrb[0].mxu0
  %v4790 = vadd.f32 0.0, %v4789
  %v4791 = vpop.f32.mrb[0].mxu0
  %4792 = vmatprep.mubr.f32.mxu0 0.0
  %4793 = vmatmul.mubr.f32.gmra.mrb[0].mxu0 %v4669
  %v4794 = vpop.f32.mrb[0].mxu0
  %v4795 = vadd.f32 0.0, %v4794
  %v4796 = vpop.f32.mrb[0].mxu0
  %4797 = vmatprep.mubr.f32.mxu0 0.0
  %4798 = vmatmul.mubr.f32.gmra.mrb[0].mxu0 %v4671
  %v4799 = vpop.f32.mrb[0].mxu0
  %v4800 = vadd.f32 0.0, %v4799
  %v4801 = vpop.f32.mrb[0].mxu0
  %4802 = vdwg.mxu0
  %v4803 = vadd.f32 %v4372, %v4740
  %v4804 = vadd.f32 %v4373, %v4745
  %v4805 = vadd.f32 %v4374, %v4750
  %v4806 = vadd.f32 %v4375, %v4755
  %v4807 = vadd.f32 %v4376, %v4760
  %v4808 = vadd.f32 %v4377, %v4765
  %v4809 = vadd.f32 %v4378, %v4770
  %v4810 = vadd.f32 %v4379, %v4775
  %v4811 = vadd.f32 %v4380, %v4780
  %v4812 = vadd.f32 %v4381, %v4785
  %v4813 = vadd.f32 %v4382, %v4790
  %v4814 = vadd.f32 %v4383, %v4795
  %v4815 = vadd.f32 %v4384, %v4800
  %s4816 = scalar_lea.vmem %s3, 96
  %v4817 = vld [vmem:[%s4816] sm:$0xff]
  %v4818 = vld [vmem:[%s4816 + $0x8] sm:$0xff]
  %v4819 = vcombine.low %v2205, %v2233
  %v4820 = vcombine.low %v2240, %v2247
  %v4822 = vunpack.c.l.s4 1966171168
  %v4823 = vunpack.c.0.s8 %v4822
  %v4824 = vlaneseq
  %v4825 = vshrl.u32 %v4824, 7
  %v4826 = vsub.s32 %v4823, %v4825
  %v4827 = vrot.slane %v4819, %v4826
  %v4829 = vunpack.c.l.s4 1966171168
  %v4830 = vunpack.c.0.s8 %v4829
  %v4831 = vlaneseq
  %v4832 = vshrl.u32 %v4831, 7
  %v4833 = vsub.s32 %v4830, %v4832
  %v4834 = vrot.slane %v4820, %v4833
  %v4835 = vcombine.low %v4827, %v4834
  %v4836 = vcombine.low %v2254, %v2282
  %v4837 = vcombine.low %v2289, %v2296
  %v4839 = vunpack.c.l.s4 1966171168
  %v4840 = vunpack.c.0.s8 %v4839
  %v4841 = vlaneseq
  %v4842 = vshrl.u32 %v4841, 7
  %v4843 = vsub.s32 %v4840, %v4842
  %v4844 = vrot.slane %v4836, %v4843
  %v4846 = vunpack.c.l.s4 1966171168
  %v4847 = vunpack.c.0.s8 %v4846
  %v4848 = vlaneseq
  %v4849 = vshrl.u32 %v4848, 7
  %v4850 = vsub.s32 %v4847, %v4849
  %v4851 = vrot.slane %v4837, %v4850
  %v4852 = vcombine.low %v4844, %v4851
  %v4853 = vcombine.low %v2338, %v2345
  %v4855 = vunpack.c.l.s4 1966171168
  %v4856 = vunpack.c.0.s8 %v4855
  %v4857 = vlaneseq
  %v4858 = vshrl.u32 %v4857, 7
  %v4859 = vsub.s32 %v4856, %v4858
  %v4860 = vrot.slane %v4853, %v4859
  %v4861 = vcombine.low %v3001, %v4860
  %v4862 = vcombine.low %v2387, %v2394
  %v4864 = vunpack.c.l.s4 1966171168
  %v4865 = vunpack.c.0.s8 %v4864
  %v4866 = vlaneseq
  %v4867 = vshrl.u32 %v4866, 7
  %v4868 = vsub.s32 %v4865, %v4867
  %v4869 = vrot.slane %v4862, %v4868
  %v4870 = vcombine.low %v3034, %v4869
  %v4871 = vcombine.low %v731, %v749
  %v4873 = vunpack.c.l.s4 1966171168
  %v4874 = vunpack.c.0.s8 %v4873
  %v4875 = vlaneseq
  %v4876 = vshrl.u32 %v4875, 7
  %v4877 = vsub.s32 %v4874, %v4876
  %v4878 = vrot.slane %v4871, %v4877
  %v4879 = vcombine.low %v2401, %v4878
  %v4880 = vcombine.low %v4051, %v4058
  %v4882 = vunpack.c.l.s4 1966171168
  %v4883 = vunpack.c.0.s8 %v4882
  %v4884 = vlaneseq
  %v4885 = vshrl.u32 %v4884, 7
  %v4886 = vsub.s32 %v4883, %v4885
  %v4887 = vrot.slane %v4879, %v4886
  %v4889 = vunpack.c.l.s4 1966171168
  %v4890 = vunpack.c.0.s8 %v4889
  %v4891 = vlaneseq
  %v4892 = vshrl.u32 %v4891, 7
  %v4893 = vsub.s32 %v4890, %v4892
  %v4894 = vrot.slane %v4880, %v4893
  %v4895 = vcombine.low %v4887, %v4894
  %v4896 = vcombine.low %v822, %v836
  %v4897 = vcombine.low %v844, %v846
  %v4898 = vcombine.low %v829, %v843
  %v4900 = vunpack.c.l.s4 1966171168
  %v4901 = vunpack.c.0.s8 %v4900
  %v4902 = vlaneseq
  %v4903 = vshrl.u32 %v4902, 7
  %v4904 = vsub.s32 %v4901, %v4903
  %v4905 = vrot.slane %v4896, %v4904
  %v4907 = vunpack.c.l.s4 1966171168
  %v4908 = vunpack.c.0.s8 %v4907
  %v4909 = vlaneseq
  %v4910 = vshrl.u32 %v4909, 7
  %v4911 = vsub.s32 %v4908, %v4910
  %v4912 = vrot.slane %v4897, %v4911
  %v4914 = vunpack.c.l.s4 1966171168
  %v4915 = vunpack.c.0.s8 %v4914
  %v4916 = vlaneseq
  %v4917 = vshrl.u32 %v4916, 7
  %v4918 = vsub.s32 %v4915, %v4917
  %v4919 = vrot.slane %v4898, %v4918
  %v4920 = vcombine.low %v4065, %v4905
  %v4921 = vcombine.low %v4912, %v4919
  %v4923 = vunpack.c.l.s4 1966171168
  %v4924 = vunpack.c.0.s8 %v4923
  %v4925 = vlaneseq
  %v4926 = vshrl.u32 %v4925, 7
  %v4927 = vsub.s32 %v4924, %v4926
  %v4928 = vrot.slane %v4920, %v4927
  %v4930 = vunpack.c.l.s4 1966171168
  %v4931 = vunpack.c.0.s8 %v4930
  %v4932 = vlaneseq
  %v4933 = vshrl.u32 %v4932, 7
  %v4934 = vsub.s32 %v4931, %v4933
  %v4935 = vrot.slane %v4921, %v4934
  %v4936 = vcombine.low %v4928, %v4935
  %v4937 = vcombine.low %v845, %v993
  %v4939 = vunpack.c.l.s4 1966171168
  %v4940 = vunpack.c.0.s8 %v4939
  %v4941 = vlaneseq
  %v4942 = vshrl.u32 %v4941, 7
  %v4943 = vsub.s32 %v4940, %v4942
  %v4944 = vrot.slane %v4937, %v4943
  %v4945 = vcombine.low %v4944, %v2527
  %v4947 = vunpack.c.l.s4 1966171168
  %v4948 = vunpack.c.0.s8 %v4947
  %v4949 = vlaneseq
  %v4950 = vshrl.u32 %v4949, 7
  %v4951 = vsub.s32 %v4948, %v4950
  %v4952 = vrot.slane %v4945, %v4951
  %v4953 = vcombine.low %v4952, %v3151
  %v4954 = vcombine.low %v2548, %v2576
  %v4955 = vcombine.low %v2583, %v2590
  %v4957 = vunpack.c.l.s4 1966171168
  %v4958 = vunpack.c.0.s8 %v4957
  %v4959 = vlaneseq
  %v4960 = vshrl.u32 %v4959, 7
  %v4961 = vsub.s32 %v4958, %v4960
  %v4962 = vrot.slane %v4954, %v4961
  %v4964 = vunpack.c.l.s4 1966171168
  %v4965 = vunpack.c.0.s8 %v4964
  %v4966 = vlaneseq
  %v4967 = vshrl.u32 %v4966, 7
  %v4968 = vsub.s32 %v4965, %v4967
  %v4969 = vrot.slane %v4955, %v4968
  %v4970 = vcombine.low %v4962, %v4969
  %v4971 = vcombine.low %v2597, %v2625
  %v4972 = vcombine.low %v2632, %v2639
  %v4974 = vunpack.c.l.s4 1966171168
  %v4975 = vunpack.c.0.s8 %v4974
  %v4976 = vlaneseq
  %v4977 = vshrl.u32 %v4976, 7
  %v4978 = vsub.s32 %v4975, %v4977
  %v4979 = vrot.slane %v4971, %v4978
  %v4981 = vunpack.c.l.s4 1966171168
  %v4982 = vunpack.c.0.s8 %v4981
  %v4983 = vlaneseq
  %v4984 = vshrl.u32 %v4983, 7
  %v4985 = vsub.s32 %v4982, %v4984
  %v4986 = vrot.slane %v4972, %v4985
  %v4987 = vcombine.low %v4979, %v4986
  %v4988 = vcombine.low %v2681, %v2688
  %v4990 = vunpack.c.l.s4 1966171168
  %v4991 = vunpack.c.0.s8 %v4990
  %v4992 = vlaneseq
  %v4993 = vshrl.u32 %v4992, 7
  %v4994 = vsub.s32 %v4991, %v4993
  %v4995 = vrot.slane %v4988, %v4994
  %v4996 = vcombine.low %v3216, %v4995
  %v4997 = vcombine.low %v1263, %v1277
  %v4999 = vunpack.c.l.s4 1966171168
  %v5000 = vunpack.c.0.s8 %v4999
  %v5001 = vlaneseq
  %v5002 = vshrl.u32 %v5001, 7
  %v5003 = vsub.s32 %v5000, %v5002
  %v5004 = vrot.slane %v4997, %v5003
  %v5005 = vcombine.low %v5004, %v4176
  %v5007 = vunpack.c.l.s4 1966171168
  %v5008 = vunpack.c.0.s8 %v5007
  %v5009 = vlaneseq
  %v5010 = vshrl.u32 %v5009, 7
  %v5011 = vsub.s32 %v5008, %v5010
  %v5012 = vrot.slane %v5005, %v5011
  %v5013 = vcombine.low %v3249, %v5012
  %v5014 = vcombine.low %v1286, %v1326
  %v5015 = vcombine.low %v1334, %v1336
  %v5016 = vcombine.low %v1319, %v1333
  %v5018 = vunpack.c.l.s4 1966171168
  %v5019 = vunpack.c.0.s8 %v5018
  %v5020 = vlaneseq
  %v5021 = vshrl.u32 %v5020, 7
  %v5022 = vsub.s32 %v5019, %v5021
  %v5023 = vrot.slane %v5014, %v5022
  %v5025 = vunpack.c.l.s4 1966171168
  %v5026 = vunpack.c.0.s8 %v5025
  %v5027 = vlaneseq
  %v5028 = vshrl.u32 %v5027, 7
  %v5029 = vsub.s32 %v5026, %v5028
  %v5030 = vrot.slane %v5015, %v5029
  %v5032 = vunpack.c.l.s4 1966171168
  %v5033 = vunpack.c.0.s8 %v5032
  %v5034 = vlaneseq
  %v5035 = vshrl.u32 %v5034, 7
  %v5036 = vsub.s32 %v5033, %v5035
  %v5037 = vrot.slane %v5016, %v5036
  %v5038 = vcombine.low %v4183, %v5023
  %v5039 = vcombine.low %v5030, %v5037
  %v5041 = vunpack.c.l.s4 1966171168
  %v5042 = vunpack.c.0.s8 %v5041
  %v5043 = vlaneseq
  %v5044 = vshrl.u32 %v5043, 7
  %v5045 = vsub.s32 %v5042, %v5044
  %v5046 = vrot.slane %v5038, %v5045
  %v5048 = vunpack.c.l.s4 1966171168
  %v5049 = vunpack.c.0.s8 %v5048
  %v5050 = vlaneseq
  %v5051 = vshrl.u32 %v5050, 7
  %v5052 = vsub.s32 %v5049, %v5051
  %v5053 = vrot.slane %v5039, %v5052
  %v5054 = vcombine.low %v5046, %v5053
  %v5055 = vcombine.low %v1335, %v1337
  %v5057 = vunpack.c.l.s4 1966171168
  %v5058 = vunpack.c.0.s8 %v5057
  %v5059 = vlaneseq
  %v5060 = vshrl.u32 %v5059, 7
  %v5061 = vsub.s32 %v5058, %v5060
  %v5062 = vrot.slane %v5055, %v5061
  %v5064 = vunpack.c.l.s4 1966171168
  %v5065 = vunpack.c.0.s8 %v5064
  %v5066 = vlaneseq
  %v5067 = vshrl.u32 %v5066, 7
  %v5068 = vsub.s32 %v5065, %v5067
  %v5069 = vrot.slane %v5062, %v5068
  %v5070 = vsel %vm1968, %v4835, 0
  %v5072 = vsel %vm1968, %v4852, 0
  %v5074 = vsel %vm1968, %v4861, 0
  %v5076 = vsel %vm1968, %v4870, 0
  %v5078 = vsel %vm1968, %v4895, 0
  %v5080 = vsel %vm1968, %v4936, 0
  %v5082 = vsel %vm1968, %v4953, 0
  %v5084 = vsel %vm1968, %v4970, 0
  %v5086 = vsel %vm1968, %v4987, 0
  %v5088 = vsel %vm1968, %v4996, 0
  %v5090 = vsel %vm1968, %v5013, 0
  %v5092 = vsel %vm1968, %v5054, 0
  %v5094 = vsel %vm1968, %v5069, 0
  %5096 = vmatprep.subr.mxu0 0.0
  %5097 = vmatpush1.msra.mxu0 %v4817
  %5098 = vmatprep.subr.mxu0 0.0
  %5099 = vmatpush1.msra.mxu0 %v4818
  %5100 = vmatprep.subr.mxu0 0.0
  %5101 = vmatpush1.msra.mxu0 0.0
  %5102 = vmatprep.subr.mxu0 0.0
  %5103 = vmatpush1.msra.mxu0 0.0
  %5104 = vmatprep.subr.mxu0 0.0
  %5105 = vmatpush1.msra.mxu0 0.0
  %5106 = vmatprep.subr.mxu0 0.0
  %5107 = vmatpush1.msra.mxu0 0.0
  %5108 = vmatprep.subr.mxu0 0.0
  %5109 = vmatpush1.msra.mxu0 0.0
  %5110 = vmatprep.subr.mxu0 0.0
  %5111 = vmatpush1.msra.mxu0 0.0
  %5112 = vmatprep.subr.mxu0 0.0
  %5113 = vmatpush1.msra.mxu0 0.0
  %5114 = vmatprep.subr.mxu0 0.0
  %5115 = vmatpush1.msra.mxu0 0.0
  %5116 = vmatprep.subr.mxu0 0.0
  %5117 = vmatpush1.msra.mxu0 0.0
  %5118 = vmatprep.subr.mxu0 0.0
  %5119 = vmatpush1.msra.mxu0 0.0
  %5120 = vmatprep.subr.mxu0 0.0
  %5121 = vmatpush1.msra.mxu0 0.0
  %5122 = vmatprep.subr.mxu0 0.0
  %5123 = vmatpush1.msra.mxu0 0.0
  %5124 = vmatprep.subr.mxu0 0.0
  %5125 = vmatpush1.msra.mxu0 0.0
  %5126 = vmatprep.subr.mxu0 0.0
  %5127 = vmatpush1.msra.mxu0 0.0
  %5128 = vmatprep.subr.mxu0 0.0
  %5129 = vmatpush1.msra.mxu0 0.0
  %5130 = vmatprep.subr.mxu0 0.0
  %5131 = vmatpush1.msra.mxu0 0.0
  %5132 = vmatprep.subr.mxu0 0.0
  %5133 = vmatpush1.msra.mxu0 0.0
  %5134 = vmatprep.subr.mxu0 0.0
  %5135 = vmatpush1.msra.mxu0 0.0
  %5136 = vmatprep.subr.mxu0 0.0
  %5137 = vmatpush1.msra.mxu0 0.0
  %5138 = vmatprep.subr.mxu0 0.0
  %5139 = vmatpush1.msra.mxu0 0.0
  %5140 = vmatprep.subr.mxu0 0.0
  %5141 = vmatpush1.msra.mxu0 0.0
  %5142 = vmatprep.subr.mxu0 0.0
  %5143 = vmatpush1.msra.mxu0 0.0
  %5144 = vmatprep.subr.mxu0 0.0
  %5145 = vmatpush1.msra.mxu0 0.0
  %5146 = vmatprep.subr.mxu0 0.0
  %5147 = vmatpush1.msra.mxu0 0.0
  %5148 = vmatprep.subr.mxu0 0.0
  %5149 = vmatpush1.msra.mxu0 0.0
  %5150 = vmatprep.subr.mxu0 0.0
  %5151 = vmatpush1.msra.mxu0 0.0
  %5152 = vmatprep.subr.mxu0 0.0
  %5153 = vmatpush1.msra.mxu0 0.0
  %5154 = vmatprep.subr.mxu0 0.0
  %5155 = vmatpush1.msra.mxu0 0.0
  %5156 = vmatprep.subr.mxu0 0.0
  %5157 = vmatpush1.msra.mxu0 0.0
  %5158 = vmatprep.subr.mxu0 0.0
  %5159 = vmatpush1.msra.mxu0 0.0
  %5160 = vmatprep.mubr.f32.mxu0 0.0
  %5161 = vmatmul.mubr.f32.gmra.mrb[0].mxu0 %v5070
  %v5162 = vpop.f32.mrb[0].mxu0
  %v5163 = vadd.f32 0.0, %v5162
  %v5164 = vpop.f32.mrb[0].mxu0
  %5165 = vmatprep.mubr.f32.mxu0 0.0
  %5166 = vmatmul.mubr.f32.gmra.mrb[0].mxu0 %v5072
  %v5167 = vpop.f32.mrb[0].mxu0
  %v5168 = vadd.f32 0.0, %v5167
  %v5169 = vpop.f32.mrb[0].mxu0
  %5170 = vmatprep.mubr.f32.mxu0 0.0
  %5171 = vmatmul.mubr.f32.gmra.mrb[0].mxu0 %v5074
  %v5172 = vpop.f32.mrb[0].mxu0
  %v5173 = vadd.f32 0.0, %v5172
  %v5174 = vpop.f32.mrb[0].mxu0
  %5175 = vmatprep.mubr.f32.mxu0 0.0
  %5176 = vmatmul.mubr.f32.gmra.mrb[0].mxu0 %v5076
  %v5177 = vpop.f32.mrb[0].mxu0
  %v5178 = vadd.f32 0.0, %v5177
  %v5179 = vpop.f32.mrb[0].mxu0
  %5180 = vmatprep.mubr.f32.mxu0 0.0
  %5181 = vmatmul.mubr.f32.gmra.mrb[0].mxu0 %v5078
  %v5182 = vpop.f32.mrb[0].mxu0
  %v5183 = vadd.f32 0.0, %v5182
  %v5184 = vpop.f32.mrb[0].mxu0
  %5185 = vmatprep.mubr.f32.mxu0 0.0
  %5186 = vmatmul.mubr.f32.gmra.mrb[0].mxu0 %v5080
  %v5187 = vpop.f32.mrb[0].mxu0
  %v5188 = vadd.f32 0.0, %v5187
  %v5189 = vpop.f32.mrb[0].mxu0
  %5190 = vmatprep.mubr.f32.mxu0 0.0
  %5191 = vmatmul.mubr.f32.gmra.mrb[0].mxu0 %v5082
  %v5192 = vpop.f32.mrb[0].mxu0
  %v5193 = vadd.f32 0.0, %v5192
  %v5194 = vpop.f32.mrb[0].mxu0
  %5195 = vmatprep.mubr.f32.mxu0 0.0
  %5196 = vmatmul.mubr.f32.gmra.mrb[0].mxu0 %v5084
  %v5197 = vpop.f32.mrb[0].mxu0
  %v5198 = vadd.f32 0.0, %v5197
  %v5199 = vpop.f32.mrb[0].mxu0
  %5200 = vmatprep.mubr.f32.mxu0 0.0
  %5201 = vmatmul.mubr.f32.gmra.mrb[0].mxu0 %v5086
  %v5202 = vpop.f32.mrb[0].mxu0
  %v5203 = vadd.f32 0.0, %v5202
  %v5204 = vpop.f32.mrb[0].mxu0
  %5205 = vmatprep.mubr.f32.mxu0 0.0
  %5206 = vmatmul.mubr.f32.gmra.mrb[0].mxu0 %v5088
  %v5207 = vpop.f32.mrb[0].mxu0
  %v5208 = vadd.f32 0.0, %v5207
  %v5209 = vpop.f32.mrb[0].mxu0
  %5210 = vmatprep.mubr.f32.mxu0 0.0
  %5211 = vmatmul.mubr.f32.gmra.mrb[0].mxu0 %v5090
  %v5212 = vpop.f32.mrb[0].mxu0
  %v5213 = vadd.f32 0.0, %v5212
  %v5214 = vpop.f32.mrb[0].mxu0
  %5215 = vmatprep.mubr.f32.mxu0 0.0
  %5216 = vmatmul.mubr.f32.gmra.mrb[0].mxu0 %v5092
  %v5217 = vpop.f32.mrb[0].mxu0
  %v5218 = vadd.f32 0.0, %v5217
  %v5219 = vpop.f32.mrb[0].mxu0
  %5220 = vmatprep.mubr.f32.mxu0 0.0
  %5221 = vmatmul.mubr.f32.gmra.mrb[0].mxu0 %v5094
  %v5222 = vpop.f32.mrb[0].mxu0
  %v5223 = vadd.f32 0.0, %v5222
  %v5224 = vpop.f32.mrb[0].mxu0
  %5225 = vdwg.mxu0
  %v5226 = vadd.f32 %v4803, %v5163
  %v5227 = vadd.f32 %v4804, %v5168
  %v5228 = vadd.f32 %v4805, %v5173
  %v5229 = vadd.f32 %v4806, %v5178
  %v5230 = vadd.f32 %v4807, %v5183
  %v5231 = vadd.f32 %v4808, %v5188
  %v5232 = vadd.f32 %v4809, %v5193
  %v5233 = vadd.f32 %v4810, %v5198
  %v5234 = vadd.f32 %v4811, %v5203
  %v5235 = vadd.f32 %v4812, %v5208
  %v5236 = vadd.f32 %v4813, %v5213
  %v5237 = vadd.f32 %v4814, %v5218
  %v5238 = vadd.f32 %v4815, %v5223
  %s5239 = scalar_lea.vmem %s3, 112
  %v5240 = vld [vmem:[%s5239] sm:$0xff]
  %v5241 = vld [vmem:[%s5239 + $0x8] sm:$0xff]
  %v5242 = vcombine.low %v1480, %v1487
  %v5244 = vunpack.c.l.s4 1966171168
  %v5245 = vunpack.c.0.s8 %v5244
  %v5246 = vlaneseq
  %v5247 = vshrl.u32 %v5246, 7
  %v5248 = vsub.s32 %v5245, %v5247
  %v5249 = vrot.slane %v5242, %v5248
  %v5250 = vcombine.low %v3487, %v5249
  %v5251 = vcombine.low %v1529, %v1536
  %v5253 = vunpack.c.l.s4 1966171168
  %v5254 = vunpack.c.0.s8 %v5253
  %v5255 = vlaneseq
  %v5256 = vshrl.u32 %v5255, 7
  %v5257 = vsub.s32 %v5254, %v5256
  %v5258 = vrot.slane %v5251, %v5257
  %v5259 = vcombine.low %v3512, %v5258
  %v5260 = vcombine.low %v1578, %v1585
  %v5262 = vunpack.c.l.s4 1966171168
  %v5263 = vunpack.c.0.s8 %v5262
  %v5264 = vlaneseq
  %v5265 = vshrl.u32 %v5264, 7
  %v5266 = vsub.s32 %v5263, %v5265
  %v5267 = vrot.slane %v5260, %v5266
  %v5268 = vcombine.low %v3537, %v5267
  %v5269 = vcombine.low %v1592, %v1620
  %v5271 = vunpack.c.l.s4 1966171168
  %v5272 = vunpack.c.0.s8 %v5271
  %v5273 = vlaneseq
  %v5274 = vshrl.u32 %v5273, 7
  %v5275 = vsub.s32 %v5272, %v5274
  %v5276 = vrot.slane %v5269, %v5275
  %v5277 = vcombine.low %v5276, %v3569
  %v5278 = vcombine.low %v745, %v773
  %v5280 = vunpack.c.l.s4 1966171168
  %v5281 = vunpack.c.0.s8 %v5280
  %v5282 = vlaneseq
  %v5283 = vshrl.u32 %v5282, 7
  %v5284 = vsub.s32 %v5281, %v5283
  %v5285 = vrot.slane %v5278, %v5284
  %v5286 = vcombine.low %v1641, %v5285
  %v5288 = vunpack.c.l.s4 1966171168
  %v5289 = vunpack.c.0.s8 %v5288
  %v5290 = vlaneseq
  %v5291 = vshrl.u32 %v5290, 7
  %v5292 = vsub.s32 %v5289, %v5291
  %v5293 = vrot.slane %v5286, %v5292
  %v5294 = vcombine.low %v5293, %v3610
  %v5295 = vcombine.low %v836, %v844
  %v5296 = vcombine.low %v846, %v829
  %v5297 = vcombine.low %v843, %v845
  %v5299 = vunpack.c.l.s4 1966171168
  %v5300 = vunpack.c.0.s8 %v5299
  %v5301 = vlaneseq
  %v5302 = vshrl.u32 %v5301, 7
  %v5303 = vsub.s32 %v5300, %v5302
  %v5304 = vrot.slane %v5295, %v5303
  %v5306 = vunpack.c.l.s4 1966171168
  %v5307 = vunpack.c.0.s8 %v5306
  %v5308 = vlaneseq
  %v5309 = vshrl.u32 %v5308, 7
  %v5310 = vsub.s32 %v5307, %v5309
  %v5311 = vrot.slane %v5296, %v5310
  %v5313 = vunpack.c.l.s4 1966171168
  %v5314 = vunpack.c.0.s8 %v5313
  %v5315 = vlaneseq
  %v5316 = vshrl.u32 %v5315, 7
  %v5317 = vsub.s32 %v5314, %v5316
  %v5318 = vrot.slane %v5297, %v5317
  %v5319 = vcombine.low %v4488, %v5304
  %v5320 = vcombine.low %v5311, %v5318
  %v5322 = vunpack.c.l.s4 1966171168
  %v5323 = vunpack.c.0.s8 %v5322
  %v5324 = vlaneseq
  %v5325 = vshrl.u32 %v5324, 7
  %v5326 = vsub.s32 %v5323, %v5325
  %v5327 = vrot.slane %v5319, %v5326
  %v5329 = vunpack.c.l.s4 1966171168
  %v5330 = vunpack.c.0.s8 %v5329
  %v5331 = vlaneseq
  %v5332 = vshrl.u32 %v5331, 7
  %v5333 = vsub.s32 %v5330, %v5332
  %v5334 = vrot.slane %v5320, %v5333
  %v5335 = vcombine.low %v5327, %v5334
  %v5336 = vcombine.low %v847, %v976
  %v5338 = vunpack.c.l.s4 1966171168
  %v5339 = vunpack.c.0.s8 %v5338
  %v5340 = vlaneseq
  %v5341 = vshrl.u32 %v5340, 7
  %v5342 = vsub.s32 %v5339, %v5341
  %v5343 = vrot.slane %v5336, %v5342
  %v5344 = vcombine.low %v5343, %v1767
  %v5345 = vcombine.low %v1774, %v1781
  %v5347 = vunpack.c.l.s4 1966171168
  %v5348 = vunpack.c.0.s8 %v5347
  %v5349 = vlaneseq
  %v5350 = vshrl.u32 %v5349, 7
  %v5351 = vsub.s32 %v5348, %v5350
  %v5352 = vrot.slane %v5344, %v5351
  %v5354 = vunpack.c.l.s4 1966171168
  %v5355 = vunpack.c.0.s8 %v5354
  %v5356 = vlaneseq
  %v5357 = vshrl.u32 %v5356, 7
  %v5358 = vsub.s32 %v5355, %v5357
  %v5359 = vrot.slane %v5345, %v5358
  %v5360 = vcombine.low %v5352, %v5359
  %v5361 = vcombine.low %v1823, %v1830
  %v5363 = vunpack.c.l.s4 1966171168
  %v5364 = vunpack.c.0.s8 %v5363
  %v5365 = vlaneseq
  %v5366 = vshrl.u32 %v5365, 7
  %v5367 = vsub.s32 %v5364, %v5366
  %v5368 = vrot.slane %v5361, %v5367
  %v5369 = vcombine.low %v3686, %v5368
  %v5370 = vcombine.low %v1872, %v1879
  %v5372 = vunpack.c.l.s4 1966171168
  %v5373 = vunpack.c.0.s8 %v5372
  %v5374 = vlaneseq
  %v5375 = vshrl.u32 %v5374, 7
  %v5376 = vsub.s32 %v5373, %v5375
  %v5377 = vrot.slane %v5370, %v5376
  %v5378 = vcombine.low %v3711, %v5377
  %v5379 = vcombine.low %v1921, %v1928
  %v5381 = vunpack.c.l.s4 1966171168
  %v5382 = vunpack.c.0.s8 %v5381
  %v5383 = vlaneseq
  %v5384 = vshrl.u32 %v5383, 7
  %v5385 = vsub.s32 %v5382, %v5384
  %v5386 = vrot.slane %v5379, %v5385
  %v5387 = vcombine.low %v3736, %v5386
  %v5388 = vcombine.low %v1935, %v1960
  %v5390 = vunpack.c.l.s4 1966171168
  %v5391 = vunpack.c.0.s8 %v5390
  %v5392 = vlaneseq
  %v5393 = vshrl.u32 %v5392, 7
  %v5394 = vsub.s32 %v5391, %v5393
  %v5395 = vrot.slane %v5388, %v5394
  %v5396 = vcombine.low %v5395, %v3784
  %v5397 = vcombine.low %v1288, %v1334
  %v5398 = vcombine.low %v1336, %v1319
  %v5399 = vcombine.low %v1333, %v1335
  %v5401 = vunpack.c.l.s4 1966171168
  %v5402 = vunpack.c.0.s8 %v5401
  %v5403 = vlaneseq
  %v5404 = vshrl.u32 %v5403, 7
  %v5405 = vsub.s32 %v5402, %v5404
  %v5406 = vrot.slane %v5397, %v5405
  %v5408 = vunpack.c.l.s4 1966171168
  %v5409 = vunpack.c.0.s8 %v5408
  %v5410 = vlaneseq
  %v5411 = vshrl.u32 %v5410, 7
  %v5412 = vsub.s32 %v5409, %v5411
  %v5413 = vrot.slane %v5398, %v5412
  %v5415 = vunpack.c.l.s4 1966171168
  %v5416 = vunpack.c.0.s8 %v5415
  %v5417 = vlaneseq
  %v5418 = vshrl.u32 %v5417, 7
  %v5419 = vsub.s32 %v5416, %v5418
  %v5420 = vrot.slane %v5399, %v5419
  %v5421 = vcombine.low %v3793, %v5406
  %v5422 = vcombine.low %v5413, %v5420
  %v5424 = vunpack.c.l.s4 1966171168
  %v5425 = vunpack.c.0.s8 %v5424
  %v5426 = vlaneseq
  %v5427 = vshrl.u32 %v5426, 7
  %v5428 = vsub.s32 %v5425, %v5427
  %v5429 = vrot.slane %v5421, %v5428
  %v5431 = vunpack.c.l.s4 1966171168
  %v5432 = vunpack.c.0.s8 %v5431
  %v5433 = vlaneseq
  %v5434 = vshrl.u32 %v5433, 7
  %v5435 = vsub.s32 %v5432, %v5434
  %v5436 = vrot.slane %v5422, %v5435
  %v5437 = vcombine.low %v5429, %v5436
  %v5438 = vcombine.low %v1337, %v1352
  %v5440 = vunpack.c.l.s4 1966171168
  %v5441 = vunpack.c.0.s8 %v5440
  %v5442 = vlaneseq
  %v5443 = vshrl.u32 %v5442, 7
  %v5444 = vsub.s32 %v5441, %v5443
  %v5445 = vrot.slane %v5438, %v5444
  %v5447 = vunpack.c.l.s4 1966171168
  %v5448 = vunpack.c.0.s8 %v5447
  %v5449 = vlaneseq
  %v5450 = vshrl.u32 %v5449, 7
  %v5451 = vsub.s32 %v5448, %v5450
  %v5452 = vrot.slane %v5445, %v5451
  %v5453 = vsel %vm1968, %v5250, 0
  %v5455 = vsel %vm1968, %v5259, 0
  %v5457 = vsel %vm1968, %v5268, 0
  %v5459 = vsel %vm1968, %v5277, 0
  %v5461 = vsel %vm1968, %v5294, 0
  %v5463 = vsel %vm1968, %v5335, 0
  %v5465 = vsel %vm1968, %v5360, 0
  %v5467 = vsel %vm1968, %v5369, 0
  %v5469 = vsel %vm1968, %v5378, 0
  %v5471 = vsel %vm1968, %v5387, 0
  %v5473 = vsel %vm1968, %v5396, 0
  %v5475 = vsel %vm1968, %v5437, 0
  %v5477 = vsel %vm1968, %v5452, 0
  %5479 = vmatprep.subr.mxu0 0.0
  %5480 = vmatpush1.msra.mxu0 %v5240
  %5481 = vmatprep.subr.mxu0 0.0
  %5482 = vmatpush1.msra.mxu0 %v5241
  %5483 = vmatprep.subr.mxu0 0.0
  %5484 = vmatpush1.msra.mxu0 0.0
  %5485 = vmatprep.subr.mxu0 0.0
  %5486 = vmatpush1.msra.mxu0 0.0
  %5487 = vmatprep.subr.mxu0 0.0
  %5488 = vmatpush1.msra.mxu0 0.0
  %5489 = vmatprep.subr.mxu0 0.0
  %5490 = vmatpush1.msra.mxu0 0.0
  %5491 = vmatprep.subr.mxu0 0.0
  %5492 = vmatpush1.msra.mxu0 0.0
  %5493 = vmatprep.subr.mxu0 0.0
  %5494 = vmatpush1.msra.mxu0 0.0
  %5495 = vmatprep.subr.mxu0 0.0
  %5496 = vmatpush1.msra.mxu0 0.0
  %5497 = vmatprep.subr.mxu0 0.0
  %5498 = vmatpush1.msra.mxu0 0.0
  %5499 = vmatprep.subr.mxu0 0.0
  %5500 = vmatpush1.msra.mxu0 0.0
  %5501 = vmatprep.subr.mxu0 0.0
  %5502 = vmatpush1.msra.mxu0 0.0
  %5503 = vmatprep.subr.mxu0 0.0
  %5504 = vmatpush1.msra.mxu0 0.0
  %5505 = vmatprep.subr.mxu0 0.0
  %5506 = vmatpush1.msra.mxu0 0.0
  %5507 = vmatprep.subr.mxu0 0.0
  %5508 = vmatpush1.msra.mxu0 0.0
  %5509 = vmatprep.subr.mxu0 0.0
  %5510 = vmatpush1.msra.mxu0 0.0
  %5511 = vmatprep.subr.mxu0 0.0
  %5512 = vmatpush1.msra.mxu0 0.0
  %5513 = vmatprep.subr.mxu0 0.0
  %5514 = vmatpush1.msra.mxu0 0.0
  %5515 = vmatprep.subr.mxu0 0.0
  %5516 = vmatpush1.msra.mxu0 0.0
  %5517 = vmatprep.subr.mxu0 0.0
  %5518 = vmatpush1.msra.mxu0 0.0
  %5519 = vmatprep.subr.mxu0 0.0
  %5520 = vmatpush1.msra.mxu0 0.0
  %5521 = vmatprep.subr.mxu0 0.0
  %5522 = vmatpush1.msra.mxu0 0.0
  %5523 = vmatprep.subr.mxu0 0.0
  %5524 = vmatpush1.msra.mxu0 0.0
  %5525 = vmatprep.subr.mxu0 0.0
  %5526 = vmatpush1.msra.mxu0 0.0
  %5527 = vmatprep.subr.mxu0 0.0
  %5528 = vmatpush1.msra.mxu0 0.0
  %5529 = vmatprep.subr.mxu0 0.0
  %5530 = vmatpush1.msra.mxu0 0.0
  %5531 = vmatprep.subr.mxu0 0.0
  %5532 = vmatpush1.msra.mxu0 0.0
  %5533 = vmatprep.subr.mxu0 0.0
  %5534 = vmatpush1.msra.mxu0 0.0
  %5535 = vmatprep.subr.mxu0 0.0
  %5536 = vmatpush1.msra.mxu0 0.0
  %5537 = vmatprep.subr.mxu0 0.0
  %5538 = vmatpush1.msra.mxu0 0.0
  %5539 = vmatprep.subr.mxu0 0.0
  %5540 = vmatpush1.msra.mxu0 0.0
  %5541 = vmatprep.subr.mxu0 0.0
  %5542 = vmatpush1.msra.mxu0 0.0
  %5543 = vmatprep.mubr.f32.mxu0 0.0
  %5544 = vmatmul.mubr.f32.gmra.mrb[0].mxu0 %v5453
  %v5545 = vpop.f32.mrb[0].mxu0
  %v5546 = vadd.f32 0.0, %v5545
  %v5547 = vpop.f32.mrb[0].mxu0
  %5548 = vmatprep.mubr.f32.mxu0 0.0
  %5549 = vmatmul.mubr.f32.gmra.mrb[0].mxu0 %v5455
  %v5550 = vpop.f32.mrb[0].mxu0
  %v5551 = vadd.f32 0.0, %v5550
  %v5552 = vpop.f32.mrb[0].mxu0
  %5553 = vmatprep.mubr.f32.mxu0 0.0
  %5554 = vmatmul.mubr.f32.gmra.mrb[0].mxu0 %v5457
  %v5555 = vpop.f32.mrb[0].mxu0
  %v5556 = vadd.f32 0.0, %v5555
  %v5557 = vpop.f32.mrb[0].mxu0
  %5558 = vmatprep.mubr.f32.mxu0 0.0
  %5559 = vmatmul.mubr.f32.gmra.mrb[0].mxu0 %v5459
  %v5560 = vpop.f32.mrb[0].mxu0
  %v5561 = vadd.f32 0.0, %v5560
  %v5562 = vpop.f32.mrb[0].mxu0
  %5563 = vmatprep.mubr.f32.mxu0 0.0
  %5564 = vmatmul.mubr.f32.gmra.mrb[0].mxu0 %v5461
  %v5565 = vpop.f32.mrb[0].mxu0
  %v5566 = vadd.f32 0.0, %v5565
  %v5567 = vpop.f32.mrb[0].mxu0
  %5568 = vmatprep.mubr.f32.mxu0 0.0
  %5569 = vmatmul.mubr.f32.gmra.mrb[0].mxu0 %v5463
  %v5570 = vpop.f32.mrb[0].mxu0
  %v5571 = vadd.f32 0.0, %v5570
  %v5572 = vpop.f32.mrb[0].mxu0
  %5573 = vmatprep.mubr.f32.mxu0 0.0
  %5574 = vmatmul.mubr.f32.gmra.mrb[0].mxu0 %v5465
  %v5575 = vpop.f32.mrb[0].mxu0
  %v5576 = vadd.f32 0.0, %v5575
  %v5577 = vpop.f32.mrb[0].mxu0
  %5578 = vmatprep.mubr.f32.mxu0 0.0
  %5579 = vmatmul.mubr.f32.gmra.mrb[0].mxu0 %v5467
  %v5580 = vpop.f32.mrb[0].mxu0
  %v5581 = vadd.f32 0.0, %v5580
  %v5582 = vpop.f32.mrb[0].mxu0
  %5583 = vmatprep.mubr.f32.mxu0 0.0
  %5584 = vmatmul.mubr.f32.gmra.mrb[0].mxu0 %v5469
  %v5585 = vpop.f32.mrb[0].mxu0
  %v5586 = vadd.f32 0.0, %v5585
  %v5587 = vpop.f32.mrb[0].mxu0
  %5588 = vmatprep.mubr.f32.mxu0 0.0
  %5589 = vmatmul.mubr.f32.gmra.mrb[0].mxu0 %v5471
  %v5590 = vpop.f32.mrb[0].mxu0
  %v5591 = vadd.f32 0.0, %v5590
  %v5592 = vpop.f32.mrb[0].mxu0
  %5593 = vmatprep.mubr.f32.mxu0 0.0
  %5594 = vmatmul.mubr.f32.gmra.mrb[0].mxu0 %v5473
  %v5595 = vpop.f32.mrb[0].mxu0
  %v5596 = vadd.f32 0.0, %v5595
  %v5597 = vpop.f32.mrb[0].mxu0
  %5598 = vmatprep.mubr.f32.mxu0 0.0
  %5599 = vmatmul.mubr.f32.gmra.mrb[0].mxu0 %v5475
  %v5600 = vpop.f32.mrb[0].mxu0
  %v5601 = vadd.f32 0.0, %v5600
  %v5602 = vpop.f32.mrb[0].mxu0
  %5603 = vmatprep.mubr.f32.mxu0 0.0
  %5604 = vmatmul.mubr.f32.gmra.mrb[0].mxu0 %v5477
  %v5605 = vpop.f32.mrb[0].mxu0
  %v5606 = vadd.f32 0.0, %v5605
  %v5607 = vpop.f32.mrb[0].mxu0
  %5608 = vdwg.mxu0
  %v5609 = vadd.f32 %v5226, %v5546
  %v5610 = vadd.f32 %v5227, %v5551
  %v5611 = vadd.f32 %v5228, %v5556
  %v5612 = vadd.f32 %v5229, %v5561
  %v5613 = vadd.f32 %v5230, %v5566
  %v5614 = vadd.f32 %v5231, %v5571
  %v5615 = vadd.f32 %v5232, %v5576
  %v5616 = vadd.f32 %v5233, %v5581
  %v5617 = vadd.f32 %v5234, %v5586
  %v5618 = vadd.f32 %v5235, %v5591
  %v5619 = vadd.f32 %v5236, %v5596
  %v5620 = vadd.f32 %v5237, %v5601
  %v5621 = vadd.f32 %v5238, %v5606
  %s5622 = scalar_lea.vmem %s3, 128
  %v5623 = vld [vmem:[%s5622] sm:$0xff]
  %v5624 = vld [vmem:[%s5622 + $0x8] sm:$0xff]
  %v5625 = vcombine.low %v2953, %v2960
  %v5627 = vunpack.c.l.s4 1966171168
  %v5628 = vunpack.c.0.s8 %v5627
  %v5629 = vlaneseq
  %v5630 = vshrl.u32 %v5629, 7
  %v5631 = vsub.s32 %v5628, %v5630
  %v5632 = vrot.slane %v5625, %v5631
  %v5633 = vcombine.low %v2263, %v5632
  %v5634 = vcombine.low %v2985, %v2303
  %v5636 = vunpack.c.l.s4 1966171168
  %v5637 = vunpack.c.0.s8 %v5636
  %v5638 = vlaneseq
  %v5639 = vshrl.u32 %v5638, 7
  %v5640 = vsub.s32 %v5637, %v5639
  %v5641 = vrot.slane %v5634, %v5640
  %v5642 = vcombine.low %v2312, %v5641
  %v5643 = vcombine.low %v3018, %v2352
  %v5645 = vunpack.c.l.s4 1966171168
  %v5646 = vunpack.c.0.s8 %v5645
  %v5647 = vlaneseq
  %v5648 = vshrl.u32 %v5647, 7
  %v5649 = vsub.s32 %v5646, %v5648
  %v5650 = vrot.slane %v5643, %v5649
  %v5651 = vcombine.low %v4023, %v5650
  %v5652 = vcombine.low %v2380, %v3044
  %v5654 = vunpack.c.l.s4 1966171168
  %v5655 = vunpack.c.0.s8 %v5654
  %v5656 = vlaneseq
  %v5657 = vshrl.u32 %v5656, 7
  %v5658 = vsub.s32 %v5655, %v5657
  %v5659 = vrot.slane %v5652, %v5658
  %v5660 = vcombine.low %v5659, %v2417
  %v5661 = vcombine.low %v747, %v787
  %v5663 = vunpack.c.l.s4 1966171168
  %v5664 = vunpack.c.0.s8 %v5663
  %v5665 = vlaneseq
  %v5666 = vshrl.u32 %v5665, 7
  %v5667 = vsub.s32 %v5664, %v5666
  %v5668 = vrot.slane %v5661, %v5667
  %v5669 = vcombine.low %v3051, %v5668
  %v5671 = vunpack.c.l.s4 1966171168
  %v5672 = vunpack.c.0.s8 %v5671
  %v5673 = vlaneseq
  %v5674 = vshrl.u32 %v5673, 7
  %v5675 = vsub.s32 %v5672, %v5674
  %v5676 = vrot.slane %v5669, %v5675
  %v5677 = vcombine.low %v5676, %v4081
  %v5678 = vcombine.low %v796, %v798
  %v5679 = vcombine.low %v845, %v847
  %v5681 = vunpack.c.l.s4 1966171168
  %v5682 = vunpack.c.0.s8 %v5681
  %v5683 = vlaneseq
  %v5684 = vshrl.u32 %v5683, 7
  %v5685 = vsub.s32 %v5682, %v5684
  %v5686 = vrot.slane %v5678, %v5685
  %v5688 = vunpack.c.l.s4 1966171168
  %v5689 = vunpack.c.0.s8 %v5688
  %v5690 = vlaneseq
  %v5691 = vshrl.u32 %v5690, 7
  %v5692 = vsub.s32 %v5689, %v5691
  %v5693 = vrot.slane %v5679, %v5692
  %v5694 = vcombine.low %v5686, %v4912
  %v5695 = vcombine.low %v4919, %v5693
  %v5697 = vunpack.c.l.s4 1966171168
  %v5698 = vunpack.c.0.s8 %v5697
  %v5699 = vlaneseq
  %v5700 = vshrl.u32 %v5699, 7
  %v5701 = vsub.s32 %v5698, %v5700
  %v5702 = vrot.slane %v5694, %v5701
  %v5704 = vunpack.c.l.s4 1966171168
  %v5705 = vunpack.c.0.s8 %v5704
  %v5706 = vlaneseq
  %v5707 = vshrl.u32 %v5706, 7
  %v5708 = vsub.s32 %v5705, %v5707
  %v5709 = vrot.slane %v5695, %v5708
  %v5710 = vcombine.low %v5702, %v5709
  %v5711 = vcombine.low %v871, %v990
  %v5713 = vunpack.c.l.s4 1966171168
  %v5714 = vunpack.c.0.s8 %v5713
  %v5715 = vlaneseq
  %v5716 = vshrl.u32 %v5715, 7
  %v5717 = vsub.s32 %v5714, %v5716
  %v5718 = vrot.slane %v5711, %v5717
  %v5719 = vcombine.low %v5718, %v2534
  %v5720 = vcombine.low %v2541, %v3142
  %v5722 = vunpack.c.l.s4 1966171168
  %v5723 = vunpack.c.0.s8 %v5722
  %v5724 = vlaneseq
  %v5725 = vshrl.u32 %v5724, 7
  %v5726 = vsub.s32 %v5723, %v5725
  %v5727 = vrot.slane %v5719, %v5726
  %v5729 = vunpack.c.l.s4 1966171168
  %v5730 = vunpack.c.0.s8 %v5729
  %v5731 = vlaneseq
  %v5732 = vshrl.u32 %v5731, 7
  %v5733 = vsub.s32 %v5730, %v5732
  %v5734 = vrot.slane %v5720, %v5733
  %v5735 = vcombine.low %v5727, %v5734
  %v5736 = vcombine.low %v3168, %v3175
  %v5738 = vunpack.c.l.s4 1966171168
  %v5739 = vunpack.c.0.s8 %v5738
  %v5740 = vlaneseq
  %v5741 = vshrl.u32 %v5740, 7
  %v5742 = vsub.s32 %v5739, %v5741
  %v5743 = vrot.slane %v5736, %v5742
  %v5744 = vcombine.low %v2606, %v5743
  %v5745 = vcombine.low %v3200, %v2646
  %v5747 = vunpack.c.l.s4 1966171168
  %v5748 = vunpack.c.0.s8 %v5747
  %v5749 = vlaneseq
  %v5750 = vshrl.u32 %v5749, 7
  %v5751 = vsub.s32 %v5748, %v5750
  %v5752 = vrot.slane %v5745, %v5751
  %v5753 = vcombine.low %v2655, %v5752
  %v5754 = vcombine.low %v3233, %v2695
  %v5756 = vunpack.c.l.s4 1966171168
  %v5757 = vunpack.c.0.s8 %v5756
  %v5758 = vlaneseq
  %v5759 = vshrl.u32 %v5758, 7
  %v5760 = vsub.s32 %v5757, %v5759
  %v5761 = vrot.slane %v5754, %v5760
  %v5762 = vcombine.low %v4158, %v5761
  %v5763 = vcombine.low %v2720, %v3258
  %v5765 = vunpack.c.l.s4 1966171168
  %v5766 = vunpack.c.0.s8 %v5765
  %v5767 = vlaneseq
  %v5768 = vshrl.u32 %v5767, 7
  %v5769 = vsub.s32 %v5766, %v5768
  %v5770 = vrot.slane %v5763, %v5769
  %v5771 = vcombine.low %v5770, %v4199
  %v5772 = vcombine.low %v1312, %v1336
  %v5774 = vunpack.c.l.s4 1966171168
  %v5775 = vunpack.c.0.s8 %v5774
  %v5776 = vlaneseq
  %v5777 = vshrl.u32 %v5776, 7
  %v5778 = vsub.s32 %v5775, %v5777
  %v5779 = vrot.slane %v5772, %v5778
  %v5780 = vcombine.low %v4208, %v5779
  %v5781 = vcombine.low %v5037, %v5062
  %v5783 = vunpack.c.l.s4 1966171168
  %v5784 = vunpack.c.0.s8 %v5783
  %v5785 = vlaneseq
  %v5786 = vshrl.u32 %v5785, 7
  %v5787 = vsub.s32 %v5784, %v5786
  %v5788 = vrot.slane %v5780, %v5787
  %v5790 = vunpack.c.l.s4 1966171168
  %v5791 = vunpack.c.0.s8 %v5790
  %v5792 = vlaneseq
  %v5793 = vshrl.u32 %v5792, 7
  %v5794 = vsub.s32 %v5791, %v5793
  %v5795 = vrot.slane %v5781, %v5794
  %v5796 = vcombine.low %v5788, %v5795
  %v5797 = vcombine.low %v1352, %v1359
  %v5799 = vunpack.c.l.s4 1966171168
  %v5800 = vunpack.c.0.s8 %v5799
  %v5801 = vlaneseq
  %v5802 = vshrl.u32 %v5801, 7
  %v5803 = vsub.s32 %v5800, %v5802
  %v5804 = vrot.slane %v5797, %v5803
  %v5806 = vunpack.c.l.s4 1966171168
  %v5807 = vunpack.c.0.s8 %v5806
  %v5808 = vlaneseq
  %v5809 = vshrl.u32 %v5808, 7
  %v5810 = vsub.s32 %v5807, %v5809
  %v5811 = vrot.slane %v5804, %v5810
  %v5812 = vsel %vm1968, %v5633, 0
  %v5814 = vsel %vm1968, %v5642, 0
  %v5816 = vsel %vm1968, %v5651, 0
  %v5818 = vsel %vm1968, %v5660, 0
  %v5820 = vsel %vm1968, %v5677, 0
  %v5822 = vsel %vm1968, %v5710, 0
  %v5824 = vsel %vm1968, %v5735, 0
  %v5826 = vsel %vm1968, %v5744, 0
  %v5828 = vsel %vm1968, %v5753, 0
  %v5830 = vsel %vm1968, %v5762, 0
  %v5832 = vsel %vm1968, %v5771, 0
  %v5834 = vsel %vm1968, %v5796, 0
  %v5836 = vsel %vm1968, %v5811, 0
  %5838 = vmatprep.subr.mxu0 0.0
  %5839 = vmatpush1.msra.mxu0 %v5623
  %5840 = vmatprep.subr.mxu0 0.0
  %5841 = vmatpush1.msra.mxu0 %v5624
  %5842 = vmatprep.subr.mxu0 0.0
  %5843 = vmatpush1.msra.mxu0 0.0
  %5844 = vmatprep.subr.mxu0 0.0
  %5845 = vmatpush1.msra.mxu0 0.0
  %5846 = vmatprep.subr.mxu0 0.0
  %5847 = vmatpush1.msra.mxu0 0.0
  %5848 = vmatprep.subr.mxu0 0.0
  %5849 = vmatpush1.msra.mxu0 0.0
  %5850 = vmatprep.subr.mxu0 0.0
  %5851 = vmatpush1.msra.mxu0 0.0
  %5852 = vmatprep.subr.mxu0 0.0
  %5853 = vmatpush1.msra.mxu0 0.0
  %5854 = vmatprep.subr.mxu0 0.0
  %5855 = vmatpush1.msra.mxu0 0.0
  %5856 = vmatprep.subr.mxu0 0.0
  %5857 = vmatpush1.msra.mxu0 0.0
  %5858 = vmatprep.subr.mxu0 0.0
  %5859 = vmatpush1.msra.mxu0 0.0
  %5860 = vmatprep.subr.mxu0 0.0
  %5861 = vmatpush1.msra.mxu0 0.0
  %5862 = vmatprep.subr.mxu0 0.0
  %5863 = vmatpush1.msra.mxu0 0.0
  %5864 = vmatprep.subr.mxu0 0.0
  %5865 = vmatpush1.msra.mxu0 0.0
  %5866 = vmatprep.subr.mxu0 0.0
  %5867 = vmatpush1.msra.mxu0 0.0
  %5868 = vmatprep.subr.mxu0 0.0
  %5869 = vmatpush1.msra.mxu0 0.0
  %5870 = vmatprep.subr.mxu0 0.0
  %5871 = vmatpush1.msra.mxu0 0.0
  %5872 = vmatprep.subr.mxu0 0.0
  %5873 = vmatpush1.msra.mxu0 0.0
  %5874 = vmatprep.subr.mxu0 0.0
  %5875 = vmatpush1.msra.mxu0 0.0
  %5876 = vmatprep.subr.mxu0 0.0
  %5877 = vmatpush1.msra.mxu0 0.0
  %5878 = vmatprep.subr.mxu0 0.0
  %5879 = vmatpush1.msra.mxu0 0.0
  %5880 = vmatprep.subr.mxu0 0.0
  %5881 = vmatpush1.msra.mxu0 0.0
  %5882 = vmatprep.subr.mxu0 0.0
  %5883 = vmatpush1.msra.mxu0 0.0
  %5884 = vmatprep.subr.mxu0 0.0
  %5885 = vmatpush1.msra.mxu0 0.0
  %5886 = vmatprep.subr.mxu0 0.0
  %5887 = vmatpush1.msra.mxu0 0.0
  %5888 = vmatprep.subr.mxu0 0.0
  %5889 = vmatpush1.msra.mxu0 0.0
  %5890 = vmatprep.subr.mxu0 0.0
  %5891 = vmatpush1.msra.mxu0 0.0
  %5892 = vmatprep.subr.mxu0 0.0
  %5893 = vmatpush1.msra.mxu0 0.0
  %5894 = vmatprep.subr.mxu0 0.0
  %5895 = vmatpush1.msra.mxu0 0.0
  %5896 = vmatprep.subr.mxu0 0.0
  %5897 = vmatpush1.msra.mxu0 0.0
  %5898 = vmatprep.subr.mxu0 0.0
  %5899 = vmatpush1.msra.mxu0 0.0
  %5900 = vmatprep.subr.mxu0 0.0
  %5901 = vmatpush1.msra.mxu0 0.0
  %5902 = vmatprep.mubr.f32.mxu0 0.0
  %5903 = vmatmul.mubr.f32.gmra.mrb[0].mxu0 %v5812
  %v5904 = vpop.f32.mrb[0].mxu0
  %v5905 = vadd.f32 0.0, %v5904
  %v5906 = vpop.f32.mrb[0].mxu0
  %5907 = vmatprep.mubr.f32.mxu0 0.0
  %5908 = vmatmul.mubr.f32.gmra.mrb[0].mxu0 %v5814
  %v5909 = vpop.f32.mrb[0].mxu0
  %v5910 = vadd.f32 0.0, %v5909
  %v5911 = vpop.f32.mrb[0].mxu0
  %5912 = vmatprep.mubr.f32.mxu0 0.0
  %5913 = vmatmul.mubr.f32.gmra.mrb[0].mxu0 %v5816
  %v5914 = vpop.f32.mrb[0].mxu0
  %v5915 = vadd.f32 0.0, %v5914
  %v5916 = vpop.f32.mrb[0].mxu0
  %5917 = vmatprep.mubr.f32.mxu0 0.0
  %5918 = vmatmul.mubr.f32.gmra.mrb[0].mxu0 %v5818
  %v5919 = vpop.f32.mrb[0].mxu0
  %v5920 = vadd.f32 0.0, %v5919
  %v5921 = vpop.f32.mrb[0].mxu0
  %5922 = vmatprep.mubr.f32.mxu0 0.0
  %5923 = vmatmul.mubr.f32.gmra.mrb[0].mxu0 %v5820
  %v5924 = vpop.f32.mrb[0].mxu0
  %v5925 = vadd.f32 0.0, %v5924
  %v5926 = vpop.f32.mrb[0].mxu0
  %5927 = vmatprep.mubr.f32.mxu0 0.0
  %5928 = vmatmul.mubr.f32.gmra.mrb[0].mxu0 %v5822
  %v5929 = vpop.f32.mrb[0].mxu0
  %v5930 = vadd.f32 0.0, %v5929
  %v5931 = vpop.f32.mrb[0].mxu0
  %5932 = vmatprep.mubr.f32.mxu0 0.0
  %5933 = vmatmul.mubr.f32.gmra.mrb[0].mxu0 %v5824
  %v5934 = vpop.f32.mrb[0].mxu0
  %v5935 = vadd.f32 0.0, %v5934
  %v5936 = vpop.f32.mrb[0].mxu0
  %5937 = vmatprep.mubr.f32.mxu0 0.0
  %5938 = vmatmul.mubr.f32.gmra.mrb[0].mxu0 %v5826
  %v5939 = vpop.f32.mrb[0].mxu0
  %v5940 = vadd.f32 0.0, %v5939
  %v5941 = vpop.f32.mrb[0].mxu0
  %5942 = vmatprep.mubr.f32.mxu0 0.0
  %5943 = vmatmul.mubr.f32.gmra.mrb[0].mxu0 %v5828
  %v5944 = vpop.f32.mrb[0].mxu0
  %v5945 = vadd.f32 0.0, %v5944
  %v5946 = vpop.f32.mrb[0].mxu0
  %5947 = vmatprep.mubr.f32.mxu0 0.0
  %5948 = vmatmul.mubr.f32.gmra.mrb[0].mxu0 %v5830
  %v5949 = vpop.f32.mrb[0].mxu0
  %v5950 = vadd.f32 0.0, %v5949
  %v5951 = vpop.f32.mrb[0].mxu0
  %5952 = vmatprep.mubr.f32.mxu0 0.0
  %5953 = vmatmul.mubr.f32.gmra.mrb[0].mxu0 %v5832
  %v5954 = vpop.f32.mrb[0].mxu0
  %v5955 = vadd.f32 0.0, %v5954
  %v5956 = vpop.f32.mrb[0].mxu0
  %5957 = vmatprep.mubr.f32.mxu0 0.0
  %5958 = vmatmul.mubr.f32.gmra.mrb[0].mxu0 %v5834
  %v5959 = vpop.f32.mrb[0].mxu0
  %v5960 = vadd.f32 0.0, %v5959
  %v5961 = vpop.f32.mrb[0].mxu0
  %5962 = vmatprep.mubr.f32.mxu0 0.0
  %5963 = vmatmul.mubr.f32.gmra.mrb[0].mxu0 %v5836
  %v5964 = vpop.f32.mrb[0].mxu0
  %v5965 = vadd.f32 0.0, %v5964
  %v5966 = vpop.f32.mrb[0].mxu0
  %5967 = vdwg.mxu0
  %v5968 = vadd.f32 %v5609, %v5905
  %v5969 = vadd.f32 %v5610, %v5910
  %v5970 = vadd.f32 %v5611, %v5915
  %v5971 = vadd.f32 %v5612, %v5920
  %v5972 = vadd.f32 %v5613, %v5925
  %v5973 = vadd.f32 %v5614, %v5930
  %v5974 = vadd.f32 %v5615, %v5935
  %v5975 = vadd.f32 %v5616, %v5940
  %v5976 = vadd.f32 %v5617, %v5945
  %v5977 = vadd.f32 %v5618, %v5950
  %v5978 = vadd.f32 %v5619, %v5955
  %v5979 = vadd.f32 %v5620, %v5960
  %v5980 = vadd.f32 %v5621, %v5965
  %v5981 = vld [vmem:[%s4] sm:$0x1]
  %v5983 = vlaneseq
  %v5984 = vshrl.u32 %v5983, 7
  %v5985 = vsub.s32 0, %v5984
  %v5986 = vrot.slane %v5981, %v5985
  %v5988 = vadd.f32 %v5968, %v5986
  %v5989 = vadd.f32 %v5969, %v5986
  %v5990 = vadd.f32 %v5970, %v5986
  %v5991 = vadd.f32 %v5971, %v5986
  %v5992 = vadd.f32 %v5972, %v5986
  %v5993 = vadd.f32 %v5973, %v5986
  %v5994 = vadd.f32 %v5974, %v5986
  %v5995 = vadd.f32 %v5975, %v5986
  %v5996 = vadd.f32 %v5976, %v5986
  %v5997 = vadd.f32 %v5977, %v5986
  %v5998 = vadd.f32 %v5978, %v5986
  %v5999 = vadd.f32 %v5979, %v5986
  %v6000 = vadd.f32 %v5980, %v5986
  %v6001 = vmax.f32 %v5988, 0.0
  %v6002 = vmax.f32 %v5989, 0.0
  %v6003 = vmax.f32 %v5990, 0.0
  %v6004 = vmax.f32 %v5991, 0.0
  %v6005 = vmax.f32 %v5992, 0.0
  %v6006 = vmax.f32 %v5993, 0.0
  %v6007 = vmax.f32 %v5994, 0.0
  %v6008 = vmax.f32 %v5995, 0.0
  %v6009 = vmax.f32 %v5996, 0.0
  %v6010 = vmax.f32 %v5997, 0.0
  %v6011 = vmax.f32 %v5998, 0.0
  %v6012 = vmax.f32 %v5999, 0.0
  %v6013 = vmax.f32 %v6000, 0.0
  %v6027 = vcombine.high %v6001, %v6001
  %v6029 = vunpack.c.l.s4 1966171168
  %v6030 = vunpack.c.0.s8 %v6029
  %v6031 = vlaneseq
  %v6032 = vshrl.u32 %v6031, 7
  %v6033 = vsub.s32 %v6030, %v6032
  %v6034 = vrot.slane %v6001, %v6033
  %v6036 = vunpack.c.l.s4 1966171168
  %v6037 = vunpack.c.0.s8 %v6036
  %v6038 = vlaneseq
  %v6039 = vshrl.u32 %v6038, 7
  %v6040 = vsub.s32 %v6037, %v6039
  %v6041 = vrot.slane %v6027, %v6040
  %v6042 = vcombine.high %v6034, %v6034
  %v6043 = vcombine.high %v6041, %v6041
  %v6045 = vunpack.c.l.s4 1966171168
  %v6046 = vunpack.c.0.s8 %v6045
  %v6047 = vlaneseq
  %v6048 = vshrl.u32 %v6047, 7
  %v6049 = vsub.s32 %v6046, %v6048
  %v6050 = vrot.slane %v6034, %v6049
  %v6052 = vunpack.c.l.s4 1966171168
  %v6053 = vunpack.c.0.s8 %v6052
  %v6054 = vlaneseq
  %v6055 = vshrl.u32 %v6054, 7
  %v6056 = vsub.s32 %v6053, %v6055
  %v6057 = vrot.slane %v6041, %v6056
  %v6059 = vunpack.c.l.s4 1966171168
  %v6060 = vunpack.c.0.s8 %v6059
  %v6061 = vlaneseq
  %v6062 = vshrl.u32 %v6061, 7
  %v6063 = vsub.s32 %v6060, %v6062
  %v6064 = vrot.slane %v6042, %v6063
  %v6066 = vunpack.c.l.s4 1966171168
  %v6067 = vunpack.c.0.s8 %v6066
  %v6068 = vlaneseq
  %v6069 = vshrl.u32 %v6068, 7
  %v6070 = vsub.s32 %v6067, %v6069
  %v6071 = vrot.slane %v6043, %v6070
  %v6072 = vcombine.high %v6050, %v6050
  %v6073 = vcombine.high %v6057, %v6057
  %v6074 = vcombine.high %v6064, %v6064
  %v6075 = vcombine.high %v6071, %v6071
  %v6076 = vcombine.high %v6002, %v6002
  %v6078 = vunpack.c.l.s4 1966171168
  %v6079 = vunpack.c.0.s8 %v6078
  %v6080 = vlaneseq
  %v6081 = vshrl.u32 %v6080, 7
  %v6082 = vsub.s32 %v6079, %v6081
  %v6083 = vrot.slane %v6002, %v6082
  %v6085 = vunpack.c.l.s4 1966171168
  %v6086 = vunpack.c.0.s8 %v6085
  %v6087 = vlaneseq
  %v6088 = vshrl.u32 %v6087, 7
  %v6089 = vsub.s32 %v6086, %v6088
  %v6090 = vrot.slane %v6076, %v6089
  %v6091 = vcombine.high %v6083, %v6083
  %v6092 = vcombine.high %v6090, %v6090
  %v6094 = vunpack.c.l.s4 1966171168
  %v6095 = vunpack.c.0.s8 %v6094
  %v6096 = vlaneseq
  %v6097 = vshrl.u32 %v6096, 7
  %v6098 = vsub.s32 %v6095, %v6097
  %v6099 = vrot.slane %v6083, %v6098
  %v6101 = vunpack.c.l.s4 1966171168
  %v6102 = vunpack.c.0.s8 %v6101
  %v6103 = vlaneseq
  %v6104 = vshrl.u32 %v6103, 7
  %v6105 = vsub.s32 %v6102, %v6104
  %v6106 = vrot.slane %v6090, %v6105
  %v6108 = vunpack.c.l.s4 1966171168
  %v6109 = vunpack.c.0.s8 %v6108
  %v6110 = vlaneseq
  %v6111 = vshrl.u32 %v6110, 7
  %v6112 = vsub.s32 %v6109, %v6111
  %v6113 = vrot.slane %v6091, %v6112
  %v6115 = vunpack.c.l.s4 1966171168
  %v6116 = vunpack.c.0.s8 %v6115
  %v6117 = vlaneseq
  %v6118 = vshrl.u32 %v6117, 7
  %v6119 = vsub.s32 %v6116, %v6118
  %v6120 = vrot.slane %v6092, %v6119
  %v6121 = vcombine.high %v6099, %v6099
  %v6122 = vcombine.high %v6106, %v6106
  %v6123 = vcombine.high %v6113, %v6113
  %v6124 = vcombine.high %v6120, %v6120
  %v6125 = vcombine.high %v6003, %v6003
  %v6127 = vunpack.c.l.s4 1966171168
  %v6128 = vunpack.c.0.s8 %v6127
  %v6129 = vlaneseq
  %v6130 = vshrl.u32 %v6129, 7
  %v6131 = vsub.s32 %v6128, %v6130
  %v6132 = vrot.slane %v6003, %v6131
  %v6134 = vunpack.c.l.s4 1966171168
  %v6135 = vunpack.c.0.s8 %v6134
  %v6136 = vlaneseq
  %v6137 = vshrl.u32 %v6136, 7
  %v6138 = vsub.s32 %v6135, %v6137
  %v6139 = vrot.slane %v6125, %v6138
  %v6140 = vcombine.high %v6132, %v6132
  %v6141 = vcombine.high %v6139, %v6139
  %v6143 = vunpack.c.l.s4 1966171168
  %v6144 = vunpack.c.0.s8 %v6143
  %v6145 = vlaneseq
  %v6146 = vshrl.u32 %v6145, 7
  %v6147 = vsub.s32 %v6144, %v6146
  %v6148 = vrot.slane %v6132, %v6147
  %v6150 = vunpack.c.l.s4 1966171168
  %v6151 = vunpack.c.0.s8 %v6150
  %v6152 = vlaneseq
  %v6153 = vshrl.u32 %v6152, 7
  %v6154 = vsub.s32 %v6151, %v6153
  %v6155 = vrot.slane %v6139, %v6154
  %v6157 = vunpack.c.l.s4 1966171168
  %v6158 = vunpack.c.0.s8 %v6157
  %v6159 = vlaneseq
  %v6160 = vshrl.u32 %v6159, 7
  %v6161 = vsub.s32 %v6158, %v6160
  %v6162 = vrot.slane %v6140, %v6161
  %v6164 = vunpack.c.l.s4 1966171168
  %v6165 = vunpack.c.0.s8 %v6164
  %v6166 = vlaneseq
  %v6167 = vshrl.u32 %v6166, 7
  %v6168 = vsub.s32 %v6165, %v6167
  %v6169 = vrot.slane %v6141, %v6168
  %v6170 = vcombine.high %v6148, %v6148
  %v6171 = vcombine.high %v6155, %v6155
  %v6172 = vcombine.high %v6162, %v6162
  %v6173 = vcombine.high %v6169, %v6169
  %v6174 = vcombine.high %v6004, %v6004
  %v6176 = vunpack.c.l.s4 1966171168
  %v6177 = vunpack.c.0.s8 %v6176
  %v6178 = vlaneseq
  %v6179 = vshrl.u32 %v6178, 7
  %v6180 = vsub.s32 %v6177, %v6179
  %v6181 = vrot.slane %v6004, %v6180
  %v6183 = vunpack.c.l.s4 1966171168
  %v6184 = vunpack.c.0.s8 %v6183
  %v6185 = vlaneseq
  %v6186 = vshrl.u32 %v6185, 7
  %v6187 = vsub.s32 %v6184, %v6186
  %v6188 = vrot.slane %v6174, %v6187
  %v6189 = vcombine.high %v6181, %v6181
  %v6190 = vcombine.high %v6188, %v6188
  %v6192 = vunpack.c.l.s4 1966171168
  %v6193 = vunpack.c.0.s8 %v6192
  %v6194 = vlaneseq
  %v6195 = vshrl.u32 %v6194, 7
  %v6196 = vsub.s32 %v6193, %v6195
  %v6197 = vrot.slane %v6181, %v6196
  %v6199 = vunpack.c.l.s4 1966171168
  %v6200 = vunpack.c.0.s8 %v6199
  %v6201 = vlaneseq
  %v6202 = vshrl.u32 %v6201, 7
  %v6203 = vsub.s32 %v6200, %v6202
  %v6204 = vrot.slane %v6188, %v6203
  %v6206 = vunpack.c.l.s4 1966171168
  %v6207 = vunpack.c.0.s8 %v6206
  %v6208 = vlaneseq
  %v6209 = vshrl.u32 %v6208, 7
  %v6210 = vsub.s32 %v6207, %v6209
  %v6211 = vrot.slane %v6189, %v6210
  %v6213 = vunpack.c.l.s4 1966171168
  %v6214 = vunpack.c.0.s8 %v6213
  %v6215 = vlaneseq
  %v6216 = vshrl.u32 %v6215, 7
  %v6217 = vsub.s32 %v6214, %v6216
  %v6218 = vrot.slane %v6190, %v6217
  %v6219 = vcombine.high %v6197, %v6197
  %v6220 = vcombine.high %v6204, %v6204
  %v6221 = vcombine.high %v6211, %v6211
  %v6222 = vcombine.high %v6218, %v6218
  %v6223 = vcombine.high %v6005, %v6005
  %v6225 = vunpack.c.l.s4 1966171168
  %v6226 = vunpack.c.0.s8 %v6225
  %v6227 = vlaneseq
  %v6228 = vshrl.u32 %v6227, 7
  %v6229 = vsub.s32 %v6226, %v6228
  %v6230 = vrot.slane %v6005, %v6229
  %v6232 = vunpack.c.l.s4 1966171168
  %v6233 = vunpack.c.0.s8 %v6232
  %v6234 = vlaneseq
  %v6235 = vshrl.u32 %v6234, 7
  %v6236 = vsub.s32 %v6233, %v6235
  %v6237 = vrot.slane %v6223, %v6236
  %v6238 = vcombine.high %v6230, %v6230
  %v6239 = vcombine.high %v6237, %v6237
  %v6241 = vunpack.c.l.s4 1966171168
  %v6242 = vunpack.c.0.s8 %v6241
  %v6243 = vlaneseq
  %v6244 = vshrl.u32 %v6243, 7
  %v6245 = vsub.s32 %v6242, %v6244
  %v6246 = vrot.slane %v6230, %v6245
  %v6248 = vunpack.c.l.s4 1966171168
  %v6249 = vunpack.c.0.s8 %v6248
  %v6250 = vlaneseq
  %v6251 = vshrl.u32 %v6250, 7
  %v6252 = vsub.s32 %v6249, %v6251
  %v6253 = vrot.slane %v6237, %v6252
  %v6255 = vunpack.c.l.s4 1966171168
  %v6256 = vunpack.c.0.s8 %v6255
  %v6257 = vlaneseq
  %v6258 = vshrl.u32 %v6257, 7
  %v6259 = vsub.s32 %v6256, %v6258
  %v6260 = vrot.slane %v6238, %v6259
  %v6262 = vunpack.c.l.s4 1966171168
  %v6263 = vunpack.c.0.s8 %v6262
  %v6264 = vlaneseq
  %v6265 = vshrl.u32 %v6264, 7
  %v6266 = vsub.s32 %v6263, %v6265
  %v6267 = vrot.slane %v6239, %v6266
  %v6268 = vcombine.high %v6246, %v6246
  %v6269 = vcombine.high %v6253, %v6253
  %v6270 = vcombine.high %v6260, %v6260
  %v6271 = vcombine.high %v6267, %v6267
  %v6272 = vcombine.high %v6006, %v6006
  %v6274 = vunpack.c.l.s4 1966171168
  %v6275 = vunpack.c.0.s8 %v6274
  %v6276 = vlaneseq
  %v6277 = vshrl.u32 %v6276, 7
  %v6278 = vsub.s32 %v6275, %v6277
  %v6279 = vrot.slane %v6006, %v6278
  %v6281 = vunpack.c.l.s4 1966171168
  %v6282 = vunpack.c.0.s8 %v6281
  %v6283 = vlaneseq
  %v6284 = vshrl.u32 %v6283, 7
  %v6285 = vsub.s32 %v6282, %v6284
  %v6286 = vrot.slane %v6272, %v6285
  %v6287 = vcombine.high %v6279, %v6279
  %v6288 = vcombine.high %v6286, %v6286
  %v6290 = vunpack.c.l.s4 1966171168
  %v6291 = vunpack.c.0.s8 %v6290
  %v6292 = vlaneseq
  %v6293 = vshrl.u32 %v6292, 7
  %v6294 = vsub.s32 %v6291, %v6293
  %v6295 = vrot.slane %v6279, %v6294
  %v6297 = vunpack.c.l.s4 1966171168
  %v6298 = vunpack.c.0.s8 %v6297
  %v6299 = vlaneseq
  %v6300 = vshrl.u32 %v6299, 7
  %v6301 = vsub.s32 %v6298, %v6300
  %v6302 = vrot.slane %v6286, %v6301
  %v6304 = vunpack.c.l.s4 1966171168
  %v6305 = vunpack.c.0.s8 %v6304
  %v6306 = vlaneseq
  %v6307 = vshrl.u32 %v6306, 7
  %v6308 = vsub.s32 %v6305, %v6307
  %v6309 = vrot.slane %v6287, %v6308
  %v6311 = vunpack.c.l.s4 1966171168
  %v6312 = vunpack.c.0.s8 %v6311
  %v6313 = vlaneseq
  %v6314 = vshrl.u32 %v6313, 7
  %v6315 = vsub.s32 %v6312, %v6314
  %v6316 = vrot.slane %v6288, %v6315
  %v6317 = vcombine.high %v6295, %v6295
  %v6318 = vcombine.high %v6302, %v6302
  %v6319 = vcombine.high %v6309, %v6309
  %v6320 = vcombine.high %v6316, %v6316
  %v6321 = vcombine.high %v6007, %v6007
  %v6323 = vunpack.c.l.s4 1966171168
  %v6324 = vunpack.c.0.s8 %v6323
  %v6325 = vlaneseq
  %v6326 = vshrl.u32 %v6325, 7
  %v6327 = vsub.s32 %v6324, %v6326
  %v6328 = vrot.slane %v6007, %v6327
  %v6330 = vunpack.c.l.s4 1966171168
  %v6331 = vunpack.c.0.s8 %v6330
  %v6332 = vlaneseq
  %v6333 = vshrl.u32 %v6332, 7
  %v6334 = vsub.s32 %v6331, %v6333
  %v6335 = vrot.slane %v6321, %v6334
  %v6336 = vcombine.high %v6328, %v6328
  %v6337 = vcombine.high %v6335, %v6335
  %v6339 = vunpack.c.l.s4 1966171168
  %v6340 = vunpack.c.0.s8 %v6339
  %v6341 = vlaneseq
  %v6342 = vshrl.u32 %v6341, 7
  %v6343 = vsub.s32 %v6340, %v6342
  %v6344 = vrot.slane %v6328, %v6343
  %v6346 = vunpack.c.l.s4 1966171168
  %v6347 = vunpack.c.0.s8 %v6346
  %v6348 = vlaneseq
  %v6349 = vshrl.u32 %v6348, 7
  %v6350 = vsub.s32 %v6347, %v6349
  %v6351 = vrot.slane %v6335, %v6350
  %v6353 = vunpack.c.l.s4 1966171168
  %v6354 = vunpack.c.0.s8 %v6353
  %v6355 = vlaneseq
  %v6356 = vshrl.u32 %v6355, 7
  %v6357 = vsub.s32 %v6354, %v6356
  %v6358 = vrot.slane %v6336, %v6357
  %v6360 = vunpack.c.l.s4 1966171168
  %v6361 = vunpack.c.0.s8 %v6360
  %v6362 = vlaneseq
  %v6363 = vshrl.u32 %v6362, 7
  %v6364 = vsub.s32 %v6361, %v6363
  %v6365 = vrot.slane %v6337, %v6364
  %v6366 = vcombine.high %v6344, %v6344
  %v6367 = vcombine.high %v6351, %v6351
  %v6368 = vcombine.high %v6358, %v6358
  %v6369 = vcombine.high %v6365, %v6365
  %v6370 = vcombine.high %v6008, %v6008
  %v6372 = vunpack.c.l.s4 1966171168
  %v6373 = vunpack.c.0.s8 %v6372
  %v6374 = vlaneseq
  %v6375 = vshrl.u32 %v6374, 7
  %v6376 = vsub.s32 %v6373, %v6375
  %v6377 = vrot.slane %v6008, %v6376
  %v6379 = vunpack.c.l.s4 1966171168
  %v6380 = vunpack.c.0.s8 %v6379
  %v6381 = vlaneseq
  %v6382 = vshrl.u32 %v6381, 7
  %v6383 = vsub.s32 %v6380, %v6382
  %v6384 = vrot.slane %v6370, %v6383
  %v6385 = vcombine.high %v6377, %v6377
  %v6386 = vcombine.high %v6384, %v6384
  %v6388 = vunpack.c.l.s4 1966171168
  %v6389 = vunpack.c.0.s8 %v6388
  %v6390 = vlaneseq
  %v6391 = vshrl.u32 %v6390, 7
  %v6392 = vsub.s32 %v6389, %v6391
  %v6393 = vrot.slane %v6377, %v6392
  %v6395 = vunpack.c.l.s4 1966171168
  %v6396 = vunpack.c.0.s8 %v6395
  %v6397 = vlaneseq
  %v6398 = vshrl.u32 %v6397, 7
  %v6399 = vsub.s32 %v6396, %v6398
  %v6400 = vrot.slane %v6384, %v6399
  %v6402 = vunpack.c.l.s4 1966171168
  %v6403 = vunpack.c.0.s8 %v6402
  %v6404 = vlaneseq
  %v6405 = vshrl.u32 %v6404, 7
  %v6406 = vsub.s32 %v6403, %v6405
  %v6407 = vrot.slane %v6385, %v6406
  %v6409 = vunpack.c.l.s4 1966171168
  %v6410 = vunpack.c.0.s8 %v6409
  %v6411 = vlaneseq
  %v6412 = vshrl.u32 %v6411, 7
  %v6413 = vsub.s32 %v6410, %v6412
  %v6414 = vrot.slane %v6386, %v6413
  %v6415 = vcombine.high %v6393, %v6393
  %v6416 = vcombine.high %v6400, %v6400
  %v6417 = vcombine.high %v6407, %v6407
  %v6418 = vcombine.high %v6414, %v6414
  %v6419 = vcombine.high %v6009, %v6009
  %v6421 = vunpack.c.l.s4 1966171168
  %v6422 = vunpack.c.0.s8 %v6421
  %v6423 = vlaneseq
  %v6424 = vshrl.u32 %v6423, 7
  %v6425 = vsub.s32 %v6422, %v6424
  %v6426 = vrot.slane %v6009, %v6425
  %v6428 = vunpack.c.l.s4 1966171168
  %v6429 = vunpack.c.0.s8 %v6428
  %v6430 = vlaneseq
  %v6431 = vshrl.u32 %v6430, 7
  %v6432 = vsub.s32 %v6429, %v6431
  %v6433 = vrot.slane %v6419, %v6432
  %v6434 = vcombine.high %v6426, %v6426
  %v6435 = vcombine.high %v6433, %v6433
  %v6437 = vunpack.c.l.s4 1966171168
  %v6438 = vunpack.c.0.s8 %v6437
  %v6439 = vlaneseq
  %v6440 = vshrl.u32 %v6439, 7
  %v6441 = vsub.s32 %v6438, %v6440
  %v6442 = vrot.slane %v6426, %v6441
  %v6444 = vunpack.c.l.s4 1966171168
  %v6445 = vunpack.c.0.s8 %v6444
  %v6446 = vlaneseq
  %v6447 = vshrl.u32 %v6446, 7
  %v6448 = vsub.s32 %v6445, %v6447
  %v6449 = vrot.slane %v6433, %v6448
  %v6451 = vunpack.c.l.s4 1966171168
  %v6452 = vunpack.c.0.s8 %v6451
  %v6453 = vlaneseq
  %v6454 = vshrl.u32 %v6453, 7
  %v6455 = vsub.s32 %v6452, %v6454
  %v6456 = vrot.slane %v6434, %v6455
  %v6458 = vunpack.c.l.s4 1966171168
  %v6459 = vunpack.c.0.s8 %v6458
  %v6460 = vlaneseq
  %v6461 = vshrl.u32 %v6460, 7
  %v6462 = vsub.s32 %v6459, %v6461
  %v6463 = vrot.slane %v6435, %v6462
  %v6464 = vcombine.high %v6442, %v6442
  %v6465 = vcombine.high %v6449, %v6449
  %v6466 = vcombine.high %v6456, %v6456
  %v6467 = vcombine.high %v6463, %v6463
  %v6468 = vcombine.high %v6010, %v6010
  %v6470 = vunpack.c.l.s4 1966171168
  %v6471 = vunpack.c.0.s8 %v6470
  %v6472 = vlaneseq
  %v6473 = vshrl.u32 %v6472, 7
  %v6474 = vsub.s32 %v6471, %v6473
  %v6475 = vrot.slane %v6010, %v6474
  %v6477 = vunpack.c.l.s4 1966171168
  %v6478 = vunpack.c.0.s8 %v6477
  %v6479 = vlaneseq
  %v6480 = vshrl.u32 %v6479, 7
  %v6481 = vsub.s32 %v6478, %v6480
  %v6482 = vrot.slane %v6468, %v6481
  %v6483 = vcombine.high %v6475, %v6475
  %v6484 = vcombine.high %v6482, %v6482
  %v6486 = vunpack.c.l.s4 1966171168
  %v6487 = vunpack.c.0.s8 %v6486
  %v6488 = vlaneseq
  %v6489 = vshrl.u32 %v6488, 7
  %v6490 = vsub.s32 %v6487, %v6489
  %v6491 = vrot.slane %v6475, %v6490
  %v6493 = vunpack.c.l.s4 1966171168
  %v6494 = vunpack.c.0.s8 %v6493
  %v6495 = vlaneseq
  %v6496 = vshrl.u32 %v6495, 7
  %v6497 = vsub.s32 %v6494, %v6496
  %v6498 = vrot.slane %v6482, %v6497
  %v6500 = vunpack.c.l.s4 1966171168
  %v6501 = vunpack.c.0.s8 %v6500
  %v6502 = vlaneseq
  %v6503 = vshrl.u32 %v6502, 7
  %v6504 = vsub.s32 %v6501, %v6503
  %v6505 = vrot.slane %v6483, %v6504
  %v6507 = vunpack.c.l.s4 1966171168
  %v6508 = vunpack.c.0.s8 %v6507
  %v6509 = vlaneseq
  %v6510 = vshrl.u32 %v6509, 7
  %v6511 = vsub.s32 %v6508, %v6510
  %v6512 = vrot.slane %v6484, %v6511
  %v6513 = vcombine.high %v6491, %v6491
  %v6514 = vcombine.high %v6498, %v6498
  %v6515 = vcombine.high %v6505, %v6505
  %v6516 = vcombine.high %v6512, %v6512
  %v6517 = vcombine.high %v6011, %v6011
  %v6519 = vunpack.c.l.s4 1966171168
  %v6520 = vunpack.c.0.s8 %v6519
  %v6521 = vlaneseq
  %v6522 = vshrl.u32 %v6521, 7
  %v6523 = vsub.s32 %v6520, %v6522
  %v6524 = vrot.slane %v6011, %v6523
  %v6526 = vunpack.c.l.s4 1966171168
  %v6527 = vunpack.c.0.s8 %v6526
  %v6528 = vlaneseq
  %v6529 = vshrl.u32 %v6528, 7
  %v6530 = vsub.s32 %v6527, %v6529
  %v6531 = vrot.slane %v6517, %v6530
  %v6532 = vcombine.high %v6524, %v6524
  %v6533 = vcombine.high %v6531, %v6531
  %v6535 = vunpack.c.l.s4 1966171168
  %v6536 = vunpack.c.0.s8 %v6535
  %v6537 = vlaneseq
  %v6538 = vshrl.u32 %v6537, 7
  %v6539 = vsub.s32 %v6536, %v6538
  %v6540 = vrot.slane %v6524, %v6539
  %v6542 = vunpack.c.l.s4 1966171168
  %v6543 = vunpack.c.0.s8 %v6542
  %v6544 = vlaneseq
  %v6545 = vshrl.u32 %v6544, 7
  %v6546 = vsub.s32 %v6543, %v6545
  %v6547 = vrot.slane %v6531, %v6546
  %v6549 = vunpack.c.l.s4 1966171168
  %v6550 = vunpack.c.0.s8 %v6549
  %v6551 = vlaneseq
  %v6552 = vshrl.u32 %v6551, 7
  %v6553 = vsub.s32 %v6550, %v6552
  %v6554 = vrot.slane %v6532, %v6553
  %v6556 = vunpack.c.l.s4 1966171168
  %v6557 = vunpack.c.0.s8 %v6556
  %v6558 = vlaneseq
  %v6559 = vshrl.u32 %v6558, 7
  %v6560 = vsub.s32 %v6557, %v6559
  %v6561 = vrot.slane %v6533, %v6560
  %v6562 = vcombine.high %v6540, %v6540
  %v6563 = vcombine.high %v6547, %v6547
  %v6564 = vcombine.high %v6554, %v6554
  %v6565 = vcombine.high %v6561, %v6561
  %v6566 = vcombine.high %v6012, %v6012
  %v6568 = vunpack.c.l.s4 1966171168
  %v6569 = vunpack.c.0.s8 %v6568
  %v6570 = vlaneseq
  %v6571 = vshrl.u32 %v6570, 7
  %v6572 = vsub.s32 %v6569, %v6571
  %v6573 = vrot.slane %v6012, %v6572
  %v6575 = vunpack.c.l.s4 1966171168
  %v6576 = vunpack.c.0.s8 %v6575
  %v6577 = vlaneseq
  %v6578 = vshrl.u32 %v6577, 7
  %v6579 = vsub.s32 %v6576, %v6578
  %v6580 = vrot.slane %v6566, %v6579
  %v6581 = vcombine.high %v6573, %v6573
  %v6582 = vcombine.high %v6580, %v6580
  %v6584 = vunpack.c.l.s4 1966171168
  %v6585 = vunpack.c.0.s8 %v6584
  %v6586 = vlaneseq
  %v6587 = vshrl.u32 %v6586, 7
  %v6588 = vsub.s32 %v6585, %v6587
  %v6589 = vrot.slane %v6573, %v6588
  %v6591 = vunpack.c.l.s4 1966171168
  %v6592 = vunpack.c.0.s8 %v6591
  %v6593 = vlaneseq
  %v6594 = vshrl.u32 %v6593, 7
  %v6595 = vsub.s32 %v6592, %v6594
  %v6596 = vrot.slane %v6580, %v6595
  %v6598 = vunpack.c.l.s4 1966171168
  %v6599 = vunpack.c.0.s8 %v6598
  %v6600 = vlaneseq
  %v6601 = vshrl.u32 %v6600, 7
  %v6602 = vsub.s32 %v6599, %v6601
  %v6603 = vrot.slane %v6581, %v6602
  %v6605 = vunpack.c.l.s4 1966171168
  %v6606 = vunpack.c.0.s8 %v6605
  %v6607 = vlaneseq
  %v6608 = vshrl.u32 %v6607, 7
  %v6609 = vsub.s32 %v6606, %v6608
  %v6610 = vrot.slane %v6582, %v6609
  %v6611 = vcombine.high %v6589, %v6589
  %v6612 = vcombine.high %v6596, %v6596
  %v6613 = vcombine.high %v6603, %v6603
  %v6614 = vcombine.high %v6610, %v6610
  %v6616 = vunpack.c.l.s4 1966171168
  %v6617 = vunpack.c.0.s8 %v6616
  %v6618 = vlaneseq
  %v6619 = vshrl.u32 %v6618, 7
  %v6620 = vsub.s32 %v6617, %v6619
  %v6621 = vrot.slane %v6013, %v6620
  %v6622 = vcombine.high %v6621, %v6621
  %v6624 = vunpack.c.l.s4 1966171168
  %v6625 = vunpack.c.0.s8 %v6624
  %v6626 = vlaneseq
  %v6627 = vshrl.u32 %v6626, 7
  %v6628 = vsub.s32 %v6625, %v6627
  %v6629 = vrot.slane %v6621, %v6628
  %v6631 = vunpack.c.l.s4 1966171168
  %v6632 = vunpack.c.0.s8 %v6631
  %v6633 = vlaneseq
  %v6634 = vshrl.u32 %v6633, 7
  %v6635 = vsub.s32 %v6632, %v6634
  %v6636 = vrot.slane %v6622, %v6635
  %v6637 = vld [vmem:[%s5] sm:$0xff]
  %v6638 = vld [vmem:[%s5 + $0x8] sm:$0xff]
  %v6639 = vld [vmem:[%s5 + $0x10] sm:$0xff]
  %v6640 = vld [vmem:[%s5 + $0x18] sm:$0xff]
  %s6641 = scalar_lea.vmem %s5, 32
  %v6642 = vld [vmem:[%s6641] sm:$0xff]
  %v6643 = vld [vmem:[%s6641 + $0x8] sm:$0xff]
  %v6644 = vld [vmem:[%s6641 + $0x10] sm:$0xff]
  %v6645 = vld [vmem:[%s6641 + $0x18] sm:$0xff]
  %v6646 = vcombine.low %v6064, %v6072
  %v6647 = vcombine.low %v6074, %v6057
  %v6648 = vcombine.low %v6071, %v6099
  %v6649 = vcombine.low %v6113, %v6121
  %v6651 = vunpack.c.l.s4 1966171168
  %v6652 = vunpack.c.0.s8 %v6651
  %v6653 = vlaneseq
  %v6654 = vshrl.u32 %v6653, 7
  %v6655 = vsub.s32 %v6652, %v6654
  %v6656 = vrot.slane %v6646, %v6655
  %v6658 = vunpack.c.l.s4 1966171168
  %v6659 = vunpack.c.0.s8 %v6658
  %v6660 = vlaneseq
  %v6661 = vshrl.u32 %v6660, 7
  %v6662 = vsub.s32 %v6659, %v6661
  %v6663 = vrot.slane %v6647, %v6662
  %v6665 = vunpack.c.l.s4 1966171168
  %v6666 = vunpack.c.0.s8 %v6665
  %v6667 = vlaneseq
  %v6668 = vshrl.u32 %v6667, 7
  %v6669 = vsub.s32 %v6666, %v6668
  %v6670 = vrot.slane %v6648, %v6669
  %v6672 = vunpack.c.l.s4 1966171168
  %v6673 = vunpack.c.0.s8 %v6672
  %v6674 = vlaneseq
  %v6675 = vshrl.u32 %v6674, 7
  %v6676 = vsub.s32 %v6673, %v6675
  %v6677 = vrot.slane %v6649, %v6676
  %v6678 = vcombine.low %v6656, %v6663
  %v6679 = vcombine.low %v6670, %v6677
  %v6681 = vunpack.c.l.s4 1966171168
  %v6682 = vunpack.c.0.s8 %v6681
  %v6683 = vlaneseq
  %v6684 = vshrl.u32 %v6683, 7
  %v6685 = vsub.s32 %v6682, %v6684
  %v6686 = vrot.slane %v6678, %v6685
  %v6688 = vunpack.c.l.s4 1966171168
  %v6689 = vunpack.c.0.s8 %v6688
  %v6690 = vlaneseq
  %v6691 = vshrl.u32 %v6690, 7
  %v6692 = vsub.s32 %v6689, %v6691
  %v6693 = vrot.slane %v6679, %v6692
  %v6694 = vcombine.low %v6686, %v6693
  %v6695 = vcombine.low %v6123, %v6106
  %v6696 = vcombine.low %v6124, %v6148
  %v6697 = vcombine.low %v6162, %v6170
  %v6698 = vcombine.low %v6172, %v6171
  %v6700 = vunpack.c.l.s4 1966171168
  %v6701 = vunpack.c.0.s8 %v6700
  %v6702 = vlaneseq
  %v6703 = vshrl.u32 %v6702, 7
  %v6704 = vsub.s32 %v6701, %v6703
  %v6705 = vrot.slane %v6695, %v6704
  %v6707 = vunpack.c.l.s4 1966171168
  %v6708 = vunpack.c.0.s8 %v6707
  %v6709 = vlaneseq
  %v6710 = vshrl.u32 %v6709, 7
  %v6711 = vsub.s32 %v6708, %v6710
  %v6712 = vrot.slane %v6696, %v6711
  %v6714 = vunpack.c.l.s4 1966171168
  %v6715 = vunpack.c.0.s8 %v6714
  %v6716 = vlaneseq
  %v6717 = vshrl.u32 %v6716, 7
  %v6718 = vsub.s32 %v6715, %v6717
  %v6719 = vrot.slane %v6697, %v6718
  %v6721 = vunpack.c.l.s4 1966171168
  %v6722 = vunpack.c.0.s8 %v6721
  %v6723 = vlaneseq
  %v6724 = vshrl.u32 %v6723, 7
  %v6725 = vsub.s32 %v6722, %v6724
  %v6726 = vrot.slane %v6698, %v6725
  %v6727 = vcombine.low %v6705, %v6712
  %v6728 = vcombine.low %v6719, %v6726
  %v6730 = vunpack.c.l.s4 1966171168
  %v6731 = vunpack.c.0.s8 %v6730
  %v6732 = vlaneseq
  %v6733 = vshrl.u32 %v6732, 7
  %v6734 = vsub.s32 %v6731, %v6733
  %v6735 = vrot.slane %v6727, %v6734
  %v6737 = vunpack.c.l.s4 1966171168
  %v6738 = vunpack.c.0.s8 %v6737
  %v6739 = vlaneseq
  %v6740 = vshrl.u32 %v6739, 7
  %v6741 = vsub.s32 %v6738, %v6740
  %v6742 = vrot.slane %v6728, %v6741
  %v6743 = vcombine.low %v6735, %v6742
  %v6744 = vcombine.low %v6173, %v6197
  %v6745 = vcombine.low %v6211, %v6219
  %v6746 = vcombine.low %v6218, %v6220
  %v6747 = vcombine.low %v6222, %v6246
  %v6749 = vunpack.c.l.s4 1966171168
  %v6750 = vunpack.c.0.s8 %v6749
  %v6751 = vlaneseq
  %v6752 = vshrl.u32 %v6751, 7
  %v6753 = vsub.s32 %v6750, %v6752
  %v6754 = vrot.slane %v6744, %v6753
  %v6756 = vunpack.c.l.s4 1966171168
  %v6757 = vunpack.c.0.s8 %v6756
  %v6758 = vlaneseq
  %v6759 = vshrl.u32 %v6758, 7
  %v6760 = vsub.s32 %v6757, %v6759
  %v6761 = vrot.slane %v6745, %v6760
  %v6763 = vunpack.c.l.s4 1966171168
  %v6764 = vunpack.c.0.s8 %v6763
  %v6765 = vlaneseq
  %v6766 = vshrl.u32 %v6765, 7
  %v6767 = vsub.s32 %v6764, %v6766
  %v6768 = vrot.slane %v6746, %v6767
  %v6770 = vunpack.c.l.s4 1966171168
  %v6771 = vunpack.c.0.s8 %v6770
  %v6772 = vlaneseq
  %v6773 = vshrl.u32 %v6772, 7
  %v6774 = vsub.s32 %v6771, %v6773
  %v6775 = vrot.slane %v6747, %v6774
  %v6776 = vcombine.low %v6754, %v6761
  %v6777 = vcombine.low %v6768, %v6775
  %v6779 = vunpack.c.l.s4 1966171168
  %v6780 = vunpack.c.0.s8 %v6779
  %v6781 = vlaneseq
  %v6782 = vshrl.u32 %v6781, 7
  %v6783 = vsub.s32 %v6780, %v6782
  %v6784 = vrot.slane %v6776, %v6783
  %v6786 = vunpack.c.l.s4 1966171168
  %v6787 = vunpack.c.0.s8 %v6786
  %v6788 = vlaneseq
  %v6789 = vshrl.u32 %v6788, 7
  %v6790 = vsub.s32 %v6787, %v6789
  %v6791 = vrot.slane %v6777, %v6790
  %v6792 = vcombine.low %v6784, %v6791
  %v6793 = vcombine.low %v6260, %v6366
  %v6794 = vcombine.low %v6368, %v6351
  %v6795 = vcombine.low %v6365, %v6367
  %v6796 = vcombine.low %v6407, %v6415
  %v6798 = vunpack.c.l.s4 1966171168
  %v6799 = vunpack.c.0.s8 %v6798
  %v6800 = vlaneseq
  %v6801 = vshrl.u32 %v6800, 7
  %v6802 = vsub.s32 %v6799, %v6801
  %v6803 = vrot.slane %v6793, %v6802
  %v6805 = vunpack.c.l.s4 1966171168
  %v6806 = vunpack.c.0.s8 %v6805
  %v6807 = vlaneseq
  %v6808 = vshrl.u32 %v6807, 7
  %v6809 = vsub.s32 %v6806, %v6808
  %v6810 = vrot.slane %v6794, %v6809
  %v6812 = vunpack.c.l.s4 1966171168
  %v6813 = vunpack.c.0.s8 %v6812
  %v6814 = vlaneseq
  %v6815 = vshrl.u32 %v6814, 7
  %v6816 = vsub.s32 %v6813, %v6815
  %v6817 = vrot.slane %v6795, %v6816
  %v6819 = vunpack.c.l.s4 1966171168
  %v6820 = vunpack.c.0.s8 %v6819
  %v6821 = vlaneseq
  %v6822 = vshrl.u32 %v6821, 7
  %v6823 = vsub.s32 %v6820, %v6822
  %v6824 = vrot.slane %v6796, %v6823
  %v6825 = vcombine.low %v6803, %v6810
  %v6826 = vcombine.low %v6817, %v6824
  %v6828 = vunpack.c.l.s4 1966171168
  %v6829 = vunpack.c.0.s8 %v6828
  %v6830 = vlaneseq
  %v6831 = vshrl.u32 %v6830, 7
  %v6832 = vsub.s32 %v6829, %v6831
  %v6833 = vrot.slane %v6825, %v6832
  %v6835 = vunpack.c.l.s4 1966171168
  %v6836 = vunpack.c.0.s8 %v6835
  %v6837 = vlaneseq
  %v6838 = vshrl.u32 %v6837, 7
  %v6839 = vsub.s32 %v6836, %v6838
  %v6840 = vrot.slane %v6826, %v6839
  %v6841 = vcombine.low %v6833, %v6840
  %v6842 = vcombine.low %v6417, %v6400
  %v6843 = vcombine.low %v6414, %v6442
  %v6844 = vcombine.low %v6456, %v6464
  %v6845 = vcombine.low %v6466, %v6449
  %v6847 = vunpack.c.l.s4 1966171168
  %v6848 = vunpack.c.0.s8 %v6847
  %v6849 = vlaneseq
  %v6850 = vshrl.u32 %v6849, 7
  %v6851 = vsub.s32 %v6848, %v6850
  %v6852 = vrot.slane %v6842, %v6851
  %v6854 = vunpack.c.l.s4 1966171168
  %v6855 = vunpack.c.0.s8 %v6854
  %v6856 = vlaneseq
  %v6857 = vshrl.u32 %v6856, 7
  %v6858 = vsub.s32 %v6855, %v6857
  %v6859 = vrot.slane %v6843, %v6858
  %v6861 = vunpack.c.l.s4 1966171168
  %v6862 = vunpack.c.0.s8 %v6861
  %v6863 = vlaneseq
  %v6864 = vshrl.u32 %v6863, 7
  %v6865 = vsub.s32 %v6862, %v6864
  %v6866 = vrot.slane %v6844, %v6865
  %v6868 = vunpack.c.l.s4 1966171168
  %v6869 = vunpack.c.0.s8 %v6868
  %v6870 = vlaneseq
  %v6871 = vshrl.u32 %v6870, 7
  %v6872 = vsub.s32 %v6869, %v6871
  %v6873 = vrot.slane %v6845, %v6872
  %v6874 = vcombine.low %v6852, %v6859
  %v6875 = vcombine.low %v6866, %v6873
  %v6877 = vunpack.c.l.s4 1966171168
  %v6878 = vunpack.c.0.s8 %v6877
  %v6879 = vlaneseq
  %v6880 = vshrl.u32 %v6879, 7
  %v6881 = vsub.s32 %v6878, %v6880
  %v6882 = vrot.slane %v6874, %v6881
  %v6884 = vunpack.c.l.s4 1966171168
  %v6885 = vunpack.c.0.s8 %v6884
  %v6886 = vlaneseq
  %v6887 = vshrl.u32 %v6886, 7
  %v6888 = vsub.s32 %v6885, %v6887
  %v6889 = vrot.slane %v6875, %v6888
  %v6890 = vcombine.low %v6882, %v6889
  %v6891 = vcombine.low %v6467, %v6491
  %v6892 = vcombine.low %v6505, %v6513
  %v6893 = vcombine.low %v6515, %v6514
  %v6894 = vcombine.low %v6516, %v6540
  %v6896 = vunpack.c.l.s4 1966171168
  %v6897 = vunpack.c.0.s8 %v6896
  %v6898 = vlaneseq
  %v6899 = vshrl.u32 %v6898, 7
  %v6900 = vsub.s32 %v6897, %v6899
  %v6901 = vrot.slane %v6891, %v6900
  %v6903 = vunpack.c.l.s4 1966171168
  %v6904 = vunpack.c.0.s8 %v6903
  %v6905 = vlaneseq
  %v6906 = vshrl.u32 %v6905, 7
  %v6907 = vsub.s32 %v6904, %v6906
  %v6908 = vrot.slane %v6892, %v6907
  %v6910 = vunpack.c.l.s4 1966171168
  %v6911 = vunpack.c.0.s8 %v6910
  %v6912 = vlaneseq
  %v6913 = vshrl.u32 %v6912, 7
  %v6914 = vsub.s32 %v6911, %v6913
  %v6915 = vrot.slane %v6893, %v6914
  %v6917 = vunpack.c.l.s4 1966171168
  %v6918 = vunpack.c.0.s8 %v6917
  %v6919 = vlaneseq
  %v6920 = vshrl.u32 %v6919, 7
  %v6921 = vsub.s32 %v6918, %v6920
  %v6922 = vrot.slane %v6894, %v6921
  %v6923 = vcombine.low %v6901, %v6908
  %v6924 = vcombine.low %v6915, %v6922
  %v6926 = vunpack.c.l.s4 1966171168
  %v6927 = vunpack.c.0.s8 %v6926
  %v6928 = vlaneseq
  %v6929 = vshrl.u32 %v6928, 7
  %v6930 = vsub.s32 %v6927, %v6929
  %v6931 = vrot.slane %v6923, %v6930
  %v6933 = vunpack.c.l.s4 1966171168
  %v6934 = vunpack.c.0.s8 %v6933
  %v6935 = vlaneseq
  %v6936 = vshrl.u32 %v6935, 7
  %v6937 = vsub.s32 %v6934, %v6936
  %v6938 = vrot.slane %v6924, %v6937
  %v6939 = vcombine.low %v6931, %v6938
  %v6940 = vcombine.low %v6554, %v6562
  %v6942 = vunpack.c.l.s4 1966171168
  %v6943 = vunpack.c.0.s8 %v6942
  %v6944 = vlaneseq
  %v6945 = vshrl.u32 %v6944, 7
  %v6946 = vsub.s32 %v6943, %v6945
  %v6947 = vrot.slane %v6940, %v6946
  %v6949 = vunpack.c.l.s4 1966171168
  %v6950 = vunpack.c.0.s8 %v6949
  %v6951 = vlaneseq
  %v6952 = vshrl.u32 %v6951, 7
  %v6953 = vsub.s32 %v6950, %v6952
  %v6954 = vrot.slane %v6947, %v6953
  %vm6955 = vcmask 261120
  %v6956 = vsel %vm6955, %v6694, 0
  %v6958 = vsel %vm6955, %v6743, 0
  %v6960 = vsel %vm6955, %v6792, 0
  %v6962 = vsel %vm6955, %v6841, 0
  %v6964 = vsel %vm6955, %v6890, 0
  %v6966 = vsel %vm6955, %v6939, 0
  %v6968 = vsel %vm6955, %v6954, 0
  %6970 = vmatprep.subr.mxu0 0.0
  %6971 = vmatpush1.msra.mxu0 %v6642
  %6972 = vmatprep.subr.mxu0 0.0
  %6973 = vmatpush1.msra.mxu0 %v6643
  %6974 = vmatprep.subr.mxu0 0.0
  %6975 = vmatpush1.msra.mxu0 %v6644
  %6976 = vmatprep.subr.mxu0 0.0
  %6977 = vmatpush1.msra.mxu0 %v6645
  %6978 = vmatprep.subr.mxu0 0.0
  %6979 = vmatpush1.msra.mxu0 0.0
  %6980 = vmatprep.subr.mxu0 0.0
  %6981 = vmatpush1.msra.mxu0 0.0
  %6982 = vmatprep.subr.mxu0 0.0
  %6983 = vmatpush1.msra.mxu0 0.0
  %6984 = vmatprep.subr.mxu0 0.0
  %6985 = vmatpush1.msra.mxu0 0.0
  %6986 = vmatprep.subr.mxu0 0.0
  %6987 = vmatpush1.msra.mxu0 0.0
  %6988 = vmatprep.subr.mxu0 0.0
  %6989 = vmatpush1.msra.mxu0 0.0
  %6990 = vmatprep.subr.mxu0 0.0
  %6991 = vmatpush1.msra.mxu0 0.0
  %6992 = vmatprep.subr.mxu0 0.0
  %6993 = vmatpush1.msra.mxu0 0.0
  %6994 = vmatprep.subr.mxu0 0.0
  %6995 = vmatpush1.msra.mxu0 0.0
  %6996 = vmatprep.subr.mxu0 0.0
  %6997 = vmatpush1.msra.mxu0 0.0
  %6998 = vmatprep.subr.mxu0 0.0
  %6999 = vmatpush1.msra.mxu0 0.0
  %7000 = vmatprep.subr.mxu0 0.0
  %7001 = vmatpush1.msra.mxu0 0.0
  %7002 = vmatprep.subr.mxu0 0.0
  %7003 = vmatpush1.msra.mxu0 0.0
  %7004 = vmatprep.subr.mxu0 0.0
  %7005 = vmatpush1.msra.mxu0 0.0
  %7006 = vmatprep.subr.mxu0 0.0
  %7007 = vmatpush1.msra.mxu0 0.0
  %7008 = vmatprep.subr.mxu0 0.0
  %7009 = vmatpush1.msra.mxu0 0.0
  %7010 = vmatprep.subr.mxu0 0.0
  %7011 = vmatpush1.msra.mxu0 0.0
  %7012 = vmatprep.subr.mxu0 0.0
  %7013 = vmatpush1.msra.mxu0 0.0
  %7014 = vmatprep.subr.mxu0 0.0
  %7015 = vmatpush1.msra.mxu0 0.0
  %7016 = vmatprep.subr.mxu0 0.0
  %7017 = vmatpush1.msra.mxu0 0.0
  %7018 = vmatprep.subr.mxu0 0.0
  %7019 = vmatpush1.msra.mxu0 0.0
  %7020 = vmatprep.subr.mxu0 0.0
  %7021 = vmatpush1.msra.mxu0 0.0
  %7022 = vmatprep.subr.mxu0 0.0
  %7023 = vmatpush1.msra.mxu0 0.0
  %7024 = vmatprep.subr.mxu0 0.0
  %7025 = vmatpush1.msra.mxu0 0.0
  %7026 = vmatprep.subr.mxu0 0.0
  %7027 = vmatpush1.msra.mxu0 0.0
  %7028 = vmatprep.subr.mxu0 0.0
  %7029 = vmatpush1.msra.mxu0 0.0
  %7030 = vmatprep.subr.mxu0 0.0
  %7031 = vmatpush1.msra.mxu0 0.0
  %7032 = vmatprep.subr.mxu0 0.0
  %7033 = vmatpush1.msra.mxu0 0.0
  %7034 = vmatprep.mubr.f32.mxu0 0.0
  %7035 = vmatmul.mubr.f32.gmra.mrb[0].mxu0 %v6956
  %v7036 = vpop.f32.mrb[0].mxu0
  %v7037 = vadd.f32 0.0, %v7036
  %v7038 = vpop.f32.mrb[0].mxu0
  %7039 = vmatprep.mubr.f32.mxu0 0.0
  %7040 = vmatmul.mubr.f32.gmra.mrb[0].mxu0 %v6958
  %v7041 = vpop.f32.mrb[0].mxu0
  %v7042 = vadd.f32 0.0, %v7041
  %v7043 = vpop.f32.mrb[0].mxu0
  %7044 = vmatprep.mubr.f32.mxu0 0.0
  %7045 = vmatmul.mubr.f32.gmra.mrb[0].mxu0 %v6960
  %v7046 = vpop.f32.mrb[0].mxu0
  %v7047 = vadd.f32 0.0, %v7046
  %v7048 = vpop.f32.mrb[0].mxu0
  %7049 = vmatprep.mubr.f32.mxu0 0.0
  %7050 = vmatmul.mubr.f32.gmra.mrb[0].mxu0 %v6962
  %v7051 = vpop.f32.mrb[0].mxu0
  %v7052 = vadd.f32 0.0, %v7051
  %v7053 = vpop.f32.mrb[0].mxu0
  %7054 = vmatprep.mubr.f32.mxu0 0.0
  %7055 = vmatmul.mubr.f32.gmra.mrb[0].mxu0 %v6964
  %v7056 = vpop.f32.mrb[0].mxu0
  %v7057 = vadd.f32 0.0, %v7056
  %v7058 = vpop.f32.mrb[0].mxu0
  %7059 = vmatprep.mubr.f32.mxu0 0.0
  %7060 = vmatmul.mubr.f32.gmra.mrb[0].mxu0 %v6966
  %v7061 = vpop.f32.mrb[0].mxu0
  %v7062 = vadd.f32 0.0, %v7061
  %v7063 = vpop.f32.mrb[0].mxu0
  %7064 = vmatprep.mubr.f32.mxu0 0.0
  %7065 = vmatmul.mubr.f32.gmra.mrb[0].mxu0 %v6968
  %v7066 = vpop.f32.mrb[0].mxu0
  %v7067 = vadd.f32 0.0, %v7066
  %v7068 = vpop.f32.mrb[0].mxu0
  %7069 = vdwg.mxu0
  %v7070 = vcombine.low %v6050, %v6064
  %v7071 = vcombine.low %v6072, %v6074
  %v7072 = vcombine.low %v6057, %v6075
  %v7073 = vcombine.low %v6099, %v6113
  %v7075 = vunpack.c.l.s4 1966171168
  %v7076 = vunpack.c.0.s8 %v7075
  %v7077 = vlaneseq
  %v7078 = vshrl.u32 %v7077, 7
  %v7079 = vsub.s32 %v7076, %v7078
  %v7080 = vrot.slane %v7070, %v7079
  %v7082 = vunpack.c.l.s4 1966171168
  %v7083 = vunpack.c.0.s8 %v7082
  %v7084 = vlaneseq
  %v7085 = vshrl.u32 %v7084, 7
  %v7086 = vsub.s32 %v7083, %v7085
  %v7087 = vrot.slane %v7071, %v7086
  %v7089 = vunpack.c.l.s4 1966171168
  %v7090 = vunpack.c.0.s8 %v7089
  %v7091 = vlaneseq
  %v7092 = vshrl.u32 %v7091, 7
  %v7093 = vsub.s32 %v7090, %v7092
  %v7094 = vrot.slane %v7072, %v7093
  %v7096 = vunpack.c.l.s4 1966171168
  %v7097 = vunpack.c.0.s8 %v7096
  %v7098 = vlaneseq
  %v7099 = vshrl.u32 %v7098, 7
  %v7100 = vsub.s32 %v7097, %v7099
  %v7101 = vrot.slane %v7073, %v7100
  %v7102 = vcombine.low %v7080, %v7087
  %v7103 = vcombine.low %v7094, %v7101
  %v7105 = vunpack.c.l.s4 1966171168
  %v7106 = vunpack.c.0.s8 %v7105
  %v7107 = vlaneseq
  %v7108 = vshrl.u32 %v7107, 7
  %v7109 = vsub.s32 %v7106, %v7108
  %v7110 = vrot.slane %v7102, %v7109
  %v7112 = vunpack.c.l.s4 1966171168
  %v7113 = vunpack.c.0.s8 %v7112
  %v7114 = vlaneseq
  %v7115 = vshrl.u32 %v7114, 7
  %v7116 = vsub.s32 %v7113, %v7115
  %v7117 = vrot.slane %v7103, %v7116
  %v7118 = vcombine.low %v7110, %v7117
  %v7119 = vcombine.low %v6121, %v6123
  %v7120 = vcombine.low %v6122, %v6124
  %v7121 = vcombine.low %v6148, %v6162
  %v7122 = vcombine.low %v6170, %v6169
  %v7124 = vunpack.c.l.s4 1966171168
  %v7125 = vunpack.c.0.s8 %v7124
  %v7126 = vlaneseq
  %v7127 = vshrl.u32 %v7126, 7
  %v7128 = vsub.s32 %v7125, %v7127
  %v7129 = vrot.slane %v7119, %v7128
  %v7131 = vunpack.c.l.s4 1966171168
  %v7132 = vunpack.c.0.s8 %v7131
  %v7133 = vlaneseq
  %v7134 = vshrl.u32 %v7133, 7
  %v7135 = vsub.s32 %v7132, %v7134
  %v7136 = vrot.slane %v7120, %v7135
  %v7138 = vunpack.c.l.s4 1966171168
  %v7139 = vunpack.c.0.s8 %v7138
  %v7140 = vlaneseq
  %v7141 = vshrl.u32 %v7140, 7
  %v7142 = vsub.s32 %v7139, %v7141
  %v7143 = vrot.slane %v7121, %v7142
  %v7145 = vunpack.c.l.s4 1966171168
  %v7146 = vunpack.c.0.s8 %v7145
  %v7147 = vlaneseq
  %v7148 = vshrl.u32 %v7147, 7
  %v7149 = vsub.s32 %v7146, %v7148
  %v7150 = vrot.slane %v7122, %v7149
  %v7151 = vcombine.low %v7129, %v7136
  %v7152 = vcombine.low %v7143, %v7150
  %v7154 = vunpack.c.l.s4 1966171168
  %v7155 = vunpack.c.0.s8 %v7154
  %v7156 = vlaneseq
  %v7157 = vshrl.u32 %v7156, 7
  %v7158 = vsub.s32 %v7155, %v7157
  %v7159 = vrot.slane %v7151, %v7158
  %v7161 = vunpack.c.l.s4 1966171168
  %v7162 = vunpack.c.0.s8 %v7161
  %v7163 = vlaneseq
  %v7164 = vshrl.u32 %v7163, 7
  %v7165 = vsub.s32 %v7162, %v7164
  %v7166 = vrot.slane %v7152, %v7165
  %v7167 = vcombine.low %v7159, %v7166
  %v7168 = vcombine.low %v6171, %v6173
  %v7169 = vcombine.low %v6197, %v6211
  %v7170 = vcombine.low %v6204, %v6218
  %v7171 = vcombine.low %v6220, %v6222
  %v7173 = vunpack.c.l.s4 1966171168
  %v7174 = vunpack.c.0.s8 %v7173
  %v7175 = vlaneseq
  %v7176 = vshrl.u32 %v7175, 7
  %v7177 = vsub.s32 %v7174, %v7176
  %v7178 = vrot.slane %v7168, %v7177
  %v7180 = vunpack.c.l.s4 1966171168
  %v7181 = vunpack.c.0.s8 %v7180
  %v7182 = vlaneseq
  %v7183 = vshrl.u32 %v7182, 7
  %v7184 = vsub.s32 %v7181, %v7183
  %v7185 = vrot.slane %v7169, %v7184
  %v7187 = vunpack.c.l.s4 1966171168
  %v7188 = vunpack.c.0.s8 %v7187
  %v7189 = vlaneseq
  %v7190 = vshrl.u32 %v7189, 7
  %v7191 = vsub.s32 %v7188, %v7190
  %v7192 = vrot.slane %v7170, %v7191
  %v7194 = vunpack.c.l.s4 1966171168
  %v7195 = vunpack.c.0.s8 %v7194
  %v7196 = vlaneseq
  %v7197 = vshrl.u32 %v7196, 7
  %v7198 = vsub.s32 %v7195, %v7197
  %v7199 = vrot.slane %v7171, %v7198
  %v7200 = vcombine.low %v7178, %v7185
  %v7201 = vcombine.low %v7192, %v7199
  %v7203 = vunpack.c.l.s4 1966171168
  %v7204 = vunpack.c.0.s8 %v7203
  %v7205 = vlaneseq
  %v7206 = vshrl.u32 %v7205, 7
  %v7207 = vsub.s32 %v7204, %v7206
  %v7208 = vrot.slane %v7200, %v7207
  %v7210 = vunpack.c.l.s4 1966171168
  %v7211 = vunpack.c.0.s8 %v7210
  %v7212 = vlaneseq
  %v7213 = vshrl.u32 %v7212, 7
  %v7214 = vsub.s32 %v7211, %v7213
  %v7215 = vrot.slane %v7201, %v7214
  %v7216 = vcombine.low %v7208, %v7215
  %v7217 = vcombine.low %v6246, %v6358
  %v7218 = vcombine.low %v6366, %v6368
  %v7219 = vcombine.low %v6351, %v6365
  %v7220 = vcombine.low %v6393, %v6407
  %v7222 = vunpack.c.l.s4 1966171168
  %v7223 = vunpack.c.0.s8 %v7222
  %v7224 = vlaneseq
  %v7225 = vshrl.u32 %v7224, 7
  %v7226 = vsub.s32 %v7223, %v7225
  %v7227 = vrot.slane %v7217, %v7226
  %v7229 = vunpack.c.l.s4 1966171168
  %v7230 = vunpack.c.0.s8 %v7229
  %v7231 = vlaneseq
  %v7232 = vshrl.u32 %v7231, 7
  %v7233 = vsub.s32 %v7230, %v7232
  %v7234 = vrot.slane %v7218, %v7233
  %v7236 = vunpack.c.l.s4 1966171168
  %v7237 = vunpack.c.0.s8 %v7236
  %v7238 = vlaneseq
  %v7239 = vshrl.u32 %v7238, 7
  %v7240 = vsub.s32 %v7237, %v7239
  %v7241 = vrot.slane %v7219, %v7240
  %v7243 = vunpack.c.l.s4 1966171168
  %v7244 = vunpack.c.0.s8 %v7243
  %v7245 = vlaneseq
  %v7246 = vshrl.u32 %v7245, 7
  %v7247 = vsub.s32 %v7244, %v7246
  %v7248 = vrot.slane %v7220, %v7247
  %v7249 = vcombine.low %v7227, %v7234
  %v7250 = vcombine.low %v7241, %v7248
  %v7252 = vunpack.c.l.s4 1966171168
  %v7253 = vunpack.c.0.s8 %v7252
  %v7254 = vlaneseq
  %v7255 = vshrl.u32 %v7254, 7
  %v7256 = vsub.s32 %v7253, %v7255
  %v7257 = vrot.slane %v7249, %v7256
  %v7259 = vunpack.c.l.s4 1966171168
  %v7260 = vunpack.c.0.s8 %v7259
  %v7261 = vlaneseq
  %v7262 = vshrl.u32 %v7261, 7
  %v7263 = vsub.s32 %v7260, %v7262
  %v7264 = vrot.slane %v7250, %v7263
  %v7265 = vcombine.low %v7257, %v7264
  %v7266 = vcombine.low %v6415, %v6417
  %v7267 = vcombine.low %v6400, %v6418
  %v7268 = vcombine.low %v6442, %v6456
  %v7269 = vcombine.low %v6464, %v6466
  %v7271 = vunpack.c.l.s4 1966171168
  %v7272 = vunpack.c.0.s8 %v7271
  %v7273 = vlaneseq
  %v7274 = vshrl.u32 %v7273, 7
  %v7275 = vsub.s32 %v7272, %v7274
  %v7276 = vrot.slane %v7266, %v7275
  %v7278 = vunpack.c.l.s4 1966171168
  %v7279 = vunpack.c.0.s8 %v7278
  %v7280 = vlaneseq
  %v7281 = vshrl.u32 %v7280, 7
  %v7282 = vsub.s32 %v7279, %v7281
  %v7283 = vrot.slane %v7267, %v7282
  %v7285 = vunpack.c.l.s4 1966171168
  %v7286 = vunpack.c.0.s8 %v7285
  %v7287 = vlaneseq
  %v7288 = vshrl.u32 %v7287, 7
  %v7289 = vsub.s32 %v7286, %v7288
  %v7290 = vrot.slane %v7268, %v7289
  %v7292 = vunpack.c.l.s4 1966171168
  %v7293 = vunpack.c.0.s8 %v7292
  %v7294 = vlaneseq
  %v7295 = vshrl.u32 %v7294, 7
  %v7296 = vsub.s32 %v7293, %v7295
  %v7297 = vrot.slane %v7269, %v7296
  %v7298 = vcombine.low %v7276, %v7283
  %v7299 = vcombine.low %v7290, %v7297
  %v7301 = vunpack.c.l.s4 1966171168
  %v7302 = vunpack.c.0.s8 %v7301
  %v7303 = vlaneseq
  %v7304 = vshrl.u32 %v7303, 7
  %v7305 = vsub.s32 %v7302, %v7304
  %v7306 = vrot.slane %v7298, %v7305
  %v7308 = vunpack.c.l.s4 1966171168
  %v7309 = vunpack.c.0.s8 %v7308
  %v7310 = vlaneseq
  %v7311 = vshrl.u32 %v7310, 7
  %v7312 = vsub.s32 %v7309, %v7311
  %v7313 = vrot.slane %v7299, %v7312
  %v7314 = vcombine.low %v7306, %v7313
  %v7315 = vcombine.low %v6465, %v6467
  %v7316 = vcombine.low %v6491, %v6505
  %v7317 = vcombine.low %v6513, %v6512
  %v7318 = vcombine.low %v6514, %v6516
  %v7320 = vunpack.c.l.s4 1966171168
  %v7321 = vunpack.c.0.s8 %v7320
  %v7322 = vlaneseq
  %v7323 = vshrl.u32 %v7322, 7
  %v7324 = vsub.s32 %v7321, %v7323
  %v7325 = vrot.slane %v7315, %v7324
  %v7327 = vunpack.c.l.s4 1966171168
  %v7328 = vunpack.c.0.s8 %v7327
  %v7329 = vlaneseq
  %v7330 = vshrl.u32 %v7329, 7
  %v7331 = vsub.s32 %v7328, %v7330
  %v7332 = vrot.slane %v7316, %v7331
  %v7334 = vunpack.c.l.s4 1966171168
  %v7335 = vunpack.c.0.s8 %v7334
  %v7336 = vlaneseq
  %v7337 = vshrl.u32 %v7336, 7
  %v7338 = vsub.s32 %v7335, %v7337
  %v7339 = vrot.slane %v7317, %v7338
  %v7341 = vunpack.c.l.s4 1966171168
  %v7342 = vunpack.c.0.s8 %v7341
  %v7343 = vlaneseq
  %v7344 = vshrl.u32 %v7343, 7
  %v7345 = vsub.s32 %v7342, %v7344
  %v7346 = vrot.slane %v7318, %v7345
  %v7347 = vcombine.low %v7325, %v7332
  %v7348 = vcombine.low %v7339, %v7346
  %v7350 = vunpack.c.l.s4 1966171168
  %v7351 = vunpack.c.0.s8 %v7350
  %v7352 = vlaneseq
  %v7353 = vshrl.u32 %v7352, 7
  %v7354 = vsub.s32 %v7351, %v7353
  %v7355 = vrot.slane %v7347, %v7354
  %v7357 = vunpack.c.l.s4 1966171168
  %v7358 = vunpack.c.0.s8 %v7357
  %v7359 = vlaneseq
  %v7360 = vshrl.u32 %v7359, 7
  %v7361 = vsub.s32 %v7358, %v7360
  %v7362 = vrot.slane %v7348, %v7361
  %v7363 = vcombine.low %v7355, %v7362
  %v7364 = vcombine.low %v6540, %v6554
  %v7366 = vunpack.c.l.s4 1966171168
  %v7367 = vunpack.c.0.s8 %v7366
  %v7368 = vlaneseq
  %v7369 = vshrl.u32 %v7368, 7
  %v7370 = vsub.s32 %v7367, %v7369
  %v7371 = vrot.slane %v7364, %v7370
  %v7373 = vunpack.c.l.s4 1966171168
  %v7374 = vunpack.c.0.s8 %v7373
  %v7375 = vlaneseq
  %v7376 = vshrl.u32 %v7375, 7
  %v7377 = vsub.s32 %v7374, %v7376
  %v7378 = vrot.slane %v7371, %v7377
  %v7379 = vsel %vm6955, %v7118, 0
  %v7381 = vsel %vm6955, %v7167, 0
  %v7383 = vsel %vm6955, %v7216, 0
  %v7385 = vsel %vm6955, %v7265, 0
  %v7387 = vsel %vm6955, %v7314, 0
  %v7389 = vsel %vm6955, %v7363, 0
  %v7391 = vsel %vm6955, %v7378, 0
  %7393 = vmatprep.subr.mxu0 0.0
  %7394 = vmatpush1.msra.mxu0 %v6637
  %7395 = vmatprep.subr.mxu0 0.0
  %7396 = vmatpush1.msra.mxu0 %v6638
  %7397 = vmatprep.subr.mxu0 0.0
  %7398 = vmatpush1.msra.mxu0 %v6639
  %7399 = vmatprep.subr.mxu0 0.0
  %7400 = vmatpush1.msra.mxu0 %v6640
  %7401 = vmatprep.subr.mxu0 0.0
  %7402 = vmatpush1.msra.mxu0 0.0
  %7403 = vmatprep.subr.mxu0 0.0
  %7404 = vmatpush1.msra.mxu0 0.0
  %7405 = vmatprep.subr.mxu0 0.0
  %7406 = vmatpush1.msra.mxu0 0.0
  %7407 = vmatprep.subr.mxu0 0.0
  %7408 = vmatpush1.msra.mxu0 0.0
  %7409 = vmatprep.subr.mxu0 0.0
  %7410 = vmatpush1.msra.mxu0 0.0
  %7411 = vmatprep.subr.mxu0 0.0
  %7412 = vmatpush1.msra.mxu0 0.0
  %7413 = vmatprep.subr.mxu0 0.0
  %7414 = vmatpush1.msra.mxu0 0.0
  %7415 = vmatprep.subr.mxu0 0.0
  %7416 = vmatpush1.msra.mxu0 0.0
  %7417 = vmatprep.subr.mxu0 0.0
  %7418 = vmatpush1.msra.mxu0 0.0
  %7419 = vmatprep.subr.mxu0 0.0
  %7420 = vmatpush1.msra.mxu0 0.0
  %7421 = vmatprep.subr.mxu0 0.0
  %7422 = vmatpush1.msra.mxu0 0.0
  %7423 = vmatprep.subr.mxu0 0.0
  %7424 = vmatpush1.msra.mxu0 0.0
  %7425 = vmatprep.subr.mxu0 0.0
  %7426 = vmatpush1.msra.mxu0 0.0
  %7427 = vmatprep.subr.mxu0 0.0
  %7428 = vmatpush1.msra.mxu0 0.0
  %7429 = vmatprep.subr.mxu0 0.0
  %7430 = vmatpush1.msra.mxu0 0.0
  %7431 = vmatprep.subr.mxu0 0.0
  %7432 = vmatpush1.msra.mxu0 0.0
  %7433 = vmatprep.subr.mxu0 0.0
  %7434 = vmatpush1.msra.mxu0 0.0
  %7435 = vmatprep.subr.mxu0 0.0
  %7436 = vmatpush1.msra.mxu0 0.0
  %7437 = vmatprep.subr.mxu0 0.0
  %7438 = vmatpush1.msra.mxu0 0.0
  %7439 = vmatprep.subr.mxu0 0.0
  %7440 = vmatpush1.msra.mxu0 0.0
  %7441 = vmatprep.subr.mxu0 0.0
  %7442 = vmatpush1.msra.mxu0 0.0
  %7443 = vmatprep.subr.mxu0 0.0
  %7444 = vmatpush1.msra.mxu0 0.0
  %7445 = vmatprep.subr.mxu0 0.0
  %7446 = vmatpush1.msra.mxu0 0.0
  %7447 = vmatprep.subr.mxu0 0.0
  %7448 = vmatpush1.msra.mxu0 0.0
  %7449 = vmatprep.subr.mxu0 0.0
  %7450 = vmatpush1.msra.mxu0 0.0
  %7451 = vmatprep.subr.mxu0 0.0
  %7452 = vmatpush1.msra.mxu0 0.0
  %7453 = vmatprep.subr.mxu0 0.0
  %7454 = vmatpush1.msra.mxu0 0.0
  %7455 = vmatprep.subr.mxu0 0.0
  %7456 = vmatpush1.msra.mxu0 0.0
  %7457 = vmatprep.mubr.f32.mxu0 0.0
  %7458 = vmatmul.mubr.f32.gmra.mrb[0].mxu0 %v7379
  %v7459 = vpop.f32.mrb[0].mxu0
  %v7460 = vadd.f32 %v7037, %v7459
  %v7461 = vpop.f32.mrb[0].mxu0
  %7462 = vmatprep.mubr.f32.mxu0 0.0
  %7463 = vmatmul.mubr.f32.gmra.mrb[0].mxu0 %v7381
  %v7464 = vpop.f32.mrb[0].mxu0
  %v7465 = vadd.f32 %v7042, %v7464
  %v7466 = vpop.f32.mrb[0].mxu0
  %7467 = vmatprep.mubr.f32.mxu0 0.0
  %7468 = vmatmul.mubr.f32.gmra.mrb[0].mxu0 %v7383
  %v7469 = vpop.f32.mrb[0].mxu0
  %v7470 = vadd.f32 %v7047, %v7469
  %v7471 = vpop.f32.mrb[0].mxu0
  %7472 = vmatprep.mubr.f32.mxu0 0.0
  %7473 = vmatmul.mubr.f32.gmra.mrb[0].mxu0 %v7385
  %v7474 = vpop.f32.mrb[0].mxu0
  %v7475 = vadd.f32 %v7052, %v7474
  %v7476 = vpop.f32.mrb[0].mxu0
  %7477 = vmatprep.mubr.f32.mxu0 0.0
  %7478 = vmatmul.mubr.f32.gmra.mrb[0].mxu0 %v7387
  %v7479 = vpop.f32.mrb[0].mxu0
  %v7480 = vadd.f32 %v7057, %v7479
  %v7481 = vpop.f32.mrb[0].mxu0
  %7482 = vmatprep.mubr.f32.mxu0 0.0
  %7483 = vmatmul.mubr.f32.gmra.mrb[0].mxu0 %v7389
  %v7484 = vpop.f32.mrb[0].mxu0
  %v7485 = vadd.f32 %v7062, %v7484
  %v7486 = vpop.f32.mrb[0].mxu0
  %7487 = vmatprep.mubr.f32.mxu0 0.0
  %7488 = vmatmul.mubr.f32.gmra.mrb[0].mxu0 %v7391
  %v7489 = vpop.f32.mrb[0].mxu0
  %v7490 = vadd.f32 %v7067, %v7489
  %v7491 = vpop.f32.mrb[0].mxu0
  %7492 = vdwg.mxu0
  %s7493 = scalar_lea.vmem %s5, 64
  %v7494 = vld [vmem:[%s7493] sm:$0xff]
  %v7495 = vld [vmem:[%s7493 + $0x8] sm:$0xff]
  %v7496 = vld [vmem:[%s7493 + $0x10] sm:$0xff]
  %v7497 = vld [vmem:[%s7493 + $0x18] sm:$0xff]
  %v7498 = vcombine.low %v6057, %v6071
  %v7499 = vcombine.low %v6073, %v6113
  %v7501 = vunpack.c.l.s4 1966171168
  %v7502 = vunpack.c.0.s8 %v7501
  %v7503 = vlaneseq
  %v7504 = vshrl.u32 %v7503, 7
  %v7505 = vsub.s32 %v7502, %v7504
  %v7506 = vrot.slane %v7498, %v7505
  %v7508 = vunpack.c.l.s4 1966171168
  %v7509 = vunpack.c.0.s8 %v7508
  %v7510 = vlaneseq
  %v7511 = vshrl.u32 %v7510, 7
  %v7512 = vsub.s32 %v7509, %v7511
  %v7513 = vrot.slane %v7499, %v7512
  %v7514 = vcombine.low %v7087, %v7506
  %v7515 = vcombine.low %v7513, %v7129
  %v7517 = vunpack.c.l.s4 1966171168
  %v7518 = vunpack.c.0.s8 %v7517
  %v7519 = vlaneseq
  %v7520 = vshrl.u32 %v7519, 7
  %v7521 = vsub.s32 %v7518, %v7520
  %v7522 = vrot.slane %v7514, %v7521
  %v7524 = vunpack.c.l.s4 1966171168
  %v7525 = vunpack.c.0.s8 %v7524
  %v7526 = vlaneseq
  %v7527 = vshrl.u32 %v7526, 7
  %v7528 = vsub.s32 %v7525, %v7527
  %v7529 = vrot.slane %v7515, %v7528
  %v7530 = vcombine.low %v7522, %v7529
  %v7531 = vcombine.low %v6106, %v6120
  %v7532 = vcombine.low %v6170, %v6172
  %v7533 = vcombine.low %v6155, %v6173
  %v7535 = vunpack.c.l.s4 1966171168
  %v7536 = vunpack.c.0.s8 %v7535
  %v7537 = vlaneseq
  %v7538 = vshrl.u32 %v7537, 7
  %v7539 = vsub.s32 %v7536, %v7538
  %v7540 = vrot.slane %v7531, %v7539
  %v7542 = vunpack.c.l.s4 1966171168
  %v7543 = vunpack.c.0.s8 %v7542
  %v7544 = vlaneseq
  %v7545 = vshrl.u32 %v7544, 7
  %v7546 = vsub.s32 %v7543, %v7545
  %v7547 = vrot.slane %v7532, %v7546
  %v7549 = vunpack.c.l.s4 1966171168
  %v7550 = vunpack.c.0.s8 %v7549
  %v7551 = vlaneseq
  %v7552 = vshrl.u32 %v7551, 7
  %v7553 = vsub.s32 %v7550, %v7552
  %v7554 = vrot.slane %v7533, %v7553
  %v7555 = vcombine.low %v7540, %v7143
  %v7556 = vcombine.low %v7547, %v7554
  %v7558 = vunpack.c.l.s4 1966171168
  %v7559 = vunpack.c.0.s8 %v7558
  %v7560 = vlaneseq
  %v7561 = vshrl.u32 %v7560, 7
  %v7562 = vsub.s32 %v7559, %v7561
  %v7563 = vrot.slane %v7555, %v7562
  %v7565 = vunpack.c.l.s4 1966171168
  %v7566 = vunpack.c.0.s8 %v7565
  %v7567 = vlaneseq
  %v7568 = vshrl.u32 %v7567, 7
  %v7569 = vsub.s32 %v7566, %v7568
  %v7570 = vrot.slane %v7556, %v7569
  %v7571 = vcombine.low %v7563, %v7570
  %v7572 = vcombine.low %v6219, %v6221
  %v7573 = vcombine.low %v6246, %v6260
  %v7575 = vunpack.c.l.s4 1966171168
  %v7576 = vunpack.c.0.s8 %v7575
  %v7577 = vlaneseq
  %v7578 = vshrl.u32 %v7577, 7
  %v7579 = vsub.s32 %v7576, %v7578
  %v7580 = vrot.slane %v7572, %v7579
  %v7582 = vunpack.c.l.s4 1966171168
  %v7583 = vunpack.c.0.s8 %v7582
  %v7584 = vlaneseq
  %v7585 = vshrl.u32 %v7584, 7
  %v7586 = vsub.s32 %v7583, %v7585
  %v7587 = vrot.slane %v7573, %v7586
  %v7588 = vcombine.low %v7185, %v7580
  %v7589 = vcombine.low %v7199, %v7587
  %v7591 = vunpack.c.l.s4 1966171168
  %v7592 = vunpack.c.0.s8 %v7591
  %v7593 = vlaneseq
  %v7594 = vshrl.u32 %v7593, 7
  %v7595 = vsub.s32 %v7592, %v7594
  %v7596 = vrot.slane %v7588, %v7595
  %v7598 = vunpack.c.l.s4 1966171168
  %v7599 = vunpack.c.0.s8 %v7598
  %v7600 = vlaneseq
  %v7601 = vshrl.u32 %v7600, 7
  %v7602 = vsub.s32 %v7599, %v7601
  %v7603 = vrot.slane %v7589, %v7602
  %v7604 = vcombine.low %v7596, %v7603
  %v7605 = vcombine.low %v6268, %v6368
  %v7606 = vcombine.low %v6367, %v6369
  %v7608 = vunpack.c.l.s4 1966171168
  %v7609 = vunpack.c.0.s8 %v7608
  %v7610 = vlaneseq
  %v7611 = vshrl.u32 %v7610, 7
  %v7612 = vsub.s32 %v7609, %v7611
  %v7613 = vrot.slane %v7605, %v7612
  %v7615 = vunpack.c.l.s4 1966171168
  %v7616 = vunpack.c.0.s8 %v7615
  %v7617 = vlaneseq
  %v7618 = vshrl.u32 %v7617, 7
  %v7619 = vsub.s32 %v7616, %v7618
  %v7620 = vrot.slane %v7606, %v7619
  %v7621 = vcombine.low %v7613, %v7241
  %v7622 = vcombine.low %v7620, %v7276
  %v7624 = vunpack.c.l.s4 1966171168
  %v7625 = vunpack.c.0.s8 %v7624
  %v7626 = vlaneseq
  %v7627 = vshrl.u32 %v7626, 7
  %v7628 = vsub.s32 %v7625, %v7627
  %v7629 = vrot.slane %v7621, %v7628
  %v7631 = vunpack.c.l.s4 1966171168
  %v7632 = vunpack.c.0.s8 %v7631
  %v7633 = vlaneseq
  %v7634 = vshrl.u32 %v7633, 7
  %v7635 = vsub.s32 %v7632, %v7634
  %v7636 = vrot.slane %v7622, %v7635
  %v7637 = vcombine.low %v7629, %v7636
  %v7638 = vcombine.low %v6400, %v6414
  %v7639 = vcombine.low %v6416, %v6456
  %v7640 = vcombine.low %v6449, %v6463
  %v7642 = vunpack.c.l.s4 1966171168
  %v7643 = vunpack.c.0.s8 %v7642
  %v7644 = vlaneseq
  %v7645 = vshrl.u32 %v7644, 7
  %v7646 = vsub.s32 %v7643, %v7645
  %v7647 = vrot.slane %v7638, %v7646
  %v7649 = vunpack.c.l.s4 1966171168
  %v7650 = vunpack.c.0.s8 %v7649
  %v7651 = vlaneseq
  %v7652 = vshrl.u32 %v7651, 7
  %v7653 = vsub.s32 %v7650, %v7652
  %v7654 = vrot.slane %v7639, %v7653
  %v7656 = vunpack.c.l.s4 1966171168
  %v7657 = vunpack.c.0.s8 %v7656
  %v7658 = vlaneseq
  %v7659 = vshrl.u32 %v7658, 7
  %v7660 = vsub.s32 %v7657, %v7659
  %v7661 = vrot.slane %v7640, %v7660
  %v7662 = vcombine.low %v7647, %v7654
  %v7663 = vcombine.low %v7297, %v7661
  %v7665 = vunpack.c.l.s4 1966171168
  %v7666 = vunpack.c.0.s8 %v7665
  %v7667 = vlaneseq
  %v7668 = vshrl.u32 %v7667, 7
  %v7669 = vsub.s32 %v7666, %v7668
  %v7670 = vrot.slane %v7662, %v7669
  %v7672 = vunpack.c.l.s4 1966171168
  %v7673 = vunpack.c.0.s8 %v7672
  %v7674 = vlaneseq
  %v7675 = vshrl.u32 %v7674, 7
  %v7676 = vsub.s32 %v7673, %v7675
  %v7677 = vrot.slane %v7663, %v7676
  %v7678 = vcombine.low %v7670, %v7677
  %v7679 = vcombine.low %v6513, %v6515
  %v7680 = vcombine.low %v6498, %v6516
  %v7682 = vunpack.c.l.s4 1966171168
  %v7683 = vunpack.c.0.s8 %v7682
  %v7684 = vlaneseq
  %v7685 = vshrl.u32 %v7684, 7
  %v7686 = vsub.s32 %v7683, %v7685
  %v7687 = vrot.slane %v7679, %v7686
  %v7689 = vunpack.c.l.s4 1966171168
  %v7690 = vunpack.c.0.s8 %v7689
  %v7691 = vlaneseq
  %v7692 = vshrl.u32 %v7691, 7
  %v7693 = vsub.s32 %v7690, %v7692
  %v7694 = vrot.slane %v7680, %v7693
  %v7695 = vcombine.low %v7332, %v7687
  %v7696 = vcombine.low %v7694, %v7371
  %v7698 = vunpack.c.l.s4 1966171168
  %v7699 = vunpack.c.0.s8 %v7698
  %v7700 = vlaneseq
  %v7701 = vshrl.u32 %v7700, 7
  %v7702 = vsub.s32 %v7699, %v7701
  %v7703 = vrot.slane %v7695, %v7702
  %v7705 = vunpack.c.l.s4 1966171168
  %v7706 = vunpack.c.0.s8 %v7705
  %v7707 = vlaneseq
  %v7708 = vshrl.u32 %v7707, 7
  %v7709 = vsub.s32 %v7706, %v7708
  %v7710 = vrot.slane %v7696, %v7709
  %v7711 = vcombine.low %v7703, %v7710
  %v7712 = vcombine.low %v6562, %v6564
  %v7714 = vunpack.c.l.s4 1966171168
  %v7715 = vunpack.c.0.s8 %v7714
  %v7716 = vlaneseq
  %v7717 = vshrl.u32 %v7716, 7
  %v7718 = vsub.s32 %v7715, %v7717
  %v7719 = vrot.slane %v7712, %v7718
  %v7721 = vunpack.c.l.s4 1966171168
  %v7722 = vunpack.c.0.s8 %v7721
  %v7723 = vlaneseq
  %v7724 = vshrl.u32 %v7723, 7
  %v7725 = vsub.s32 %v7722, %v7724
  %v7726 = vrot.slane %v7719, %v7725
  %v7727 = vsel %vm6955, %v7530, 0
  %v7729 = vsel %vm6955, %v7571, 0
  %v7731 = vsel %vm6955, %v7604, 0
  %v7733 = vsel %vm6955, %v7637, 0
  %v7735 = vsel %vm6955, %v7678, 0
  %v7737 = vsel %vm6955, %v7711, 0
  %v7739 = vsel %vm6955, %v7726, 0
  %7741 = vmatprep.subr.mxu0 0.0
  %7742 = vmatpush1.msra.mxu0 %v7494
  %7743 = vmatprep.subr.mxu0 0.0
  %7744 = vmatpush1.msra.mxu0 %v7495
  %7745 = vmatprep.subr.mxu0 0.0
  %7746 = vmatpush1.msra.mxu0 %v7496
  %7747 = vmatprep.subr.mxu0 0.0
  %7748 = vmatpush1.msra.mxu0 %v7497
  %7749 = vmatprep.subr.mxu0 0.0
  %7750 = vmatpush1.msra.mxu0 0.0
  %7751 = vmatprep.subr.mxu0 0.0
  %7752 = vmatpush1.msra.mxu0 0.0
  %7753 = vmatprep.subr.mxu0 0.0
  %7754 = vmatpush1.msra.mxu0 0.0
  %7755 = vmatprep.subr.mxu0 0.0
  %7756 = vmatpush1.msra.mxu0 0.0
  %7757 = vmatprep.subr.mxu0 0.0
  %7758 = vmatpush1.msra.mxu0 0.0
  %7759 = vmatprep.subr.mxu0 0.0
  %7760 = vmatpush1.msra.mxu0 0.0
  %7761 = vmatprep.subr.mxu0 0.0
  %7762 = vmatpush1.msra.mxu0 0.0
  %7763 = vmatprep.subr.mxu0 0.0
  %7764 = vmatpush1.msra.mxu0 0.0
  %7765 = vmatprep.subr.mxu0 0.0
  %7766 = vmatpush1.msra.mxu0 0.0
  %7767 = vmatprep.subr.mxu0 0.0
  %7768 = vmatpush1.msra.mxu0 0.0
  %7769 = vmatprep.subr.mxu0 0.0
  %7770 = vmatpush1.msra.mxu0 0.0
  %7771 = vmatprep.subr.mxu0 0.0
  %7772 = vmatpush1.msra.mxu0 0.0
  %7773 = vmatprep.subr.mxu0 0.0
  %7774 = vmatpush1.msra.mxu0 0.0
  %7775 = vmatprep.subr.mxu0 0.0
  %7776 = vmatpush1.msra.mxu0 0.0
  %7777 = vmatprep.subr.mxu0 0.0
  %7778 = vmatpush1.msra.mxu0 0.0
  %7779 = vmatprep.subr.mxu0 0.0
  %7780 = vmatpush1.msra.mxu0 0.0
  %7781 = vmatprep.subr.mxu0 0.0
  %7782 = vmatpush1.msra.mxu0 0.0
  %7783 = vmatprep.subr.mxu0 0.0
  %7784 = vmatpush1.msra.mxu0 0.0
  %7785 = vmatprep.subr.mxu0 0.0
  %7786 = vmatpush1.msra.mxu0 0.0
  %7787 = vmatprep.subr.mxu0 0.0
  %7788 = vmatpush1.msra.mxu0 0.0
  %7789 = vmatprep.subr.mxu0 0.0
  %7790 = vmatpush1.msra.mxu0 0.0
  %7791 = vmatprep.subr.mxu0 0.0
  %7792 = vmatpush1.msra.mxu0 0.0
  %7793 = vmatprep.subr.mxu0 0.0
  %7794 = vmatpush1.msra.mxu0 0.0
  %7795 = vmatprep.subr.mxu0 0.0
  %7796 = vmatpush1.msra.mxu0 0.0
  %7797 = vmatprep.subr.mxu0 0.0
  %7798 = vmatpush1.msra.mxu0 0.0
  %7799 = vmatprep.subr.mxu0 0.0
  %7800 = vmatpush1.msra.mxu0 0.0
  %7801 = vmatprep.subr.mxu0 0.0
  %7802 = vmatpush1.msra.mxu0 0.0
  %7803 = vmatprep.subr.mxu0 0.0
  %7804 = vmatpush1.msra.mxu0 0.0
  %7805 = vmatprep.mubr.f32.mxu0 0.0
  %7806 = vmatmul.mubr.f32.gmra.mrb[0].mxu0 %v7727
  %v7807 = vpop.f32.mrb[0].mxu0
  %v7808 = vadd.f32 0.0, %v7807
  %v7809 = vpop.f32.mrb[0].mxu0
  %7810 = vmatprep.mubr.f32.mxu0 0.0
  %7811 = vmatmul.mubr.f32.gmra.mrb[0].mxu0 %v7729
  %v7812 = vpop.f32.mrb[0].mxu0
  %v7813 = vadd.f32 0.0, %v7812
  %v7814 = vpop.f32.mrb[0].mxu0
  %7815 = vmatprep.mubr.f32.mxu0 0.0
  %7816 = vmatmul.mubr.f32.gmra.mrb[0].mxu0 %v7731
  %v7817 = vpop.f32.mrb[0].mxu0
  %v7818 = vadd.f32 0.0, %v7817
  %v7819 = vpop.f32.mrb[0].mxu0
  %7820 = vmatprep.mubr.f32.mxu0 0.0
  %7821 = vmatmul.mubr.f32.gmra.mrb[0].mxu0 %v7733
  %v7822 = vpop.f32.mrb[0].mxu0
  %v7823 = vadd.f32 0.0, %v7822
  %v7824 = vpop.f32.mrb[0].mxu0
  %7825 = vmatprep.mubr.f32.mxu0 0.0
  %7826 = vmatmul.mubr.f32.gmra.mrb[0].mxu0 %v7735
  %v7827 = vpop.f32.mrb[0].mxu0
  %v7828 = vadd.f32 0.0, %v7827
  %v7829 = vpop.f32.mrb[0].mxu0
  %7830 = vmatprep.mubr.f32.mxu0 0.0
  %7831 = vmatmul.mubr.f32.gmra.mrb[0].mxu0 %v7737
  %v7832 = vpop.f32.mrb[0].mxu0
  %v7833 = vadd.f32 0.0, %v7832
  %v7834 = vpop.f32.mrb[0].mxu0
  %7835 = vmatprep.mubr.f32.mxu0 0.0
  %7836 = vmatmul.mubr.f32.gmra.mrb[0].mxu0 %v7739
  %v7837 = vpop.f32.mrb[0].mxu0
  %v7838 = vadd.f32 0.0, %v7837
  %v7839 = vpop.f32.mrb[0].mxu0
  %7840 = vdwg.mxu0
  %v7841 = vadd.f32 %v7460, %v7808
  %v7842 = vadd.f32 %v7465, %v7813
  %v7843 = vadd.f32 %v7470, %v7818
  %v7844 = vadd.f32 %v7475, %v7823
  %v7845 = vadd.f32 %v7480, %v7828
  %v7846 = vadd.f32 %v7485, %v7833
  %v7847 = vadd.f32 %v7490, %v7838
  %s7848 = scalar_lea.vmem %s5, 96
  %v7849 = vld [vmem:[%s7848] sm:$0xff]
  %v7850 = vld [vmem:[%s7848 + $0x8] sm:$0xff]
  %v7851 = vld [vmem:[%s7848 + $0x10] sm:$0xff]
  %v7852 = vld [vmem:[%s7848 + $0x18] sm:$0xff]
  %v7853 = vcombine.low %v6075, %v6099
  %v7854 = vcombine.low %v6123, %v6122
  %v7856 = vunpack.c.l.s4 1966171168
  %v7857 = vunpack.c.0.s8 %v7856
  %v7858 = vlaneseq
  %v7859 = vshrl.u32 %v7858, 7
  %v7860 = vsub.s32 %v7857, %v7859
  %v7861 = vrot.slane %v7853, %v7860
  %v7863 = vunpack.c.l.s4 1966171168
  %v7864 = vunpack.c.0.s8 %v7863
  %v7865 = vlaneseq
  %v7866 = vshrl.u32 %v7865, 7
  %v7867 = vsub.s32 %v7864, %v7866
  %v7868 = vrot.slane %v7854, %v7867
  %v7869 = vcombine.low %v7861, %v6677
  %v7870 = vcombine.low %v7868, %v6712
  %v7872 = vunpack.c.l.s4 1966171168
  %v7873 = vunpack.c.0.s8 %v7872
  %v7874 = vlaneseq
  %v7875 = vshrl.u32 %v7874, 7
  %v7876 = vsub.s32 %v7873, %v7875
  %v7877 = vrot.slane %v7869, %v7876
  %v7879 = vunpack.c.l.s4 1966171168
  %v7880 = vunpack.c.0.s8 %v7879
  %v7881 = vlaneseq
  %v7882 = vshrl.u32 %v7881, 7
  %v7883 = vsub.s32 %v7880, %v7882
  %v7884 = vrot.slane %v7870, %v7883
  %v7885 = vcombine.low %v7877, %v7884
  %v7886 = vcombine.low %v6169, %v6171
  %v7887 = vcombine.low %v6211, %v6204
  %v7889 = vunpack.c.l.s4 1966171168
  %v7890 = vunpack.c.0.s8 %v7889
  %v7891 = vlaneseq
  %v7892 = vshrl.u32 %v7891, 7
  %v7893 = vsub.s32 %v7890, %v7892
  %v7894 = vrot.slane %v7886, %v7893
  %v7896 = vunpack.c.l.s4 1966171168
  %v7897 = vunpack.c.0.s8 %v7896
  %v7898 = vlaneseq
  %v7899 = vshrl.u32 %v7898, 7
  %v7900 = vsub.s32 %v7897, %v7899
  %v7901 = vrot.slane %v7887, %v7900
  %v7902 = vcombine.low %v6719, %v7894
  %v7903 = vcombine.low %v6754, %v7901
  %v7905 = vunpack.c.l.s4 1966171168
  %v7906 = vunpack.c.0.s8 %v7905
  %v7907 = vlaneseq
  %v7908 = vshrl.u32 %v7907, 7
  %v7909 = vsub.s32 %v7906, %v7908
  %v7910 = vrot.slane %v7902, %v7909
  %v7912 = vunpack.c.l.s4 1966171168
  %v7913 = vunpack.c.0.s8 %v7912
  %v7914 = vlaneseq
  %v7915 = vshrl.u32 %v7914, 7
  %v7916 = vsub.s32 %v7913, %v7915
  %v7917 = vrot.slane %v7903, %v7916
  %v7918 = vcombine.low %v7910, %v7917
  %v7919 = vcombine.low %v6270, %v6253
  %v7920 = vcombine.low %v6267, %v6269
  %v7922 = vunpack.c.l.s4 1966171168
  %v7923 = vunpack.c.0.s8 %v7922
  %v7924 = vlaneseq
  %v7925 = vshrl.u32 %v7924, 7
  %v7926 = vsub.s32 %v7923, %v7925
  %v7927 = vrot.slane %v7919, %v7926
  %v7929 = vunpack.c.l.s4 1966171168
  %v7930 = vunpack.c.0.s8 %v7929
  %v7931 = vlaneseq
  %v7932 = vshrl.u32 %v7931, 7
  %v7933 = vsub.s32 %v7930, %v7932
  %v7934 = vrot.slane %v7920, %v7933
  %v7935 = vcombine.low %v7927, %v7934
  %v7937 = vunpack.c.l.s4 1966171168
  %v7938 = vunpack.c.0.s8 %v7937
  %v7939 = vlaneseq
  %v7940 = vshrl.u32 %v7939, 7
  %v7941 = vsub.s32 %v7938, %v7940
  %v7942 = vrot.slane %v7935, %v7941
  %v7943 = vcombine.low %v6791, %v7942
  %v7944 = vcombine.low %v6271, %v6393
  %v7945 = vcombine.low %v6418, %v6442
  %v7947 = vunpack.c.l.s4 1966171168
  %v7948 = vunpack.c.0.s8 %v7947
  %v7949 = vlaneseq
  %v7950 = vshrl.u32 %v7949, 7
  %v7951 = vsub.s32 %v7948, %v7950
  %v7952 = vrot.slane %v7944, %v7951
  %v7954 = vunpack.c.l.s4 1966171168
  %v7955 = vunpack.c.0.s8 %v7954
  %v7956 = vlaneseq
  %v7957 = vshrl.u32 %v7956, 7
  %v7958 = vsub.s32 %v7955, %v7957
  %v7959 = vrot.slane %v7945, %v7958
  %v7960 = vcombine.low %v7952, %v6824
  %v7961 = vcombine.low %v6852, %v7959
  %v7963 = vunpack.c.l.s4 1966171168
  %v7964 = vunpack.c.0.s8 %v7963
  %v7965 = vlaneseq
  %v7966 = vshrl.u32 %v7965, 7
  %v7967 = vsub.s32 %v7964, %v7966
  %v7968 = vrot.slane %v7960, %v7967
  %v7970 = vunpack.c.l.s4 1966171168
  %v7971 = vunpack.c.0.s8 %v7970
  %v7972 = vlaneseq
  %v7973 = vshrl.u32 %v7972, 7
  %v7974 = vsub.s32 %v7971, %v7973
  %v7975 = vrot.slane %v7961, %v7974
  %v7976 = vcombine.low %v7968, %v7975
  %v7977 = vcombine.low %v6466, %v6465
  %v7979 = vunpack.c.l.s4 1966171168
  %v7980 = vunpack.c.0.s8 %v7979
  %v7981 = vlaneseq
  %v7982 = vshrl.u32 %v7981, 7
  %v7983 = vsub.s32 %v7980, %v7982
  %v7984 = vrot.slane %v7977, %v7983
  %v7985 = vcombine.low %v6866, %v7984
  %v7987 = vunpack.c.l.s4 1966171168
  %v7988 = vunpack.c.0.s8 %v7987
  %v7989 = vlaneseq
  %v7990 = vshrl.u32 %v7989, 7
  %v7991 = vsub.s32 %v7988, %v7990
  %v7992 = vrot.slane %v7985, %v7991
  %v7993 = vcombine.low %v7992, %v6931
  %v7994 = vcombine.low %v6512, %v6514
  %v7995 = vcombine.low %v6554, %v6547
  %v7996 = vcombine.low %v6561, %v6563
  %v7998 = vunpack.c.l.s4 1966171168
  %v7999 = vunpack.c.0.s8 %v7998
  %v8000 = vlaneseq
  %v8001 = vshrl.u32 %v8000, 7
  %v8002 = vsub.s32 %v7999, %v8001
  %v8003 = vrot.slane %v7994, %v8002
  %v8005 = vunpack.c.l.s4 1966171168
  %v8006 = vunpack.c.0.s8 %v8005
  %v8007 = vlaneseq
  %v8008 = vshrl.u32 %v8007, 7
  %v8009 = vsub.s32 %v8006, %v8008
  %v8010 = vrot.slane %v7995, %v8009
  %v8012 = vunpack.c.l.s4 1966171168
  %v8013 = vunpack.c.0.s8 %v8012
  %v8014 = vlaneseq
  %v8015 = vshrl.u32 %v8014, 7
  %v8016 = vsub.s32 %v8013, %v8015
  %v8017 = vrot.slane %v7996, %v8016
  %v8018 = vcombine.low %v8003, %v6922
  %v8019 = vcombine.low %v8010, %v8017
  %v8021 = vunpack.c.l.s4 1966171168
  %v8022 = vunpack.c.0.s8 %v8021
  %v8023 = vlaneseq
  %v8024 = vshrl.u32 %v8023, 7
  %v8025 = vsub.s32 %v8022, %v8024
  %v8026 = vrot.slane %v8018, %v8025
  %v8028 = vunpack.c.l.s4 1966171168
  %v8029 = vunpack.c.0.s8 %v8028
  %v8030 = vlaneseq
  %v8031 = vshrl.u32 %v8030, 7
  %v8032 = vsub.s32 %v8029, %v8031
  %v8033 = vrot.slane %v8019, %v8032
  %v8034 = vcombine.low %v8026, %v8033
  %v8035 = vcombine.low %v6565, %v6589
  %v8037 = vunpack.c.l.s4 1966171168
  %v8038 = vunpack.c.0.s8 %v8037
  %v8039 = vlaneseq
  %v8040 = vshrl.u32 %v8039, 7
  %v8041 = vsub.s32 %v8038, %v8040
  %v8042 = vrot.slane %v8035, %v8041
  %v8044 = vunpack.c.l.s4 1966171168
  %v8045 = vunpack.c.0.s8 %v8044
  %v8046 = vlaneseq
  %v8047 = vshrl.u32 %v8046, 7
  %v8048 = vsub.s32 %v8045, %v8047
  %v8049 = vrot.slane %v8042, %v8048
  %v8050 = vsel %vm6955, %v7885, 0
  %v8052 = vsel %vm6955, %v7918, 0
  %v8054 = vsel %vm6955, %v7943, 0
  %v8056 = vsel %vm6955, %v7976, 0
  %v8058 = vsel %vm6955, %v7993, 0
  %v8060 = vsel %vm6955, %v8034, 0
  %v8062 = vsel %vm6955, %v8049, 0
  %8064 = vmatprep.subr.mxu0 0.0
  %8065 = vmatpush1.msra.mxu0 %v7849
  %8066 = vmatprep.subr.mxu0 0.0
  %8067 = vmatpush1.msra.mxu0 %v7850
  %8068 = vmatprep.subr.mxu0 0.0
  %8069 = vmatpush1.msra.mxu0 %v7851
  %8070 = vmatprep.subr.mxu0 0.0
  %8071 = vmatpush1.msra.mxu0 %v7852
  %8072 = vmatprep.subr.mxu0 0.0
  %8073 = vmatpush1.msra.mxu0 0.0
  %8074 = vmatprep.subr.mxu0 0.0
  %8075 = vmatpush1.msra.mxu0 0.0
  %8076 = vmatprep.subr.mxu0 0.0
  %8077 = vmatpush1.msra.mxu0 0.0
  %8078 = vmatprep.subr.mxu0 0.0
  %8079 = vmatpush1.msra.mxu0 0.0
  %8080 = vmatprep.subr.mxu0 0.0
  %8081 = vmatpush1.msra.mxu0 0.0
  %8082 = vmatprep.subr.mxu0 0.0
  %8083 = vmatpush1.msra.mxu0 0.0
  %8084 = vmatprep.subr.mxu0 0.0
  %8085 = vmatpush1.msra.mxu0 0.0
  %8086 = vmatprep.subr.mxu0 0.0
  %8087 = vmatpush1.msra.mxu0 0.0
  %8088 = vmatprep.subr.mxu0 0.0
  %8089 = vmatpush1.msra.mxu0 0.0
  %8090 = vmatprep.subr.mxu0 0.0
  %8091 = vmatpush1.msra.mxu0 0.0
  %8092 = vmatprep.subr.mxu0 0.0
  %8093 = vmatpush1.msra.mxu0 0.0
  %8094 = vmatprep.subr.mxu0 0.0
  %8095 = vmatpush1.msra.mxu0 0.0
  %8096 = vmatprep.subr.mxu0 0.0
  %8097 = vmatpush1.msra.mxu0 0.0
  %8098 = vmatprep.subr.mxu0 0.0
  %8099 = vmatpush1.msra.mxu0 0.0
  %8100 = vmatprep.subr.mxu0 0.0
  %8101 = vmatpush1.msra.mxu0 0.0
  %8102 = vmatprep.subr.mxu0 0.0
  %8103 = vmatpush1.msra.mxu0 0.0
  %8104 = vmatprep.subr.mxu0 0.0
  %8105 = vmatpush1.msra.mxu0 0.0
  %8106 = vmatprep.subr.mxu0 0.0
  %8107 = vmatpush1.msra.mxu0 0.0
  %8108 = vmatprep.subr.mxu0 0.0
  %8109 = vmatpush1.msra.mxu0 0.0
  %8110 = vmatprep.subr.mxu0 0.0
  %8111 = vmatpush1.msra.mxu0 0.0
  %8112 = vmatprep.subr.mxu0 0.0
  %8113 = vmatpush1.msra.mxu0 0.0
  %8114 = vmatprep.subr.mxu0 0.0
  %8115 = vmatpush1.msra.mxu0 0.0
  %8116 = vmatprep.subr.mxu0 0.0
  %8117 = vmatpush1.msra.mxu0 0.0
  %8118 = vmatprep.subr.mxu0 0.0
  %8119 = vmatpush1.msra.mxu0 0.0
  %8120 = vmatprep.subr.mxu0 0.0
  %8121 = vmatpush1.msra.mxu0 0.0
  %8122 = vmatprep.subr.mxu0 0.0
  %8123 = vmatpush1.msra.mxu0 0.0
  %8124 = vmatprep.subr.mxu0 0.0
  %8125 = vmatpush1.msra.mxu0 0.0
  %8126 = vmatprep.subr.mxu0 0.0
  %8127 = vmatpush1.msra.mxu0 0.0
  %8128 = vmatprep.mubr.f32.mxu0 0.0
  %8129 = vmatmul.mubr.f32.gmra.mrb[0].mxu0 %v8050
  %v8130 = vpop.f32.mrb[0].mxu0
  %v8131 = vadd.f32 0.0, %v8130
  %v8132 = vpop.f32.mrb[0].mxu0
  %8133 = vmatprep.mubr.f32.mxu0 0.0
  %8134 = vmatmul.mubr.f32.gmra.mrb[0].mxu0 %v8052
  %v8135 = vpop.f32.mrb[0].mxu0
  %v8136 = vadd.f32 0.0, %v8135
  %v8137 = vpop.f32.mrb[0].mxu0
  %8138 = vmatprep.mubr.f32.mxu0 0.0
  %8139 = vmatmul.mubr.f32.gmra.mrb[0].mxu0 %v8054
  %v8140 = vpop.f32.mrb[0].mxu0
  %v8141 = vadd.f32 0.0, %v8140
  %v8142 = vpop.f32.mrb[0].mxu0
  %8143 = vmatprep.mubr.f32.mxu0 0.0
  %8144 = vmatmul.mubr.f32.gmra.mrb[0].mxu0 %v8056
  %v8145 = vpop.f32.mrb[0].mxu0
  %v8146 = vadd.f32 0.0, %v8145
  %v8147 = vpop.f32.mrb[0].mxu0
  %8148 = vmatprep.mubr.f32.mxu0 0.0
  %8149 = vmatmul.mubr.f32.gmra.mrb[0].mxu0 %v8058
  %v8150 = vpop.f32.mrb[0].mxu0
  %v8151 = vadd.f32 0.0, %v8150
  %v8152 = vpop.f32.mrb[0].mxu0
  %8153 = vmatprep.mubr.f32.mxu0 0.0
  %8154 = vmatmul.mubr.f32.gmra.mrb[0].mxu0 %v8060
  %v8155 = vpop.f32.mrb[0].mxu0
  %v8156 = vadd.f32 0.0, %v8155
  %v8157 = vpop.f32.mrb[0].mxu0
  %8158 = vmatprep.mubr.f32.mxu0 0.0
  %8159 = vmatmul.mubr.f32.gmra.mrb[0].mxu0 %v8062
  %v8160 = vpop.f32.mrb[0].mxu0
  %v8161 = vadd.f32 0.0, %v8160
  %v8162 = vpop.f32.mrb[0].mxu0
  %8163 = vdwg.mxu0
  %v8164 = vadd.f32 %v7841, %v8131
  %v8165 = vadd.f32 %v7842, %v8136
  %v8166 = vadd.f32 %v7843, %v8141
  %v8167 = vadd.f32 %v7844, %v8146
  %v8168 = vadd.f32 %v7845, %v8151
  %v8169 = vadd.f32 %v7846, %v8156
  %v8170 = vadd.f32 %v7847, %v8161
  %s8171 = scalar_lea.vmem %s5, 128
  %v8172 = vld [vmem:[%s8171] sm:$0xff]
  %v8173 = vld [vmem:[%s8171 + $0x8] sm:$0xff]
  %v8174 = vld [vmem:[%s8171 + $0x10] sm:$0xff]
  %v8175 = vld [vmem:[%s8171 + $0x18] sm:$0xff]
  %v8176 = vcombine.low %v6106, %v6124
  %v8178 = vunpack.c.l.s4 1966171168
  %v8179 = vunpack.c.0.s8 %v8178
  %v8180 = vlaneseq
  %v8181 = vshrl.u32 %v8180, 7
  %v8182 = vsub.s32 %v8179, %v8181
  %v8183 = vrot.slane %v8176, %v8182
  %v8184 = vcombine.low %v7101, %v7129
  %v8185 = vcombine.low %v8183, %v7143
  %v8187 = vunpack.c.l.s4 1966171168
  %v8188 = vunpack.c.0.s8 %v8187
  %v8189 = vlaneseq
  %v8190 = vshrl.u32 %v8189, 7
  %v8191 = vsub.s32 %v8188, %v8190
  %v8192 = vrot.slane %v8184, %v8191
  %v8194 = vunpack.c.l.s4 1966171168
  %v8195 = vunpack.c.0.s8 %v8194
  %v8196 = vlaneseq
  %v8197 = vshrl.u32 %v8196, 7
  %v8198 = vsub.s32 %v8195, %v8197
  %v8199 = vrot.slane %v8185, %v8198
  %v8200 = vcombine.low %v8192, %v8199
  %v8201 = vcombine.low %v6219, %v6218
  %v8203 = vunpack.c.l.s4 1966171168
  %v8204 = vunpack.c.0.s8 %v8203
  %v8205 = vlaneseq
  %v8206 = vshrl.u32 %v8205, 7
  %v8207 = vsub.s32 %v8204, %v8206
  %v8208 = vrot.slane %v8201, %v8207
  %v8209 = vcombine.low %v7547, %v7178
  %v8210 = vcombine.low %v7185, %v8208
  %v8212 = vunpack.c.l.s4 1966171168
  %v8213 = vunpack.c.0.s8 %v8212
  %v8214 = vlaneseq
  %v8215 = vshrl.u32 %v8214, 7
  %v8216 = vsub.s32 %v8213, %v8215
  %v8217 = vrot.slane %v8209, %v8216
  %v8219 = vunpack.c.l.s4 1966171168
  %v8220 = vunpack.c.0.s8 %v8219
  %v8221 = vlaneseq
  %v8222 = vshrl.u32 %v8221, 7
  %v8223 = vsub.s32 %v8220, %v8222
  %v8224 = vrot.slane %v8210, %v8223
  %v8225 = vcombine.low %v8217, %v8224
  %v8226 = vcombine.low %v6253, %v6267
  %v8227 = vcombine.low %v6269, %v6271
  %v8229 = vunpack.c.l.s4 1966171168
  %v8230 = vunpack.c.0.s8 %v8229
  %v8231 = vlaneseq
  %v8232 = vshrl.u32 %v8231, 7
  %v8233 = vsub.s32 %v8230, %v8232
  %v8234 = vrot.slane %v8226, %v8233
  %v8236 = vunpack.c.l.s4 1966171168
  %v8237 = vunpack.c.0.s8 %v8236
  %v8238 = vlaneseq
  %v8239 = vshrl.u32 %v8238, 7
  %v8240 = vsub.s32 %v8237, %v8239
  %v8241 = vrot.slane %v8227, %v8240
  %v8242 = vcombine.low %v8234, %v8241
  %v8244 = vunpack.c.l.s4 1966171168
  %v8245 = vunpack.c.0.s8 %v8244
  %v8246 = vlaneseq
  %v8247 = vshrl.u32 %v8246, 7
  %v8248 = vsub.s32 %v8245, %v8247
  %v8249 = vrot.slane %v8242, %v8248
  %v8250 = vcombine.low %v7603, %v8249
  %v8251 = vcombine.low %v6295, %v6407
  %v8253 = vunpack.c.l.s4 1966171168
  %v8254 = vunpack.c.0.s8 %v8253
  %v8255 = vlaneseq
  %v8256 = vshrl.u32 %v8255, 7
  %v8257 = vsub.s32 %v8254, %v8256
  %v8258 = vrot.slane %v8251, %v8257
  %v8259 = vcombine.low %v8258, %v7276
  %v8260 = vcombine.low %v7647, %v7290
  %v8262 = vunpack.c.l.s4 1966171168
  %v8263 = vunpack.c.0.s8 %v8262
  %v8264 = vlaneseq
  %v8265 = vshrl.u32 %v8264, 7
  %v8266 = vsub.s32 %v8263, %v8265
  %v8267 = vrot.slane %v8259, %v8266
  %v8269 = vunpack.c.l.s4 1966171168
  %v8270 = vunpack.c.0.s8 %v8269
  %v8271 = vlaneseq
  %v8272 = vshrl.u32 %v8271, 7
  %v8273 = vsub.s32 %v8270, %v8272
  %v8274 = vrot.slane %v8260, %v8273
  %v8275 = vcombine.low %v8267, %v8274
  %v8276 = vcombine.low %v6449, %v6467
  %v8278 = vunpack.c.l.s4 1966171168
  %v8279 = vunpack.c.0.s8 %v8278
  %v8280 = vlaneseq
  %v8281 = vshrl.u32 %v8280, 7
  %v8282 = vsub.s32 %v8279, %v8281
  %v8283 = vrot.slane %v8276, %v8282
  %v8284 = vcombine.low %v7297, %v8283
  %v8286 = vunpack.c.l.s4 1966171168
  %v8287 = vunpack.c.0.s8 %v8286
  %v8288 = vlaneseq
  %v8289 = vshrl.u32 %v8288, 7
  %v8290 = vsub.s32 %v8287, %v8289
  %v8291 = vrot.slane %v8284, %v8290
  %v8292 = vcombine.low %v8291, %v7703
  %v8293 = vcombine.low %v6562, %v6561
  %v8294 = vcombine.low %v6563, %v6565
  %v8296 = vunpack.c.l.s4 1966171168
  %v8297 = vunpack.c.0.s8 %v8296
  %v8298 = vlaneseq
  %v8299 = vshrl.u32 %v8298, 7
  %v8300 = vsub.s32 %v8297, %v8299
  %v8301 = vrot.slane %v8293, %v8300
  %v8303 = vunpack.c.l.s4 1966171168
  %v8304 = vunpack.c.0.s8 %v8303
  %v8305 = vlaneseq
  %v8306 = vshrl.u32 %v8305, 7
  %v8307 = vsub.s32 %v8304, %v8306
  %v8308 = vrot.slane %v8294, %v8307
  %v8309 = vcombine.low %v7346, %v7371
  %v8310 = vcombine.low %v8301, %v8308
  %v8312 = vunpack.c.l.s4 1966171168
  %v8313 = vunpack.c.0.s8 %v8312
  %v8314 = vlaneseq
  %v8315 = vshrl.u32 %v8314, 7
  %v8316 = vsub.s32 %v8313, %v8315
  %v8317 = vrot.slane %v8309, %v8316
  %v8319 = vunpack.c.l.s4 1966171168
  %v8320 = vunpack.c.0.s8 %v8319
  %v8321 = vlaneseq
  %v8322 = vshrl.u32 %v8321, 7
  %v8323 = vsub.s32 %v8320, %v8322
  %v8324 = vrot.slane %v8310, %v8323
  %v8325 = vcombine.low %v8317, %v8324
  %v8326 = vcombine.low %v6589, %v6603
  %v8328 = vunpack.c.l.s4 1966171168
  %v8329 = vunpack.c.0.s8 %v8328
  %v8330 = vlaneseq
  %v8331 = vshrl.u32 %v8330, 7
  %v8332 = vsub.s32 %v8329, %v8331
  %v8333 = vrot.slane %v8326, %v8332
  %v8335 = vunpack.c.l.s4 1966171168
  %v8336 = vunpack.c.0.s8 %v8335
  %v8337 = vlaneseq
  %v8338 = vshrl.u32 %v8337, 7
  %v8339 = vsub.s32 %v8336, %v8338
  %v8340 = vrot.slane %v8333, %v8339
  %v8341 = vsel %vm6955, %v8200, 0
  %v8343 = vsel %vm6955, %v8225, 0
  %v8345 = vsel %vm6955, %v8250, 0
  %v8347 = vsel %vm6955, %v8275, 0
  %v8349 = vsel %vm6955, %v8292, 0
  %v8351 = vsel %vm6955, %v8325, 0
  %v8353 = vsel %vm6955, %v8340, 0
  %8355 = vmatprep.subr.mxu0 0.0
  %8356 = vmatpush1.msra.mxu0 %v8172
  %8357 = vmatprep.subr.mxu0 0.0
  %8358 = vmatpush1.msra.mxu0 %v8173
  %8359 = vmatprep.subr.mxu0 0.0
  %8360 = vmatpush1.msra.mxu0 %v8174
  %8361 = vmatprep.subr.mxu0 0.0
  %8362 = vmatpush1.msra.mxu0 %v8175
  %8363 = vmatprep.subr.mxu0 0.0
  %8364 = vmatpush1.msra.mxu0 0.0
  %8365 = vmatprep.subr.mxu0 0.0
  %8366 = vmatpush1.msra.mxu0 0.0
  %8367 = vmatprep.subr.mxu0 0.0
  %8368 = vmatpush1.msra.mxu0 0.0
  %8369 = vmatprep.subr.mxu0 0.0
  %8370 = vmatpush1.msra.mxu0 0.0
  %8371 = vmatprep.subr.mxu0 0.0
  %8372 = vmatpush1.msra.mxu0 0.0
  %8373 = vmatprep.subr.mxu0 0.0
  %8374 = vmatpush1.msra.mxu0 0.0
  %8375 = vmatprep.subr.mxu0 0.0
  %8376 = vmatpush1.msra.mxu0 0.0
  %8377 = vmatprep.subr.mxu0 0.0
  %8378 = vmatpush1.msra.mxu0 0.0
  %8379 = vmatprep.subr.mxu0 0.0
  %8380 = vmatpush1.msra.mxu0 0.0
  %8381 = vmatprep.subr.mxu0 0.0
  %8382 = vmatpush1.msra.mxu0 0.0
  %8383 = vmatprep.subr.mxu0 0.0
  %8384 = vmatpush1.msra.mxu0 0.0
  %8385 = vmatprep.subr.mxu0 0.0
  %8386 = vmatpush1.msra.mxu0 0.0
  %8387 = vmatprep.subr.mxu0 0.0
  %8388 = vmatpush1.msra.mxu0 0.0
  %8389 = vmatprep.subr.mxu0 0.0
  %8390 = vmatpush1.msra.mxu0 0.0
  %8391 = vmatprep.subr.mxu0 0.0
  %8392 = vmatpush1.msra.mxu0 0.0
  %8393 = vmatprep.subr.mxu0 0.0
  %8394 = vmatpush1.msra.mxu0 0.0
  %8395 = vmatprep.subr.mxu0 0.0
  %8396 = vmatpush1.msra.mxu0 0.0
  %8397 = vmatprep.subr.mxu0 0.0
  %8398 = vmatpush1.msra.mxu0 0.0
  %8399 = vmatprep.subr.mxu0 0.0
  %8400 = vmatpush1.msra.mxu0 0.0
  %8401 = vmatprep.subr.mxu0 0.0
  %8402 = vmatpush1.msra.mxu0 0.0
  %8403 = vmatprep.subr.mxu0 0.0
  %8404 = vmatpush1.msra.mxu0 0.0
  %8405 = vmatprep.subr.mxu0 0.0
  %8406 = vmatpush1.msra.mxu0 0.0
  %8407 = vmatprep.subr.mxu0 0.0
  %8408 = vmatpush1.msra.mxu0 0.0
  %8409 = vmatprep.subr.mxu0 0.0
  %8410 = vmatpush1.msra.mxu0 0.0
  %8411 = vmatprep.subr.mxu0 0.0
  %8412 = vmatpush1.msra.mxu0 0.0
  %8413 = vmatprep.subr.mxu0 0.0
  %8414 = vmatpush1.msra.mxu0 0.0
  %8415 = vmatprep.subr.mxu0 0.0
  %8416 = vmatpush1.msra.mxu0 0.0
  %8417 = vmatprep.subr.mxu0 0.0
  %8418 = vmatpush1.msra.mxu0 0.0
  %8419 = vmatprep.mubr.f32.mxu0 0.0
  %8420 = vmatmul.mubr.f32.gmra.mrb[0].mxu0 %v8341
  %v8421 = vpop.f32.mrb[0].mxu0
  %v8422 = vadd.f32 0.0, %v8421
  %v8423 = vpop.f32.mrb[0].mxu0
  %8424 = vmatprep.mubr.f32.mxu0 0.0
  %8425 = vmatmul.mubr.f32.gmra.mrb[0].mxu0 %v8343
  %v8426 = vpop.f32.mrb[0].mxu0
  %v8427 = vadd.f32 0.0, %v8426
  %v8428 = vpop.f32.mrb[0].mxu0
  %8429 = vmatprep.mubr.f32.mxu0 0.0
  %8430 = vmatmul.mubr.f32.gmra.mrb[0].mxu0 %v8345
  %v8431 = vpop.f32.mrb[0].mxu0
  %v8432 = vadd.f32 0.0, %v8431
  %v8433 = vpop.f32.mrb[0].mxu0
  %8434 = vmatprep.mubr.f32.mxu0 0.0
  %8435 = vmatmul.mubr.f32.gmra.mrb[0].mxu0 %v8347
  %v8436 = vpop.f32.mrb[0].mxu0
  %v8437 = vadd.f32 0.0, %v8436
  %v8438 = vpop.f32.mrb[0].mxu0
  %8439 = vmatprep.mubr.f32.mxu0 0.0
  %8440 = vmatmul.mubr.f32.gmra.mrb[0].mxu0 %v8349
  %v8441 = vpop.f32.mrb[0].mxu0
  %v8442 = vadd.f32 0.0, %v8441
  %v8443 = vpop.f32.mrb[0].mxu0
  %8444 = vmatprep.mubr.f32.mxu0 0.0
  %8445 = vmatmul.mubr.f32.gmra.mrb[0].mxu0 %v8351
  %v8446 = vpop.f32.mrb[0].mxu0
  %v8447 = vadd.f32 0.0, %v8446
  %v8448 = vpop.f32.mrb[0].mxu0
  %8449 = vmatprep.mubr.f32.mxu0 0.0
  %8450 = vmatmul.mubr.f32.gmra.mrb[0].mxu0 %v8353
  %v8451 = vpop.f32.mrb[0].mxu0
  %v8452 = vadd.f32 0.0, %v8451
  %v8453 = vpop.f32.mrb[0].mxu0
  %8454 = vdwg.mxu0
  %v8455 = vadd.f32 %v8164, %v8422
  %v8456 = vadd.f32 %v8165, %v8427
  %v8457 = vadd.f32 %v8166, %v8432
  %v8458 = vadd.f32 %v8167, %v8437
  %v8459 = vadd.f32 %v8168, %v8442
  %v8460 = vadd.f32 %v8169, %v8447
  %v8461 = vadd.f32 %v8170, %v8452
  %s8462 = scalar_lea.vmem %s5, 160
  %v8463 = vld [vmem:[%s8462] sm:$0xff]
  %v8464 = vld [vmem:[%s8462 + $0x8] sm:$0xff]
  %v8465 = vld [vmem:[%s8462 + $0x10] sm:$0xff]
  %v8466 = vld [vmem:[%s8462 + $0x18] sm:$0xff]
  %v8467 = vcombine.low %v6120, %v6148
  %v8469 = vunpack.c.l.s4 1966171168
  %v8470 = vunpack.c.0.s8 %v8469
  %v8471 = vlaneseq
  %v8472 = vshrl.u32 %v8471, 7
  %v8473 = vsub.s32 %v8470, %v8472
  %v8474 = vrot.slane %v8467, %v8473
  %v8475 = vcombine.low %v6677, %v6705
  %v8476 = vcombine.low %v8474, %v6719
  %v8478 = vunpack.c.l.s4 1966171168
  %v8479 = vunpack.c.0.s8 %v8478
  %v8480 = vlaneseq
  %v8481 = vshrl.u32 %v8480, 7
  %v8482 = vsub.s32 %v8479, %v8481
  %v8483 = vrot.slane %v8475, %v8482
  %v8485 = vunpack.c.l.s4 1966171168
  %v8486 = vunpack.c.0.s8 %v8485
  %v8487 = vlaneseq
  %v8488 = vshrl.u32 %v8487, 7
  %v8489 = vsub.s32 %v8486, %v8488
  %v8490 = vrot.slane %v8476, %v8489
  %v8491 = vcombine.low %v8483, %v8490
  %v8492 = vcombine.low %v6172, %v6155
  %v8493 = vcombine.low %v6221, %v6220
  %v8495 = vunpack.c.l.s4 1966171168
  %v8496 = vunpack.c.0.s8 %v8495
  %v8497 = vlaneseq
  %v8498 = vshrl.u32 %v8497, 7
  %v8499 = vsub.s32 %v8496, %v8498
  %v8500 = vrot.slane %v8492, %v8499
  %v8502 = vunpack.c.l.s4 1966171168
  %v8503 = vunpack.c.0.s8 %v8502
  %v8504 = vlaneseq
  %v8505 = vshrl.u32 %v8504, 7
  %v8506 = vsub.s32 %v8503, %v8505
  %v8507 = vrot.slane %v8493, %v8506
  %v8508 = vcombine.low %v8500, %v6754
  %v8509 = vcombine.low %v6761, %v8507
  %v8511 = vunpack.c.l.s4 1966171168
  %v8512 = vunpack.c.0.s8 %v8511
  %v8513 = vlaneseq
  %v8514 = vshrl.u32 %v8513, 7
  %v8515 = vsub.s32 %v8512, %v8514
  %v8516 = vrot.slane %v8508, %v8515
  %v8518 = vunpack.c.l.s4 1966171168
  %v8519 = vunpack.c.0.s8 %v8518
  %v8520 = vlaneseq
  %v8521 = vshrl.u32 %v8520, 7
  %v8522 = vsub.s32 %v8519, %v8521
  %v8523 = vrot.slane %v8509, %v8522
  %v8524 = vcombine.low %v8516, %v8523
  %v8525 = vcombine.low %v6260, %v6268
  %v8526 = vcombine.low %v6271, %v6295
  %v8528 = vunpack.c.l.s4 1966171168
  %v8529 = vunpack.c.0.s8 %v8528
  %v8530 = vlaneseq
  %v8531 = vshrl.u32 %v8530, 7
  %v8532 = vsub.s32 %v8529, %v8531
  %v8533 = vrot.slane %v8525, %v8532
  %v8535 = vunpack.c.l.s4 1966171168
  %v8536 = vunpack.c.0.s8 %v8535
  %v8537 = vlaneseq
  %v8538 = vshrl.u32 %v8537, 7
  %v8539 = vsub.s32 %v8536, %v8538
  %v8540 = vrot.slane %v8526, %v8539
  %v8541 = vcombine.low %v6775, %v8533
  %v8542 = vcombine.low %v7934, %v8540
  %v8544 = vunpack.c.l.s4 1966171168
  %v8545 = vunpack.c.0.s8 %v8544
  %v8546 = vlaneseq
  %v8547 = vshrl.u32 %v8546, 7
  %v8548 = vsub.s32 %v8545, %v8547
  %v8549 = vrot.slane %v8541, %v8548
  %v8551 = vunpack.c.l.s4 1966171168
  %v8552 = vunpack.c.0.s8 %v8551
  %v8553 = vlaneseq
  %v8554 = vshrl.u32 %v8553, 7
  %v8555 = vsub.s32 %v8552, %v8554
  %v8556 = vrot.slane %v8542, %v8555
  %v8557 = vcombine.low %v8549, %v8556
  %v8558 = vcombine.low %v6309, %v6415
  %v8559 = vcombine.low %v6414, %v6416
  %v8561 = vunpack.c.l.s4 1966171168
  %v8562 = vunpack.c.0.s8 %v8561
  %v8563 = vlaneseq
  %v8564 = vshrl.u32 %v8563, 7
  %v8565 = vsub.s32 %v8562, %v8564
  %v8566 = vrot.slane %v8558, %v8565
  %v8568 = vunpack.c.l.s4 1966171168
  %v8569 = vunpack.c.0.s8 %v8568
  %v8570 = vlaneseq
  %v8571 = vshrl.u32 %v8570, 7
  %v8572 = vsub.s32 %v8569, %v8571
  %v8573 = vrot.slane %v8559, %v8572
  %v8574 = vcombine.low %v8566, %v6852
  %v8575 = vcombine.low %v8573, %v6866
  %v8577 = vunpack.c.l.s4 1966171168
  %v8578 = vunpack.c.0.s8 %v8577
  %v8579 = vlaneseq
  %v8580 = vshrl.u32 %v8579, 7
  %v8581 = vsub.s32 %v8578, %v8580
  %v8582 = vrot.slane %v8574, %v8581
  %v8584 = vunpack.c.l.s4 1966171168
  %v8585 = vunpack.c.0.s8 %v8584
  %v8586 = vlaneseq
  %v8587 = vshrl.u32 %v8586, 7
  %v8588 = vsub.s32 %v8585, %v8587
  %v8589 = vrot.slane %v8575, %v8588
  %v8590 = vcombine.low %v8582, %v8589
  %v8591 = vcombine.low %v6463, %v6491
  %v8592 = vcombine.low %v6515, %v6498
  %v8594 = vunpack.c.l.s4 1966171168
  %v8595 = vunpack.c.0.s8 %v8594
  %v8596 = vlaneseq
  %v8597 = vshrl.u32 %v8596, 7
  %v8598 = vsub.s32 %v8595, %v8597
  %v8599 = vrot.slane %v8591, %v8598
  %v8601 = vunpack.c.l.s4 1966171168
  %v8602 = vunpack.c.0.s8 %v8601
  %v8603 = vlaneseq
  %v8604 = vshrl.u32 %v8603, 7
  %v8605 = vsub.s32 %v8602, %v8604
  %v8606 = vrot.slane %v8592, %v8605
  %v8607 = vcombine.low %v6873, %v8599
  %v8608 = vcombine.low %v6908, %v8606
  %v8610 = vunpack.c.l.s4 1966171168
  %v8611 = vunpack.c.0.s8 %v8610
  %v8612 = vlaneseq
  %v8613 = vshrl.u32 %v8612, 7
  %v8614 = vsub.s32 %v8611, %v8613
  %v8615 = vrot.slane %v8607, %v8614
  %v8617 = vunpack.c.l.s4 1966171168
  %v8618 = vunpack.c.0.s8 %v8617
  %v8619 = vlaneseq
  %v8620 = vshrl.u32 %v8619, 7
  %v8621 = vsub.s32 %v8618, %v8620
  %v8622 = vrot.slane %v8608, %v8621
  %v8623 = vcombine.low %v8615, %v8622
  %v8624 = vcombine.low %v6564, %v6563
  %v8626 = vunpack.c.l.s4 1966171168
  %v8627 = vunpack.c.0.s8 %v8626
  %v8628 = vlaneseq
  %v8629 = vshrl.u32 %v8628, 7
  %v8630 = vsub.s32 %v8627, %v8629
  %v8631 = vrot.slane %v8624, %v8630
  %v8632 = vcombine.low %v6922, %v6947
  %v8633 = vcombine.low %v8631, %v8042
  %v8635 = vunpack.c.l.s4 1966171168
  %v8636 = vunpack.c.0.s8 %v8635
  %v8637 = vlaneseq
  %v8638 = vshrl.u32 %v8637, 7
  %v8639 = vsub.s32 %v8636, %v8638
  %v8640 = vrot.slane %v8632, %v8639
  %v8642 = vunpack.c.l.s4 1966171168
  %v8643 = vunpack.c.0.s8 %v8642
  %v8644 = vlaneseq
  %v8645 = vshrl.u32 %v8644, 7
  %v8646 = vsub.s32 %v8643, %v8645
  %v8647 = vrot.slane %v8633, %v8646
  %v8648 = vcombine.low %v8640, %v8647
  %v8649 = vcombine.low %v6603, %v6611
  %v8651 = vunpack.c.l.s4 1966171168
  %v8652 = vunpack.c.0.s8 %v8651
  %v8653 = vlaneseq
  %v8654 = vshrl.u32 %v8653, 7
  %v8655 = vsub.s32 %v8652, %v8654
  %v8656 = vrot.slane %v8649, %v8655
  %v8658 = vunpack.c.l.s4 1966171168
  %v8659 = vunpack.c.0.s8 %v8658
  %v8660 = vlaneseq
  %v8661 = vshrl.u32 %v8660, 7
  %v8662 = vsub.s32 %v8659, %v8661
  %v8663 = vrot.slane %v8656, %v8662
  %v8664 = vsel %vm6955, %v8491, 0
  %v8666 = vsel %vm6955, %v8524, 0
  %v8668 = vsel %vm6955, %v8557, 0
  %v8670 = vsel %vm6955, %v8590, 0
  %v8672 = vsel %vm6955, %v8623, 0
  %v8674 = vsel %vm6955, %v8648, 0
  %v8676 = vsel %vm6955, %v8663, 0
  %8678 = vmatprep.subr.mxu0 0.0
  %8679 = vmatpush1.msra.mxu0 %v8463
  %8680 = vmatprep.subr.mxu0 0.0
  %8681 = vmatpush1.msra.mxu0 %v8464
  %8682 = vmatprep.subr.mxu0 0.0
  %8683 = vmatpush1.msra.mxu0 %v8465
  %8684 = vmatprep.subr.mxu0 0.0
  %8685 = vmatpush1.msra.mxu0 %v8466
  %8686 = vmatprep.subr.mxu0 0.0
  %8687 = vmatpush1.msra.mxu0 0.0
  %8688 = vmatprep.subr.mxu0 0.0
  %8689 = vmatpush1.msra.mxu0 0.0
  %8690 = vmatprep.subr.mxu0 0.0
  %8691 = vmatpush1.msra.mxu0 0.0
  %8692 = vmatprep.subr.mxu0 0.0
  %8693 = vmatpush1.msra.mxu0 0.0
  %8694 = vmatprep.subr.mxu0 0.0
  %8695 = vmatpush1.msra.mxu0 0.0
  %8696 = vmatprep.subr.mxu0 0.0
  %8697 = vmatpush1.msra.mxu0 0.0
  %8698 = vmatprep.subr.mxu0 0.0
  %8699 = vmatpush1.msra.mxu0 0.0
  %8700 = vmatprep.subr.mxu0 0.0
  %8701 = vmatpush1.msra.mxu0 0.0
  %8702 = vmatprep.subr.mxu0 0.0
  %8703 = vmatpush1.msra.mxu0 0.0
  %8704 = vmatprep.subr.mxu0 0.0
  %8705 = vmatpush1.msra.mxu0 0.0
  %8706 = vmatprep.subr.mxu0 0.0
  %8707 = vmatpush1.msra.mxu0 0.0
  %8708 = vmatprep.subr.mxu0 0.0
  %8709 = vmatpush1.msra.mxu0 0.0
  %8710 = vmatprep.subr.mxu0 0.0
  %8711 = vmatpush1.msra.mxu0 0.0
  %8712 = vmatprep.subr.mxu0 0.0
  %8713 = vmatpush1.msra.mxu0 0.0
  %8714 = vmatprep.subr.mxu0 0.0
  %8715 = vmatpush1.msra.mxu0 0.0
  %8716 = vmatprep.subr.mxu0 0.0
  %8717 = vmatpush1.msra.mxu0 0.0
  %8718 = vmatprep.subr.mxu0 0.0
  %8719 = vmatpush1.msra.mxu0 0.0
  %8720 = vmatprep.subr.mxu0 0.0
  %8721 = vmatpush1.msra.mxu0 0.0
  %8722 = vmatprep.subr.mxu0 0.0
  %8723 = vmatpush1.msra.mxu0 0.0
  %8724 = vmatprep.subr.mxu0 0.0
  %8725 = vmatpush1.msra.mxu0 0.0
  %8726 = vmatprep.subr.mxu0 0.0
  %8727 = vmatpush1.msra.mxu0 0.0
  %8728 = vmatprep.subr.mxu0 0.0
  %8729 = vmatpush1.msra.mxu0 0.0
  %8730 = vmatprep.subr.mxu0 0.0
  %8731 = vmatpush1.msra.mxu0 0.0
  %8732 = vmatprep.subr.mxu0 0.0
  %8733 = vmatpush1.msra.mxu0 0.0
  %8734 = vmatprep.subr.mxu0 0.0
  %8735 = vmatpush1.msra.mxu0 0.0
  %8736 = vmatprep.subr.mxu0 0.0
  %8737 = vmatpush1.msra.mxu0 0.0
  %8738 = vmatprep.subr.mxu0 0.0
  %8739 = vmatpush1.msra.mxu0 0.0
  %8740 = vmatprep.subr.mxu0 0.0
  %8741 = vmatpush1.msra.mxu0 0.0
  %8742 = vmatprep.mubr.f32.mxu0 0.0
  %8743 = vmatmul.mubr.f32.gmra.mrb[0].mxu0 %v8664
  %v8744 = vpop.f32.mrb[0].mxu0
  %v8745 = vadd.f32 0.0, %v8744
  %v8746 = vpop.f32.mrb[0].mxu0
  %8747 = vmatprep.mubr.f32.mxu0 0.0
  %8748 = vmatmul.mubr.f32.gmra.mrb[0].mxu0 %v8666
  %v8749 = vpop.f32.mrb[0].mxu0
  %v8750 = vadd.f32 0.0, %v8749
  %v8751 = vpop.f32.mrb[0].mxu0
  %8752 = vmatprep.mubr.f32.mxu0 0.0
  %8753 = vmatmul.mubr.f32.gmra.mrb[0].mxu0 %v8668
  %v8754 = vpop.f32.mrb[0].mxu0
  %v8755 = vadd.f32 0.0, %v8754
  %v8756 = vpop.f32.mrb[0].mxu0
  %8757 = vmatprep.mubr.f32.mxu0 0.0
  %8758 = vmatmul.mubr.f32.gmra.mrb[0].mxu0 %v8670
  %v8759 = vpop.f32.mrb[0].mxu0
  %v8760 = vadd.f32 0.0, %v8759
  %v8761 = vpop.f32.mrb[0].mxu0
  %8762 = vmatprep.mubr.f32.mxu0 0.0
  %8763 = vmatmul.mubr.f32.gmra.mrb[0].mxu0 %v8672
  %v8764 = vpop.f32.mrb[0].mxu0
  %v8765 = vadd.f32 0.0, %v8764
  %v8766 = vpop.f32.mrb[0].mxu0
  %8767 = vmatprep.mubr.f32.mxu0 0.0
  %8768 = vmatmul.mubr.f32.gmra.mrb[0].mxu0 %v8674
  %v8769 = vpop.f32.mrb[0].mxu0
  %v8770 = vadd.f32 0.0, %v8769
  %v8771 = vpop.f32.mrb[0].mxu0
  %8772 = vmatprep.mubr.f32.mxu0 0.0
  %8773 = vmatmul.mubr.f32.gmra.mrb[0].mxu0 %v8676
  %v8774 = vpop.f32.mrb[0].mxu0
  %v8775 = vadd.f32 0.0, %v8774
  %v8776 = vpop.f32.mrb[0].mxu0
  %8777 = vdwg.mxu0
  %v8778 = vadd.f32 %v8455, %v8745
  %v8779 = vadd.f32 %v8456, %v8750
  %v8780 = vadd.f32 %v8457, %v8755
  %v8781 = vadd.f32 %v8458, %v8760
  %v8782 = vadd.f32 %v8459, %v8765
  %v8783 = vadd.f32 %v8460, %v8770
  %v8784 = vadd.f32 %v8461, %v8775
  %s8785 = scalar_lea.vmem %s5, 192
  %v8786 = vld [vmem:[%s8785] sm:$0xff]
  %v8787 = vld [vmem:[%s8785 + $0x8] sm:$0xff]
  %v8788 = vld [vmem:[%s8785 + $0x10] sm:$0xff]
  %v8789 = vld [vmem:[%s8785 + $0x18] sm:$0xff]
  %v8790 = vcombine.low %v7136, %v7143
  %v8791 = vcombine.low %v7150, %v7178
  %v8793 = vunpack.c.l.s4 1966171168
  %v8794 = vunpack.c.0.s8 %v8793
  %v8795 = vlaneseq
  %v8796 = vshrl.u32 %v8795, 7
  %v8797 = vsub.s32 %v8794, %v8796
  %v8798 = vrot.slane %v8790, %v8797
  %v8800 = vunpack.c.l.s4 1966171168
  %v8801 = vunpack.c.0.s8 %v8800
  %v8802 = vlaneseq
  %v8803 = vshrl.u32 %v8802, 7
  %v8804 = vsub.s32 %v8801, %v8803
  %v8805 = vrot.slane %v8791, %v8804
  %v8806 = vcombine.low %v8798, %v8805
  %v8807 = vcombine.low %v6246, %v6270
  %v8809 = vunpack.c.l.s4 1966171168
  %v8810 = vunpack.c.0.s8 %v8809
  %v8811 = vlaneseq
  %v8812 = vshrl.u32 %v8811, 7
  %v8813 = vsub.s32 %v8810, %v8812
  %v8814 = vrot.slane %v8807, %v8813
  %v8815 = vcombine.low %v7185, %v7192
  %v8816 = vcombine.low %v7199, %v8814
  %v8818 = vunpack.c.l.s4 1966171168
  %v8819 = vunpack.c.0.s8 %v8818
  %v8820 = vlaneseq
  %v8821 = vshrl.u32 %v8820, 7
  %v8822 = vsub.s32 %v8819, %v8821
  %v8823 = vrot.slane %v8815, %v8822
  %v8825 = vunpack.c.l.s4 1966171168
  %v8826 = vunpack.c.0.s8 %v8825
  %v8827 = vlaneseq
  %v8828 = vshrl.u32 %v8827, 7
  %v8829 = vsub.s32 %v8826, %v8828
  %v8830 = vrot.slane %v8816, %v8829
  %v8831 = vcombine.low %v8823, %v8830
  %v8832 = vcombine.low %v6317, %v6319
  %v8833 = vcombine.low %v6302, %v6316
  %v8835 = vunpack.c.l.s4 1966171168
  %v8836 = vunpack.c.0.s8 %v8835
  %v8837 = vlaneseq
  %v8838 = vshrl.u32 %v8837, 7
  %v8839 = vsub.s32 %v8836, %v8838
  %v8840 = vrot.slane %v8832, %v8839
  %v8842 = vunpack.c.l.s4 1966171168
  %v8843 = vunpack.c.0.s8 %v8842
  %v8844 = vlaneseq
  %v8845 = vshrl.u32 %v8844, 7
  %v8846 = vsub.s32 %v8843, %v8845
  %v8847 = vrot.slane %v8833, %v8846
  %v8848 = vcombine.low %v8840, %v8847
  %v8850 = vunpack.c.l.s4 1966171168
  %v8851 = vunpack.c.0.s8 %v8850
  %v8852 = vlaneseq
  %v8853 = vshrl.u32 %v8852, 7
  %v8854 = vsub.s32 %v8851, %v8853
  %v8855 = vrot.slane %v8848, %v8854
  %v8856 = vcombine.low %v8249, %v8855
  %v8857 = vcombine.low %v6318, %v6418
  %v8859 = vunpack.c.l.s4 1966171168
  %v8860 = vunpack.c.0.s8 %v8859
  %v8861 = vlaneseq
  %v8862 = vshrl.u32 %v8861, 7
  %v8863 = vsub.s32 %v8860, %v8862
  %v8864 = vrot.slane %v8857, %v8863
  %v8865 = vcombine.low %v8864, %v7290
  %v8866 = vcombine.low %v7297, %v7325
  %v8868 = vunpack.c.l.s4 1966171168
  %v8869 = vunpack.c.0.s8 %v8868
  %v8870 = vlaneseq
  %v8871 = vshrl.u32 %v8870, 7
  %v8872 = vsub.s32 %v8869, %v8871
  %v8873 = vrot.slane %v8865, %v8872
  %v8875 = vunpack.c.l.s4 1966171168
  %v8876 = vunpack.c.0.s8 %v8875
  %v8877 = vlaneseq
  %v8878 = vshrl.u32 %v8877, 7
  %v8879 = vsub.s32 %v8876, %v8878
  %v8880 = vrot.slane %v8866, %v8879
  %v8881 = vcombine.low %v8873, %v8880
  %v8882 = vcombine.low %v7332, %v7339
  %v8884 = vunpack.c.l.s4 1966171168
  %v8885 = vunpack.c.0.s8 %v8884
  %v8886 = vlaneseq
  %v8887 = vshrl.u32 %v8886, 7
  %v8888 = vsub.s32 %v8885, %v8887
  %v8889 = vrot.slane %v8882, %v8888
  %v8890 = vcombine.low %v8889, %v8317
  %v8891 = vcombine.low %v6547, %v6561
  %v8892 = vcombine.low %v6589, %v6613
  %v8893 = vcombine.low %v6596, %v6610
  %v8895 = vunpack.c.l.s4 1966171168
  %v8896 = vunpack.c.0.s8 %v8895
  %v8897 = vlaneseq
  %v8898 = vshrl.u32 %v8897, 7
  %v8899 = vsub.s32 %v8896, %v8898
  %v8900 = vrot.slane %v8891, %v8899
  %v8902 = vunpack.c.l.s4 1966171168
  %v8903 = vunpack.c.0.s8 %v8902
  %v8904 = vlaneseq
  %v8905 = vshrl.u32 %v8904, 7
  %v8906 = vsub.s32 %v8903, %v8905
  %v8907 = vrot.slane %v8892, %v8906
  %v8909 = vunpack.c.l.s4 1966171168
  %v8910 = vunpack.c.0.s8 %v8909
  %v8911 = vlaneseq
  %v8912 = vshrl.u32 %v8911, 7
  %v8913 = vsub.s32 %v8910, %v8912
  %v8914 = vrot.slane %v8893, %v8913
  %v8915 = vcombine.low %v8900, %v8308
  %v8916 = vcombine.low %v8907, %v8914
  %v8918 = vunpack.c.l.s4 1966171168
  %v8919 = vunpack.c.0.s8 %v8918
  %v8920 = vlaneseq
  %v8921 = vshrl.u32 %v8920, 7
  %v8922 = vsub.s32 %v8919, %v8921
  %v8923 = vrot.slane %v8915, %v8922
  %v8925 = vunpack.c.l.s4 1966171168
  %v8926 = vunpack.c.0.s8 %v8925
  %v8927 = vlaneseq
  %v8928 = vshrl.u32 %v8927, 7
  %v8929 = vsub.s32 %v8926, %v8928
  %v8930 = vrot.slane %v8916, %v8929
  %v8931 = vcombine.low %v8923, %v8930
  %v8932 = vcombine.low %v6612, %v6614
  %v8934 = vunpack.c.l.s4 1966171168
  %v8935 = vunpack.c.0.s8 %v8934
  %v8936 = vlaneseq
  %v8937 = vshrl.u32 %v8936, 7
  %v8938 = vsub.s32 %v8935, %v8937
  %v8939 = vrot.slane %v8932, %v8938
  %v8941 = vunpack.c.l.s4 1966171168
  %v8942 = vunpack.c.0.s8 %v8941
  %v8943 = vlaneseq
  %v8944 = vshrl.u32 %v8943, 7
  %v8945 = vsub.s32 %v8942, %v8944
  %v8946 = vrot.slane %v8939, %v8945
  %v8947 = vsel %vm6955, %v8806, 0
  %v8949 = vsel %vm6955, %v8831, 0
  %v8951 = vsel %vm6955, %v8856, 0
  %v8953 = vsel %vm6955, %v8881, 0
  %v8955 = vsel %vm6955, %v8890, 0
  %v8957 = vsel %vm6955, %v8931, 0
  %v8959 = vsel %vm6955, %v8946, 0
  %8961 = vmatprep.subr.mxu0 0.0
  %8962 = vmatpush1.msra.mxu0 %v8786
  %8963 = vmatprep.subr.mxu0 0.0
  %8964 = vmatpush1.msra.mxu0 %v8787
  %8965 = vmatprep.subr.mxu0 0.0
  %8966 = vmatpush1.msra.mxu0 %v8788
  %8967 = vmatprep.subr.mxu0 0.0
  %8968 = vmatpush1.msra.mxu0 %v8789
  %8969 = vmatprep.subr.mxu0 0.0
  %8970 = vmatpush1.msra.mxu0 0.0
  %8971 = vmatprep.subr.mxu0 0.0
  %8972 = vmatpush1.msra.mxu0 0.0
  %8973 = vmatprep.subr.mxu0 0.0
  %8974 = vmatpush1.msra.mxu0 0.0
  %8975 = vmatprep.subr.mxu0 0.0
  %8976 = vmatpush1.msra.mxu0 0.0
  %8977 = vmatprep.subr.mxu0 0.0
  %8978 = vmatpush1.msra.mxu0 0.0
  %8979 = vmatprep.subr.mxu0 0.0
  %8980 = vmatpush1.msra.mxu0 0.0
  %8981 = vmatprep.subr.mxu0 0.0
  %8982 = vmatpush1.msra.mxu0 0.0
  %8983 = vmatprep.subr.mxu0 0.0
  %8984 = vmatpush1.msra.mxu0 0.0
  %8985 = vmatprep.subr.mxu0 0.0
  %8986 = vmatpush1.msra.mxu0 0.0
  %8987 = vmatprep.subr.mxu0 0.0
  %8988 = vmatpush1.msra.mxu0 0.0
  %8989 = vmatprep.subr.mxu0 0.0
  %8990 = vmatpush1.msra.mxu0 0.0
  %8991 = vmatprep.subr.mxu0 0.0
  %8992 = vmatpush1.msra.mxu0 0.0
  %8993 = vmatprep.subr.mxu0 0.0
  %8994 = vmatpush1.msra.mxu0 0.0
  %8995 = vmatprep.subr.mxu0 0.0
  %8996 = vmatpush1.msra.mxu0 0.0
  %8997 = vmatprep.subr.mxu0 0.0
  %8998 = vmatpush1.msra.mxu0 0.0
  %8999 = vmatprep.subr.mxu0 0.0
  %9000 = vmatpush1.msra.mxu0 0.0
  %9001 = vmatprep.subr.mxu0 0.0
  %9002 = vmatpush1.msra.mxu0 0.0
  %9003 = vmatprep.subr.mxu0 0.0
  %9004 = vmatpush1.msra.mxu0 0.0
  %9005 = vmatprep.subr.mxu0 0.0
  %9006 = vmatpush1.msra.mxu0 0.0
  %9007 = vmatprep.subr.mxu0 0.0
  %9008 = vmatpush1.msra.mxu0 0.0
  %9009 = vmatprep.subr.mxu0 0.0
  %9010 = vmatpush1.msra.mxu0 0.0
  %9011 = vmatprep.subr.mxu0 0.0
  %9012 = vmatpush1.msra.mxu0 0.0
  %9013 = vmatprep.subr.mxu0 0.0
  %9014 = vmatpush1.msra.mxu0 0.0
  %9015 = vmatprep.subr.mxu0 0.0
  %9016 = vmatpush1.msra.mxu0 0.0
  %9017 = vmatprep.subr.mxu0 0.0
  %9018 = vmatpush1.msra.mxu0 0.0
  %9019 = vmatprep.subr.mxu0 0.0
  %9020 = vmatpush1.msra.mxu0 0.0
  %9021 = vmatprep.subr.mxu0 0.0
  %9022 = vmatpush1.msra.mxu0 0.0
  %9023 = vmatprep.subr.mxu0 0.0
  %9024 = vmatpush1.msra.mxu0 0.0
  %9025 = vmatprep.mubr.f32.mxu0 0.0
  %9026 = vmatmul.mubr.f32.gmra.mrb[0].mxu0 %v8947
  %v9027 = vpop.f32.mrb[0].mxu0
  %v9028 = vadd.f32 0.0, %v9027
  %v9029 = vpop.f32.mrb[0].mxu0
  %9030 = vmatprep.mubr.f32.mxu0 0.0
  %9031 = vmatmul.mubr.f32.gmra.mrb[0].mxu0 %v8949
  %v9032 = vpop.f32.mrb[0].mxu0
  %v9033 = vadd.f32 0.0, %v9032
  %v9034 = vpop.f32.mrb[0].mxu0
  %9035 = vmatprep.mubr.f32.mxu0 0.0
  %9036 = vmatmul.mubr.f32.gmra.mrb[0].mxu0 %v8951
  %v9037 = vpop.f32.mrb[0].mxu0
  %v9038 = vadd.f32 0.0, %v9037
  %v9039 = vpop.f32.mrb[0].mxu0
  %9040 = vmatprep.mubr.f32.mxu0 0.0
  %9041 = vmatmul.mubr.f32.gmra.mrb[0].mxu0 %v8953
  %v9042 = vpop.f32.mrb[0].mxu0
  %v9043 = vadd.f32 0.0, %v9042
  %v9044 = vpop.f32.mrb[0].mxu0
  %9045 = vmatprep.mubr.f32.mxu0 0.0
  %9046 = vmatmul.mubr.f32.gmra.mrb[0].mxu0 %v8955
  %v9047 = vpop.f32.mrb[0].mxu0
  %v9048 = vadd.f32 0.0, %v9047
  %v9049 = vpop.f32.mrb[0].mxu0
  %9050 = vmatprep.mubr.f32.mxu0 0.0
  %9051 = vmatmul.mubr.f32.gmra.mrb[0].mxu0 %v8957
  %v9052 = vpop.f32.mrb[0].mxu0
  %v9053 = vadd.f32 0.0, %v9052
  %v9054 = vpop.f32.mrb[0].mxu0
  %9055 = vmatprep.mubr.f32.mxu0 0.0
  %9056 = vmatmul.mubr.f32.gmra.mrb[0].mxu0 %v8959
  %v9057 = vpop.f32.mrb[0].mxu0
  %v9058 = vadd.f32 0.0, %v9057
  %v9059 = vpop.f32.mrb[0].mxu0
  %9060 = vdwg.mxu0
  %v9061 = vadd.f32 %v8778, %v9028
  %v9062 = vadd.f32 %v8779, %v9033
  %v9063 = vadd.f32 %v8780, %v9038
  %v9064 = vadd.f32 %v8781, %v9043
  %v9065 = vadd.f32 %v8782, %v9048
  %v9066 = vadd.f32 %v8783, %v9053
  %v9067 = vadd.f32 %v8784, %v9058
  %s9068 = scalar_lea.vmem %s5, 224
  %v9069 = vld [vmem:[%s9068] sm:$0xff]
  %v9070 = vld [vmem:[%s9068 + $0x8] sm:$0xff]
  %v9071 = vld [vmem:[%s9068 + $0x10] sm:$0xff]
  %v9072 = vld [vmem:[%s9068 + $0x18] sm:$0xff]
  %v9073 = vcombine.low %v6712, %v6719
  %v9074 = vcombine.low %v6726, %v6754
  %v9076 = vunpack.c.l.s4 1966171168
  %v9077 = vunpack.c.0.s8 %v9076
  %v9078 = vlaneseq
  %v9079 = vshrl.u32 %v9078, 7
  %v9080 = vsub.s32 %v9077, %v9079
  %v9081 = vrot.slane %v9073, %v9080
  %v9083 = vunpack.c.l.s4 1966171168
  %v9084 = vunpack.c.0.s8 %v9083
  %v9085 = vlaneseq
  %v9086 = vshrl.u32 %v9085, 7
  %v9087 = vsub.s32 %v9084, %v9086
  %v9088 = vrot.slane %v9074, %v9087
  %v9089 = vcombine.low %v9081, %v9088
  %v9090 = vcombine.low %v6260, %v6253
  %v9092 = vunpack.c.l.s4 1966171168
  %v9093 = vunpack.c.0.s8 %v9092
  %v9094 = vlaneseq
  %v9095 = vshrl.u32 %v9094, 7
  %v9096 = vsub.s32 %v9093, %v9095
  %v9097 = vrot.slane %v9090, %v9096
  %v9098 = vcombine.low %v6761, %v6768
  %v9099 = vcombine.low %v6775, %v9097
  %v9101 = vunpack.c.l.s4 1966171168
  %v9102 = vunpack.c.0.s8 %v9101
  %v9103 = vlaneseq
  %v9104 = vshrl.u32 %v9103, 7
  %v9105 = vsub.s32 %v9102, %v9104
  %v9106 = vrot.slane %v9098, %v9105
  %v9108 = vunpack.c.l.s4 1966171168
  %v9109 = vunpack.c.0.s8 %v9108
  %v9110 = vlaneseq
  %v9111 = vshrl.u32 %v9110, 7
  %v9112 = vsub.s32 %v9109, %v9111
  %v9113 = vrot.slane %v9099, %v9112
  %v9114 = vcombine.low %v9106, %v9113
  %v9115 = vcombine.low %v6319, %v6302
  %v9116 = vcombine.low %v6316, %v6318
  %v9118 = vunpack.c.l.s4 1966171168
  %v9119 = vunpack.c.0.s8 %v9118
  %v9120 = vlaneseq
  %v9121 = vshrl.u32 %v9120, 7
  %v9122 = vsub.s32 %v9119, %v9121
  %v9123 = vrot.slane %v9115, %v9122
  %v9125 = vunpack.c.l.s4 1966171168
  %v9126 = vunpack.c.0.s8 %v9125
  %v9127 = vlaneseq
  %v9128 = vshrl.u32 %v9127, 7
  %v9129 = vsub.s32 %v9126, %v9128
  %v9130 = vrot.slane %v9116, %v9129
  %v9131 = vcombine.low %v9123, %v9130
  %v9133 = vunpack.c.l.s4 1966171168
  %v9134 = vunpack.c.0.s8 %v9133
  %v9135 = vlaneseq
  %v9136 = vshrl.u32 %v9135, 7
  %v9137 = vsub.s32 %v9134, %v9136
  %v9138 = vrot.slane %v9131, %v9137
  %v9139 = vcombine.low %v8556, %v9138
  %v9140 = vcombine.low %v6320, %v6442
  %v9142 = vunpack.c.l.s4 1966171168
  %v9143 = vunpack.c.0.s8 %v9142
  %v9144 = vlaneseq
  %v9145 = vshrl.u32 %v9144, 7
  %v9146 = vsub.s32 %v9143, %v9145
  %v9147 = vrot.slane %v9140, %v9146
  %v9148 = vcombine.low %v9147, %v6866
  %v9149 = vcombine.low %v6873, %v6901
  %v9151 = vunpack.c.l.s4 1966171168
  %v9152 = vunpack.c.0.s8 %v9151
  %v9153 = vlaneseq
  %v9154 = vshrl.u32 %v9153, 7
  %v9155 = vsub.s32 %v9152, %v9154
  %v9156 = vrot.slane %v9148, %v9155
  %v9158 = vunpack.c.l.s4 1966171168
  %v9159 = vunpack.c.0.s8 %v9158
  %v9160 = vlaneseq
  %v9161 = vshrl.u32 %v9160, 7
  %v9162 = vsub.s32 %v9159, %v9161
  %v9163 = vrot.slane %v9149, %v9162
  %v9164 = vcombine.low %v9156, %v9163
  %v9165 = vcombine.low %v6908, %v6915
  %v9167 = vunpack.c.l.s4 1966171168
  %v9168 = vunpack.c.0.s8 %v9167
  %v9169 = vlaneseq
  %v9170 = vshrl.u32 %v9169, 7
  %v9171 = vsub.s32 %v9168, %v9170
  %v9172 = vrot.slane %v9165, %v9171
  %v9173 = vcombine.low %v9172, %v8640
  %v9174 = vcombine.low %v6603, %v6596
  %v9175 = vcombine.low %v6610, %v6612
  %v9177 = vunpack.c.l.s4 1966171168
  %v9178 = vunpack.c.0.s8 %v9177
  %v9179 = vlaneseq
  %v9180 = vshrl.u32 %v9179, 7
  %v9181 = vsub.s32 %v9178, %v9180
  %v9182 = vrot.slane %v9174, %v9181
  %v9184 = vunpack.c.l.s4 1966171168
  %v9185 = vunpack.c.0.s8 %v9184
  %v9186 = vlaneseq
  %v9187 = vshrl.u32 %v9186, 7
  %v9188 = vsub.s32 %v9185, %v9187
  %v9189 = vrot.slane %v9175, %v9188
  %v9190 = vcombine.low %v8017, %v8042
  %v9191 = vcombine.low %v9182, %v9189
  %v9193 = vunpack.c.l.s4 1966171168
  %v9194 = vunpack.c.0.s8 %v9193
  %v9195 = vlaneseq
  %v9196 = vshrl.u32 %v9195, 7
  %v9197 = vsub.s32 %v9194, %v9196
  %v9198 = vrot.slane %v9190, %v9197
  %v9200 = vunpack.c.l.s4 1966171168
  %v9201 = vunpack.c.0.s8 %v9200
  %v9202 = vlaneseq
  %v9203 = vshrl.u32 %v9202, 7
  %v9204 = vsub.s32 %v9201, %v9203
  %v9205 = vrot.slane %v9191, %v9204
  %v9206 = vcombine.low %v9198, %v9205
  %v9207 = vcombine.low %v6614, %v6629
  %v9209 = vunpack.c.l.s4 1966171168
  %v9210 = vunpack.c.0.s8 %v9209
  %v9211 = vlaneseq
  %v9212 = vshrl.u32 %v9211, 7
  %v9213 = vsub.s32 %v9210, %v9212
  %v9214 = vrot.slane %v9207, %v9213
  %v9216 = vunpack.c.l.s4 1966171168
  %v9217 = vunpack.c.0.s8 %v9216
  %v9218 = vlaneseq
  %v9219 = vshrl.u32 %v9218, 7
  %v9220 = vsub.s32 %v9217, %v9219
  %v9221 = vrot.slane %v9214, %v9220
  %v9222 = vsel %vm6955, %v9089, 0
  %v9224 = vsel %vm6955, %v9114, 0
  %v9226 = vsel %vm6955, %v9139, 0
  %v9228 = vsel %vm6955, %v9164, 0
  %v9230 = vsel %vm6955, %v9173, 0
  %v9232 = vsel %vm6955, %v9206, 0
  %v9234 = vsel %vm6955, %v9221, 0
  %9236 = vmatprep.subr.mxu0 0.0
  %9237 = vmatpush1.msra.mxu0 %v9069
  %9238 = vmatprep.subr.mxu0 0.0
  %9239 = vmatpush1.msra.mxu0 %v9070
  %9240 = vmatprep.subr.mxu0 0.0
  %9241 = vmatpush1.msra.mxu0 %v9071
  %9242 = vmatprep.subr.mxu0 0.0
  %9243 = vmatpush1.msra.mxu0 %v9072
  %9244 = vmatprep.subr.mxu0 0.0
  %9245 = vmatpush1.msra.mxu0 0.0
  %9246 = vmatprep.subr.mxu0 0.0
  %9247 = vmatpush1.msra.mxu0 0.0
  %9248 = vmatprep.subr.mxu0 0.0
  %9249 = vmatpush1.msra.mxu0 0.0
  %9250 = vmatprep.subr.mxu0 0.0
  %9251 = vmatpush1.msra.mxu0 0.0
  %9252 = vmatprep.subr.mxu0 0.0
  %9253 = vmatpush1.msra.mxu0 0.0
  %9254 = vmatprep.subr.mxu0 0.0
  %9255 = vmatpush1.msra.mxu0 0.0
  %9256 = vmatprep.subr.mxu0 0.0
  %9257 = vmatpush1.msra.mxu0 0.0
  %9258 = vmatprep.subr.mxu0 0.0
  %9259 = vmatpush1.msra.mxu0 0.0
  %9260 = vmatprep.subr.mxu0 0.0
  %9261 = vmatpush1.msra.mxu0 0.0
  %9262 = vmatprep.subr.mxu0 0.0
  %9263 = vmatpush1.msra.mxu0 0.0
  %9264 = vmatprep.subr.mxu0 0.0
  %9265 = vmatpush1.msra.mxu0 0.0
  %9266 = vmatprep.subr.mxu0 0.0
  %9267 = vmatpush1.msra.mxu0 0.0
  %9268 = vmatprep.subr.mxu0 0.0
  %9269 = vmatpush1.msra.mxu0 0.0
  %9270 = vmatprep.subr.mxu0 0.0
  %9271 = vmatpush1.msra.mxu0 0.0
  %9272 = vmatprep.subr.mxu0 0.0
  %9273 = vmatpush1.msra.mxu0 0.0
  %9274 = vmatprep.subr.mxu0 0.0
  %9275 = vmatpush1.msra.mxu0 0.0
  %9276 = vmatprep.subr.mxu0 0.0
  %9277 = vmatpush1.msra.mxu0 0.0
  %9278 = vmatprep.subr.mxu0 0.0
  %9279 = vmatpush1.msra.mxu0 0.0
  %9280 = vmatprep.subr.mxu0 0.0
  %9281 = vmatpush1.msra.mxu0 0.0
  %9282 = vmatprep.subr.mxu0 0.0
  %9283 = vmatpush1.msra.mxu0 0.0
  %9284 = vmatprep.subr.mxu0 0.0
  %9285 = vmatpush1.msra.mxu0 0.0
  %9286 = vmatprep.subr.mxu0 0.0
  %9287 = vmatpush1.msra.mxu0 0.0
  %9288 = vmatprep.subr.mxu0 0.0
  %9289 = vmatpush1.msra.mxu0 0.0
  %9290 = vmatprep.subr.mxu0 0.0
  %9291 = vmatpush1.msra.mxu0 0.0
  %9292 = vmatprep.subr.mxu0 0.0
  %9293 = vmatpush1.msra.mxu0 0.0
  %9294 = vmatprep.subr.mxu0 0.0
  %9295 = vmatpush1.msra.mxu0 0.0
  %9296 = vmatprep.subr.mxu0 0.0
  %9297 = vmatpush1.msra.mxu0 0.0
  %9298 = vmatprep.subr.mxu0 0.0
  %9299 = vmatpush1.msra.mxu0 0.0
  %9300 = vmatprep.mubr.f32.mxu0 0.0
  %9301 = vmatmul.mubr.f32.gmra.mrb[0].mxu0 %v9222
  %v9302 = vpop.f32.mrb[0].mxu0
  %v9303 = vadd.f32 0.0, %v9302
  %v9304 = vpop.f32.mrb[0].mxu0
  %9305 = vmatprep.mubr.f32.mxu0 0.0
  %9306 = vmatmul.mubr.f32.gmra.mrb[0].mxu0 %v9224
  %v9307 = vpop.f32.mrb[0].mxu0
  %v9308 = vadd.f32 0.0, %v9307
  %v9309 = vpop.f32.mrb[0].mxu0
  %9310 = vmatprep.mubr.f32.mxu0 0.0
  %9311 = vmatmul.mubr.f32.gmra.mrb[0].mxu0 %v9226
  %v9312 = vpop.f32.mrb[0].mxu0
  %v9313 = vadd.f32 0.0, %v9312
  %v9314 = vpop.f32.mrb[0].mxu0
  %9315 = vmatprep.mubr.f32.mxu0 0.0
  %9316 = vmatmul.mubr.f32.gmra.mrb[0].mxu0 %v9228
  %v9317 = vpop.f32.mrb[0].mxu0
  %v9318 = vadd.f32 0.0, %v9317
  %v9319 = vpop.f32.mrb[0].mxu0
  %9320 = vmatprep.mubr.f32.mxu0 0.0
  %9321 = vmatmul.mubr.f32.gmra.mrb[0].mxu0 %v9230
  %v9322 = vpop.f32.mrb[0].mxu0
  %v9323 = vadd.f32 0.0, %v9322
  %v9324 = vpop.f32.mrb[0].mxu0
  %9325 = vmatprep.mubr.f32.mxu0 0.0
  %9326 = vmatmul.mubr.f32.gmra.mrb[0].mxu0 %v9232
  %v9327 = vpop.f32.mrb[0].mxu0
  %v9328 = vadd.f32 0.0, %v9327
  %v9329 = vpop.f32.mrb[0].mxu0
  %9330 = vmatprep.mubr.f32.mxu0 0.0
  %9331 = vmatmul.mubr.f32.gmra.mrb[0].mxu0 %v9234
  %v9332 = vpop.f32.mrb[0].mxu0
  %v9333 = vadd.f32 0.0, %v9332
  %v9334 = vpop.f32.mrb[0].mxu0
  %9335 = vdwg.mxu0
  %v9336 = vadd.f32 %v9061, %v9303
  %v9337 = vadd.f32 %v9062, %v9308
  %v9338 = vadd.f32 %v9063, %v9313
  %v9339 = vadd.f32 %v9064, %v9318
  %v9340 = vadd.f32 %v9065, %v9323
  %v9341 = vadd.f32 %v9066, %v9328
  %v9342 = vadd.f32 %v9067, %v9333
  %s9343 = scalar_lea.vmem %s5, 256
  %v9344 = vld [vmem:[%s9343] sm:$0xff]
  %v9345 = vld [vmem:[%s9343 + $0x8] sm:$0xff]
  %v9346 = vld [vmem:[%s9343 + $0x10] sm:$0xff]
  %v9347 = vld [vmem:[%s9343 + $0x18] sm:$0xff]
  %v9348 = vcombine.low %v7143, %v7547
  %v9349 = vcombine.low %v7554, %v7185
  %v9351 = vunpack.c.l.s4 1966171168
  %v9352 = vunpack.c.0.s8 %v9351
  %v9353 = vlaneseq
  %v9354 = vshrl.u32 %v9353, 7
  %v9355 = vsub.s32 %v9352, %v9354
  %v9356 = vrot.slane %v9348, %v9355
  %v9358 = vunpack.c.l.s4 1966171168
  %v9359 = vunpack.c.0.s8 %v9358
  %v9360 = vlaneseq
  %v9361 = vshrl.u32 %v9360, 7
  %v9362 = vsub.s32 %v9359, %v9361
  %v9363 = vrot.slane %v9349, %v9362
  %v9364 = vcombine.low %v9356, %v9363
  %v9365 = vcombine.low %v6268, %v6267
  %v9367 = vunpack.c.l.s4 1966171168
  %v9368 = vunpack.c.0.s8 %v9367
  %v9369 = vlaneseq
  %v9370 = vshrl.u32 %v9369, 7
  %v9371 = vsub.s32 %v9368, %v9370
  %v9372 = vrot.slane %v9365, %v9371
  %v9373 = vcombine.low %v7580, %v7199
  %v9374 = vcombine.low %v7587, %v9372
  %v9376 = vunpack.c.l.s4 1966171168
  %v9377 = vunpack.c.0.s8 %v9376
  %v9378 = vlaneseq
  %v9379 = vshrl.u32 %v9378, 7
  %v9380 = vsub.s32 %v9377, %v9379
  %v9381 = vrot.slane %v9373, %v9380
  %v9383 = vunpack.c.l.s4 1966171168
  %v9384 = vunpack.c.0.s8 %v9383
  %v9385 = vlaneseq
  %v9386 = vshrl.u32 %v9385, 7
  %v9387 = vsub.s32 %v9384, %v9386
  %v9388 = vrot.slane %v9374, %v9387
  %v9389 = vcombine.low %v9381, %v9388
  %v9390 = vcombine.low %v6295, %v6309
  %v9391 = vcombine.low %v6318, %v6320
  %v9393 = vunpack.c.l.s4 1966171168
  %v9394 = vunpack.c.0.s8 %v9393
  %v9395 = vlaneseq
  %v9396 = vshrl.u32 %v9395, 7
  %v9397 = vsub.s32 %v9394, %v9396
  %v9398 = vrot.slane %v9390, %v9397
  %v9400 = vunpack.c.l.s4 1966171168
  %v9401 = vunpack.c.0.s8 %v9400
  %v9402 = vlaneseq
  %v9403 = vshrl.u32 %v9402, 7
  %v9404 = vsub.s32 %v9401, %v9403
  %v9405 = vrot.slane %v9391, %v9404
  %v9406 = vcombine.low %v8241, %v9398
  %v9407 = vcombine.low %v8847, %v9405
  %v9409 = vunpack.c.l.s4 1966171168
  %v9410 = vunpack.c.0.s8 %v9409
  %v9411 = vlaneseq
  %v9412 = vshrl.u32 %v9411, 7
  %v9413 = vsub.s32 %v9410, %v9412
  %v9414 = vrot.slane %v9406, %v9413
  %v9416 = vunpack.c.l.s4 1966171168
  %v9417 = vunpack.c.0.s8 %v9416
  %v9418 = vlaneseq
  %v9419 = vshrl.u32 %v9418, 7
  %v9420 = vsub.s32 %v9417, %v9419
  %v9421 = vrot.slane %v9407, %v9420
  %v9422 = vcombine.low %v9414, %v9421
  %v9423 = vcombine.low %v6344, %v6456
  %v9425 = vunpack.c.l.s4 1966171168
  %v9426 = vunpack.c.0.s8 %v9425
  %v9427 = vlaneseq
  %v9428 = vshrl.u32 %v9427, 7
  %v9429 = vsub.s32 %v9426, %v9428
  %v9430 = vrot.slane %v9423, %v9429
  %v9431 = vcombine.low %v9430, %v7297
  %v9432 = vcombine.low %v7661, %v7332
  %v9434 = vunpack.c.l.s4 1966171168
  %v9435 = vunpack.c.0.s8 %v9434
  %v9436 = vlaneseq
  %v9437 = vshrl.u32 %v9436, 7
  %v9438 = vsub.s32 %v9435, %v9437
  %v9439 = vrot.slane %v9431, %v9438
  %v9441 = vunpack.c.l.s4 1966171168
  %v9442 = vunpack.c.0.s8 %v9441
  %v9443 = vlaneseq
  %v9444 = vshrl.u32 %v9443, 7
  %v9445 = vsub.s32 %v9442, %v9444
  %v9446 = vrot.slane %v9432, %v9445
  %v9447 = vcombine.low %v9439, %v9446
  %v9448 = vcombine.low %v7687, %v7694
  %v9449 = vcombine.low %v7371, %v7719
  %v9451 = vunpack.c.l.s4 1966171168
  %v9452 = vunpack.c.0.s8 %v9451
  %v9453 = vlaneseq
  %v9454 = vshrl.u32 %v9453, 7
  %v9455 = vsub.s32 %v9452, %v9454
  %v9456 = vrot.slane %v9448, %v9455
  %v9458 = vunpack.c.l.s4 1966171168
  %v9459 = vunpack.c.0.s8 %v9458
  %v9460 = vlaneseq
  %v9461 = vshrl.u32 %v9460, 7
  %v9462 = vsub.s32 %v9459, %v9461
  %v9463 = vrot.slane %v9449, %v9462
  %v9464 = vcombine.low %v9456, %v9463
  %v9465 = vcombine.low %v6611, %v6610
  %v9467 = vunpack.c.l.s4 1966171168
  %v9468 = vunpack.c.0.s8 %v9467
  %v9469 = vlaneseq
  %v9470 = vshrl.u32 %v9469, 7
  %v9471 = vsub.s32 %v9468, %v9470
  %v9472 = vrot.slane %v9465, %v9471
  %v9473 = vcombine.low %v8308, %v8333
  %v9474 = vcombine.low %v9472, %v8939
  %v9476 = vunpack.c.l.s4 1966171168
  %v9477 = vunpack.c.0.s8 %v9476
  %v9478 = vlaneseq
  %v9479 = vshrl.u32 %v9478, 7
  %v9480 = vsub.s32 %v9477, %v9479
  %v9481 = vrot.slane %v9473, %v9480
  %v9483 = vunpack.c.l.s4 1966171168
  %v9484 = vunpack.c.0.s8 %v9483
  %v9485 = vlaneseq
  %v9486 = vshrl.u32 %v9485, 7
  %v9487 = vsub.s32 %v9484, %v9486
  %v9488 = vrot.slane %v9474, %v9487
  %v9489 = vcombine.low %v9481, %v9488
  %v9490 = vcombine.low %v6629, %v6636
  %v9492 = vunpack.c.l.s4 1966171168
  %v9493 = vunpack.c.0.s8 %v9492
  %v9494 = vlaneseq
  %v9495 = vshrl.u32 %v9494, 7
  %v9496 = vsub.s32 %v9493, %v9495
  %v9497 = vrot.slane %v9490, %v9496
  %v9499 = vunpack.c.l.s4 1966171168
  %v9500 = vunpack.c.0.s8 %v9499
  %v9501 = vlaneseq
  %v9502 = vshrl.u32 %v9501, 7
  %v9503 = vsub.s32 %v9500, %v9502
  %v9504 = vrot.slane %v9497, %v9503
  %v9505 = vsel %vm6955, %v9364, 0
  %v9507 = vsel %vm6955, %v9389, 0
  %v9509 = vsel %vm6955, %v9422, 0
  %v9511 = vsel %vm6955, %v9447, 0
  %v9513 = vsel %vm6955, %v9464, 0
  %v9515 = vsel %vm6955, %v9489, 0
  %v9517 = vsel %vm6955, %v9504, 0
  %9519 = vmatprep.subr.mxu0 0.0
  %9520 = vmatpush1.msra.mxu0 %v9344
  %9521 = vmatprep.subr.mxu0 0.0
  %9522 = vmatpush1.msra.mxu0 %v9345
  %9523 = vmatprep.subr.mxu0 0.0
  %9524 = vmatpush1.msra.mxu0 %v9346
  %9525 = vmatprep.subr.mxu0 0.0
  %9526 = vmatpush1.msra.mxu0 %v9347
  %9527 = vmatprep.subr.mxu0 0.0
  %9528 = vmatpush1.msra.mxu0 0.0
  %9529 = vmatprep.subr.mxu0 0.0
  %9530 = vmatpush1.msra.mxu0 0.0
  %9531 = vmatprep.subr.mxu0 0.0
  %9532 = vmatpush1.msra.mxu0 0.0
  %9533 = vmatprep.subr.mxu0 0.0
  %9534 = vmatpush1.msra.mxu0 0.0
  %9535 = vmatprep.subr.mxu0 0.0
  %9536 = vmatpush1.msra.mxu0 0.0
  %9537 = vmatprep.subr.mxu0 0.0
  %9538 = vmatpush1.msra.mxu0 0.0
  %9539 = vmatprep.subr.mxu0 0.0
  %9540 = vmatpush1.msra.mxu0 0.0
  %9541 = vmatprep.subr.mxu0 0.0
  %9542 = vmatpush1.msra.mxu0 0.0
  %9543 = vmatprep.subr.mxu0 0.0
  %9544 = vmatpush1.msra.mxu0 0.0
  %9545 = vmatprep.subr.mxu0 0.0
  %9546 = vmatpush1.msra.mxu0 0.0
  %9547 = vmatprep.subr.mxu0 0.0
  %9548 = vmatpush1.msra.mxu0 0.0
  %9549 = vmatprep.subr.mxu0 0.0
  %9550 = vmatpush1.msra.mxu0 0.0
  %9551 = vmatprep.subr.mxu0 0.0
  %9552 = vmatpush1.msra.mxu0 0.0
  %9553 = vmatprep.subr.mxu0 0.0
  %9554 = vmatpush1.msra.mxu0 0.0
  %9555 = vmatprep.subr.mxu0 0.0
  %9556 = vmatpush1.msra.mxu0 0.0
  %9557 = vmatprep.subr.mxu0 0.0
  %9558 = vmatpush1.msra.mxu0 0.0
  %9559 = vmatprep.subr.mxu0 0.0
  %9560 = vmatpush1.msra.mxu0 0.0
  %9561 = vmatprep.subr.mxu0 0.0
  %9562 = vmatpush1.msra.mxu0 0.0
  %9563 = vmatprep.subr.mxu0 0.0
  %9564 = vmatpush1.msra.mxu0 0.0
  %9565 = vmatprep.subr.mxu0 0.0
  %9566 = vmatpush1.msra.mxu0 0.0
  %9567 = vmatprep.subr.mxu0 0.0
  %9568 = vmatpush1.msra.mxu0 0.0
  %9569 = vmatprep.subr.mxu0 0.0
  %9570 = vmatpush1.msra.mxu0 0.0
  %9571 = vmatprep.subr.mxu0 0.0
  %9572 = vmatpush1.msra.mxu0 0.0
  %9573 = vmatprep.subr.mxu0 0.0
  %9574 = vmatpush1.msra.mxu0 0.0
  %9575 = vmatprep.subr.mxu0 0.0
  %9576 = vmatpush1.msra.mxu0 0.0
  %9577 = vmatprep.subr.mxu0 0.0
  %9578 = vmatpush1.msra.mxu0 0.0
  %9579 = vmatprep.subr.mxu0 0.0
  %9580 = vmatpush1.msra.mxu0 0.0
  %9581 = vmatprep.subr.mxu0 0.0
  %9582 = vmatpush1.msra.mxu0 0.0
  %9583 = vmatprep.mubr.f32.mxu0 0.0
  %9584 = vmatmul.mubr.f32.gmra.mrb[0].mxu0 %v9505
  %v9585 = vpop.f32.mrb[0].mxu0
  %v9586 = vadd.f32 0.0, %v9585
  %v9587 = vpop.f32.mrb[0].mxu0
  %9588 = vmatprep.mubr.f32.mxu0 0.0
  %9589 = vmatmul.mubr.f32.gmra.mrb[0].mxu0 %v9507
  %v9590 = vpop.f32.mrb[0].mxu0
  %v9591 = vadd.f32 0.0, %v9590
  %v9592 = vpop.f32.mrb[0].mxu0
  %9593 = vmatprep.mubr.f32.mxu0 0.0
  %9594 = vmatmul.mubr.f32.gmra.mrb[0].mxu0 %v9509
  %v9595 = vpop.f32.mrb[0].mxu0
  %v9596 = vadd.f32 0.0, %v9595
  %v9597 = vpop.f32.mrb[0].mxu0
  %9598 = vmatprep.mubr.f32.mxu0 0.0
  %9599 = vmatmul.mubr.f32.gmra.mrb[0].mxu0 %v9511
  %v9600 = vpop.f32.mrb[0].mxu0
  %v9601 = vadd.f32 0.0, %v9600
  %v9602 = vpop.f32.mrb[0].mxu0
  %9603 = vmatprep.mubr.f32.mxu0 0.0
  %9604 = vmatmul.mubr.f32.gmra.mrb[0].mxu0 %v9513
  %v9605 = vpop.f32.mrb[0].mxu0
  %v9606 = vadd.f32 0.0, %v9605
  %v9607 = vpop.f32.mrb[0].mxu0
  %9608 = vmatprep.mubr.f32.mxu0 0.0
  %9609 = vmatmul.mubr.f32.gmra.mrb[0].mxu0 %v9515
  %v9610 = vpop.f32.mrb[0].mxu0
  %v9611 = vadd.f32 0.0, %v9610
  %v9612 = vpop.f32.mrb[0].mxu0
  %9613 = vmatprep.mubr.f32.mxu0 0.0
  %9614 = vmatmul.mubr.f32.gmra.mrb[0].mxu0 %v9517
  %v9615 = vpop.f32.mrb[0].mxu0
  %v9616 = vadd.f32 0.0, %v9615
  %v9617 = vpop.f32.mrb[0].mxu0
  %9618 = vdwg.mxu0
  %v9619 = vadd.f32 %v9336, %v9586
  %v9620 = vadd.f32 %v9337, %v9591
  %v9621 = vadd.f32 %v9338, %v9596
  %v9622 = vadd.f32 %v9339, %v9601
  %v9623 = vadd.f32 %v9340, %v9606
  %v9624 = vadd.f32 %v9341, %v9611
  %v9625 = vadd.f32 %v9342, %v9616
  %v9626 = vld [vmem:[%s6] sm:$0x1]
  %v9628 = vlaneseq
  %v9629 = vshrl.u32 %v9628, 7
  %v9630 = vsub.s32 0, %v9629
  %v9631 = vrot.slane %v9626, %v9630
  %v9633 = vadd.f32 %v9619, %v9631
  %v9634 = vadd.f32 %v9620, %v9631
  %v9635 = vadd.f32 %v9621, %v9631
  %v9636 = vadd.f32 %v9622, %v9631
  %v9637 = vadd.f32 %v9623, %v9631
  %v9638 = vadd.f32 %v9624, %v9631
  %v9639 = vadd.f32 %v9625, %v9631
  %v9640 = vmax.f32 %v9633, 0.0
  %v9641 = vmax.f32 %v9634, 0.0
  %v9642 = vmax.f32 %v9635, 0.0
  %v9643 = vmax.f32 %v9636, 0.0
  %v9644 = vmax.f32 %v9637, 0.0
  %v9645 = vmax.f32 %v9638, 0.0
  %v9646 = vmax.f32 %v9639, 0.0
  %v9654 = vcombine.high %v9640, %v9640
  %v9656 = vunpack.c.l.s4 1966171168
  %v9657 = vunpack.c.0.s8 %v9656
  %v9658 = vlaneseq
  %v9659 = vshrl.u32 %v9658, 7
  %v9660 = vsub.s32 %v9657, %v9659
  %v9661 = vrot.slane %v9640, %v9660
  %v9663 = vunpack.c.l.s4 1966171168
  %v9664 = vunpack.c.0.s8 %v9663
  %v9665 = vlaneseq
  %v9666 = vshrl.u32 %v9665, 7
  %v9667 = vsub.s32 %v9664, %v9666
  %v9668 = vrot.slane %v9654, %v9667
  %v9669 = vcombine.high %v9661, %v9661
  %v9670 = vcombine.high %v9668, %v9668
  %v9672 = vunpack.c.l.s4 1966171168
  %v9673 = vunpack.c.0.s8 %v9672
  %v9674 = vlaneseq
  %v9675 = vshrl.u32 %v9674, 7
  %v9676 = vsub.s32 %v9673, %v9675
  %v9677 = vrot.slane %v9661, %v9676
  %v9679 = vunpack.c.l.s4 1966171168
  %v9680 = vunpack.c.0.s8 %v9679
  %v9681 = vlaneseq
  %v9682 = vshrl.u32 %v9681, 7
  %v9683 = vsub.s32 %v9680, %v9682
  %v9684 = vrot.slane %v9668, %v9683
  %v9686 = vunpack.c.l.s4 1966171168
  %v9687 = vunpack.c.0.s8 %v9686
  %v9688 = vlaneseq
  %v9689 = vshrl.u32 %v9688, 7
  %v9690 = vsub.s32 %v9687, %v9689
  %v9691 = vrot.slane %v9669, %v9690
  %v9693 = vunpack.c.l.s4 1966171168
  %v9694 = vunpack.c.0.s8 %v9693
  %v9695 = vlaneseq
  %v9696 = vshrl.u32 %v9695, 7
  %v9697 = vsub.s32 %v9694, %v9696
  %v9698 = vrot.slane %v9670, %v9697
  %v9699 = vcombine.high %v9677, %v9677
  %v9700 = vcombine.high %v9684, %v9684
  %v9701 = vcombine.high %v9691, %v9691
  %v9702 = vcombine.high %v9698, %v9698
  %v9703 = vcombine.high %v9641, %v9641
  %v9705 = vunpack.c.l.s4 1966171168
  %v9706 = vunpack.c.0.s8 %v9705
  %v9707 = vlaneseq
  %v9708 = vshrl.u32 %v9707, 7
  %v9709 = vsub.s32 %v9706, %v9708
  %v9710 = vrot.slane %v9641, %v9709
  %v9712 = vunpack.c.l.s4 1966171168
  %v9713 = vunpack.c.0.s8 %v9712
  %v9714 = vlaneseq
  %v9715 = vshrl.u32 %v9714, 7
  %v9716 = vsub.s32 %v9713, %v9715
  %v9717 = vrot.slane %v9703, %v9716
  %v9718 = vcombine.high %v9710, %v9710
  %v9719 = vcombine.high %v9717, %v9717
  %v9721 = vunpack.c.l.s4 1966171168
  %v9722 = vunpack.c.0.s8 %v9721
  %v9723 = vlaneseq
  %v9724 = vshrl.u32 %v9723, 7
  %v9725 = vsub.s32 %v9722, %v9724
  %v9726 = vrot.slane %v9710, %v9725
  %v9728 = vunpack.c.l.s4 1966171168
  %v9729 = vunpack.c.0.s8 %v9728
  %v9730 = vlaneseq
  %v9731 = vshrl.u32 %v9730, 7
  %v9732 = vsub.s32 %v9729, %v9731
  %v9733 = vrot.slane %v9717, %v9732
  %v9735 = vunpack.c.l.s4 1966171168
  %v9736 = vunpack.c.0.s8 %v9735
  %v9737 = vlaneseq
  %v9738 = vshrl.u32 %v9737, 7
  %v9739 = vsub.s32 %v9736, %v9738
  %v9740 = vrot.slane %v9718, %v9739
  %v9742 = vunpack.c.l.s4 1966171168
  %v9743 = vunpack.c.0.s8 %v9742
  %v9744 = vlaneseq
  %v9745 = vshrl.u32 %v9744, 7
  %v9746 = vsub.s32 %v9743, %v9745
  %v9747 = vrot.slane %v9719, %v9746
  %v9748 = vcombine.high %v9726, %v9726
  %v9749 = vcombine.high %v9733, %v9733
  %v9750 = vcombine.high %v9740, %v9740
  %v9751 = vcombine.high %v9747, %v9747
  %v9752 = vcombine.high %v9642, %v9642
  %v9754 = vunpack.c.l.s4 1966171168
  %v9755 = vunpack.c.0.s8 %v9754
  %v9756 = vlaneseq
  %v9757 = vshrl.u32 %v9756, 7
  %v9758 = vsub.s32 %v9755, %v9757
  %v9759 = vrot.slane %v9642, %v9758
  %v9761 = vunpack.c.l.s4 1966171168
  %v9762 = vunpack.c.0.s8 %v9761
  %v9763 = vlaneseq
  %v9764 = vshrl.u32 %v9763, 7
  %v9765 = vsub.s32 %v9762, %v9764
  %v9766 = vrot.slane %v9752, %v9765
  %v9767 = vcombine.high %v9759, %v9759
  %v9768 = vcombine.high %v9766, %v9766
  %v9770 = vunpack.c.l.s4 1966171168
  %v9771 = vunpack.c.0.s8 %v9770
  %v9772 = vlaneseq
  %v9773 = vshrl.u32 %v9772, 7
  %v9774 = vsub.s32 %v9771, %v9773
  %v9775 = vrot.slane %v9759, %v9774
  %v9777 = vunpack.c.l.s4 1966171168
  %v9778 = vunpack.c.0.s8 %v9777
  %v9779 = vlaneseq
  %v9780 = vshrl.u32 %v9779, 7
  %v9781 = vsub.s32 %v9778, %v9780
  %v9782 = vrot.slane %v9766, %v9781
  %v9784 = vunpack.c.l.s4 1966171168
  %v9785 = vunpack.c.0.s8 %v9784
  %v9786 = vlaneseq
  %v9787 = vshrl.u32 %v9786, 7
  %v9788 = vsub.s32 %v9785, %v9787
  %v9789 = vrot.slane %v9767, %v9788
  %v9791 = vunpack.c.l.s4 1966171168
  %v9792 = vunpack.c.0.s8 %v9791
  %v9793 = vlaneseq
  %v9794 = vshrl.u32 %v9793, 7
  %v9795 = vsub.s32 %v9792, %v9794
  %v9796 = vrot.slane %v9768, %v9795
  %v9797 = vcombine.high %v9775, %v9775
  %v9798 = vcombine.high %v9782, %v9782
  %v9799 = vcombine.high %v9789, %v9789
  %v9800 = vcombine.high %v9796, %v9796
  %v9801 = vcombine.high %v9643, %v9643
  %v9803 = vunpack.c.l.s4 1966171168
  %v9804 = vunpack.c.0.s8 %v9803
  %v9805 = vlaneseq
  %v9806 = vshrl.u32 %v9805, 7
  %v9807 = vsub.s32 %v9804, %v9806
  %v9808 = vrot.slane %v9643, %v9807
  %v9810 = vunpack.c.l.s4 1966171168
  %v9811 = vunpack.c.0.s8 %v9810
  %v9812 = vlaneseq
  %v9813 = vshrl.u32 %v9812, 7
  %v9814 = vsub.s32 %v9811, %v9813
  %v9815 = vrot.slane %v9801, %v9814
  %v9816 = vcombine.high %v9808, %v9808
  %v9817 = vcombine.high %v9815, %v9815
  %v9819 = vunpack.c.l.s4 1966171168
  %v9820 = vunpack.c.0.s8 %v9819
  %v9821 = vlaneseq
  %v9822 = vshrl.u32 %v9821, 7
  %v9823 = vsub.s32 %v9820, %v9822
  %v9824 = vrot.slane %v9808, %v9823
  %v9826 = vunpack.c.l.s4 1966171168
  %v9827 = vunpack.c.0.s8 %v9826
  %v9828 = vlaneseq
  %v9829 = vshrl.u32 %v9828, 7
  %v9830 = vsub.s32 %v9827, %v9829
  %v9831 = vrot.slane %v9815, %v9830
  %v9833 = vunpack.c.l.s4 1966171168
  %v9834 = vunpack.c.0.s8 %v9833
  %v9835 = vlaneseq
  %v9836 = vshrl.u32 %v9835, 7
  %v9837 = vsub.s32 %v9834, %v9836
  %v9838 = vrot.slane %v9816, %v9837
  %v9840 = vunpack.c.l.s4 1966171168
  %v9841 = vunpack.c.0.s8 %v9840
  %v9842 = vlaneseq
  %v9843 = vshrl.u32 %v9842, 7
  %v9844 = vsub.s32 %v9841, %v9843
  %v9845 = vrot.slane %v9817, %v9844
  %v9846 = vcombine.high %v9824, %v9824
  %v9847 = vcombine.high %v9831, %v9831
  %v9848 = vcombine.high %v9838, %v9838
  %v9849 = vcombine.high %v9845, %v9845
  %v9850 = vcombine.high %v9644, %v9644
  %v9852 = vunpack.c.l.s4 1966171168
  %v9853 = vunpack.c.0.s8 %v9852
  %v9854 = vlaneseq
  %v9855 = vshrl.u32 %v9854, 7
  %v9856 = vsub.s32 %v9853, %v9855
  %v9857 = vrot.slane %v9644, %v9856
  %v9859 = vunpack.c.l.s4 1966171168
  %v9860 = vunpack.c.0.s8 %v9859
  %v9861 = vlaneseq
  %v9862 = vshrl.u32 %v9861, 7
  %v9863 = vsub.s32 %v9860, %v9862
  %v9864 = vrot.slane %v9850, %v9863
  %v9865 = vcombine.high %v9857, %v9857
  %v9866 = vcombine.high %v9864, %v9864
  %v9868 = vunpack.c.l.s4 1966171168
  %v9869 = vunpack.c.0.s8 %v9868
  %v9870 = vlaneseq
  %v9871 = vshrl.u32 %v9870, 7
  %v9872 = vsub.s32 %v9869, %v9871
  %v9873 = vrot.slane %v9857, %v9872
  %v9875 = vunpack.c.l.s4 1966171168
  %v9876 = vunpack.c.0.s8 %v9875
  %v9877 = vlaneseq
  %v9878 = vshrl.u32 %v9877, 7
  %v9879 = vsub.s32 %v9876, %v9878
  %v9880 = vrot.slane %v9864, %v9879
  %v9882 = vunpack.c.l.s4 1966171168
  %v9883 = vunpack.c.0.s8 %v9882
  %v9884 = vlaneseq
  %v9885 = vshrl.u32 %v9884, 7
  %v9886 = vsub.s32 %v9883, %v9885
  %v9887 = vrot.slane %v9865, %v9886
  %v9889 = vunpack.c.l.s4 1966171168
  %v9890 = vunpack.c.0.s8 %v9889
  %v9891 = vlaneseq
  %v9892 = vshrl.u32 %v9891, 7
  %v9893 = vsub.s32 %v9890, %v9892
  %v9894 = vrot.slane %v9866, %v9893
  %v9895 = vcombine.high %v9873, %v9873
  %v9896 = vcombine.high %v9880, %v9880
  %v9897 = vcombine.high %v9887, %v9887
  %v9898 = vcombine.high %v9894, %v9894
  %v9899 = vcombine.high %v9645, %v9645
  %v9901 = vunpack.c.l.s4 1966171168
  %v9902 = vunpack.c.0.s8 %v9901
  %v9903 = vlaneseq
  %v9904 = vshrl.u32 %v9903, 7
  %v9905 = vsub.s32 %v9902, %v9904
  %v9906 = vrot.slane %v9645, %v9905
  %v9908 = vunpack.c.l.s4 1966171168
  %v9909 = vunpack.c.0.s8 %v9908
  %v9910 = vlaneseq
  %v9911 = vshrl.u32 %v9910, 7
  %v9912 = vsub.s32 %v9909, %v9911
  %v9913 = vrot.slane %v9899, %v9912
  %v9914 = vcombine.high %v9906, %v9906
  %v9915 = vcombine.high %v9913, %v9913
  %v9917 = vunpack.c.l.s4 1966171168
  %v9918 = vunpack.c.0.s8 %v9917
  %v9919 = vlaneseq
  %v9920 = vshrl.u32 %v9919, 7
  %v9921 = vsub.s32 %v9918, %v9920
  %v9922 = vrot.slane %v9906, %v9921
  %v9924 = vunpack.c.l.s4 1966171168
  %v9925 = vunpack.c.0.s8 %v9924
  %v9926 = vlaneseq
  %v9927 = vshrl.u32 %v9926, 7
  %v9928 = vsub.s32 %v9925, %v9927
  %v9929 = vrot.slane %v9913, %v9928
  %v9931 = vunpack.c.l.s4 1966171168
  %v9932 = vunpack.c.0.s8 %v9931
  %v9933 = vlaneseq
  %v9934 = vshrl.u32 %v9933, 7
  %v9935 = vsub.s32 %v9932, %v9934
  %v9936 = vrot.slane %v9914, %v9935
  %v9938 = vunpack.c.l.s4 1966171168
  %v9939 = vunpack.c.0.s8 %v9938
  %v9940 = vlaneseq
  %v9941 = vshrl.u32 %v9940, 7
  %v9942 = vsub.s32 %v9939, %v9941
  %v9943 = vrot.slane %v9915, %v9942
  %v9944 = vcombine.high %v9922, %v9922
  %v9945 = vcombine.high %v9929, %v9929
  %v9946 = vcombine.high %v9936, %v9936
  %v9947 = vcombine.high %v9943, %v9943
  %v9949 = vunpack.c.l.s4 1966171168
  %v9950 = vunpack.c.0.s8 %v9949
  %v9951 = vlaneseq
  %v9952 = vshrl.u32 %v9951, 7
  %v9953 = vsub.s32 %v9950, %v9952
  %v9954 = vrot.slane %v9646, %v9953
  %v9955 = vcombine.high %v9954, %v9954
  %v9957 = vunpack.c.l.s4 1966171168
  %v9958 = vunpack.c.0.s8 %v9957
  %v9959 = vlaneseq
  %v9960 = vshrl.u32 %v9959, 7
  %v9961 = vsub.s32 %v9958, %v9960
  %v9962 = vrot.slane %v9954, %v9961
  %v9964 = vunpack.c.l.s4 1966171168
  %v9965 = vunpack.c.0.s8 %v9964
  %v9966 = vlaneseq
  %v9967 = vshrl.u32 %v9966, 7
  %v9968 = vsub.s32 %v9965, %v9967
  %v9969 = vrot.slane %v9955, %v9968
  %v9970 = vld [vmem:[%s7] sm:$0xff]
  %v9971 = vld [vmem:[%s7 + $0x8] sm:$0xff]
  %v9972 = vld [vmem:[%s7 + $0x10] sm:$0xff]
  %v9973 = vld [vmem:[%s7 + $0x18] sm:$0xff]
  %v9974 = vld [vmem:[%s7 + $0x20] sm:$0xff]
  %v9975 = vld [vmem:[%s7 + $0x28] sm:$0xff]
  %v9976 = vld [vmem:[%s7 + $0x30] sm:$0xff]
  %v9977 = vld [vmem:[%s7 + $0x38] sm:$0xff]
  %s9978 = scalar_lea.vmem %s7, 64
  %v9979 = vld [vmem:[%s9978] sm:$0xff]
  %v9980 = vld [vmem:[%s9978 + $0x8] sm:$0xff]
  %v9981 = vld [vmem:[%s9978 + $0x10] sm:$0xff]
  %v9982 = vld [vmem:[%s9978 + $0x18] sm:$0xff]
  %v9983 = vld [vmem:[%s9978 + $0x20] sm:$0xff]
  %v9984 = vld [vmem:[%s9978 + $0x28] sm:$0xff]
  %v9985 = vld [vmem:[%s9978 + $0x30] sm:$0xff]
  %v9986 = vld [vmem:[%s9978 + $0x38] sm:$0xff]
  %v9987 = vcombine.low %v9691, %v9699
  %v9988 = vcombine.low %v9701, %v9700
  %v9989 = vcombine.low %v9702, %v9726
  %v9990 = vcombine.low %v9750, %v9733
  %v9992 = vunpack.c.l.s4 1966171168
  %v9993 = vunpack.c.0.s8 %v9992
  %v9994 = vlaneseq
  %v9995 = vshrl.u32 %v9994, 7
  %v9996 = vsub.s32 %v9993, %v9995
  %v9997 = vrot.slane %v9987, %v9996
  %v9999 = vunpack.c.l.s4 1966171168
  %v10000 = vunpack.c.0.s8 %v9999
  %v10001 = vlaneseq
  %v10002 = vshrl.u32 %v10001, 7
  %v10003 = vsub.s32 %v10000, %v10002
  %v10004 = vrot.slane %v9988, %v10003
  %v10006 = vunpack.c.l.s4 1966171168
  %v10007 = vunpack.c.0.s8 %v10006
  %v10008 = vlaneseq
  %v10009 = vshrl.u32 %v10008, 7
  %v10010 = vsub.s32 %v10007, %v10009
  %v10011 = vrot.slane %v9989, %v10010
  %v10013 = vunpack.c.l.s4 1966171168
  %v10014 = vunpack.c.0.s8 %v10013
  %v10015 = vlaneseq
  %v10016 = vshrl.u32 %v10015, 7
  %v10017 = vsub.s32 %v10014, %v10016
  %v10018 = vrot.slane %v9990, %v10017
  %v10019 = vcombine.low %v9997, %v10004
  %v10020 = vcombine.low %v10011, %v10018
  %v10022 = vunpack.c.l.s4 1966171168
  %v10023 = vunpack.c.0.s8 %v10022
  %v10024 = vlaneseq
  %v10025 = vshrl.u32 %v10024, 7
  %v10026 = vsub.s32 %v10023, %v10025
  %v10027 = vrot.slane %v10019, %v10026
  %v10029 = vunpack.c.l.s4 1966171168
  %v10030 = vunpack.c.0.s8 %v10029
  %v10031 = vlaneseq
  %v10032 = vshrl.u32 %v10031, 7
  %v10033 = vsub.s32 %v10030, %v10032
  %v10034 = vrot.slane %v10020, %v10033
  %v10035 = vcombine.low %v10027, %v10034
  %v10036 = vcombine.low %v9747, %v9846
  %v10037 = vcombine.low %v9848, %v9831
  %v10038 = vcombine.low %v9849, %v9873
  %v10039 = vcombine.low %v9887, %v9880
  %v10041 = vunpack.c.l.s4 1966171168
  %v10042 = vunpack.c.0.s8 %v10041
  %v10043 = vlaneseq
  %v10044 = vshrl.u32 %v10043, 7
  %v10045 = vsub.s32 %v10042, %v10044
  %v10046 = vrot.slane %v10036, %v10045
  %v10048 = vunpack.c.l.s4 1966171168
  %v10049 = vunpack.c.0.s8 %v10048
  %v10050 = vlaneseq
  %v10051 = vshrl.u32 %v10050, 7
  %v10052 = vsub.s32 %v10049, %v10051
  %v10053 = vrot.slane %v10037, %v10052
  %v10055 = vunpack.c.l.s4 1966171168
  %v10056 = vunpack.c.0.s8 %v10055
  %v10057 = vlaneseq
  %v10058 = vshrl.u32 %v10057, 7
  %v10059 = vsub.s32 %v10056, %v10058
  %v10060 = vrot.slane %v10038, %v10059
  %v10062 = vunpack.c.l.s4 1966171168
  %v10063 = vunpack.c.0.s8 %v10062
  %v10064 = vlaneseq
  %v10065 = vshrl.u32 %v10064, 7
  %v10066 = vsub.s32 %v10063, %v10065
  %v10067 = vrot.slane %v10039, %v10066
  %v10068 = vcombine.low %v10046, %v10053
  %v10069 = vcombine.low %v10060, %v10067
  %v10071 = vunpack.c.l.s4 1966171168
  %v10072 = vunpack.c.0.s8 %v10071
  %v10073 = vlaneseq
  %v10074 = vshrl.u32 %v10073, 7
  %v10075 = vsub.s32 %v10072, %v10074
  %v10076 = vrot.slane %v10068, %v10075
  %v10078 = vunpack.c.l.s4 1966171168
  %v10079 = vunpack.c.0.s8 %v10078
  %v10080 = vlaneseq
  %v10081 = vshrl.u32 %v10080, 7
  %v10082 = vsub.s32 %v10079, %v10081
  %v10083 = vrot.slane %v10069, %v10082
  %v10084 = vcombine.low %v10076, %v10083
  %v10085 = vcombine.low %v9894, %v9896
  %v10087 = vunpack.c.l.s4 1966171168
  %v10088 = vunpack.c.0.s8 %v10087
  %v10089 = vlaneseq
  %v10090 = vshrl.u32 %v10089, 7
  %v10091 = vsub.s32 %v10088, %v10090
  %v10092 = vrot.slane %v10085, %v10091
  %v10094 = vunpack.c.l.s4 1966171168
  %v10095 = vunpack.c.0.s8 %v10094
  %v10096 = vlaneseq
  %v10097 = vshrl.u32 %v10096, 7
  %v10098 = vsub.s32 %v10095, %v10097
  %v10099 = vrot.slane %v10092, %v10098
  %vm10100 = vcmask 523264
  %v10101 = vsel %vm10100, %v10035, 0
  %v10103 = vsel %vm10100, %v10084, 0
  %v10105 = vsel %vm10100, %v10099, 0
  %10107 = vmatprep.subr.mxu0 0.0
  %10108 = vmatpush1.msra.mxu0 %v9979
  %10109 = vmatprep.subr.mxu0 0.0
  %10110 = vmatpush1.msra.mxu0 %v9980
  %10111 = vmatprep.subr.mxu0 0.0
  %10112 = vmatpush1.msra.mxu0 %v9981
  %10113 = vmatprep.subr.mxu0 0.0
  %10114 = vmatpush1.msra.mxu0 %v9982
  %10115 = vmatprep.subr.mxu0 0.0
  %10116 = vmatpush1.msra.mxu0 %v9983
  %10117 = vmatprep.subr.mxu0 0.0
  %10118 = vmatpush1.msra.mxu0 %v9984
  %10119 = vmatprep.subr.mxu0 0.0
  %10120 = vmatpush1.msra.mxu0 %v9985
  %10121 = vmatprep.subr.mxu0 0.0
  %10122 = vmatpush1.msra.mxu0 %v9986
  %10123 = vmatprep.subr.mxu0 0.0
  %10124 = vmatpush1.msra.mxu0 0.0
  %10125 = vmatprep.subr.mxu0 0.0
  %10126 = vmatpush1.msra.mxu0 0.0
  %10127 = vmatprep.subr.mxu0 0.0
  %10128 = vmatpush1.msra.mxu0 0.0
  %10129 = vmatprep.subr.mxu0 0.0
  %10130 = vmatpush1.msra.mxu0 0.0
  %10131 = vmatprep.subr.mxu0 0.0
  %10132 = vmatpush1.msra.mxu0 0.0
  %10133 = vmatprep.subr.mxu0 0.0
  %10134 = vmatpush1.msra.mxu0 0.0
  %10135 = vmatprep.subr.mxu0 0.0
  %10136 = vmatpush1.msra.mxu0 0.0
  %10137 = vmatprep.subr.mxu0 0.0
  %10138 = vmatpush1.msra.mxu0 0.0
  %10139 = vmatprep.subr.mxu0 0.0
  %10140 = vmatpush1.msra.mxu0 0.0
  %10141 = vmatprep.subr.mxu0 0.0
  %10142 = vmatpush1.msra.mxu0 0.0
  %10143 = vmatprep.subr.mxu0 0.0
  %10144 = vmatpush1.msra.mxu0 0.0
  %10145 = vmatprep.subr.mxu0 0.0
  %10146 = vmatpush1.msra.mxu0 0.0
  %10147 = vmatprep.subr.mxu0 0.0
  %10148 = vmatpush1.msra.mxu0 0.0
  %10149 = vmatprep.subr.mxu0 0.0
  %10150 = vmatpush1.msra.mxu0 0.0
  %10151 = vmatprep.subr.mxu0 0.0
  %10152 = vmatpush1.msra.mxu0 0.0
  %10153 = vmatprep.subr.mxu0 0.0
  %10154 = vmatpush1.msra.mxu0 0.0
  %10155 = vmatprep.subr.mxu0 0.0
  %10156 = vmatpush1.msra.mxu0 0.0
  %10157 = vmatprep.subr.mxu0 0.0
  %10158 = vmatpush1.msra.mxu0 0.0
  %10159 = vmatprep.subr.mxu0 0.0
  %10160 = vmatpush1.msra.mxu0 0.0
  %10161 = vmatprep.subr.mxu0 0.0
  %10162 = vmatpush1.msra.mxu0 0.0
  %10163 = vmatprep.subr.mxu0 0.0
  %10164 = vmatpush1.msra.mxu0 0.0
  %10165 = vmatprep.subr.mxu0 0.0
  %10166 = vmatpush1.msra.mxu0 0.0
  %10167 = vmatprep.subr.mxu0 0.0
  %10168 = vmatpush1.msra.mxu0 0.0
  %10169 = vmatprep.subr.mxu0 0.0
  %10170 = vmatpush1.msra.mxu0 0.0
  %10171 = vmatprep.mubr.f32.mxu0 0.0
  %10172 = vmatmul.mubr.f32.gmra.mrb[0].mxu0 %v10101
  %v10173 = vpop.f32.mrb[0].mxu0
  %v10174 = vadd.f32 0.0, %v10173
  %v10175 = vpop.f32.mrb[0].mxu0
  %10176 = vmatprep.mubr.f32.mxu0 0.0
  %10177 = vmatmul.mubr.f32.gmra.mrb[0].mxu0 %v10103
  %v10178 = vpop.f32.mrb[0].mxu0
  %v10179 = vadd.f32 0.0, %v10178
  %v10180 = vpop.f32.mrb[0].mxu0
  %10181 = vmatprep.mubr.f32.mxu0 0.0
  %10182 = vmatmul.mubr.f32.gmra.mrb[0].mxu0 %v10105
  %v10183 = vpop.f32.mrb[0].mxu0
  %v10184 = vadd.f32 0.0, %v10183
  %v10185 = vpop.f32.mrb[0].mxu0
  %10186 = vdwg.mxu0
  %v10187 = vcombine.low %v9677, %v9691
  %v10188 = vcombine.low %v9699, %v9698
  %v10189 = vcombine.low %v9700, %v9702
  %v10190 = vcombine.low %v9748, %v9750
  %v10192 = vunpack.c.l.s4 1966171168
  %v10193 = vunpack.c.0.s8 %v10192
  %v10194 = vlaneseq
  %v10195 = vshrl.u32 %v10194, 7
  %v10196 = vsub.s32 %v10193, %v10195
  %v10197 = vrot.slane %v10187, %v10196
  %v10199 = vunpack.c.l.s4 1966171168
  %v10200 = vunpack.c.0.s8 %v10199
  %v10201 = vlaneseq
  %v10202 = vshrl.u32 %v10201, 7
  %v10203 = vsub.s32 %v10200, %v10202
  %v10204 = vrot.slane %v10188, %v10203
  %v10206 = vunpack.c.l.s4 1966171168
  %v10207 = vunpack.c.0.s8 %v10206
  %v10208 = vlaneseq
  %v10209 = vshrl.u32 %v10208, 7
  %v10210 = vsub.s32 %v10207, %v10209
  %v10211 = vrot.slane %v10189, %v10210
  %v10213 = vunpack.c.l.s4 1966171168
  %v10214 = vunpack.c.0.s8 %v10213
  %v10215 = vlaneseq
  %v10216 = vshrl.u32 %v10215, 7
  %v10217 = vsub.s32 %v10214, %v10216
  %v10218 = vrot.slane %v10190, %v10217
  %v10219 = vcombine.low %v10197, %v10204
  %v10220 = vcombine.low %v10211, %v10218
  %v10222 = vunpack.c.l.s4 1966171168
  %v10223 = vunpack.c.0.s8 %v10222
  %v10224 = vlaneseq
  %v10225 = vshrl.u32 %v10224, 7
  %v10226 = vsub.s32 %v10223, %v10225
  %v10227 = vrot.slane %v10219, %v10226
  %v10229 = vunpack.c.l.s4 1966171168
  %v10230 = vunpack.c.0.s8 %v10229
  %v10231 = vlaneseq
  %v10232 = vshrl.u32 %v10231, 7
  %v10233 = vsub.s32 %v10230, %v10232
  %v10234 = vrot.slane %v10220, %v10233
  %v10235 = vcombine.low %v10227, %v10234
  %v10236 = vcombine.low %v9733, %v9838
  %v10237 = vcombine.low %v9846, %v9848
  %v10238 = vcombine.low %v9847, %v9849
  %v10239 = vcombine.low %v9873, %v9897
  %v10241 = vunpack.c.l.s4 1966171168
  %v10242 = vunpack.c.0.s8 %v10241
  %v10243 = vlaneseq
  %v10244 = vshrl.u32 %v10243, 7
  %v10245 = vsub.s32 %v10242, %v10244
  %v10246 = vrot.slane %v10236, %v10245
  %v10248 = vunpack.c.l.s4 1966171168
  %v10249 = vunpack.c.0.s8 %v10248
  %v10250 = vlaneseq
  %v10251 = vshrl.u32 %v10250, 7
  %v10252 = vsub.s32 %v10249, %v10251
  %v10253 = vrot.slane %v10237, %v10252
  %v10255 = vunpack.c.l.s4 1966171168
  %v10256 = vunpack.c.0.s8 %v10255
  %v10257 = vlaneseq
  %v10258 = vshrl.u32 %v10257, 7
  %v10259 = vsub.s32 %v10256, %v10258
  %v10260 = vrot.slane %v10238, %v10259
  %v10262 = vunpack.c.l.s4 1966171168
  %v10263 = vunpack.c.0.s8 %v10262
  %v10264 = vlaneseq
  %v10265 = vshrl.u32 %v10264, 7
  %v10266 = vsub.s32 %v10263, %v10265
  %v10267 = vrot.slane %v10239, %v10266
  %v10268 = vcombine.low %v10246, %v10253
  %v10269 = vcombine.low %v10260, %v10267
  %v10271 = vunpack.c.l.s4 1966171168
  %v10272 = vunpack.c.0.s8 %v10271
  %v10273 = vlaneseq
  %v10274 = vshrl.u32 %v10273, 7
  %v10275 = vsub.s32 %v10272, %v10274
  %v10276 = vrot.slane %v10268, %v10275
  %v10278 = vunpack.c.l.s4 1966171168
  %v10279 = vunpack.c.0.s8 %v10278
  %v10280 = vlaneseq
  %v10281 = vshrl.u32 %v10280, 7
  %v10282 = vsub.s32 %v10279, %v10281
  %v10283 = vrot.slane %v10269, %v10282
  %v10284 = vcombine.low %v10276, %v10283
  %v10285 = vcombine.low %v9880, %v9894
  %v10287 = vunpack.c.l.s4 1966171168
  %v10288 = vunpack.c.0.s8 %v10287
  %v10289 = vlaneseq
  %v10290 = vshrl.u32 %v10289, 7
  %v10291 = vsub.s32 %v10288, %v10290
  %v10292 = vrot.slane %v10285, %v10291
  %v10294 = vunpack.c.l.s4 1966171168
  %v10295 = vunpack.c.0.s8 %v10294
  %v10296 = vlaneseq
  %v10297 = vshrl.u32 %v10296, 7
  %v10298 = vsub.s32 %v10295, %v10297
  %v10299 = vrot.slane %v10292, %v10298
  %v10300 = vsel %vm10100, %v10235, 0
  %v10302 = vsel %vm10100, %v10284, 0
  %v10304 = vsel %vm10100, %v10299, 0
  %10306 = vmatprep.subr.mxu0 0.0
  %10307 = vmatpush1.msra.mxu0 %v9970
  %10308 = vmatprep.subr.mxu0 0.0
  %10309 = vmatpush1.msra.mxu0 %v9971
  %10310 = vmatprep.subr.mxu0 0.0
  %10311 = vmatpush1.msra.mxu0 %v9972
  %10312 = vmatprep.subr.mxu0 0.0
  %10313 = vmatpush1.msra.mxu0 %v9973
  %10314 = vmatprep.subr.mxu0 0.0
  %10315 = vmatpush1.msra.mxu0 %v9974
  %10316 = vmatprep.subr.mxu0 0.0
  %10317 = vmatpush1.msra.mxu0 %v9975
  %10318 = vmatprep.subr.mxu0 0.0
  %10319 = vmatpush1.msra.mxu0 %v9976
  %10320 = vmatprep.subr.mxu0 0.0
  %10321 = vmatpush1.msra.mxu0 %v9977
  %10322 = vmatprep.subr.mxu0 0.0
  %10323 = vmatpush1.msra.mxu0 0.0
  %10324 = vmatprep.subr.mxu0 0.0
  %10325 = vmatpush1.msra.mxu0 0.0
  %10326 = vmatprep.subr.mxu0 0.0
  %10327 = vmatpush1.msra.mxu0 0.0
  %10328 = vmatprep.subr.mxu0 0.0
  %10329 = vmatpush1.msra.mxu0 0.0
  %10330 = vmatprep.subr.mxu0 0.0
  %10331 = vmatpush1.msra.mxu0 0.0
  %10332 = vmatprep.subr.mxu0 0.0
  %10333 = vmatpush1.msra.mxu0 0.0
  %10334 = vmatprep.subr.mxu0 0.0
  %10335 = vmatpush1.msra.mxu0 0.0
  %10336 = vmatprep.subr.mxu0 0.0
  %10337 = vmatpush1.msra.mxu0 0.0
  %10338 = vmatprep.subr.mxu0 0.0
  %10339 = vmatpush1.msra.mxu0 0.0
  %10340 = vmatprep.subr.mxu0 0.0
  %10341 = vmatpush1.msra.mxu0 0.0
  %10342 = vmatprep.subr.mxu0 0.0
  %10343 = vmatpush1.msra.mxu0 0.0
  %10344 = vmatprep.subr.mxu0 0.0
  %10345 = vmatpush1.msra.mxu0 0.0
  %10346 = vmatprep.subr.mxu0 0.0
  %10347 = vmatpush1.msra.mxu0 0.0
  %10348 = vmatprep.subr.mxu0 0.0
  %10349 = vmatpush1.msra.mxu0 0.0
  %10350 = vmatprep.subr.mxu0 0.0
  %10351 = vmatpush1.msra.mxu0 0.0
  %10352 = vmatprep.subr.mxu0 0.0
  %10353 = vmatpush1.msra.mxu0 0.0
  %10354 = vmatprep.subr.mxu0 0.0
  %10355 = vmatpush1.msra.mxu0 0.0
  %10356 = vmatprep.subr.mxu0 0.0
  %10357 = vmatpush1.msra.mxu0 0.0
  %10358 = vmatprep.subr.mxu0 0.0
  %10359 = vmatpush1.msra.mxu0 0.0
  %10360 = vmatprep.subr.mxu0 0.0
  %10361 = vmatpush1.msra.mxu0 0.0
  %10362 = vmatprep.subr.mxu0 0.0
  %10363 = vmatpush1.msra.mxu0 0.0
  %10364 = vmatprep.subr.mxu0 0.0
  %10365 = vmatpush1.msra.mxu0 0.0
  %10366 = vmatprep.subr.mxu0 0.0
  %10367 = vmatpush1.msra.mxu0 0.0
  %10368 = vmatprep.subr.mxu0 0.0
  %10369 = vmatpush1.msra.mxu0 0.0
  %10370 = vmatprep.mubr.f32.mxu0 0.0
  %10371 = vmatmul.mubr.f32.gmra.mrb[0].mxu0 %v10300
  %v10372 = vpop.f32.mrb[0].mxu0
  %v10373 = vadd.f32 %v10174, %v10372
  %v10374 = vpop.f32.mrb[0].mxu0
  %10375 = vmatprep.mubr.f32.mxu0 0.0
  %10376 = vmatmul.mubr.f32.gmra.mrb[0].mxu0 %v10302
  %v10377 = vpop.f32.mrb[0].mxu0
  %v10378 = vadd.f32 %v10179, %v10377
  %v10379 = vpop.f32.mrb[0].mxu0
  %10380 = vmatprep.mubr.f32.mxu0 0.0
  %10381 = vmatmul.mubr.f32.gmra.mrb[0].mxu0 %v10304
  %v10382 = vpop.f32.mrb[0].mxu0
  %v10383 = vadd.f32 %v10184, %v10382
  %v10384 = vpop.f32.mrb[0].mxu0
  %10385 = vdwg.mxu0
  %s10386 = scalar_lea.vmem %s7, 128
  %v10387 = vld [vmem:[%s10386] sm:$0xff]
  %v10388 = vld [vmem:[%s10386 + $0x8] sm:$0xff]
  %v10389 = vld [vmem:[%s10386 + $0x10] sm:$0xff]
  %v10390 = vld [vmem:[%s10386 + $0x18] sm:$0xff]
  %v10391 = vld [vmem:[%s10386 + $0x20] sm:$0xff]
  %v10392 = vld [vmem:[%s10386 + $0x28] sm:$0xff]
  %v10393 = vld [vmem:[%s10386 + $0x30] sm:$0xff]
  %v10394 = vld [vmem:[%s10386 + $0x38] sm:$0xff]
  %v10395 = vcombine.low %v9699, %v9701
  %v10396 = vcombine.low %v9684, %v9702
  %v10397 = vcombine.low %v9726, %v9740
  %v10398 = vcombine.low %v9733, %v9747
  %v10400 = vunpack.c.l.s4 1966171168
  %v10401 = vunpack.c.0.s8 %v10400
  %v10402 = vlaneseq
  %v10403 = vshrl.u32 %v10402, 7
  %v10404 = vsub.s32 %v10401, %v10403
  %v10405 = vrot.slane %v10395, %v10404
  %v10407 = vunpack.c.l.s4 1966171168
  %v10408 = vunpack.c.0.s8 %v10407
  %v10409 = vlaneseq
  %v10410 = vshrl.u32 %v10409, 7
  %v10411 = vsub.s32 %v10408, %v10410
  %v10412 = vrot.slane %v10396, %v10411
  %v10414 = vunpack.c.l.s4 1966171168
  %v10415 = vunpack.c.0.s8 %v10414
  %v10416 = vlaneseq
  %v10417 = vshrl.u32 %v10416, 7
  %v10418 = vsub.s32 %v10415, %v10417
  %v10419 = vrot.slane %v10397, %v10418
  %v10421 = vunpack.c.l.s4 1966171168
  %v10422 = vunpack.c.0.s8 %v10421
  %v10423 = vlaneseq
  %v10424 = vshrl.u32 %v10423, 7
  %v10425 = vsub.s32 %v10422, %v10424
  %v10426 = vrot.slane %v10398, %v10425
  %v10427 = vcombine.low %v10405, %v10412
  %v10428 = vcombine.low %v10419, %v10426
  %v10430 = vunpack.c.l.s4 1966171168
  %v10431 = vunpack.c.0.s8 %v10430
  %v10432 = vlaneseq
  %v10433 = vshrl.u32 %v10432, 7
  %v10434 = vsub.s32 %v10431, %v10433
  %v10435 = vrot.slane %v10427, %v10434
  %v10437 = vunpack.c.l.s4 1966171168
  %v10438 = vunpack.c.0.s8 %v10437
  %v10439 = vlaneseq
  %v10440 = vshrl.u32 %v10439, 7
  %v10441 = vsub.s32 %v10438, %v10440
  %v10442 = vrot.slane %v10428, %v10441
  %v10443 = vcombine.low %v10435, %v10442
  %v10444 = vcombine.low %v9749, %v9848
  %v10445 = vcombine.low %v9831, %v9845
  %v10446 = vcombine.low %v9873, %v9887
  %v10447 = vcombine.low %v9895, %v9894
  %v10449 = vunpack.c.l.s4 1966171168
  %v10450 = vunpack.c.0.s8 %v10449
  %v10451 = vlaneseq
  %v10452 = vshrl.u32 %v10451, 7
  %v10453 = vsub.s32 %v10450, %v10452
  %v10454 = vrot.slane %v10444, %v10453
  %v10456 = vunpack.c.l.s4 1966171168
  %v10457 = vunpack.c.0.s8 %v10456
  %v10458 = vlaneseq
  %v10459 = vshrl.u32 %v10458, 7
  %v10460 = vsub.s32 %v10457, %v10459
  %v10461 = vrot.slane %v10445, %v10460
  %v10463 = vunpack.c.l.s4 1966171168
  %v10464 = vunpack.c.0.s8 %v10463
  %v10465 = vlaneseq
  %v10466 = vshrl.u32 %v10465, 7
  %v10467 = vsub.s32 %v10464, %v10466
  %v10468 = vrot.slane %v10446, %v10467
  %v10470 = vunpack.c.l.s4 1966171168
  %v10471 = vunpack.c.0.s8 %v10470
  %v10472 = vlaneseq
  %v10473 = vshrl.u32 %v10472, 7
  %v10474 = vsub.s32 %v10471, %v10473
  %v10475 = vrot.slane %v10447, %v10474
  %v10476 = vcombine.low %v10454, %v10461
  %v10477 = vcombine.low %v10468, %v10475
  %v10479 = vunpack.c.l.s4 1966171168
  %v10480 = vunpack.c.0.s8 %v10479
  %v10481 = vlaneseq
  %v10482 = vshrl.u32 %v10481, 7
  %v10483 = vsub.s32 %v10480, %v10482
  %v10484 = vrot.slane %v10476, %v10483
  %v10486 = vunpack.c.l.s4 1966171168
  %v10487 = vunpack.c.0.s8 %v10486
  %v10488 = vlaneseq
  %v10489 = vshrl.u32 %v10488, 7
  %v10490 = vsub.s32 %v10487, %v10489
  %v10491 = vrot.slane %v10477, %v10490
  %v10492 = vcombine.low %v10484, %v10491
  %v10493 = vcombine.low %v9896, %v9898
  %v10495 = vunpack.c.l.s4 1966171168
  %v10496 = vunpack.c.0.s8 %v10495
  %v10497 = vlaneseq
  %v10498 = vshrl.u32 %v10497, 7
  %v10499 = vsub.s32 %v10496, %v10498
  %v10500 = vrot.slane %v10493, %v10499
  %v10502 = vunpack.c.l.s4 1966171168
  %v10503 = vunpack.c.0.s8 %v10502
  %v10504 = vlaneseq
  %v10505 = vshrl.u32 %v10504, 7
  %v10506 = vsub.s32 %v10503, %v10505
  %v10507 = vrot.slane %v10500, %v10506
  %v10508 = vsel %vm10100, %v10443, 0
  %v10510 = vsel %vm10100, %v10492, 0
  %v10512 = vsel %vm10100, %v10507, 0
  %10514 = vmatprep.subr.mxu0 0.0
  %10515 = vmatpush1.msra.mxu0 %v10387
  %10516 = vmatprep.subr.mxu0 0.0
  %10517 = vmatpush1.msra.mxu0 %v10388
  %10518 = vmatprep.subr.mxu0 0.0
  %10519 = vmatpush1.msra.mxu0 %v10389
  %10520 = vmatprep.subr.mxu0 0.0
  %10521 = vmatpush1.msra.mxu0 %v10390
  %10522 = vmatprep.subr.mxu0 0.0
  %10523 = vmatpush1.msra.mxu0 %v10391
  %10524 = vmatprep.subr.mxu0 0.0
  %10525 = vmatpush1.msra.mxu0 %v10392
  %10526 = vmatprep.subr.mxu0 0.0
  %10527 = vmatpush1.msra.mxu0 %v10393
  %10528 = vmatprep.subr.mxu0 0.0
  %10529 = vmatpush1.msra.mxu0 %v10394
  %10530 = vmatprep.subr.mxu0 0.0
  %10531 = vmatpush1.msra.mxu0 0.0
  %10532 = vmatprep.subr.mxu0 0.0
  %10533 = vmatpush1.msra.mxu0 0.0
  %10534 = vmatprep.subr.mxu0 0.0
  %10535 = vmatpush1.msra.mxu0 0.0
  %10536 = vmatprep.subr.mxu0 0.0
  %10537 = vmatpush1.msra.mxu0 0.0
  %10538 = vmatprep.subr.mxu0 0.0
  %10539 = vmatpush1.msra.mxu0 0.0
  %10540 = vmatprep.subr.mxu0 0.0
  %10541 = vmatpush1.msra.mxu0 0.0
  %10542 = vmatprep.subr.mxu0 0.0
  %10543 = vmatpush1.msra.mxu0 0.0
  %10544 = vmatprep.subr.mxu0 0.0
  %10545 = vmatpush1.msra.mxu0 0.0
  %10546 = vmatprep.subr.mxu0 0.0
  %10547 = vmatpush1.msra.mxu0 0.0
  %10548 = vmatprep.subr.mxu0 0.0
  %10549 = vmatpush1.msra.mxu0 0.0
  %10550 = vmatprep.subr.mxu0 0.0
  %10551 = vmatpush1.msra.mxu0 0.0
  %10552 = vmatprep.subr.mxu0 0.0
  %10553 = vmatpush1.msra.mxu0 0.0
  %10554 = vmatprep.subr.mxu0 0.0
  %10555 = vmatpush1.msra.mxu0 0.0
  %10556 = vmatprep.subr.mxu0 0.0
  %10557 = vmatpush1.msra.mxu0 0.0
  %10558 = vmatprep.subr.mxu0 0.0
  %10559 = vmatpush1.msra.mxu0 0.0
  %10560 = vmatprep.subr.mxu0 0.0
  %10561 = vmatpush1.msra.mxu0 0.0
  %10562 = vmatprep.subr.mxu0 0.0
  %10563 = vmatpush1.msra.mxu0 0.0
  %10564 = vmatprep.subr.mxu0 0.0
  %10565 = vmatpush1.msra.mxu0 0.0
  %10566 = vmatprep.subr.mxu0 0.0
  %10567 = vmatpush1.msra.mxu0 0.0
  %10568 = vmatprep.subr.mxu0 0.0
  %10569 = vmatpush1.msra.mxu0 0.0
  %10570 = vmatprep.subr.mxu0 0.0
  %10571 = vmatpush1.msra.mxu0 0.0
  %10572 = vmatprep.subr.mxu0 0.0
  %10573 = vmatpush1.msra.mxu0 0.0
  %10574 = vmatprep.subr.mxu0 0.0
  %10575 = vmatpush1.msra.mxu0 0.0
  %10576 = vmatprep.subr.mxu0 0.0
  %10577 = vmatpush1.msra.mxu0 0.0
  %10578 = vmatprep.mubr.f32.mxu0 0.0
  %10579 = vmatmul.mubr.f32.gmra.mrb[0].mxu0 %v10508
  %v10580 = vpop.f32.mrb[0].mxu0
  %v10581 = vadd.f32 0.0, %v10580
  %v10582 = vpop.f32.mrb[0].mxu0
  %10583 = vmatprep.mubr.f32.mxu0 0.0
  %10584 = vmatmul.mubr.f32.gmra.mrb[0].mxu0 %v10510
  %v10585 = vpop.f32.mrb[0].mxu0
  %v10586 = vadd.f32 0.0, %v10585
  %v10587 = vpop.f32.mrb[0].mxu0
  %10588 = vmatprep.mubr.f32.mxu0 0.0
  %10589 = vmatmul.mubr.f32.gmra.mrb[0].mxu0 %v10512
  %v10590 = vpop.f32.mrb[0].mxu0
  %v10591 = vadd.f32 0.0, %v10590
  %v10592 = vpop.f32.mrb[0].mxu0
  %10593 = vdwg.mxu0
  %v10594 = vadd.f32 %v10373, %v10581
  %v10595 = vadd.f32 %v10378, %v10586
  %v10596 = vadd.f32 %v10383, %v10591
  %s10597 = scalar_lea.vmem %s7, 192
  %v10598 = vld [vmem:[%s10597] sm:$0xff]
  %v10599 = vld [vmem:[%s10597 + $0x8] sm:$0xff]
  %v10600 = vld [vmem:[%s10597 + $0x10] sm:$0xff]
  %v10601 = vld [vmem:[%s10597 + $0x18] sm:$0xff]
  %v10602 = vld [vmem:[%s10597 + $0x20] sm:$0xff]
  %v10603 = vld [vmem:[%s10597 + $0x28] sm:$0xff]
  %v10604 = vld [vmem:[%s10597 + $0x30] sm:$0xff]
  %v10605 = vld [vmem:[%s10597 + $0x38] sm:$0xff]
  %v10606 = vcombine.low %v9698, %v9700
  %v10607 = vcombine.low %v9702, %v9748
  %v10608 = vcombine.low %v9751, %v9775
  %v10610 = vunpack.c.l.s4 1966171168
  %v10611 = vunpack.c.0.s8 %v10610
  %v10612 = vlaneseq
  %v10613 = vshrl.u32 %v10612, 7
  %v10614 = vsub.s32 %v10611, %v10613
  %v10615 = vrot.slane %v10606, %v10614
  %v10617 = vunpack.c.l.s4 1966171168
  %v10618 = vunpack.c.0.s8 %v10617
  %v10619 = vlaneseq
  %v10620 = vshrl.u32 %v10619, 7
  %v10621 = vsub.s32 %v10618, %v10620
  %v10622 = vrot.slane %v10607, %v10621
  %v10624 = vunpack.c.l.s4 1966171168
  %v10625 = vunpack.c.0.s8 %v10624
  %v10626 = vlaneseq
  %v10627 = vshrl.u32 %v10626, 7
  %v10628 = vsub.s32 %v10625, %v10627
  %v10629 = vrot.slane %v10608, %v10628
  %v10630 = vcombine.low %v10615, %v10622
  %v10631 = vcombine.low %v10018, %v10629
  %v10633 = vunpack.c.l.s4 1966171168
  %v10634 = vunpack.c.0.s8 %v10633
  %v10635 = vlaneseq
  %v10636 = vshrl.u32 %v10635, 7
  %v10637 = vsub.s32 %v10634, %v10636
  %v10638 = vrot.slane %v10630, %v10637
  %v10640 = vunpack.c.l.s4 1966171168
  %v10641 = vunpack.c.0.s8 %v10640
  %v10642 = vlaneseq
  %v10643 = vshrl.u32 %v10642, 7
  %v10644 = vsub.s32 %v10641, %v10643
  %v10645 = vrot.slane %v10631, %v10644
  %v10646 = vcombine.low %v10638, %v10645
  %v10647 = vcombine.low %v9789, %v9847
  %v10648 = vcombine.low %v9897, %v9880
  %v10649 = vcombine.low %v9894, %v9922
  %v10651 = vunpack.c.l.s4 1966171168
  %v10652 = vunpack.c.0.s8 %v10651
  %v10653 = vlaneseq
  %v10654 = vshrl.u32 %v10653, 7
  %v10655 = vsub.s32 %v10652, %v10654
  %v10656 = vrot.slane %v10647, %v10655
  %v10658 = vunpack.c.l.s4 1966171168
  %v10659 = vunpack.c.0.s8 %v10658
  %v10660 = vlaneseq
  %v10661 = vshrl.u32 %v10660, 7
  %v10662 = vsub.s32 %v10659, %v10661
  %v10663 = vrot.slane %v10648, %v10662
  %v10665 = vunpack.c.l.s4 1966171168
  %v10666 = vunpack.c.0.s8 %v10665
  %v10667 = vlaneseq
  %v10668 = vshrl.u32 %v10667, 7
  %v10669 = vsub.s32 %v10666, %v10668
  %v10670 = vrot.slane %v10649, %v10669
  %v10671 = vcombine.low %v10656, %v10060
  %v10672 = vcombine.low %v10663, %v10670
  %v10674 = vunpack.c.l.s4 1966171168
  %v10675 = vunpack.c.0.s8 %v10674
  %v10676 = vlaneseq
  %v10677 = vshrl.u32 %v10676, 7
  %v10678 = vsub.s32 %v10675, %v10677
  %v10679 = vrot.slane %v10671, %v10678
  %v10681 = vunpack.c.l.s4 1966171168
  %v10682 = vunpack.c.0.s8 %v10681
  %v10683 = vlaneseq
  %v10684 = vshrl.u32 %v10683, 7
  %v10685 = vsub.s32 %v10682, %v10684
  %v10686 = vrot.slane %v10672, %v10685
  %v10687 = vcombine.low %v10679, %v10686
  %v10688 = vcombine.low %v9936, %v9944
  %v10690 = vunpack.c.l.s4 1966171168
  %v10691 = vunpack.c.0.s8 %v10690
  %v10692 = vlaneseq
  %v10693 = vshrl.u32 %v10692, 7
  %v10694 = vsub.s32 %v10691, %v10693
  %v10695 = vrot.slane %v10688, %v10694
  %v10697 = vunpack.c.l.s4 1966171168
  %v10698 = vunpack.c.0.s8 %v10697
  %v10699 = vlaneseq
  %v10700 = vshrl.u32 %v10699, 7
  %v10701 = vsub.s32 %v10698, %v10700
  %v10702 = vrot.slane %v10695, %v10701
  %v10703 = vsel %vm10100, %v10646, 0
  %v10705 = vsel %vm10100, %v10687, 0
  %v10707 = vsel %vm10100, %v10702, 0
  %10709 = vmatprep.subr.mxu0 0.0
  %10710 = vmatpush1.msra.mxu0 %v10598
  %10711 = vmatprep.subr.mxu0 0.0
  %10712 = vmatpush1.msra.mxu0 %v10599
  %10713 = vmatprep.subr.mxu0 0.0
  %10714 = vmatpush1.msra.mxu0 %v10600
  %10715 = vmatprep.subr.mxu0 0.0
  %10716 = vmatpush1.msra.mxu0 %v10601
  %10717 = vmatprep.subr.mxu0 0.0
  %10718 = vmatpush1.msra.mxu0 %v10602
  %10719 = vmatprep.subr.mxu0 0.0
  %10720 = vmatpush1.msra.mxu0 %v10603
  %10721 = vmatprep.subr.mxu0 0.0
  %10722 = vmatpush1.msra.mxu0 %v10604
  %10723 = vmatprep.subr.mxu0 0.0
  %10724 = vmatpush1.msra.mxu0 %v10605
  %10725 = vmatprep.subr.mxu0 0.0
  %10726 = vmatpush1.msra.mxu0 0.0
  %10727 = vmatprep.subr.mxu0 0.0
  %10728 = vmatpush1.msra.mxu0 0.0
  %10729 = vmatprep.subr.mxu0 0.0
  %10730 = vmatpush1.msra.mxu0 0.0
  %10731 = vmatprep.subr.mxu0 0.0
  %10732 = vmatpush1.msra.mxu0 0.0
  %10733 = vmatprep.subr.mxu0 0.0
  %10734 = vmatpush1.msra.mxu0 0.0
  %10735 = vmatprep.subr.mxu0 0.0
  %10736 = vmatpush1.msra.mxu0 0.0
  %10737 = vmatprep.subr.mxu0 0.0
  %10738 = vmatpush1.msra.mxu0 0.0
  %10739 = vmatprep.subr.mxu0 0.0
  %10740 = vmatpush1.msra.mxu0 0.0
  %10741 = vmatprep.subr.mxu0 0.0
  %10742 = vmatpush1.msra.mxu0 0.0
  %10743 = vmatprep.subr.mxu0 0.0
  %10744 = vmatpush1.msra.mxu0 0.0
  %10745 = vmatprep.subr.mxu0 0.0
  %10746 = vmatpush1.msra.mxu0 0.0
  %10747 = vmatprep.subr.mxu0 0.0
  %10748 = vmatpush1.msra.mxu0 0.0
  %10749 = vmatprep.subr.mxu0 0.0
  %10750 = vmatpush1.msra.mxu0 0.0
  %10751 = vmatprep.subr.mxu0 0.0
  %10752 = vmatpush1.msra.mxu0 0.0
  %10753 = vmatprep.subr.mxu0 0.0
  %10754 = vmatpush1.msra.mxu0 0.0
  %10755 = vmatprep.subr.mxu0 0.0
  %10756 = vmatpush1.msra.mxu0 0.0
  %10757 = vmatprep.subr.mxu0 0.0
  %10758 = vmatpush1.msra.mxu0 0.0
  %10759 = vmatprep.subr.mxu0 0.0
  %10760 = vmatpush1.msra.mxu0 0.0
  %10761 = vmatprep.subr.mxu0 0.0
  %10762 = vmatpush1.msra.mxu0 0.0
  %10763 = vmatprep.subr.mxu0 0.0
  %10764 = vmatpush1.msra.mxu0 0.0
  %10765 = vmatprep.subr.mxu0 0.0
  %10766 = vmatpush1.msra.mxu0 0.0
  %10767 = vmatprep.subr.mxu0 0.0
  %10768 = vmatpush1.msra.mxu0 0.0
  %10769 = vmatprep.subr.mxu0 0.0
  %10770 = vmatpush1.msra.mxu0 0.0
  %10771 = vmatprep.subr.mxu0 0.0
  %10772 = vmatpush1.msra.mxu0 0.0
  %10773 = vmatprep.mubr.f32.mxu0 0.0
  %10774 = vmatmul.mubr.f32.gmra.mrb[0].mxu0 %v10703
  %v10775 = vpop.f32.mrb[0].mxu0
  %v10776 = vadd.f32 0.0, %v10775
  %v10777 = vpop.f32.mrb[0].mxu0
  %10778 = vmatprep.mubr.f32.mxu0 0.0
  %10779 = vmatmul.mubr.f32.gmra.mrb[0].mxu0 %v10705
  %v10780 = vpop.f32.mrb[0].mxu0
  %v10781 = vadd.f32 0.0, %v10780
  %v10782 = vpop.f32.mrb[0].mxu0
  %10783 = vmatprep.mubr.f32.mxu0 0.0
  %10784 = vmatmul.mubr.f32.gmra.mrb[0].mxu0 %v10707
  %v10785 = vpop.f32.mrb[0].mxu0
  %v10786 = vadd.f32 0.0, %v10785
  %v10787 = vpop.f32.mrb[0].mxu0
  %10788 = vdwg.mxu0
  %v10789 = vadd.f32 %v10594, %v10776
  %v10790 = vadd.f32 %v10595, %v10781
  %v10791 = vadd.f32 %v10596, %v10786
  %s10792 = scalar_lea.vmem %s7, 256
  %v10793 = vld [vmem:[%s10792] sm:$0xff]
  %v10794 = vld [vmem:[%s10792 + $0x8] sm:$0xff]
  %v10795 = vld [vmem:[%s10792 + $0x10] sm:$0xff]
  %v10796 = vld [vmem:[%s10792 + $0x18] sm:$0xff]
  %v10797 = vld [vmem:[%s10792 + $0x20] sm:$0xff]
  %v10798 = vld [vmem:[%s10792 + $0x28] sm:$0xff]
  %v10799 = vld [vmem:[%s10792 + $0x30] sm:$0xff]
  %v10800 = vld [vmem:[%s10792 + $0x38] sm:$0xff]
  %v10801 = vcombine.low %v9726, %v9750
  %v10802 = vcombine.low %v9775, %v9789
  %v10804 = vunpack.c.l.s4 1966171168
  %v10805 = vunpack.c.0.s8 %v10804
  %v10806 = vlaneseq
  %v10807 = vshrl.u32 %v10806, 7
  %v10808 = vsub.s32 %v10805, %v10807
  %v10809 = vrot.slane %v10801, %v10808
  %v10811 = vunpack.c.l.s4 1966171168
  %v10812 = vunpack.c.0.s8 %v10811
  %v10813 = vlaneseq
  %v10814 = vshrl.u32 %v10813, 7
  %v10815 = vsub.s32 %v10812, %v10814
  %v10816 = vrot.slane %v10802, %v10815
  %v10817 = vcombine.low %v10211, %v10809
  %v10818 = vcombine.low %v10426, %v10816
  %v10820 = vunpack.c.l.s4 1966171168
  %v10821 = vunpack.c.0.s8 %v10820
  %v10822 = vlaneseq
  %v10823 = vshrl.u32 %v10822, 7
  %v10824 = vsub.s32 %v10821, %v10823
  %v10825 = vrot.slane %v10817, %v10824
  %v10827 = vunpack.c.l.s4 1966171168
  %v10828 = vunpack.c.0.s8 %v10827
  %v10829 = vlaneseq
  %v10830 = vshrl.u32 %v10829, 7
  %v10831 = vsub.s32 %v10828, %v10830
  %v10832 = vrot.slane %v10818, %v10831
  %v10833 = vcombine.low %v10825, %v10832
  %v10834 = vcombine.low %v9797, %v9849
  %v10835 = vcombine.low %v9896, %v9936
  %v10837 = vunpack.c.l.s4 1966171168
  %v10838 = vunpack.c.0.s8 %v10837
  %v10839 = vlaneseq
  %v10840 = vshrl.u32 %v10839, 7
  %v10841 = vsub.s32 %v10838, %v10840
  %v10842 = vrot.slane %v10834, %v10841
  %v10844 = vunpack.c.l.s4 1966171168
  %v10845 = vunpack.c.0.s8 %v10844
  %v10846 = vlaneseq
  %v10847 = vshrl.u32 %v10846, 7
  %v10848 = vsub.s32 %v10845, %v10847
  %v10849 = vrot.slane %v10835, %v10848
  %v10850 = vcombine.low %v10842, %v10468
  %v10851 = vcombine.low %v10292, %v10849
  %v10853 = vunpack.c.l.s4 1966171168
  %v10854 = vunpack.c.0.s8 %v10853
  %v10855 = vlaneseq
  %v10856 = vshrl.u32 %v10855, 7
  %v10857 = vsub.s32 %v10854, %v10856
  %v10858 = vrot.slane %v10850, %v10857
  %v10860 = vunpack.c.l.s4 1966171168
  %v10861 = vunpack.c.0.s8 %v10860
  %v10862 = vlaneseq
  %v10863 = vshrl.u32 %v10862, 7
  %v10864 = vsub.s32 %v10861, %v10863
  %v10865 = vrot.slane %v10851, %v10864
  %v10866 = vcombine.low %v10858, %v10865
  %v10867 = vcombine.low %v9944, %v9946
  %v10869 = vunpack.c.l.s4 1966171168
  %v10870 = vunpack.c.0.s8 %v10869
  %v10871 = vlaneseq
  %v10872 = vshrl.u32 %v10871, 7
  %v10873 = vsub.s32 %v10870, %v10872
  %v10874 = vrot.slane %v10867, %v10873
  %v10876 = vunpack.c.l.s4 1966171168
  %v10877 = vunpack.c.0.s8 %v10876
  %v10878 = vlaneseq
  %v10879 = vshrl.u32 %v10878, 7
  %v10880 = vsub.s32 %v10877, %v10879
  %v10881 = vrot.slane %v10874, %v10880
  %v10882 = vsel %vm10100, %v10833, 0
  %v10884 = vsel %vm10100, %v10866, 0
  %v10886 = vsel %vm10100, %v10881, 0
  %10888 = vmatprep.subr.mxu0 0.0
  %10889 = vmatpush1.msra.mxu0 %v10793
  %10890 = vmatprep.subr.mxu0 0.0
  %10891 = vmatpush1.msra.mxu0 %v10794
  %10892 = vmatprep.subr.mxu0 0.0
  %10893 = vmatpush1.msra.mxu0 %v10795
  %10894 = vmatprep.subr.mxu0 0.0
  %10895 = vmatpush1.msra.mxu0 %v10796
  %10896 = vmatprep.subr.mxu0 0.0
  %10897 = vmatpush1.msra.mxu0 %v10797
  %10898 = vmatprep.subr.mxu0 0.0
  %10899 = vmatpush1.msra.mxu0 %v10798
  %10900 = vmatprep.subr.mxu0 0.0
  %10901 = vmatpush1.msra.mxu0 %v10799
  %10902 = vmatprep.subr.mxu0 0.0
  %10903 = vmatpush1.msra.mxu0 %v10800
  %10904 = vmatprep.subr.mxu0 0.0
  %10905 = vmatpush1.msra.mxu0 0.0
  %10906 = vmatprep.subr.mxu0 0.0
  %10907 = vmatpush1.msra.mxu0 0.0
  %10908 = vmatprep.subr.mxu0 0.0
  %10909 = vmatpush1.msra.mxu0 0.0
  %10910 = vmatprep.subr.mxu0 0.0
  %10911 = vmatpush1.msra.mxu0 0.0
  %10912 = vmatprep.subr.mxu0 0.0
  %10913 = vmatpush1.msra.mxu0 0.0
  %10914 = vmatprep.subr.mxu0 0.0
  %10915 = vmatpush1.msra.mxu0 0.0
  %10916 = vmatprep.subr.mxu0 0.0
  %10917 = vmatpush1.msra.mxu0 0.0
  %10918 = vmatprep.subr.mxu0 0.0
  %10919 = vmatpush1.msra.mxu0 0.0
  %10920 = vmatprep.subr.mxu0 0.0
  %10921 = vmatpush1.msra.mxu0 0.0
  %10922 = vmatprep.subr.mxu0 0.0
  %10923 = vmatpush1.msra.mxu0 0.0
  %10924 = vmatprep.subr.mxu0 0.0
  %10925 = vmatpush1.msra.mxu0 0.0
  %10926 = vmatprep.subr.mxu0 0.0
  %10927 = vmatpush1.msra.mxu0 0.0
  %10928 = vmatprep.subr.mxu0 0.0
  %10929 = vmatpush1.msra.mxu0 0.0
  %10930 = vmatprep.subr.mxu0 0.0
  %10931 = vmatpush1.msra.mxu0 0.0
  %10932 = vmatprep.subr.mxu0 0.0
  %10933 = vmatpush1.msra.mxu0 0.0
  %10934 = vmatprep.subr.mxu0 0.0
  %10935 = vmatpush1.msra.mxu0 0.0
  %10936 = vmatprep.subr.mxu0 0.0
  %10937 = vmatpush1.msra.mxu0 0.0
  %10938 = vmatprep.subr.mxu0 0.0
  %10939 = vmatpush1.msra.mxu0 0.0
  %10940 = vmatprep.subr.mxu0 0.0
  %10941 = vmatpush1.msra.mxu0 0.0
  %10942 = vmatprep.subr.mxu0 0.0
  %10943 = vmatpush1.msra.mxu0 0.0
  %10944 = vmatprep.subr.mxu0 0.0
  %10945 = vmatpush1.msra.mxu0 0.0
  %10946 = vmatprep.subr.mxu0 0.0
  %10947 = vmatpush1.msra.mxu0 0.0
  %10948 = vmatprep.subr.mxu0 0.0
  %10949 = vmatpush1.msra.mxu0 0.0
  %10950 = vmatprep.subr.mxu0 0.0
  %10951 = vmatpush1.msra.mxu0 0.0
  %10952 = vmatprep.mubr.f32.mxu0 0.0
  %10953 = vmatmul.mubr.f32.gmra.mrb[0].mxu0 %v10882
  %v10954 = vpop.f32.mrb[0].mxu0
  %v10955 = vadd.f32 0.0, %v10954
  %v10956 = vpop.f32.mrb[0].mxu0
  %10957 = vmatprep.mubr.f32.mxu0 0.0
  %10958 = vmatmul.mubr.f32.gmra.mrb[0].mxu0 %v10884
  %v10959 = vpop.f32.mrb[0].mxu0
  %v10960 = vadd.f32 0.0, %v10959
  %v10961 = vpop.f32.mrb[0].mxu0
  %10962 = vmatprep.mubr.f32.mxu0 0.0
  %10963 = vmatmul.mubr.f32.gmra.mrb[0].mxu0 %v10886
  %v10964 = vpop.f32.mrb[0].mxu0
  %v10965 = vadd.f32 0.0, %v10964
  %v10966 = vpop.f32.mrb[0].mxu0
  %10967 = vdwg.mxu0
  %v10968 = vadd.f32 %v10789, %v10955
  %v10969 = vadd.f32 %v10790, %v10960
  %v10970 = vadd.f32 %v10791, %v10965
  %s10971 = scalar_lea.vmem %s7, 320
  %v10972 = vld [vmem:[%s10971] sm:$0xff]
  %v10973 = vld [vmem:[%s10971 + $0x8] sm:$0xff]
  %v10974 = vld [vmem:[%s10971 + $0x10] sm:$0xff]
  %v10975 = vld [vmem:[%s10971 + $0x18] sm:$0xff]
  %v10976 = vld [vmem:[%s10971 + $0x20] sm:$0xff]
  %v10977 = vld [vmem:[%s10971 + $0x28] sm:$0xff]
  %v10978 = vld [vmem:[%s10971 + $0x30] sm:$0xff]
  %v10979 = vld [vmem:[%s10971 + $0x38] sm:$0xff]
  %v10980 = vcombine.low %v9740, %v9733
  %v10981 = vcombine.low %v9747, %v9749
  %v10982 = vcombine.low %v9789, %v9797
  %v10984 = vunpack.c.l.s4 1966171168
  %v10985 = vunpack.c.0.s8 %v10984
  %v10986 = vlaneseq
  %v10987 = vshrl.u32 %v10986, 7
  %v10988 = vsub.s32 %v10985, %v10987
  %v10989 = vrot.slane %v10980, %v10988
  %v10991 = vunpack.c.l.s4 1966171168
  %v10992 = vunpack.c.0.s8 %v10991
  %v10993 = vlaneseq
  %v10994 = vshrl.u32 %v10993, 7
  %v10995 = vsub.s32 %v10992, %v10994
  %v10996 = vrot.slane %v10981, %v10995
  %v10998 = vunpack.c.l.s4 1966171168
  %v10999 = vunpack.c.0.s8 %v10998
  %v11000 = vlaneseq
  %v11001 = vshrl.u32 %v11000, 7
  %v11002 = vsub.s32 %v10999, %v11001
  %v11003 = vrot.slane %v10982, %v11002
  %v11004 = vcombine.low %v10011, %v10989
  %v11005 = vcombine.low %v10996, %v11003
  %v11007 = vunpack.c.l.s4 1966171168
  %v11008 = vunpack.c.0.s8 %v11007
  %v11009 = vlaneseq
  %v11010 = vshrl.u32 %v11009, 7
  %v11011 = vsub.s32 %v11008, %v11010
  %v11012 = vrot.slane %v11004, %v11011
  %v11014 = vunpack.c.l.s4 1966171168
  %v11015 = vunpack.c.0.s8 %v11014
  %v11016 = vlaneseq
  %v11017 = vshrl.u32 %v11016, 7
  %v11018 = vsub.s32 %v11015, %v11017
  %v11019 = vrot.slane %v11005, %v11018
  %v11020 = vcombine.low %v11012, %v11019
  %v11021 = vcombine.low %v9799, %v9873
  %v11022 = vcombine.low %v9887, %v9895
  %v11023 = vcombine.low %v9898, %v9944
  %v11025 = vunpack.c.l.s4 1966171168
  %v11026 = vunpack.c.0.s8 %v11025
  %v11027 = vlaneseq
  %v11028 = vshrl.u32 %v11027, 7
  %v11029 = vsub.s32 %v11026, %v11028
  %v11030 = vrot.slane %v11021, %v11029
  %v11032 = vunpack.c.l.s4 1966171168
  %v11033 = vunpack.c.0.s8 %v11032
  %v11034 = vlaneseq
  %v11035 = vshrl.u32 %v11034, 7
  %v11036 = vsub.s32 %v11033, %v11035
  %v11037 = vrot.slane %v11022, %v11036
  %v11039 = vunpack.c.l.s4 1966171168
  %v11040 = vunpack.c.0.s8 %v11039
  %v11041 = vlaneseq
  %v11042 = vshrl.u32 %v11041, 7
  %v11043 = vsub.s32 %v11040, %v11042
  %v11044 = vrot.slane %v11023, %v11043
  %v11045 = vcombine.low %v11030, %v11037
  %v11046 = vcombine.low %v10092, %v11044
  %v11048 = vunpack.c.l.s4 1966171168
  %v11049 = vunpack.c.0.s8 %v11048
  %v11050 = vlaneseq
  %v11051 = vshrl.u32 %v11050, 7
  %v11052 = vsub.s32 %v11049, %v11051
  %v11053 = vrot.slane %v11045, %v11052
  %v11055 = vunpack.c.l.s4 1966171168
  %v11056 = vunpack.c.0.s8 %v11055
  %v11057 = vlaneseq
  %v11058 = vshrl.u32 %v11057, 7
  %v11059 = vsub.s32 %v11056, %v11058
  %v11060 = vrot.slane %v11046, %v11059
  %v11061 = vcombine.low %v11053, %v11060
  %v11062 = vcombine.low %v9946, %v9929
  %v11064 = vunpack.c.l.s4 1966171168
  %v11065 = vunpack.c.0.s8 %v11064
  %v11066 = vlaneseq
  %v11067 = vshrl.u32 %v11066, 7
  %v11068 = vsub.s32 %v11065, %v11067
  %v11069 = vrot.slane %v11062, %v11068
  %v11071 = vunpack.c.l.s4 1966171168
  %v11072 = vunpack.c.0.s8 %v11071
  %v11073 = vlaneseq
  %v11074 = vshrl.u32 %v11073, 7
  %v11075 = vsub.s32 %v11072, %v11074
  %v11076 = vrot.slane %v11069, %v11075
  %v11077 = vsel %vm10100, %v11020, 0
  %v11079 = vsel %vm10100, %v11061, 0
  %v11081 = vsel %vm10100, %v11076, 0
  %11083 = vmatprep.subr.mxu0 0.0
  %11084 = vmatpush1.msra.mxu0 %v10972
  %11085 = vmatprep.subr.mxu0 0.0
  %11086 = vmatpush1.msra.mxu0 %v10973
  %11087 = vmatprep.subr.mxu0 0.0
  %11088 = vmatpush1.msra.mxu0 %v10974
  %11089 = vmatprep.subr.mxu0 0.0
  %11090 = vmatpush1.msra.mxu0 %v10975
  %11091 = vmatprep.subr.mxu0 0.0
  %11092 = vmatpush1.msra.mxu0 %v10976
  %11093 = vmatprep.subr.mxu0 0.0
  %11094 = vmatpush1.msra.mxu0 %v10977
  %11095 = vmatprep.subr.mxu0 0.0
  %11096 = vmatpush1.msra.mxu0 %v10978
  %11097 = vmatprep.subr.mxu0 0.0
  %11098 = vmatpush1.msra.mxu0 %v10979
  %11099 = vmatprep.subr.mxu0 0.0
  %11100 = vmatpush1.msra.mxu0 0.0
  %11101 = vmatprep.subr.mxu0 0.0
  %11102 = vmatpush1.msra.mxu0 0.0
  %11103 = vmatprep.subr.mxu0 0.0
  %11104 = vmatpush1.msra.mxu0 0.0
  %11105 = vmatprep.subr.mxu0 0.0
  %11106 = vmatpush1.msra.mxu0 0.0
  %11107 = vmatprep.subr.mxu0 0.0
  %11108 = vmatpush1.msra.mxu0 0.0
  %11109 = vmatprep.subr.mxu0 0.0
  %11110 = vmatpush1.msra.mxu0 0.0
  %11111 = vmatprep.subr.mxu0 0.0
  %11112 = vmatpush1.msra.mxu0 0.0
  %11113 = vmatprep.subr.mxu0 0.0
  %11114 = vmatpush1.msra.mxu0 0.0
  %11115 = vmatprep.subr.mxu0 0.0
  %11116 = vmatpush1.msra.mxu0 0.0
  %11117 = vmatprep.subr.mxu0 0.0
  %11118 = vmatpush1.msra.mxu0 0.0
  %11119 = vmatprep.subr.mxu0 0.0
  %11120 = vmatpush1.msra.mxu0 0.0
  %11121 = vmatprep.subr.mxu0 0.0
  %11122 = vmatpush1.msra.mxu0 0.0
  %11123 = vmatprep.subr.mxu0 0.0
  %11124 = vmatpush1.msra.mxu0 0.0
  %11125 = vmatprep.subr.mxu0 0.0
  %11126 = vmatpush1.msra.mxu0 0.0
  %11127 = vmatprep.subr.mxu0 0.0
  %11128 = vmatpush1.msra.mxu0 0.0
  %11129 = vmatprep.subr.mxu0 0.0
  %11130 = vmatpush1.msra.mxu0 0.0
  %11131 = vmatprep.subr.mxu0 0.0
  %11132 = vmatpush1.msra.mxu0 0.0
  %11133 = vmatprep.subr.mxu0 0.0
  %11134 = vmatpush1.msra.mxu0 0.0
  %11135 = vmatprep.subr.mxu0 0.0
  %11136 = vmatpush1.msra.mxu0 0.0
  %11137 = vmatprep.subr.mxu0 0.0
  %11138 = vmatpush1.msra.mxu0 0.0
  %11139 = vmatprep.subr.mxu0 0.0
  %11140 = vmatpush1.msra.mxu0 0.0
  %11141 = vmatprep.subr.mxu0 0.0
  %11142 = vmatpush1.msra.mxu0 0.0
  %11143 = vmatprep.subr.mxu0 0.0
  %11144 = vmatpush1.msra.mxu0 0.0
  %11145 = vmatprep.subr.mxu0 0.0
  %11146 = vmatpush1.msra.mxu0 0.0
  %11147 = vmatprep.mubr.f32.mxu0 0.0
  %11148 = vmatmul.mubr.f32.gmra.mrb[0].mxu0 %v11077
  %v11149 = vpop.f32.mrb[0].mxu0
  %v11150 = vadd.f32 0.0, %v11149
  %v11151 = vpop.f32.mrb[0].mxu0
  %11152 = vmatprep.mubr.f32.mxu0 0.0
  %11153 = vmatmul.mubr.f32.gmra.mrb[0].mxu0 %v11079
  %v11154 = vpop.f32.mrb[0].mxu0
  %v11155 = vadd.f32 0.0, %v11154
  %v11156 = vpop.f32.mrb[0].mxu0
  %11157 = vmatprep.mubr.f32.mxu0 0.0
  %11158 = vmatmul.mubr.f32.gmra.mrb[0].mxu0 %v11081
  %v11159 = vpop.f32.mrb[0].mxu0
  %v11160 = vadd.f32 0.0, %v11159
  %v11161 = vpop.f32.mrb[0].mxu0
  %11162 = vdwg.mxu0
  %v11163 = vadd.f32 %v10968, %v11150
  %v11164 = vadd.f32 %v10969, %v11155
  %v11165 = vadd.f32 %v10970, %v11160
  %s11166 = scalar_lea.vmem %s7, 384
  %v11167 = vld [vmem:[%s11166] sm:$0xff]
  %v11168 = vld [vmem:[%s11166 + $0x8] sm:$0xff]
  %v11169 = vld [vmem:[%s11166 + $0x10] sm:$0xff]
  %v11170 = vld [vmem:[%s11166 + $0x18] sm:$0xff]
  %v11171 = vld [vmem:[%s11166 + $0x20] sm:$0xff]
  %v11172 = vld [vmem:[%s11166 + $0x28] sm:$0xff]
  %v11173 = vld [vmem:[%s11166 + $0x30] sm:$0xff]
  %v11174 = vld [vmem:[%s11166 + $0x38] sm:$0xff]
  %v11175 = vcombine.low %v9733, %v9751
  %v11176 = vcombine.low %v9782, %v9796
  %v11178 = vunpack.c.l.s4 1966171168
  %v11179 = vunpack.c.0.s8 %v11178
  %v11180 = vlaneseq
  %v11181 = vshrl.u32 %v11180, 7
  %v11182 = vsub.s32 %v11179, %v11181
  %v11183 = vrot.slane %v11175, %v11182
  %v11185 = vunpack.c.l.s4 1966171168
  %v11186 = vunpack.c.0.s8 %v11185
  %v11187 = vlaneseq
  %v11188 = vshrl.u32 %v11187, 7
  %v11189 = vsub.s32 %v11186, %v11188
  %v11190 = vrot.slane %v11176, %v11189
  %v11191 = vcombine.low %v10218, %v11183
  %v11192 = vcombine.low %v10816, %v11190
  %v11194 = vunpack.c.l.s4 1966171168
  %v11195 = vunpack.c.0.s8 %v11194
  %v11196 = vlaneseq
  %v11197 = vshrl.u32 %v11196, 7
  %v11198 = vsub.s32 %v11195, %v11197
  %v11199 = vrot.slane %v11191, %v11198
  %v11201 = vunpack.c.l.s4 1966171168
  %v11202 = vunpack.c.0.s8 %v11201
  %v11203 = vlaneseq
  %v11204 = vshrl.u32 %v11203, 7
  %v11205 = vsub.s32 %v11202, %v11204
  %v11206 = vrot.slane %v11192, %v11205
  %v11207 = vcombine.low %v11199, %v11206
  %v11208 = vcombine.low %v9798, %v9897
  %v11209 = vcombine.low %v9922, %v9936
  %v11210 = vcombine.low %v9944, %v9943
  %v11212 = vunpack.c.l.s4 1966171168
  %v11213 = vunpack.c.0.s8 %v11212
  %v11214 = vlaneseq
  %v11215 = vshrl.u32 %v11214, 7
  %v11216 = vsub.s32 %v11213, %v11215
  %v11217 = vrot.slane %v11208, %v11216
  %v11219 = vunpack.c.l.s4 1966171168
  %v11220 = vunpack.c.0.s8 %v11219
  %v11221 = vlaneseq
  %v11222 = vshrl.u32 %v11221, 7
  %v11223 = vsub.s32 %v11220, %v11222
  %v11224 = vrot.slane %v11209, %v11223
  %v11226 = vunpack.c.l.s4 1966171168
  %v11227 = vunpack.c.0.s8 %v11226
  %v11228 = vlaneseq
  %v11229 = vshrl.u32 %v11228, 7
  %v11230 = vsub.s32 %v11227, %v11229
  %v11231 = vrot.slane %v11210, %v11230
  %v11232 = vcombine.low %v11217, %v10292
  %v11233 = vcombine.low %v11224, %v11231
  %v11235 = vunpack.c.l.s4 1966171168
  %v11236 = vunpack.c.0.s8 %v11235
  %v11237 = vlaneseq
  %v11238 = vshrl.u32 %v11237, 7
  %v11239 = vsub.s32 %v11236, %v11238
  %v11240 = vrot.slane %v11232, %v11239
  %v11242 = vunpack.c.l.s4 1966171168
  %v11243 = vunpack.c.0.s8 %v11242
  %v11244 = vlaneseq
  %v11245 = vshrl.u32 %v11244, 7
  %v11246 = vsub.s32 %v11243, %v11245
  %v11247 = vrot.slane %v11233, %v11246
  %v11248 = vcombine.low %v11240, %v11247
  %v11249 = vcombine.low %v9945, %v9947
  %v11251 = vunpack.c.l.s4 1966171168
  %v11252 = vunpack.c.0.s8 %v11251
  %v11253 = vlaneseq
  %v11254 = vshrl.u32 %v11253, 7
  %v11255 = vsub.s32 %v11252, %v11254
  %v11256 = vrot.slane %v11249, %v11255
  %v11258 = vunpack.c.l.s4 1966171168
  %v11259 = vunpack.c.0.s8 %v11258
  %v11260 = vlaneseq
  %v11261 = vshrl.u32 %v11260, 7
  %v11262 = vsub.s32 %v11259, %v11261
  %v11263 = vrot.slane %v11256, %v11262
  %v11264 = vsel %vm10100, %v11207, 0
  %v11266 = vsel %vm10100, %v11248, 0
  %v11268 = vsel %vm10100, %v11263, 0
  %11270 = vmatprep.subr.mxu0 0.0
  %11271 = vmatpush1.msra.mxu0 %v11167
  %11272 = vmatprep.subr.mxu0 0.0
  %11273 = vmatpush1.msra.mxu0 %v11168
  %11274 = vmatprep.subr.mxu0 0.0
  %11275 = vmatpush1.msra.mxu0 %v11169
  %11276 = vmatprep.subr.mxu0 0.0
  %11277 = vmatpush1.msra.mxu0 %v11170
  %11278 = vmatprep.subr.mxu0 0.0
  %11279 = vmatpush1.msra.mxu0 %v11171
  %11280 = vmatprep.subr.mxu0 0.0
  %11281 = vmatpush1.msra.mxu0 %v11172
  %11282 = vmatprep.subr.mxu0 0.0
  %11283 = vmatpush1.msra.mxu0 %v11173
  %11284 = vmatprep.subr.mxu0 0.0
  %11285 = vmatpush1.msra.mxu0 %v11174
  %11286 = vmatprep.subr.mxu0 0.0
  %11287 = vmatpush1.msra.mxu0 0.0
  %11288 = vmatprep.subr.mxu0 0.0
  %11289 = vmatpush1.msra.mxu0 0.0
  %11290 = vmatprep.subr.mxu0 0.0
  %11291 = vmatpush1.msra.mxu0 0.0
  %11292 = vmatprep.subr.mxu0 0.0
  %11293 = vmatpush1.msra.mxu0 0.0
  %11294 = vmatprep.subr.mxu0 0.0
  %11295 = vmatpush1.msra.mxu0 0.0
  %11296 = vmatprep.subr.mxu0 0.0
  %11297 = vmatpush1.msra.mxu0 0.0
  %11298 = vmatprep.subr.mxu0 0.0
  %11299 = vmatpush1.msra.mxu0 0.0
  %11300 = vmatprep.subr.mxu0 0.0
  %11301 = vmatpush1.msra.mxu0 0.0
  %11302 = vmatprep.subr.mxu0 0.0
  %11303 = vmatpush1.msra.mxu0 0.0
  %11304 = vmatprep.subr.mxu0 0.0
  %11305 = vmatpush1.msra.mxu0 0.0
  %11306 = vmatprep.subr.mxu0 0.0
  %11307 = vmatpush1.msra.mxu0 0.0
  %11308 = vmatprep.subr.mxu0 0.0
  %11309 = vmatpush1.msra.mxu0 0.0
  %11310 = vmatprep.subr.mxu0 0.0
  %11311 = vmatpush1.msra.mxu0 0.0
  %11312 = vmatprep.subr.mxu0 0.0
  %11313 = vmatpush1.msra.mxu0 0.0
  %11314 = vmatprep.subr.mxu0 0.0
  %11315 = vmatpush1.msra.mxu0 0.0
  %11316 = vmatprep.subr.mxu0 0.0
  %11317 = vmatpush1.msra.mxu0 0.0
  %11318 = vmatprep.subr.mxu0 0.0
  %11319 = vmatpush1.msra.mxu0 0.0
  %11320 = vmatprep.subr.mxu0 0.0
  %11321 = vmatpush1.msra.mxu0 0.0
  %11322 = vmatprep.subr.mxu0 0.0
  %11323 = vmatpush1.msra.mxu0 0.0
  %11324 = vmatprep.subr.mxu0 0.0
  %11325 = vmatpush1.msra.mxu0 0.0
  %11326 = vmatprep.subr.mxu0 0.0
  %11327 = vmatpush1.msra.mxu0 0.0
  %11328 = vmatprep.subr.mxu0 0.0
  %11329 = vmatpush1.msra.mxu0 0.0
  %11330 = vmatprep.subr.mxu0 0.0
  %11331 = vmatpush1.msra.mxu0 0.0
  %11332 = vmatprep.subr.mxu0 0.0
  %11333 = vmatpush1.msra.mxu0 0.0
  %11334 = vmatprep.mubr.f32.mxu0 0.0
  %11335 = vmatmul.mubr.f32.gmra.mrb[0].mxu0 %v11264
  %v11336 = vpop.f32.mrb[0].mxu0
  %v11337 = vadd.f32 0.0, %v11336
  %v11338 = vpop.f32.mrb[0].mxu0
  %11339 = vmatprep.mubr.f32.mxu0 0.0
  %11340 = vmatmul.mubr.f32.gmra.mrb[0].mxu0 %v11266
  %v11341 = vpop.f32.mrb[0].mxu0
  %v11342 = vadd.f32 0.0, %v11341
  %v11343 = vpop.f32.mrb[0].mxu0
  %11344 = vmatprep.mubr.f32.mxu0 0.0
  %11345 = vmatmul.mubr.f32.gmra.mrb[0].mxu0 %v11268
  %v11346 = vpop.f32.mrb[0].mxu0
  %v11347 = vadd.f32 0.0, %v11346
  %v11348 = vpop.f32.mrb[0].mxu0
  %11349 = vdwg.mxu0
  %v11350 = vadd.f32 %v11163, %v11337
  %v11351 = vadd.f32 %v11164, %v11342
  %v11352 = vadd.f32 %v11165, %v11347
  %s11353 = scalar_lea.vmem %s7, 448
  %v11354 = vld [vmem:[%s11353] sm:$0xff]
  %v11355 = vld [vmem:[%s11353 + $0x8] sm:$0xff]
  %v11356 = vld [vmem:[%s11353 + $0x10] sm:$0xff]
  %v11357 = vld [vmem:[%s11353 + $0x18] sm:$0xff]
  %v11358 = vld [vmem:[%s11353 + $0x20] sm:$0xff]
  %v11359 = vld [vmem:[%s11353 + $0x28] sm:$0xff]
  %v11360 = vld [vmem:[%s11353 + $0x30] sm:$0xff]
  %v11361 = vld [vmem:[%s11353 + $0x38] sm:$0xff]
  %v11362 = vcombine.low %v9747, %v9775
  %v11363 = vcombine.low %v9796, %v9798
  %v11365 = vunpack.c.l.s4 1966171168
  %v11366 = vunpack.c.0.s8 %v11365
  %v11367 = vlaneseq
  %v11368 = vshrl.u32 %v11367, 7
  %v11369 = vsub.s32 %v11366, %v11368
  %v11370 = vrot.slane %v11362, %v11369
  %v11372 = vunpack.c.l.s4 1966171168
  %v11373 = vunpack.c.0.s8 %v11372
  %v11374 = vlaneseq
  %v11375 = vshrl.u32 %v11374, 7
  %v11376 = vsub.s32 %v11373, %v11375
  %v11377 = vrot.slane %v11363, %v11376
  %v11378 = vcombine.low %v10018, %v11370
  %v11379 = vcombine.low %v11003, %v11377
  %v11381 = vunpack.c.l.s4 1966171168
  %v11382 = vunpack.c.0.s8 %v11381
  %v11383 = vlaneseq
  %v11384 = vshrl.u32 %v11383, 7
  %v11385 = vsub.s32 %v11382, %v11384
  %v11386 = vrot.slane %v11378, %v11385
  %v11388 = vunpack.c.l.s4 1966171168
  %v11389 = vunpack.c.0.s8 %v11388
  %v11390 = vlaneseq
  %v11391 = vshrl.u32 %v11390, 7
  %v11392 = vsub.s32 %v11389, %v11391
  %v11393 = vrot.slane %v11379, %v11392
  %v11394 = vcombine.low %v11386, %v11393
  %v11395 = vcombine.low %v9800, %v9880
  %v11396 = vcombine.low %v9946, %v9945
  %v11398 = vunpack.c.l.s4 1966171168
  %v11399 = vunpack.c.0.s8 %v11398
  %v11400 = vlaneseq
  %v11401 = vshrl.u32 %v11400, 7
  %v11402 = vsub.s32 %v11399, %v11401
  %v11403 = vrot.slane %v11395, %v11402
  %v11405 = vunpack.c.l.s4 1966171168
  %v11406 = vunpack.c.0.s8 %v11405
  %v11407 = vlaneseq
  %v11408 = vshrl.u32 %v11407, 7
  %v11409 = vsub.s32 %v11406, %v11408
  %v11410 = vrot.slane %v11396, %v11409
  %v11411 = vcombine.low %v11403, %v10092
  %v11412 = vcombine.low %v10695, %v11410
  %v11414 = vunpack.c.l.s4 1966171168
  %v11415 = vunpack.c.0.s8 %v11414
  %v11416 = vlaneseq
  %v11417 = vshrl.u32 %v11416, 7
  %v11418 = vsub.s32 %v11415, %v11417
  %v11419 = vrot.slane %v11411, %v11418
  %v11421 = vunpack.c.l.s4 1966171168
  %v11422 = vunpack.c.0.s8 %v11421
  %v11423 = vlaneseq
  %v11424 = vshrl.u32 %v11423, 7
  %v11425 = vsub.s32 %v11422, %v11424
  %v11426 = vrot.slane %v11412, %v11425
  %v11427 = vcombine.low %v11419, %v11426
  %v11428 = vcombine.low %v9947, %v9962
  %v11430 = vunpack.c.l.s4 1966171168
  %v11431 = vunpack.c.0.s8 %v11430
  %v11432 = vlaneseq
  %v11433 = vshrl.u32 %v11432, 7
  %v11434 = vsub.s32 %v11431, %v11433
  %v11435 = vrot.slane %v11428, %v11434
  %v11437 = vunpack.c.l.s4 1966171168
  %v11438 = vunpack.c.0.s8 %v11437
  %v11439 = vlaneseq
  %v11440 = vshrl.u32 %v11439, 7
  %v11441 = vsub.s32 %v11438, %v11440
  %v11442 = vrot.slane %v11435, %v11441
  %v11443 = vsel %vm10100, %v11394, 0
  %v11445 = vsel %vm10100, %v11427, 0
  %v11447 = vsel %vm10100, %v11442, 0
  %11449 = vmatprep.subr.mxu0 0.0
  %11450 = vmatpush1.msra.mxu0 %v11354
  %11451 = vmatprep.subr.mxu0 0.0
  %11452 = vmatpush1.msra.mxu0 %v11355
  %11453 = vmatprep.subr.mxu0 0.0
  %11454 = vmatpush1.msra.mxu0 %v11356
  %11455 = vmatprep.subr.mxu0 0.0
  %11456 = vmatpush1.msra.mxu0 %v11357
  %11457 = vmatprep.subr.mxu0 0.0
  %11458 = vmatpush1.msra.mxu0 %v11358
  %11459 = vmatprep.subr.mxu0 0.0
  %11460 = vmatpush1.msra.mxu0 %v11359
  %11461 = vmatprep.subr.mxu0 0.0
  %11462 = vmatpush1.msra.mxu0 %v11360
  %11463 = vmatprep.subr.mxu0 0.0
  %11464 = vmatpush1.msra.mxu0 %v11361
  %11465 = vmatprep.subr.mxu0 0.0
  %11466 = vmatpush1.msra.mxu0 0.0
  %11467 = vmatprep.subr.mxu0 0.0
  %11468 = vmatpush1.msra.mxu0 0.0
  %11469 = vmatprep.subr.mxu0 0.0
  %11470 = vmatpush1.msra.mxu0 0.0
  %11471 = vmatprep.subr.mxu0 0.0
  %11472 = vmatpush1.msra.mxu0 0.0
  %11473 = vmatprep.subr.mxu0 0.0
  %11474 = vmatpush1.msra.mxu0 0.0
  %11475 = vmatprep.subr.mxu0 0.0
  %11476 = vmatpush1.msra.mxu0 0.0
  %11477 = vmatprep.subr.mxu0 0.0
  %11478 = vmatpush1.msra.mxu0 0.0
  %11479 = vmatprep.subr.mxu0 0.0
  %11480 = vmatpush1.msra.mxu0 0.0
  %11481 = vmatprep.subr.mxu0 0.0
  %11482 = vmatpush1.msra.mxu0 0.0
  %11483 = vmatprep.subr.mxu0 0.0
  %11484 = vmatpush1.msra.mxu0 0.0
  %11485 = vmatprep.subr.mxu0 0.0
  %11486 = vmatpush1.msra.mxu0 0.0
  %11487 = vmatprep.subr.mxu0 0.0
  %11488 = vmatpush1.msra.mxu0 0.0
  %11489 = vmatprep.subr.mxu0 0.0
  %11490 = vmatpush1.msra.mxu0 0.0
  %11491 = vmatprep.subr.mxu0 0.0
  %11492 = vmatpush1.msra.mxu0 0.0
  %11493 = vmatprep.subr.mxu0 0.0
  %11494 = vmatpush1.msra.mxu0 0.0
  %11495 = vmatprep.subr.mxu0 0.0
  %11496 = vmatpush1.msra.mxu0 0.0
  %11497 = vmatprep.subr.mxu0 0.0
  %11498 = vmatpush1.msra.mxu0 0.0
  %11499 = vmatprep.subr.mxu0 0.0
  %11500 = vmatpush1.msra.mxu0 0.0
  %11501 = vmatprep.subr.mxu0 0.0
  %11502 = vmatpush1.msra.mxu0 0.0
  %11503 = vmatprep.subr.mxu0 0.0
  %11504 = vmatpush1.msra.mxu0 0.0
  %11505 = vmatprep.subr.mxu0 0.0
  %11506 = vmatpush1.msra.mxu0 0.0
  %11507 = vmatprep.subr.mxu0 0.0
  %11508 = vmatpush1.msra.mxu0 0.0
  %11509 = vmatprep.subr.mxu0 0.0
  %11510 = vmatpush1.msra.mxu0 0.0
  %11511 = vmatprep.subr.mxu0 0.0
  %11512 = vmatpush1.msra.mxu0 0.0
  %11513 = vmatprep.mubr.f32.mxu0 0.0
  %11514 = vmatmul.mubr.f32.gmra.mrb[0].mxu0 %v11443
  %v11515 = vpop.f32.mrb[0].mxu0
  %v11516 = vadd.f32 0.0, %v11515
  %v11517 = vpop.f32.mrb[0].mxu0
  %11518 = vmatprep.mubr.f32.mxu0 0.0
  %11519 = vmatmul.mubr.f32.gmra.mrb[0].mxu0 %v11445
  %v11520 = vpop.f32.mrb[0].mxu0
  %v11521 = vadd.f32 0.0, %v11520
  %v11522 = vpop.f32.mrb[0].mxu0
  %11523 = vmatprep.mubr.f32.mxu0 0.0
  %11524 = vmatmul.mubr.f32.gmra.mrb[0].mxu0 %v11447
  %v11525 = vpop.f32.mrb[0].mxu0
  %v11526 = vadd.f32 0.0, %v11525
  %v11527 = vpop.f32.mrb[0].mxu0
  %11528 = vdwg.mxu0
  %v11529 = vadd.f32 %v11350, %v11516
  %v11530 = vadd.f32 %v11351, %v11521
  %v11531 = vadd.f32 %v11352, %v11526
  %s11532 = scalar_lea.vmem %s7, 512
  %v11533 = vld [vmem:[%s11532] sm:$0xff]
  %v11534 = vld [vmem:[%s11532 + $0x8] sm:$0xff]
  %v11535 = vld [vmem:[%s11532 + $0x10] sm:$0xff]
  %v11536 = vld [vmem:[%s11532 + $0x18] sm:$0xff]
  %v11537 = vld [vmem:[%s11532 + $0x20] sm:$0xff]
  %v11538 = vld [vmem:[%s11532 + $0x28] sm:$0xff]
  %v11539 = vld [vmem:[%s11532 + $0x30] sm:$0xff]
  %v11540 = vld [vmem:[%s11532 + $0x38] sm:$0xff]
  %v11541 = vcombine.low %v9749, %v9789
  %v11542 = vcombine.low %v9797, %v9799
  %v11543 = vcombine.low %v9798, %v9800
  %v11545 = vunpack.c.l.s4 1966171168
  %v11546 = vunpack.c.0.s8 %v11545
  %v11547 = vlaneseq
  %v11548 = vshrl.u32 %v11547, 7
  %v11549 = vsub.s32 %v11546, %v11548
  %v11550 = vrot.slane %v11541, %v11549
  %v11552 = vunpack.c.l.s4 1966171168
  %v11553 = vunpack.c.0.s8 %v11552
  %v11554 = vlaneseq
  %v11555 = vshrl.u32 %v11554, 7
  %v11556 = vsub.s32 %v11553, %v11555
  %v11557 = vrot.slane %v11542, %v11556
  %v11559 = vunpack.c.l.s4 1966171168
  %v11560 = vunpack.c.0.s8 %v11559
  %v11561 = vlaneseq
  %v11562 = vshrl.u32 %v11561, 7
  %v11563 = vsub.s32 %v11560, %v11562
  %v11564 = vrot.slane %v11543, %v11563
  %v11565 = vcombine.low %v10426, %v11550
  %v11566 = vcombine.low %v11557, %v11564
  %v11568 = vunpack.c.l.s4 1966171168
  %v11569 = vunpack.c.0.s8 %v11568
  %v11570 = vlaneseq
  %v11571 = vshrl.u32 %v11570, 7
  %v11572 = vsub.s32 %v11569, %v11571
  %v11573 = vrot.slane %v11565, %v11572
  %v11575 = vunpack.c.l.s4 1966171168
  %v11576 = vunpack.c.0.s8 %v11575
  %v11577 = vlaneseq
  %v11578 = vshrl.u32 %v11577, 7
  %v11579 = vsub.s32 %v11576, %v11578
  %v11580 = vrot.slane %v11566, %v11579
  %v11581 = vcombine.low %v11573, %v11580
  %v11582 = vcombine.low %v9824, %v9894
  %v11583 = vcombine.low %v9929, %v9947
  %v11585 = vunpack.c.l.s4 1966171168
  %v11586 = vunpack.c.0.s8 %v11585
  %v11587 = vlaneseq
  %v11588 = vshrl.u32 %v11587, 7
  %v11589 = vsub.s32 %v11586, %v11588
  %v11590 = vrot.slane %v11582, %v11589
  %v11592 = vunpack.c.l.s4 1966171168
  %v11593 = vunpack.c.0.s8 %v11592
  %v11594 = vlaneseq
  %v11595 = vshrl.u32 %v11594, 7
  %v11596 = vsub.s32 %v11593, %v11595
  %v11597 = vrot.slane %v11583, %v11596
  %v11598 = vcombine.low %v11590, %v10500
  %v11599 = vcombine.low %v10874, %v11597
  %v11601 = vunpack.c.l.s4 1966171168
  %v11602 = vunpack.c.0.s8 %v11601
  %v11603 = vlaneseq
  %v11604 = vshrl.u32 %v11603, 7
  %v11605 = vsub.s32 %v11602, %v11604
  %v11606 = vrot.slane %v11598, %v11605
  %v11608 = vunpack.c.l.s4 1966171168
  %v11609 = vunpack.c.0.s8 %v11608
  %v11610 = vlaneseq
  %v11611 = vshrl.u32 %v11610, 7
  %v11612 = vsub.s32 %v11609, %v11611
  %v11613 = vrot.slane %v11599, %v11612
  %v11614 = vcombine.low %v11606, %v11613
  %v11615 = vcombine.low %v9962, %v9969
  %v11617 = vunpack.c.l.s4 1966171168
  %v11618 = vunpack.c.0.s8 %v11617
  %v11619 = vlaneseq
  %v11620 = vshrl.u32 %v11619, 7
  %v11621 = vsub.s32 %v11618, %v11620
  %v11622 = vrot.slane %v11615, %v11621
  %v11624 = vunpack.c.l.s4 1966171168
  %v11625 = vunpack.c.0.s8 %v11624
  %v11626 = vlaneseq
  %v11627 = vshrl.u32 %v11626, 7
  %v11628 = vsub.s32 %v11625, %v11627
  %v11629 = vrot.slane %v11622, %v11628
  %v11630 = vsel %vm10100, %v11581, 0
  %v11632 = vsel %vm10100, %v11614, 0
  %v11634 = vsel %vm10100, %v11629, 0
  %11636 = vmatprep.subr.mxu0 0.0
  %11637 = vmatpush1.msra.mxu0 %v11533
  %11638 = vmatprep.subr.mxu0 0.0
  %11639 = vmatpush1.msra.mxu0 %v11534
  %11640 = vmatprep.subr.mxu0 0.0
  %11641 = vmatpush1.msra.mxu0 %v11535
  %11642 = vmatprep.subr.mxu0 0.0
  %11643 = vmatpush1.msra.mxu0 %v11536
  %11644 = vmatprep.subr.mxu0 0.0
  %11645 = vmatpush1.msra.mxu0 %v11537
  %11646 = vmatprep.subr.mxu0 0.0
  %11647 = vmatpush1.msra.mxu0 %v11538
  %11648 = vmatprep.subr.mxu0 0.0
  %11649 = vmatpush1.msra.mxu0 %v11539
  %11650 = vmatprep.subr.mxu0 0.0
  %11651 = vmatpush1.msra.mxu0 %v11540
  %11652 = vmatprep.subr.mxu0 0.0
  %11653 = vmatpush1.msra.mxu0 0.0
  %11654 = vmatprep.subr.mxu0 0.0
  %11655 = vmatpush1.msra.mxu0 0.0
  %11656 = vmatprep.subr.mxu0 0.0
  %11657 = vmatpush1.msra.mxu0 0.0
  %11658 = vmatprep.subr.mxu0 0.0
  %11659 = vmatpush1.msra.mxu0 0.0
  %11660 = vmatprep.subr.mxu0 0.0
  %11661 = vmatpush1.msra.mxu0 0.0
  %11662 = vmatprep.subr.mxu0 0.0
  %11663 = vmatpush1.msra.mxu0 0.0
  %11664 = vmatprep.subr.mxu0 0.0
  %11665 = vmatpush1.msra.mxu0 0.0
  %11666 = vmatprep.subr.mxu0 0.0
  %11667 = vmatpush1.msra.mxu0 0.0
  %11668 = vmatprep.subr.mxu0 0.0
  %11669 = vmatpush1.msra.mxu0 0.0
  %11670 = vmatprep.subr.mxu0 0.0
  %11671 = vmatpush1.msra.mxu0 0.0
  %11672 = vmatprep.subr.mxu0 0.0
  %11673 = vmatpush1.msra.mxu0 0.0
  %11674 = vmatprep.subr.mxu0 0.0
  %11675 = vmatpush1.msra.mxu0 0.0
  %11676 = vmatprep.subr.mxu0 0.0
  %11677 = vmatpush1.msra.mxu0 0.0
  %11678 = vmatprep.subr.mxu0 0.0
  %11679 = vmatpush1.msra.mxu0 0.0
  %11680 = vmatprep.subr.mxu0 0.0
  %11681 = vmatpush1.msra.mxu0 0.0
  %11682 = vmatprep.subr.mxu0 0.0
  %11683 = vmatpush1.msra.mxu0 0.0
  %11684 = vmatprep.subr.mxu0 0.0
  %11685 = vmatpush1.msra.mxu0 0.0
  %11686 = vmatprep.subr.mxu0 0.0
  %11687 = vmatpush1.msra.mxu0 0.0
  %11688 = vmatprep.subr.mxu0 0.0
  %11689 = vmatpush1.msra.mxu0 0.0
  %11690 = vmatprep.subr.mxu0 0.0
  %11691 = vmatpush1.msra.mxu0 0.0
  %11692 = vmatprep.subr.mxu0 0.0
  %11693 = vmatpush1.msra.mxu0 0.0
  %11694 = vmatprep.subr.mxu0 0.0
  %11695 = vmatpush1.msra.mxu0 0.0
  %11696 = vmatprep.subr.mxu0 0.0
  %11697 = vmatpush1.msra.mxu0 0.0
  %11698 = vmatprep.subr.mxu0 0.0
  %11699 = vmatpush1.msra.mxu0 0.0
  %11700 = vmatprep.mubr.f32.mxu0 0.0
  %11701 = vmatmul.mubr.f32.gmra.mrb[0].mxu0 %v11630
  %v11702 = vpop.f32.mrb[0].mxu0
  %v11703 = vadd.f32 0.0, %v11702
  %v11704 = vpop.f32.mrb[0].mxu0
  %11705 = vmatprep.mubr.f32.mxu0 0.0
  %11706 = vmatmul.mubr.f32.gmra.mrb[0].mxu0 %v11632
  %v11707 = vpop.f32.mrb[0].mxu0
  %v11708 = vadd.f32 0.0, %v11707
  %v11709 = vpop.f32.mrb[0].mxu0
  %11710 = vmatprep.mubr.f32.mxu0 0.0
  %11711 = vmatmul.mubr.f32.gmra.mrb[0].mxu0 %v11634
  %v11712 = vpop.f32.mrb[0].mxu0
  %v11713 = vadd.f32 0.0, %v11712
  %v11714 = vpop.f32.mrb[0].mxu0
  %11715 = vdwg.mxu0
  %v11716 = vadd.f32 %v11529, %v11703
  %v11717 = vadd.f32 %v11530, %v11708
  %v11718 = vadd.f32 %v11531, %v11713
  %v11719 = vld [vmem:[%s8] sm:$0x1]
  %v11721 = vlaneseq
  %v11722 = vshrl.u32 %v11721, 7
  %v11723 = vsub.s32 0, %v11722
  %v11724 = vrot.slane %v11719, %v11723
  %v11726 = vadd.f32 %v11716, %v11724
  %v11727 = vadd.f32 %v11717, %v11724
  %v11728 = vadd.f32 %v11718, %v11724
  %v11729 = vmax.f32 %v11726, 0.0
  %v11730 = vmax.f32 %v11727, 0.0
  %v11731 = vmax.f32 %v11728, 0.0
  %vm11732 = vcmask 1040384
  %v11733 = vsel %vm11732, %v11729, 0.0
  %vm11734 = vcmask 1041409
  %v11735 = vsel %vm11734, %v11730, %v11733
  %v11736 = vrot.slane %v11729, 1
  %v11737 = vsel %vm11732, %v11736, 0.0
  %v11738 = vrot.slane %v11730, 1
  %v11739 = vsel %vm11734, %v11738, %v11737
  %v11740 = vrot.slane %v11729, 2
  %v11741 = vsel %vm11732, %v11740, 0.0
  %v11742 = vrot.slane %v11730, 2
  %v11743 = vsel %vm11734, %v11742, %v11741
  %v11744 = vrot.slane %v11729, 3
  %v11745 = vsel %vm11732, %v11744, 0.0
  %v11746 = vrot.slane %v11730, 3
  %v11747 = vsel %vm11734, %v11746, %v11745
  %v11748 = vrot.slane %v11729, 4
  %v11749 = vsel %vm11732, %v11748, 0.0
  %v11750 = vrot.slane %v11730, 4
  %v11751 = vsel %vm11734, %v11750, %v11749
  %v11752 = vrot.slane %v11729, 5
  %v11753 = vsel %vm11732, %v11752, 0.0
  %v11754 = vrot.slane %v11730, 5
  %v11755 = vsel %vm11734, %v11754, %v11753
  %v11756 = vrot.slane %v11729, 6
  %v11757 = vsel %vm11732, %v11756, 0.0
  %v11758 = vrot.slane %v11730, 6
  %v11759 = vsel %vm11734, %v11758, %v11757
  %v11760 = vrot.slane %v11729, 7
  %v11761 = vsel %vm11732, %v11760, 0.0
  %v11762 = vrot.slane %v11731, 7
  %v11763 = vsel %vm11734, %v11762, %v11761
  %v11764 = vsel %vm11732, %v11730, 0.0
  %v11765 = vsel %vm11734, %v11731, %v11764
  %v11766 = vld [vmem:[%s9] sm:$0xff]
  %v11767 = vld [vmem:[%s9 + $0x8] sm:$0xff]
  %v11768 = vld [vmem:[%s9 + $0x10] sm:$0xff]
  %v11769 = vld [vmem:[%s9 + $0x18] sm:$0xff]
  %v11770 = vld [vmem:[%s9 + $0x20] sm:$0xff]
  %v11771 = vld [vmem:[%s9 + $0x28] sm:$0xff]
  %v11772 = vld [vmem:[%s9 + $0x30] sm:$0xff]
  %v11773 = vld [vmem:[%s9 + $0x38] sm:$0xff]
  %v11774 = vld [vmem:[%s9 + $0x40] sm:$0xff]
  %v11775 = vld [vmem:[%s9 + $0x48] sm:$0xff]
  %v11776 = vld [vmem:[%s9 + $0x50] sm:$0xff]
  %v11777 = vld [vmem:[%s9 + $0x58] sm:$0xff]
  %v11778 = vld [vmem:[%s9 + $0x60] sm:$0xff]
  %v11779 = vld [vmem:[%s9 + $0x68] sm:$0xff]
  %v11780 = vld [vmem:[%s9 + $0x70] sm:$0xff]
  %v11781 = vld [vmem:[%s9 + $0x78] sm:$0xff]
  %v11782 = vld [vmem:[%s9 + $0x80] sm:$0xff]
  %v11783 = vld [vmem:[%s9 + $0x88] sm:$0xff]
  %v11784 = vld [vmem:[%s9 + $0x90] sm:$0xff]
  %v11785 = vld [vmem:[%s9 + $0x98] sm:$0xff]
  %v11786 = vld [vmem:[%s9 + $0xa0] sm:$0xff]
  %v11787 = vld [vmem:[%s9 + $0xa8] sm:$0xff]
  %v11788 = vld [vmem:[%s9 + $0xb0] sm:$0xff]
  %v11789 = vld [vmem:[%s9 + $0xb8] sm:$0xff]
  %v11790 = vld [vmem:[%s9 + $0xc0] sm:$0xff]
  %v11791 = vld [vmem:[%s9 + $0xc8] sm:$0xff]
  %v11792 = vld [vmem:[%s9 + $0xd0] sm:$0xff]
  %v11793 = vld [vmem:[%s9 + $0xd8] sm:$0xff]
  %v11794 = vld [vmem:[%s9 + $0xe0] sm:$0xff]
  %v11795 = vld [vmem:[%s9 + $0xe8] sm:$0xff]
  %v11796 = vld [vmem:[%s9 + $0xf0] sm:$0xff]
  %v11797 = vld [vmem:[%s9 + $0xf8] sm:$0xff]
  %v11798 = vld [vmem:[%s9 + $0x100] sm:$0xff]
  %v11799 = vld [vmem:[%s9 + $0x108] sm:$0xff]
  %v11800 = vld [vmem:[%s9 + $0x110] sm:$0xff]
  %v11801 = vld [vmem:[%s9 + $0x118] sm:$0xff]
  %v11802 = vld [vmem:[%s9 + $0x120] sm:$0xff]
  %v11803 = vld [vmem:[%s9 + $0x128] sm:$0xff]
  %v11804 = vld [vmem:[%s9 + $0x130] sm:$0xff]
  %v11805 = vld [vmem:[%s9 + $0x138] sm:$0xff]
  %v11806 = vld [vmem:[%s9 + $0x140] sm:$0xff]
  %v11807 = vld [vmem:[%s9 + $0x148] sm:$0xff]
  %v11808 = vld [vmem:[%s9 + $0x150] sm:$0xff]
  %v11809 = vld [vmem:[%s9 + $0x158] sm:$0xff]
  %v11810 = vld [vmem:[%s9 + $0x160] sm:$0xff]
  %v11811 = vld [vmem:[%s9 + $0x168] sm:$0xff]
  %v11812 = vld [vmem:[%s9 + $0x170] sm:$0xff]
  %v11813 = vld [vmem:[%s9 + $0x178] sm:$0xff]
  %v11814 = vld [vmem:[%s9 + $0x180] sm:$0xff]
  %v11815 = vld [vmem:[%s9 + $0x188] sm:$0xff]
  %v11816 = vld [vmem:[%s9 + $0x190] sm:$0xff]
  %v11817 = vld [vmem:[%s9 + $0x198] sm:$0xff]
  %v11818 = vld [vmem:[%s9 + $0x1a0] sm:$0xff]
  %v11819 = vld [vmem:[%s9 + $0x1a8] sm:$0xff]
  %v11820 = vld [vmem:[%s9 + $0x1b0] sm:$0xff]
  %v11821 = vld [vmem:[%s9 + $0x1b8] sm:$0xff]
  %v11822 = vld [vmem:[%s9 + $0x1c0] sm:$0xff]
  %v11823 = vld [vmem:[%s9 + $0x1c8] sm:$0xff]
  %v11824 = vld [vmem:[%s9 + $0x1d0] sm:$0xff]
  %v11825 = vld [vmem:[%s9 + $0x1d8] sm:$0xff]
  %v11826 = vld [vmem:[%s9 + $0x1e0] sm:$0xff]
  %v11827 = vld [vmem:[%s9 + $0x1e8] sm:$0xff]
  %v11828 = vld [vmem:[%s9 + $0x1f0] sm:$0xff]
  %v11829 = vld [vmem:[%s9 + $0x1f8] sm:$0xff]
  %v11830 = vld [vmem:[%s9 + $0x200] sm:$0xff]
  %v11831 = vld [vmem:[%s9 + $0x208] sm:$0xff]
  %v11832 = vld [vmem:[%s9 + $0x210] sm:$0xff]
  %v11833 = vld [vmem:[%s9 + $0x218] sm:$0xff]
  %v11834 = vld [vmem:[%s9 + $0x220] sm:$0xff]
  %v11835 = vld [vmem:[%s9 + $0x228] sm:$0xff]
  %v11836 = vld [vmem:[%s9 + $0x230] sm:$0xff]
  %v11837 = vld [vmem:[%s9 + $0x238] sm:$0xff]
  %v11838 = vld [vmem:[%s9 + $0x240] sm:$0xff]
  %v11839 = vld [vmem:[%s9 + $0x248] sm:$0xff]
  %v11840 = vld [vmem:[%s9 + $0x250] sm:$0xff]
  %v11841 = vld [vmem:[%s9 + $0x258] sm:$0xff]
  %v11842 = vld [vmem:[%s9 + $0x260] sm:$0xff]
  %v11843 = vld [vmem:[%s9 + $0x268] sm:$0xff]
  %v11844 = vld [vmem:[%s9 + $0x270] sm:$0xff]
  %v11845 = vld [vmem:[%s9 + $0x278] sm:$0xff]
  %v11846 = vld [vmem:[%s9 + $0x280] sm:$0xff]
  %v11847 = vld [vmem:[%s9 + $0x288] sm:$0xff]
  %v11848 = vld [vmem:[%s9 + $0x290] sm:$0xff]
  %v11849 = vld [vmem:[%s9 + $0x298] sm:$0xff]
  %v11850 = vld [vmem:[%s9 + $0x2a0] sm:$0xff]
  %v11851 = vld [vmem:[%s9 + $0x2a8] sm:$0xff]
  %v11852 = vld [vmem:[%s9 + $0x2b0] sm:$0xff]
  %v11853 = vld [vmem:[%s9 + $0x2b8] sm:$0xff]
  %v11854 = vld [vmem:[%s9 + $0x2c0] sm:$0xff]
  %v11855 = vld [vmem:[%s9 + $0x2c8] sm:$0xff]
  %v11856 = vld [vmem:[%s9 + $0x2d0] sm:$0xff]
  %v11857 = vld [vmem:[%s9 + $0x2d8] sm:$0xff]
  %v11858 = vld [vmem:[%s9 + $0x2e0] sm:$0xff]
  %v11859 = vld [vmem:[%s9 + $0x2e8] sm:$0xff]
  %v11860 = vld [vmem:[%s9 + $0x2f0] sm:$0xff]
  %v11861 = vld [vmem:[%s9 + $0x2f8] sm:$0xff]
  %v11862 = vld [vmem:[%s9 + $0x300] sm:$0xff]
  %v11863 = vld [vmem:[%s9 + $0x308] sm:$0xff]
  %v11864 = vld [vmem:[%s9 + $0x310] sm:$0xff]
  %v11865 = vld [vmem:[%s9 + $0x318] sm:$0xff]
  %v11866 = vld [vmem:[%s9 + $0x320] sm:$0xff]
  %v11867 = vld [vmem:[%s9 + $0x328] sm:$0xff]
  %v11868 = vld [vmem:[%s9 + $0x330] sm:$0xff]
  %v11869 = vld [vmem:[%s9 + $0x338] sm:$0xff]
  %v11870 = vld [vmem:[%s9 + $0x340] sm:$0xff]
  %v11871 = vld [vmem:[%s9 + $0x348] sm:$0xff]
  %v11872 = vld [vmem:[%s9 + $0x350] sm:$0xff]
  %v11873 = vld [vmem:[%s9 + $0x358] sm:$0xff]
  %v11874 = vld [vmem:[%s9 + $0x360] sm:$0xff]
  %v11875 = vld [vmem:[%s9 + $0x368] sm:$0xff]
  %v11876 = vld [vmem:[%s9 + $0x370] sm:$0xff]
  %v11877 = vld [vmem:[%s9 + $0x378] sm:$0xff]
  %v11878 = vld [vmem:[%s9 + $0x380] sm:$0xff]
  %v11879 = vld [vmem:[%s9 + $0x388] sm:$0xff]
  %v11880 = vld [vmem:[%s9 + $0x390] sm:$0xff]
  %v11881 = vld [vmem:[%s9 + $0x398] sm:$0xff]
  %v11882 = vld [vmem:[%s9 + $0x3a0] sm:$0xff]
  %v11883 = vld [vmem:[%s9 + $0x3a8] sm:$0xff]
  %v11884 = vld [vmem:[%s9 + $0x3b0] sm:$0xff]
  %v11885 = vld [vmem:[%s9 + $0x3b8] sm:$0xff]
  %v11886 = vld [vmem:[%s9 + $0x3c0] sm:$0xff]
  %v11887 = vld [vmem:[%s9 + $0x3c8] sm:$0xff]
  %v11888 = vld [vmem:[%s9 + $0x3d0] sm:$0xff]
  %v11889 = vld [vmem:[%s9 + $0x3d8] sm:$0xff]
  %v11890 = vld [vmem:[%s9 + $0x3e0] sm:$0xff]
  %v11891 = vld [vmem:[%s9 + $0x3e8] sm:$0xff]
  %v11892 = vld [vmem:[%s9 + $0x3f0] sm:$0xff]
  %v11893 = vld [vmem:[%s9 + $0x3f8] sm:$0xff]
  %v11894 = vld [vmem:[%s9 + $0x400] sm:$0xff]
  %v11895 = vld [vmem:[%s9 + $0x408] sm:$0xff]
  %v11896 = vld [vmem:[%s9 + $0x410] sm:$0xff]
  %v11897 = vld [vmem:[%s9 + $0x418] sm:$0xff]
  %v11898 = vld [vmem:[%s9 + $0x420] sm:$0xff]
  %v11899 = vld [vmem:[%s9 + $0x428] sm:$0xff]
  %v11900 = vld [vmem:[%s9 + $0x430] sm:$0xff]
  %v11901 = vld [vmem:[%s9 + $0x438] sm:$0xff]
  %v11902 = vld [vmem:[%s9 + $0x440] sm:$0xff]
  %v11903 = vld [vmem:[%s9 + $0x448] sm:$0xff]
  %v11904 = vld [vmem:[%s9 + $0x450] sm:$0xff]
  %v11905 = vld [vmem:[%s9 + $0x458] sm:$0xff]
  %v11906 = vld [vmem:[%s9 + $0x460] sm:$0xff]
  %v11907 = vld [vmem:[%s9 + $0x468] sm:$0xff]
  %v11908 = vld [vmem:[%s9 + $0x470] sm:$0xff]
  %v11909 = vld [vmem:[%s9 + $0x478] sm:$0xff]
  %v11910 = vld [vmem:[%s9 + $0x480] sm:$0xff]
  %v11911 = vld [vmem:[%s9 + $0x488] sm:$0xff]
  %v11912 = vld [vmem:[%s9 + $0x490] sm:$0xff]
  %v11913 = vld [vmem:[%s9 + $0x498] sm:$0xff]
  %v11914 = vld [vmem:[%s9 + $0x4a0] sm:$0xff]
  %v11915 = vld [vmem:[%s9 + $0x4a8] sm:$0xff]
  %v11916 = vld [vmem:[%s9 + $0x4b0] sm:$0xff]
  %v11917 = vld [vmem:[%s9 + $0x4b8] sm:$0xff]
  %v11918 = vld [vmem:[%s9 + $0x4c0] sm:$0xff]
  %v11919 = vld [vmem:[%s9 + $0x4c8] sm:$0xff]
  %v11920 = vld [vmem:[%s9 + $0x4d0] sm:$0xff]
  %v11921 = vld [vmem:[%s9 + $0x4d8] sm:$0xff]
  %v11922 = vld [vmem:[%s9 + $0x4e0] sm:$0xff]
  %v11923 = vld [vmem:[%s9 + $0x4e8] sm:$0xff]
  %v11924 = vld [vmem:[%s9 + $0x4f0] sm:$0xff]
  %v11925 = vld [vmem:[%s9 + $0x4f8] sm:$0xff]
  %v11926 = vld [vmem:[%s9 + $0x500] sm:$0xff]
  %v11927 = vld [vmem:[%s9 + $0x508] sm:$0xff]
  %v11928 = vld [vmem:[%s9 + $0x510] sm:$0xff]
  %v11929 = vld [vmem:[%s9 + $0x518] sm:$0xff]
  %v11930 = vld [vmem:[%s9 + $0x520] sm:$0xff]
  %v11931 = vld [vmem:[%s9 + $0x528] sm:$0xff]
  %v11932 = vld [vmem:[%s9 + $0x530] sm:$0xff]
  %v11933 = vld [vmem:[%s9 + $0x538] sm:$0xff]
  %v11934 = vld [vmem:[%s9 + $0x540] sm:$0xff]
  %v11935 = vld [vmem:[%s9 + $0x548] sm:$0xff]
  %v11936 = vld [vmem:[%s9 + $0x550] sm:$0xff]
  %v11937 = vld [vmem:[%s9 + $0x558] sm:$0xff]
  %v11938 = vld [vmem:[%s9 + $0x560] sm:$0xff]
  %v11939 = vld [vmem:[%s9 + $0x568] sm:$0xff]
  %v11940 = vld [vmem:[%s9 + $0x570] sm:$0xff]
  %v11941 = vld [vmem:[%s9 + $0x578] sm:$0xff]
  %v11942 = vld [vmem:[%s9 + $0x580] sm:$0xff]
  %v11943 = vld [vmem:[%s9 + $0x588] sm:$0xff]
  %v11944 = vld [vmem:[%s9 + $0x590] sm:$0xff]
  %v11945 = vld [vmem:[%s9 + $0x598] sm:$0xff]
  %v11946 = vld [vmem:[%s9 + $0x5a0] sm:$0xff]
  %v11947 = vld [vmem:[%s9 + $0x5a8] sm:$0xff]
  %v11948 = vld [vmem:[%s9 + $0x5b0] sm:$0xff]
  %v11949 = vld [vmem:[%s9 + $0x5b8] sm:$0xff]
  %v11950 = vld [vmem:[%s9 + $0x5c0] sm:$0xff]
  %v11951 = vld [vmem:[%s9 + $0x5c8] sm:$0xff]
  %v11952 = vld [vmem:[%s9 + $0x5d0] sm:$0xff]
  %v11953 = vld [vmem:[%s9 + $0x5d8] sm:$0xff]
  %v11954 = vld [vmem:[%s9 + $0x5e0] sm:$0xff]
  %v11955 = vld [vmem:[%s9 + $0x5e8] sm:$0xff]
  %v11956 = vld [vmem:[%s9 + $0x5f0] sm:$0xff]
  %v11957 = vld [vmem:[%s9 + $0x5f8] sm:$0xff]
  %v11958 = vld [vmem:[%s9 + $0x600] sm:$0xff]
  %v11959 = vld [vmem:[%s9 + $0x608] sm:$0xff]
  %v11960 = vld [vmem:[%s9 + $0x610] sm:$0xff]
  %v11961 = vld [vmem:[%s9 + $0x618] sm:$0xff]
  %v11962 = vld [vmem:[%s9 + $0x620] sm:$0xff]
  %v11963 = vld [vmem:[%s9 + $0x628] sm:$0xff]
  %v11964 = vld [vmem:[%s9 + $0x630] sm:$0xff]
  %v11965 = vld [vmem:[%s9 + $0x638] sm:$0xff]
  %v11966 = vld [vmem:[%s9 + $0x640] sm:$0xff]
  %v11967 = vld [vmem:[%s9 + $0x648] sm:$0xff]
  %v11968 = vld [vmem:[%s9 + $0x650] sm:$0xff]
  %v11969 = vld [vmem:[%s9 + $0x658] sm:$0xff]
  %v11970 = vld [vmem:[%s9 + $0x660] sm:$0xff]
  %v11971 = vld [vmem:[%s9 + $0x668] sm:$0xff]
  %v11972 = vld [vmem:[%s9 + $0x670] sm:$0xff]
  %v11973 = vld [vmem:[%s9 + $0x678] sm:$0xff]
  %v11974 = vld [vmem:[%s9 + $0x680] sm:$0xff]
  %v11975 = vld [vmem:[%s9 + $0x688] sm:$0xff]
  %v11976 = vld [vmem:[%s9 + $0x690] sm:$0xff]
  %v11977 = vld [vmem:[%s9 + $0x698] sm:$0xff]
  %v11978 = vld [vmem:[%s9 + $0x6a0] sm:$0xff]
  %v11979 = vld [vmem:[%s9 + $0x6a8] sm:$0xff]
  %v11980 = vld [vmem:[%s9 + $0x6b0] sm:$0xff]
  %v11981 = vld [vmem:[%s9 + $0x6b8] sm:$0xff]
  %v11982 = vld [vmem:[%s9 + $0x6c0] sm:$0xff]
  %v11983 = vld [vmem:[%s9 + $0x6c8] sm:$0xff]
  %v11984 = vld [vmem:[%s9 + $0x6d0] sm:$0xff]
  %v11985 = vld [vmem:[%s9 + $0x6d8] sm:$0xff]
  %v11986 = vld [vmem:[%s9 + $0x6e0] sm:$0xff]
  %v11987 = vld [vmem:[%s9 + $0x6e8] sm:$0xff]
  %v11988 = vld [vmem:[%s9 + $0x6f0] sm:$0xff]
  %v11989 = vld [vmem:[%s9 + $0x6f8] sm:$0xff]
  %v11990 = vld [vmem:[%s9 + $0x700] sm:$0xff]
  %v11991 = vld [vmem:[%s9 + $0x708] sm:$0xff]
  %v11992 = vld [vmem:[%s9 + $0x710] sm:$0xff]
  %v11993 = vld [vmem:[%s9 + $0x718] sm:$0xff]
  %v11994 = vld [vmem:[%s9 + $0x720] sm:$0xff]
  %v11995 = vld [vmem:[%s9 + $0x728] sm:$0xff]
  %v11996 = vld [vmem:[%s9 + $0x730] sm:$0xff]
  %v11997 = vld [vmem:[%s9 + $0x738] sm:$0xff]
  %v11998 = vld [vmem:[%s9 + $0x740] sm:$0xff]
  %v11999 = vld [vmem:[%s9 + $0x748] sm:$0xff]
  %v12000 = vld [vmem:[%s9 + $0x750] sm:$0xff]
  %v12001 = vld [vmem:[%s9 + $0x758] sm:$0xff]
  %v12002 = vld [vmem:[%s9 + $0x760] sm:$0xff]
  %v12003 = vld [vmem:[%s9 + $0x768] sm:$0xff]
  %v12004 = vld [vmem:[%s9 + $0x770] sm:$0xff]
  %v12005 = vld [vmem:[%s9 + $0x778] sm:$0xff]
  %v12006 = vld [vmem:[%s9 + $0x780] sm:$0xff]
  %v12007 = vld [vmem:[%s9 + $0x788] sm:$0xff]
  %v12008 = vld [vmem:[%s9 + $0x790] sm:$0xff]
  %v12009 = vld [vmem:[%s9 + $0x798] sm:$0xff]
  %v12010 = vld [vmem:[%s9 + $0x7a0] sm:$0xff]
  %v12011 = vld [vmem:[%s9 + $0x7a8] sm:$0xff]
  %v12012 = vld [vmem:[%s9 + $0x7b0] sm:$0xff]
  %v12013 = vld [vmem:[%s9 + $0x7b8] sm:$0xff]
  %v12014 = vld [vmem:[%s9 + $0x7c0] sm:$0xff]
  %v12015 = vld [vmem:[%s9 + $0x7c8] sm:$0xff]
  %v12016 = vld [vmem:[%s9 + $0x7d0] sm:$0xff]
  %v12017 = vld [vmem:[%s9 + $0x7d8] sm:$0xff]
  %v12018 = vld [vmem:[%s9 + $0x7e0] sm:$0xff]
  %v12019 = vld [vmem:[%s9 + $0x7e8] sm:$0xff]
  %v12020 = vld [vmem:[%s9 + $0x7f0] sm:$0xff]
  %v12021 = vld [vmem:[%s9 + $0x7f8] sm:$0xff]
  %v12022 = vld [vmem:[%s9 + $0x800] sm:$0xff]
  %v12023 = vld [vmem:[%s9 + $0x808] sm:$0xff]
  %v12024 = vld [vmem:[%s9 + $0x810] sm:$0xff]
  %v12025 = vld [vmem:[%s9 + $0x818] sm:$0xff]
  %v12026 = vld [vmem:[%s9 + $0x820] sm:$0xff]
  %v12027 = vld [vmem:[%s9 + $0x828] sm:$0xff]
  %v12028 = vld [vmem:[%s9 + $0x830] sm:$0xff]
  %v12029 = vld [vmem:[%s9 + $0x838] sm:$0xff]
  %v12030 = vld [vmem:[%s9 + $0x840] sm:$0xff]
  %v12031 = vld [vmem:[%s9 + $0x848] sm:$0xff]
  %v12032 = vld [vmem:[%s9 + $0x850] sm:$0xff]
  %v12033 = vld [vmem:[%s9 + $0x858] sm:$0xff]
  %v12034 = vld [vmem:[%s9 + $0x860] sm:$0xff]
  %v12035 = vld [vmem:[%s9 + $0x868] sm:$0xff]
  %v12036 = vld [vmem:[%s9 + $0x870] sm:$0xff]
  %v12037 = vld [vmem:[%s9 + $0x878] sm:$0xff]
  %v12038 = vld [vmem:[%s9 + $0x880] sm:$0xff]
  %v12039 = vld [vmem:[%s9 + $0x888] sm:$0xff]
  %v12040 = vld [vmem:[%s9 + $0x890] sm:$0xff]
  %v12041 = vld [vmem:[%s9 + $0x898] sm:$0xff]
  %v12042 = vld [vmem:[%s9 + $0x8a0] sm:$0xff]
  %v12043 = vld [vmem:[%s9 + $0x8a8] sm:$0xff]
  %v12044 = vld [vmem:[%s9 + $0x8b0] sm:$0xff]
  %v12045 = vld [vmem:[%s9 + $0x8b8] sm:$0xff]
  %v12046 = vld [vmem:[%s9 + $0x8c0] sm:$0xff]
  %v12047 = vld [vmem:[%s9 + $0x8c8] sm:$0xff]
  %v12048 = vld [vmem:[%s9 + $0x8d0] sm:$0xff]
  %v12049 = vld [vmem:[%s9 + $0x8d8] sm:$0xff]
  %v12050 = vld [vmem:[%s9 + $0x8e0] sm:$0xff]
  %v12051 = vld [vmem:[%s9 + $0x8e8] sm:$0xff]
  %v12052 = vld [vmem:[%s9 + $0x8f0] sm:$0xff]
  %v12053 = vld [vmem:[%s9 + $0x8f8] sm:$0xff]
  %v12054 = vld [vmem:[%s10] sm:$0x3]
  %v12056 = vlaneseq
  %v12057 = vshrl.u32 %v12056, 7
  %v12058 = vsub.s32 0, %v12057
  %v12059 = vrot.slane %v12054, %v12058
  %v12060 = vlaneseq
  %v12061 = vshrl.u32 %v12060, 7
  %v12062 = vsub.s32 1, %v12061
  %v12063 = vrot.slane %v12054, %v12062
  %12066 = vmatprep.subr.mxu0 %v11767
  %12067 = vmatpush1.msra.mxu0 %v11766
  %12068 = vmatprep.subr.mxu0 %v11769
  %12069 = vmatpush1.msra.mxu0 %v11768
  %12070 = vmatprep.subr.mxu0 %v11771
  %12071 = vmatpush1.msra.mxu0 %v11770
  %12072 = vmatprep.subr.mxu0 %v11773
  %12073 = vmatpush1.msra.mxu0 %v11772
  %12074 = vmatprep.subr.mxu0 %v11775
  %12075 = vmatpush1.msra.mxu0 %v11774
  %12076 = vmatprep.subr.mxu0 %v11777
  %12077 = vmatpush1.msra.mxu0 %v11776
  %12078 = vmatprep.subr.mxu0 %v11779
  %12079 = vmatpush1.msra.mxu0 %v11778
  %12080 = vmatprep.subr.mxu0 %v11781
  %12081 = vmatpush1.msra.mxu0 %v11780
  %12082 = vmatprep.subr.mxu0 %v11783
  %12083 = vmatpush1.msra.mxu0 %v11782
  %12084 = vmatprep.subr.mxu0 %v11785
  %12085 = vmatpush1.msra.mxu0 %v11784
  %12086 = vmatprep.subr.mxu0 %v11787
  %12087 = vmatpush1.msra.mxu0 %v11786
  %12088 = vmatprep.subr.mxu0 %v11789
  %12089 = vmatpush1.msra.mxu0 %v11788
  %12090 = vmatprep.subr.mxu0 %v11791
  %12091 = vmatpush1.msra.mxu0 %v11790
  %12092 = vmatprep.subr.mxu0 %v11793
  %12093 = vmatpush1.msra.mxu0 %v11792
  %12094 = vmatprep.subr.mxu0 %v11795
  %12095 = vmatpush1.msra.mxu0 %v11794
  %12096 = vmatprep.subr.mxu0 %v11797
  %12097 = vmatpush1.msra.mxu0 %v11796
  %12098 = vmatprep.subr.mxu0 %v11799
  %12099 = vmatpush1.msra.mxu0 %v11798
  %12100 = vmatprep.subr.mxu0 %v11801
  %12101 = vmatpush1.msra.mxu0 %v11800
  %12102 = vmatprep.subr.mxu0 %v11803
  %12103 = vmatpush1.msra.mxu0 %v11802
  %12104 = vmatprep.subr.mxu0 %v11805
  %12105 = vmatpush1.msra.mxu0 %v11804
  %12106 = vmatprep.subr.mxu0 %v11807
  %12107 = vmatpush1.msra.mxu0 %v11806
  %12108 = vmatprep.subr.mxu0 %v11809
  %12109 = vmatpush1.msra.mxu0 %v11808
  %12110 = vmatprep.subr.mxu0 %v11811
  %12111 = vmatpush1.msra.mxu0 %v11810
  %12112 = vmatprep.subr.mxu0 %v11813
  %12113 = vmatpush1.msra.mxu0 %v11812
  %12114 = vmatprep.subr.mxu0 %v11815
  %12115 = vmatpush1.msra.mxu0 %v11814
  %12116 = vmatprep.subr.mxu0 %v11817
  %12117 = vmatpush1.msra.mxu0 %v11816
  %12118 = vmatprep.subr.mxu0 %v11819
  %12119 = vmatpush1.msra.mxu0 %v11818
  %12120 = vmatprep.subr.mxu0 %v11821
  %12121 = vmatpush1.msra.mxu0 %v11820
  %12122 = vmatprep.subr.mxu0 %v11823
  %12123 = vmatpush1.msra.mxu0 %v11822
  %12124 = vmatprep.subr.mxu0 %v11825
  %12125 = vmatpush1.msra.mxu0 %v11824
  %12126 = vmatprep.subr.mxu0 %v11827
  %12127 = vmatpush1.msra.mxu0 %v11826
  %12128 = vmatprep.subr.mxu0 %v11829
  %12129 = vmatpush1.msra.mxu0 %v11828
  %12130 = vmatprep.mubr.f32.mxu0 %v11739
  %12131 = vmatmul.mubr.f32.gmra.mrb[0].mxu0 %v11735
  %v12132 = vpop.f32.mrb[0].mxu0
  %v12133 = vadd.f32 %v12059, %v12132
  %v12134 = vpop.f32.mrb[0].mxu0
  %v12135 = vadd.f32 %v12063, %v12134
  %12136 = vdwg.mxu0
  %12137 = vmatprep.subr.mxu0 %v11831
  %12138 = vmatpush1.msra.mxu0 %v11830
  %12139 = vmatprep.subr.mxu0 %v11833
  %12140 = vmatpush1.msra.mxu0 %v11832
  %12141 = vmatprep.subr.mxu0 %v11835
  %12142 = vmatpush1.msra.mxu0 %v11834
  %12143 = vmatprep.subr.mxu0 %v11837
  %12144 = vmatpush1.msra.mxu0 %v11836
  %12145 = vmatprep.subr.mxu0 %v11839
  %12146 = vmatpush1.msra.mxu0 %v11838
  %12147 = vmatprep.subr.mxu0 %v11841
  %12148 = vmatpush1.msra.mxu0 %v11840
  %12149 = vmatprep.subr.mxu0 %v11843
  %12150 = vmatpush1.msra.mxu0 %v11842
  %12151 = vmatprep.subr.mxu0 %v11845
  %12152 = vmatpush1.msra.mxu0 %v11844
  %12153 = vmatprep.subr.mxu0 %v11847
  %12154 = vmatpush1.msra.mxu0 %v11846
  %12155 = vmatprep.subr.mxu0 %v11849
  %12156 = vmatpush1.msra.mxu0 %v11848
  %12157 = vmatprep.subr.mxu0 %v11851
  %12158 = vmatpush1.msra.mxu0 %v11850
  %12159 = vmatprep.subr.mxu0 %v11853
  %12160 = vmatpush1.msra.mxu0 %v11852
  %12161 = vmatprep.subr.mxu0 %v11855
  %12162 = vmatpush1.msra.mxu0 %v11854
  %12163 = vmatprep.subr.mxu0 %v11857
  %12164 = vmatpush1.msra.mxu0 %v11856
  %12165 = vmatprep.subr.mxu0 %v11859
  %12166 = vmatpush1.msra.mxu0 %v11858
  %12167 = vmatprep.subr.mxu0 %v11861
  %12168 = vmatpush1.msra.mxu0 %v11860
  %12169 = vmatprep.subr.mxu0 %v11863
  %12170 = vmatpush1.msra.mxu0 %v11862
  %12171 = vmatprep.subr.mxu0 %v11865
  %12172 = vmatpush1.msra.mxu0 %v11864
  %12173 = vmatprep.subr.mxu0 %v11867
  %12174 = vmatpush1.msra.mxu0 %v11866
  %12175 = vmatprep.subr.mxu0 %v11869
  %12176 = vmatpush1.msra.mxu0 %v11868
  %12177 = vmatprep.subr.mxu0 %v11871
  %12178 = vmatpush1.msra.mxu0 %v11870
  %12179 = vmatprep.subr.mxu0 %v11873
  %12180 = vmatpush1.msra.mxu0 %v11872
  %12181 = vmatprep.subr.mxu0 %v11875
  %12182 = vmatpush1.msra.mxu0 %v11874
  %12183 = vmatprep.subr.mxu0 %v11877
  %12184 = vmatpush1.msra.mxu0 %v11876
  %12185 = vmatprep.subr.mxu0 %v11879
  %12186 = vmatpush1.msra.mxu0 %v11878
  %12187 = vmatprep.subr.mxu0 %v11881
  %12188 = vmatpush1.msra.mxu0 %v11880
  %12189 = vmatprep.subr.mxu0 %v11883
  %12190 = vmatpush1.msra.mxu0 %v11882
  %12191 = vmatprep.subr.mxu0 %v11885
  %12192 = vmatpush1.msra.mxu0 %v11884
  %12193 = vmatprep.subr.mxu0 %v11887
  %12194 = vmatpush1.msra.mxu0 %v11886
  %12195 = vmatprep.subr.mxu0 %v11889
  %12196 = vmatpush1.msra.mxu0 %v11888
  %12197 = vmatprep.subr.mxu0 %v11891
  %12198 = vmatpush1.msra.mxu0 %v11890
  %12199 = vmatprep.subr.mxu0 %v11893
  %12200 = vmatpush1.msra.mxu0 %v11892
  %12201 = vmatprep.mubr.f32.mxu0 %v11747
  %12202 = vmatmul.mubr.f32.gmra.mrb[0].mxu0 %v11743
  %v12203 = vpop.f32.mrb[0].mxu0
  %v12204 = vadd.f32 %v12133, %v12203
  %v12205 = vpop.f32.mrb[0].mxu0
  %v12206 = vadd.f32 %v12135, %v12205
  %12207 = vdwg.mxu0
  %12208 = vmatprep.subr.mxu0 %v11895
  %12209 = vmatpush1.msra.mxu0 %v11894
  %12210 = vmatprep.subr.mxu0 %v11897
  %12211 = vmatpush1.msra.mxu0 %v11896
  %12212 = vmatprep.subr.mxu0 %v11899
  %12213 = vmatpush1.msra.mxu0 %v11898
  %12214 = vmatprep.subr.mxu0 %v11901
  %12215 = vmatpush1.msra.mxu0 %v11900
  %12216 = vmatprep.subr.mxu0 %v11903
  %12217 = vmatpush1.msra.mxu0 %v11902
  %12218 = vmatprep.subr.mxu0 %v11905
  %12219 = vmatpush1.msra.mxu0 %v11904
  %12220 = vmatprep.subr.mxu0 %v11907
  %12221 = vmatpush1.msra.mxu0 %v11906
  %12222 = vmatprep.subr.mxu0 %v11909
  %12223 = vmatpush1.msra.mxu0 %v11908
  %12224 = vmatprep.subr.mxu0 %v11911
  %12225 = vmatpush1.msra.mxu0 %v11910
  %12226 = vmatprep.subr.mxu0 %v11913
  %12227 = vmatpush1.msra.mxu0 %v11912
  %12228 = vmatprep.subr.mxu0 %v11915
  %12229 = vmatpush1.msra.mxu0 %v11914
  %12230 = vmatprep.subr.mxu0 %v11917
  %12231 = vmatpush1.msra.mxu0 %v11916
  %12232 = vmatprep.subr.mxu0 %v11919
  %12233 = vmatpush1.msra.mxu0 %v11918
  %12234 = vmatprep.subr.mxu0 %v11921
  %12235 = vmatpush1.msra.mxu0 %v11920
  %12236 = vmatprep.subr.mxu0 %v11923
  %12237 = vmatpush1.msra.mxu0 %v11922
  %12238 = vmatprep.subr.mxu0 %v11925
  %12239 = vmatpush1.msra.mxu0 %v11924
  %12240 = vmatprep.subr.mxu0 %v11927
  %12241 = vmatpush1.msra.mxu0 %v11926
  %12242 = vmatprep.subr.mxu0 %v11929
  %12243 = vmatpush1.msra.mxu0 %v11928
  %12244 = vmatprep.subr.mxu0 %v11931
  %12245 = vmatpush1.msra.mxu0 %v11930
  %12246 = vmatprep.subr.mxu0 %v11933
  %12247 = vmatpush1.msra.mxu0 %v11932
  %12248 = vmatprep.subr.mxu0 %v11935
  %12249 = vmatpush1.msra.mxu0 %v11934
  %12250 = vmatprep.subr.mxu0 %v11937
  %12251 = vmatpush1.msra.mxu0 %v11936
  %12252 = vmatprep.subr.mxu0 %v11939
  %12253 = vmatpush1.msra.mxu0 %v11938
  %12254 = vmatprep.subr.mxu0 %v11941
  %12255 = vmatpush1.msra.mxu0 %v11940
  %12256 = vmatprep.subr.mxu0 %v11943
  %12257 = vmatpush1.msra.mxu0 %v11942
  %12258 = vmatprep.subr.mxu0 %v11945
  %12259 = vmatpush1.msra.mxu0 %v11944
  %12260 = vmatprep.subr.mxu0 %v11947
  %12261 = vmatpush1.msra.mxu0 %v11946
  %12262 = vmatprep.subr.mxu0 %v11949
  %12263 = vmatpush1.msra.mxu0 %v11948
  %12264 = vmatprep.subr.mxu0 %v11951
  %12265 = vmatpush1.msra.mxu0 %v11950
  %12266 = vmatprep.subr.mxu0 %v11953
  %12267 = vmatpush1.msra.mxu0 %v11952
  %12268 = vmatprep.subr.mxu0 %v11955
  %12269 = vmatpush1.msra.mxu0 %v11954
  %12270 = vmatprep.subr.mxu0 %v11957
  %12271 = vmatpush1.msra.mxu0 %v11956
  %12272 = vmatprep.mubr.f32.mxu0 %v11755
  %12273 = vmatmul.mubr.f32.gmra.mrb[0].mxu0 %v11751
  %v12274 = vpop.f32.mrb[0].mxu0
  %v12275 = vadd.f32 %v12204, %v12274
  %v12276 = vpop.f32.mrb[0].mxu0
  %v12277 = vadd.f32 %v12206, %v12276
  %12278 = vdwg.mxu0
  %12279 = vmatprep.subr.mxu0 %v11959
  %12280 = vmatpush1.msra.mxu0 %v11958
  %12281 = vmatprep.subr.mxu0 %v11961
  %12282 = vmatpush1.msra.mxu0 %v11960
  %12283 = vmatprep.subr.mxu0 %v11963
  %12284 = vmatpush1.msra.mxu0 %v11962
  %12285 = vmatprep.subr.mxu0 %v11965
  %12286 = vmatpush1.msra.mxu0 %v11964
  %12287 = vmatprep.subr.mxu0 %v11967
  %12288 = vmatpush1.msra.mxu0 %v11966
  %12289 = vmatprep.subr.mxu0 %v11969
  %12290 = vmatpush1.msra.mxu0 %v11968
  %12291 = vmatprep.subr.mxu0 %v11971
  %12292 = vmatpush1.msra.mxu0 %v11970
  %12293 = vmatprep.subr.mxu0 %v11973
  %12294 = vmatpush1.msra.mxu0 %v11972
  %12295 = vmatprep.subr.mxu0 %v11975
  %12296 = vmatpush1.msra.mxu0 %v11974
  %12297 = vmatprep.subr.mxu0 %v11977
  %12298 = vmatpush1.msra.mxu0 %v11976
  %12299 = vmatprep.subr.mxu0 %v11979
  %12300 = vmatpush1.msra.mxu0 %v11978
  %12301 = vmatprep.subr.mxu0 %v11981
  %12302 = vmatpush1.msra.mxu0 %v11980
  %12303 = vmatprep.subr.mxu0 %v11983
  %12304 = vmatpush1.msra.mxu0 %v11982
  %12305 = vmatprep.subr.mxu0 %v11985
  %12306 = vmatpush1.msra.mxu0 %v11984
  %12307 = vmatprep.subr.mxu0 %v11987
  %12308 = vmatpush1.msra.mxu0 %v11986
  %12309 = vmatprep.subr.mxu0 %v11989
  %12310 = vmatpush1.msra.mxu0 %v11988
  %12311 = vmatprep.subr.mxu0 %v11991
  %12312 = vmatpush1.msra.mxu0 %v11990
  %12313 = vmatprep.subr.mxu0 %v11993
  %12314 = vmatpush1.msra.mxu0 %v11992
  %12315 = vmatprep.subr.mxu0 %v11995
  %12316 = vmatpush1.msra.mxu0 %v11994
  %12317 = vmatprep.subr.mxu0 %v11997
  %12318 = vmatpush1.msra.mxu0 %v11996
  %12319 = vmatprep.subr.mxu0 %v11999
  %12320 = vmatpush1.msra.mxu0 %v11998
  %12321 = vmatprep.subr.mxu0 %v12001
  %12322 = vmatpush1.msra.mxu0 %v12000
  %12323 = vmatprep.subr.mxu0 %v12003
  %12324 = vmatpush1.msra.mxu0 %v12002
  %12325 = vmatprep.subr.mxu0 %v12005
  %12326 = vmatpush1.msra.mxu0 %v12004
  %12327 = vmatprep.subr.mxu0 %v12007
  %12328 = vmatpush1.msra.mxu0 %v12006
  %12329 = vmatprep.subr.mxu0 %v12009
  %12330 = vmatpush1.msra.mxu0 %v12008
  %12331 = vmatprep.subr.mxu0 %v12011
  %12332 = vmatpush1.msra.mxu0 %v12010
  %12333 = vmatprep.subr.mxu0 %v12013
  %12334 = vmatpush1.msra.mxu0 %v12012
  %12335 = vmatprep.subr.mxu0 %v12015
  %12336 = vmatpush1.msra.mxu0 %v12014
  %12337 = vmatprep.subr.mxu0 %v12017
  %12338 = vmatpush1.msra.mxu0 %v12016
  %12339 = vmatprep.subr.mxu0 %v12019
  %12340 = vmatpush1.msra.mxu0 %v12018
  %12341 = vmatprep.subr.mxu0 %v12021
  %12342 = vmatpush1.msra.mxu0 %v12020
  %12343 = vmatprep.mubr.f32.mxu0 %v11763
  %12344 = vmatmul.mubr.f32.gmra.mrb[0].mxu0 %v11759
  %v12345 = vpop.f32.mrb[0].mxu0
  %v12346 = vadd.f32 %v12275, %v12345
  %v12347 = vpop.f32.mrb[0].mxu0
  %v12348 = vadd.f32 %v12277, %v12347
  %12349 = vdwg.mxu0
  %12350 = vmatprep.subr.mxu0 %v12023
  %12351 = vmatpush1.msra.mxu0 %v12022
  %12352 = vmatprep.subr.mxu0 %v12025
  %12353 = vmatpush1.msra.mxu0 %v12024
  %12354 = vmatprep.subr.mxu0 %v12027
  %12355 = vmatpush1.msra.mxu0 %v12026
  %12356 = vmatprep.subr.mxu0 %v12029
  %12357 = vmatpush1.msra.mxu0 %v12028
  %12358 = vmatprep.subr.mxu0 %v12031
  %12359 = vmatpush1.msra.mxu0 %v12030
  %12360 = vmatprep.subr.mxu0 %v12033
  %12361 = vmatpush1.msra.mxu0 %v12032
  %12362 = vmatprep.subr.mxu0 %v12035
  %12363 = vmatpush1.msra.mxu0 %v12034
  %12364 = vmatprep.subr.mxu0 %v12037
  %12365 = vmatpush1.msra.mxu0 %v12036
  %12366 = vmatprep.subr.mxu0 %v12039
  %12367 = vmatpush1.msra.mxu0 %v12038
  %12368 = vmatprep.subr.mxu0 %v12041
  %12369 = vmatpush1.msra.mxu0 %v12040
  %12370 = vmatprep.subr.mxu0 %v12043
  %12371 = vmatpush1.msra.mxu0 %v12042
  %12372 = vmatprep.subr.mxu0 %v12045
  %12373 = vmatpush1.msra.mxu0 %v12044
  %12374 = vmatprep.subr.mxu0 %v12047
  %12375 = vmatpush1.msra.mxu0 %v12046
  %12376 = vmatprep.subr.mxu0 %v12049
  %12377 = vmatpush1.msra.mxu0 %v12048
  %12378 = vmatprep.subr.mxu0 %v12051
  %12379 = vmatpush1.msra.mxu0 %v12050
  %12380 = vmatprep.subr.mxu0 %v12053
  %12381 = vmatpush1.msra.mxu0 %v12052
  %12382 = vmatprep.subr.mxu0 0.0
  %12383 = vmatpush1.msra.mxu0 0.0
  %12384 = vmatprep.subr.mxu0 0.0
  %12385 = vmatpush1.msra.mxu0 0.0
  %12386 = vmatprep.subr.mxu0 0.0
  %12387 = vmatpush1.msra.mxu0 0.0
  %12388 = vmatprep.subr.mxu0 0.0
  %12389 = vmatpush1.msra.mxu0 0.0
  %12390 = vmatprep.subr.mxu0 0.0
  %12391 = vmatpush1.msra.mxu0 0.0
  %12392 = vmatprep.subr.mxu0 0.0
  %12393 = vmatpush1.msra.mxu0 0.0
  %12394 = vmatprep.subr.mxu0 0.0
  %12395 = vmatpush1.msra.mxu0 0.0
  %12396 = vmatprep.subr.mxu0 0.0
  %12397 = vmatpush1.msra.mxu0 0.0
  %12398 = vmatprep.subr.mxu0 0.0
  %12399 = vmatpush1.msra.mxu0 0.0
  %12400 = vmatprep.subr.mxu0 0.0
  %12401 = vmatpush1.msra.mxu0 0.0
  %12402 = vmatprep.subr.mxu0 0.0
  %12403 = vmatpush1.msra.mxu0 0.0
  %12404 = vmatprep.subr.mxu0 0.0
  %12405 = vmatpush1.msra.mxu0 0.0
  %12406 = vmatprep.subr.mxu0 0.0
  %12407 = vmatpush1.msra.mxu0 0.0
  %12408 = vmatprep.subr.mxu0 0.0
  %12409 = vmatpush1.msra.mxu0 0.0
  %12410 = vmatprep.subr.mxu0 0.0
  %12411 = vmatpush1.msra.mxu0 0.0
  %12412 = vmatprep.subr.mxu0 0.0
  %12413 = vmatpush1.msra.mxu0 0.0
  %12414 = vmatprep.mubr.f32.mxu0 0.0
  %12415 = vmatmul.mubr.f32.gmra.mrb[0].mxu0 %v11765
  %v12416 = vpop.f32.mrb[0].mxu0
  %v12417 = vadd.f32 %v12346, %v12416
  %v12418 = vpop.f32.mrb[0].mxu0
  %v12419 = vadd.f32 %v12348, %v12418
  %12420 = vdwg.mxu0
  %v12421 = vmax.f32 %v12417, 0.0
  %v12422 = vmax.f32 %v12419, 0.0
  %v12423 = vld [vmem:[%s11] sm:$0xff]
  %v12424 = vld [vmem:[%s11 + $0x8] sm:$0xff]
  %v12425 = vld [vmem:[%s11 + $0x10] sm:$0xff]
  %v12426 = vld [vmem:[%s11 + $0x18] sm:$0xff]
  %v12427 = vld [vmem:[%s11 + $0x20] sm:$0xff]
  %v12428 = vld [vmem:[%s11 + $0x28] sm:$0xff]
  %v12429 = vld [vmem:[%s11 + $0x30] sm:$0xff]
  %v12430 = vld [vmem:[%s11 + $0x38] sm:$0xff]
  %v12431 = vld [vmem:[%s11 + $0x40] sm:$0xff]
  %v12432 = vld [vmem:[%s11 + $0x48] sm:$0xff]
  %v12433 = vld [vmem:[%s11 + $0x50] sm:$0xff]
  %v12434 = vld [vmem:[%s11 + $0x58] sm:$0xff]
  %v12435 = vld [vmem:[%s11 + $0x60] sm:$0xff]
  %v12436 = vld [vmem:[%s11 + $0x68] sm:$0xff]
  %v12437 = vld [vmem:[%s11 + $0x70] sm:$0xff]
  %v12438 = vld [vmem:[%s11 + $0x78] sm:$0xff]
  %v12439 = vld [vmem:[%s11 + $0x80] sm:$0xff]
  %v12440 = vld [vmem:[%s11 + $0x88] sm:$0xff]
  %v12441 = vld [vmem:[%s11 + $0x90] sm:$0xff]
  %v12442 = vld [vmem:[%s11 + $0x98] sm:$0xff]
  %v12443 = vld [vmem:[%s11 + $0xa0] sm:$0xff]
  %v12444 = vld [vmem:[%s11 + $0xa8] sm:$0xff]
  %v12445 = vld [vmem:[%s11 + $0xb0] sm:$0xff]
  %v12446 = vld [vmem:[%s11 + $0xb8] sm:$0xff]
  %v12447 = vld [vmem:[%s11 + $0xc0] sm:$0xff]
  %v12448 = vld [vmem:[%s11 + $0xc8] sm:$0xff]
  %v12449 = vld [vmem:[%s11 + $0xd0] sm:$0xff]
  %v12450 = vld [vmem:[%s11 + $0xd8] sm:$0xff]
  %v12451 = vld [vmem:[%s11 + $0xe0] sm:$0xff]
  %v12452 = vld [vmem:[%s11 + $0xe8] sm:$0xff]
  %v12453 = vld [vmem:[%s11 + $0xf0] sm:$0xff]
  %v12454 = vld [vmem:[%s11 + $0xf8] sm:$0xff]
  %v12455 = vld [vmem:[#allocation2] sm:$0x1]
  %v12457 = vlaneseq
  %v12458 = vshrl.u32 %v12457, 7
  %v12459 = vsub.s32 0, %v12458
  %v12460 = vrot.slane %v12455, %v12459
  %12462 = vmatprep.subr.mxu0 0.0
  %12463 = vmatpush1.msra.mxu0 %v12423
  %12464 = vmatprep.subr.mxu0 0.0
  %12465 = vmatpush1.msra.mxu0 %v12424
  %12466 = vmatprep.subr.mxu0 0.0
  %12467 = vmatpush1.msra.mxu0 %v12425
  %12468 = vmatprep.subr.mxu0 0.0
  %12469 = vmatpush1.msra.mxu0 %v12426
  %12470 = vmatprep.subr.mxu0 0.0
  %12471 = vmatpush1.msra.mxu0 %v12427
  %12472 = vmatprep.subr.mxu0 0.0
  %12473 = vmatpush1.msra.mxu0 %v12428
  %12474 = vmatprep.subr.mxu0 0.0
  %12475 = vmatpush1.msra.mxu0 %v12429
  %12476 = vmatprep.subr.mxu0 0.0
  %12477 = vmatpush1.msra.mxu0 %v12430
  %12478 = vmatprep.subr.mxu0 0.0
  %12479 = vmatpush1.msra.mxu0 %v12431
  %12480 = vmatprep.subr.mxu0 0.0
  %12481 = vmatpush1.msra.mxu0 %v12432
  %12482 = vmatprep.subr.mxu0 0.0
  %12483 = vmatpush1.msra.mxu0 %v12433
  %12484 = vmatprep.subr.mxu0 0.0
  %12485 = vmatpush1.msra.mxu0 %v12434
  %12486 = vmatprep.subr.mxu0 0.0
  %12487 = vmatpush1.msra.mxu0 %v12435
  %12488 = vmatprep.subr.mxu0 0.0
  %12489 = vmatpush1.msra.mxu0 %v12436
  %12490 = vmatprep.subr.mxu0 0.0
  %12491 = vmatpush1.msra.mxu0 %v12437
  %12492 = vmatprep.subr.mxu0 0.0
  %12493 = vmatpush1.msra.mxu0 %v12438
  %12494 = vmatprep.subr.mxu0 0.0
  %12495 = vmatpush1.msra.mxu0 %v12439
  %12496 = vmatprep.subr.mxu0 0.0
  %12497 = vmatpush1.msra.mxu0 %v12440
  %12498 = vmatprep.subr.mxu0 0.0
  %12499 = vmatpush1.msra.mxu0 %v12441
  %12500 = vmatprep.subr.mxu0 0.0
  %12501 = vmatpush1.msra.mxu0 %v12442
  %12502 = vmatprep.subr.mxu0 0.0
  %12503 = vmatpush1.msra.mxu0 %v12443
  %12504 = vmatprep.subr.mxu0 0.0
  %12505 = vmatpush1.msra.mxu0 %v12444
  %12506 = vmatprep.subr.mxu0 0.0
  %12507 = vmatpush1.msra.mxu0 %v12445
  %12508 = vmatprep.subr.mxu0 0.0
  %12509 = vmatpush1.msra.mxu0 %v12446
  %12510 = vmatprep.subr.mxu0 0.0
  %12511 = vmatpush1.msra.mxu0 %v12447
  %12512 = vmatprep.subr.mxu0 0.0
  %12513 = vmatpush1.msra.mxu0 %v12448
  %12514 = vmatprep.subr.mxu0 0.0
  %12515 = vmatpush1.msra.mxu0 %v12449
  %12516 = vmatprep.subr.mxu0 0.0
  %12517 = vmatpush1.msra.mxu0 %v12450
  %12518 = vmatprep.subr.mxu0 0.0
  %12519 = vmatpush1.msra.mxu0 %v12451
  %12520 = vmatprep.subr.mxu0 0.0
  %12521 = vmatpush1.msra.mxu0 %v12452
  %12522 = vmatprep.subr.mxu0 0.0
  %12523 = vmatpush1.msra.mxu0 %v12453
  %12524 = vmatprep.subr.mxu0 0.0
  %12525 = vmatpush1.msra.mxu0 %v12454
  %12526 = vmatprep.mubr.f32.mxu0 %v12422
  %12527 = vmatmul.mubr.f32.gmra.mrb[0].mxu0 %v12421
  %v12528 = vpop.f32.mrb[0].mxu0
  %v12529 = vadd.f32 %v12460, %v12528
  %v12530 = vpop.f32.mrb[0].mxu0
  %12531 = vdwg.mxu0
  %vm12532 = vcmask 1024
  %12533 = vst.msk [vmem:[%s13] sm:$0x3] %vm12532, %v12529
  // Predicated region
  $region54: #{cnn_3prv_forward.1} parent=0 // pred_check
    _
  $region55: #{cnn_3prv_forward.1} parent=0 // pred_check_branch
    %12535 = sbr.rel (0) target = $region57
  $region56: #{cnn_3prv_forward.1} parent=0 // pred_region
    _
  $region57: #{cnn_3prv_forward.1} parent=0 // pred_fallthru
    _
  // Predicated region
  $region58: #{cnn_3prv_forward.1} parent=0 // pred_check
    _
  $region59: #{cnn_3prv_forward.1} parent=0 // pred_check_branch
    %12537 = sbr.rel (0) target = $region61
  $region60: #{cnn_3prv_forward.1} parent=0 // pred_region
    _
  $region61: #{cnn_3prv_forward.1} parent=0 // pred_fallthru
    _

</llo_original>
